<compile_context>
chip_gen: v5e
topology: v5e:2x2
jax: 0.10.0
libtpu: 0.0.40
codegen_flags: <defaults>
</compile_context>

<pallas_src>
import functools

import jax
import jax.numpy as jnp
from jax.experimental import pallas as pl
from jax.experimental.pallas import tpu as pltpu


def _vmem():
    return pl.BlockSpec(memory_space=pltpu.MemorySpace.VMEM)


# ----------------------------------------------------------------------------
# Single-block GEMM + bias kernel (used by both convolutions via im2col).
# Operands are bf16, accumulation is f32 on the MXU, epilogue is f32.
# ----------------------------------------------------------------------------
def _gemm_bias_kernel(a_ref, b_ref, bias_ref, o_ref):
    acc = jnp.dot(a_ref[...], b_ref[...], preferred_element_type=jnp.float32)
    o_ref[...] = acc + bias_ref[...]


def gemm_bias(a_bf16, b_bf16, bias_f32):
    m, _ = a_bf16.shape
    _, n = b_bf16.shape
    return pl.pallas_call(
        _gemm_bias_kernel,
        out_shape=jax.ShapeDtypeStruct((m, n), jnp.float32),
        in_specs=[_vmem(), _vmem(), _vmem()],
        out_specs=_vmem(),
    )(a_bf16, b_bf16, bias_f32)


# ----------------------------------------------------------------------------
# Conv2d via channels-last im2col + Pallas GEMM.
# im2col column order is (kh, kw, cin); weight is reshaped to match.
# ----------------------------------------------------------------------------
def _im2col_nhwc(x, kh, kw, stride, padding):
    n, h, w, c = x.shape
    if padding:
        x = jnp.pad(x, ((0, 0), (padding, padding), (padding, padding), (0, 0)))
    hp, wp = h + 2 * padding, w + 2 * padding
    ho = (hp - kh) // stride + 1
    wo = (wp - kw) // stride + 1
    # Separable patch extraction: KH + KW strided slices (not KH*KW).
    rows = [x[:, r:r + stride * ho:stride, :, :] for r in range(kh)]
    xr = jnp.stack(rows, axis=2)                              # (N, Ho, KH, Wp, C)
    cols = [xr[:, :, :, q:q + stride * wo:stride, :] for q in range(kw)]
    xc = jnp.stack(cols, axis=4)                              # (N, Ho, KH, Wo, KW, C)
    p = jnp.transpose(xc, (0, 1, 3, 2, 4, 5))                 # (N, Ho, Wo, KH, KW, C)
    return p.reshape(n * ho * wo, kh * kw * c), ho, wo


def conv2d_nhwc(x, w, b, *, stride=1, padding=0):
    # x: (N, H, W, Cin); w: (Cout, Cin, KH, KW) [PyTorch layout]; b: (Cout,)
    cout, cin, kh, kw = w.shape
    n = x.shape[0]
    a, ho, wo = _im2col_nhwc(x.astype(jnp.bfloat16), kh, kw, stride, padding)
    bmat = jnp.transpose(w, (2, 3, 1, 0)).reshape(kh * kw * cin, cout)
    out = gemm_bias(a, bmat.astype(jnp.bfloat16),
                    b.astype(jnp.float32).reshape(1, cout))
    return out.reshape(n, ho, wo, cout)                       # channels-last


# ----------------------------------------------------------------------------
# MaxPool2d(kernel=3, stride=2), channels-last.
# The wrapper extracts the four stride-2 parity planes (ee, eo, oe, oo); the
# kernel combines nine contiguous shifted slices with a max tree — no 9x
# duplicated array, no strided in-kernel access.
# ----------------------------------------------------------------------------
def _maxpool_kernel(a_ref, b_ref, c_ref, d_ref, o_ref, *, ho, wo):
    a = a_ref[...]   # x[2i,   2j  ]
    b = b_ref[...]   # x[2i,   2j+1]
    c = c_ref[...]   # x[2i+1, 2j  ]
    d = d_ref[...]   # x[2i+1, 2j+1]
    r = a[:, :ho, :wo, :]
    r = jnp.maximum(r, a[:, :ho, 1:wo + 1, :])
    r = jnp.maximum(r, a[:, 1:ho + 1, :wo, :])
    r = jnp.maximum(r, a[:, 1:ho + 1, 1:wo + 1, :])
    r = jnp.maximum(r, b[:, :ho, :wo, :])
    r = jnp.maximum(r, b[:, 1:ho + 1, :wo, :])
    r = jnp.maximum(r, c[:, :ho, :wo, :])
    r = jnp.maximum(r, c[:, :ho, 1:wo + 1, :])
    r = jnp.maximum(r, d[:, :ho, :wo, :])
    o_ref[...] = r


def maxpool2d_3x3_s2(x):
    n, h, w, c = x.shape
    ho = (h - 3) // 2 + 1
    wo = (w - 3) // 2 + 1
    a = x[:, 0::2, 0::2, :]
    b = x[:, 0::2, 1::2, :]
    cc = x[:, 1::2, 0::2, :]
    d = x[:, 1::2, 1::2, :]
    kern = functools.partial(_maxpool_kernel, ho=ho, wo=wo)
    return pl.pallas_call(
        kern,
        out_shape=jax.ShapeDtypeStruct((n, ho, wo, c), x.dtype),
        in_specs=[_vmem(), _vmem(), _vmem(), _vmem()],
        out_specs=_vmem(),
    )(a, b, cc, d)


# ----------------------------------------------------------------------------
# Fused FC head: relu(fc1) -> relu(fc2) -> fc3 -> softmax over the flattened
# (batch) axis, all weights resident in VMEM, single gridless call.
# ----------------------------------------------------------------------------
def _fc_head_kernel(x_ref, w1_ref, b1_ref, w2_ref, b2_ref, w3_ref, b3_ref, o_ref):
    f32 = jnp.float32
    h = jnp.dot(x_ref[...], w1_ref[...], preferred_element_type=f32) + b1_ref[...]
    h = jnp.maximum(h, 0.0)
    h = jnp.dot(h.astype(jnp.bfloat16), w2_ref[...],
                preferred_element_type=f32) + b2_ref[...]
    h = jnp.maximum(h, 0.0)
    # fc3 has a single output unit: do it as a lane reduce on the VPU.
    z = jnp.sum(h * w3_ref[...].astype(f32), axis=1, keepdims=True) + b3_ref[...]
    # softmax over the flattened output, i.e. across the batch (dim=0).
    m = jnp.max(z, axis=0, keepdims=True)
    e = jnp.exp(z - m)
    o_ref[...] = e / jnp.sum(e, axis=0, keepdims=True)


def fc_head(x_flat, params):
    n = x_flat.shape[0]
    w1, b1 = params["fc1"]
    w2, b2 = params["fc2"]
    w3, b3 = params["fc3"]
    args = (
        x_flat.astype(jnp.bfloat16),
        w1.T.astype(jnp.bfloat16), b1.reshape(1, -1).astype(jnp.float32),
        w2.T.astype(jnp.bfloat16), b2.reshape(1, -1).astype(jnp.float32),
        w3.astype(jnp.bfloat16), b3.reshape(1, -1).astype(jnp.float32),
    )
    out = pl.pallas_call(
        _fc_head_kernel,
        out_shape=jax.ShapeDtypeStruct((n, 1), jnp.float32),
        in_specs=[_vmem() for _ in range(7)],
        out_specs=_vmem(),
    )(*args)
    return out.reshape(-1)


# ----------------------------------------------------------------------------
# Deterministic parameter init (shapes from CoughNet_Nano.__init__).
# ----------------------------------------------------------------------------
def init_params(key):
    def conv_p(k, cout, cin, kh, kw):
        k1, k2 = jax.random.split(k)
        fan_in = cin * kh * kw
        w = jax.random.normal(k1, (cout, cin, kh, kw), jnp.float32) / jnp.sqrt(fan_in)
        b = jax.random.normal(k2, (cout,), jnp.float32) * 0.01
        return w, b

    def fc_p(k, out_f, in_f):
        k1, k2 = jax.random.split(k)
        w = jax.random.normal(k1, (out_f, in_f), jnp.float32) / jnp.sqrt(in_f)
        b = jax.random.normal(k2, (out_f,), jnp.float32) * 0.01
        return w, b

    ks = jax.random.split(key, 5)
    return {
        "conv1": conv_p(ks[0], 4, 1, 17, 17),
        "conv2": conv_p(ks[1], 8, 4, 11, 11),
        "fc1": fc_p(ks[2], 512, 480),
        "fc2": fc_p(ks[3], 256, 512),
        # TODO(synk): the spec declares fc3 = nn.Linear(16, 1), which cannot
        # consume fc2's 256-feature output (the PyTorch forward as written
        # would error); fc3 uses in_features=256 so the forward is runnable.
        "fc3": fc_p(ks[4], 1, 256),
    }


# ----------------------------------------------------------------------------
# Full forward pass (mirrors CoughNet_Nano.forward).
# ----------------------------------------------------------------------------
def coughnet_nano_forward(params, x_nchw):
    # Single NCHW -> NHWC transpose at the input; channels-last after that.
    x = jnp.transpose(x_nchw, (0, 2, 3, 1)).astype(jnp.float32)
    w, b = params["conv1"]
    x = conv2d_nhwc(x, w, b, stride=6, padding=0)
    x = maxpool2d_3x3_s2(x)
    w, b = params["conv2"]
    x = conv2d_nhwc(x, w, b, stride=1, padding=4)
    x = maxpool2d_3x3_s2(x)
    # Flatten in PyTorch's (C, H, W) feature order (tiny tensor, cheap).
    n = x.shape[0]
    x = jnp.transpose(x, (0, 3, 1, 2)).reshape(n, -1)     # (N, 480)
    return fc_head(x, params)                              # (N,)


if __name__ == "__main__":
    key = jax.random.PRNGKey(0)
    pk, xk = jax.random.split(key)
    params = init_params(pk)

    # (2, 1, 197, 293): smallest NCHW input for which conv1(k17,s6) -> pool(3,2)
    # -> conv2(k11,p4) -> pool(3,2) yields 8*6*10 = 480 features = fc1.in_features.
    x = jax.random.normal(xk, (2, 1, 197, 293), jnp.float32)

    out = jax.block_until_ready(jax.jit(coughnet_nano_forward)(params, x))
    assert out.shape == (2,)
    assert bool(jnp.isfinite(out).all())
    assert abs(float(out.sum()) - 1.0) < 1e-3
    print("KERNEL_OK")
</pallas_src>

<mosaic_0001>
module attributes {stable_mosaic.version = 11 : i64} {
  func.func @_gemm_bias_kernel(%arg0: memref<2914x289xbf16, #tpu.memory_space<vmem>>, %arg1: memref<289x4xbf16, #tpu.memory_space<vmem>>, %arg2: memref<1x4xf32, #tpu.memory_space<vmem>>, %arg3: memref<2914x4xf32, #tpu.memory_space<vmem>>) attributes {dimension_semantics = [], scalar_prefetch = 0 : i64, scratch_operands = 0 : i64, tpu.core_type = #tpu.core_type<tc>} {
    %c0 = arith.constant 0 : index
    %c0_0 = arith.constant 0 : index
    %0 = vector.load %arg0[%c0, %c0_0] : memref<2914x289xbf16, #tpu.memory_space<vmem>>, vector<2914x289xbf16>
    %c0_1 = arith.constant 0 : index
    %c0_2 = arith.constant 0 : index
    %1 = vector.load %arg1[%c0_1, %c0_2] : memref<289x4xbf16, #tpu.memory_space<vmem>>, vector<289x4xbf16>
    %cst = arith.constant dense<0.000000e+00> : vector<2914x4xf32>
    %2 = tpu.matmul %0, %1, %cst {dimension_numbers = #tpu.dot_dimension_numbers<[1], [0], [0], [1], [0, 0, 1, 1], [], []>} : vector<2914x289xbf16>, vector<289x4xbf16>, vector<2914x4xf32> -> vector<2914x4xf32>
    %c0_3 = arith.constant 0 : index
    %c0_4 = arith.constant 0 : index
    %3 = vector.load %arg2[%c0_3, %c0_4] : memref<1x4xf32, #tpu.memory_space<vmem>>, vector<1x4xf32>
    %4 = vector.broadcast %3 : vector<1x4xf32> to vector<2914x4xf32>
    %5 = arith.addf %2, %4 : vector<2914x4xf32>
    %c0_5 = arith.constant 0 : index
    %c0_6 = arith.constant 0 : index
    %6 = vector.load %arg3[%c0_5, %c0_6] : memref<2914x4xf32, #tpu.memory_space<vmem>>, vector<2914x4xf32>
    tpu.vector_store %arg3[%c0_5, %c0_6], %5 {strides = array<i32>} : memref<2914x4xf32, #tpu.memory_space<vmem>>, vector<2914x4xf32>,
    return
  }
}

module attributes {stable_mosaic.version = 11 : i64} {
  func.func @_maxpool_kernel(%arg0: memref<2x16x24x4xf32, #tpu.memory_space<vmem>>, %arg1: memref<2x16x23x4xf32, #tpu.memory_space<vmem>>, %arg2: memref<2x15x24x4xf32, #tpu.memory_space<vmem>>, %arg3: memref<2x15x23x4xf32, #tpu.memory_space<vmem>>, %arg4: memref<2x15x23x4xf32, #tpu.memory_space<vmem>>) attributes {dimension_semantics = [], scalar_prefetch = 0 : i64, scratch_operands = 0 : i64, tpu.core_type = #tpu.core_type<tc>} {
    %c0 = arith.constant 0 : index
    %c0_0 = arith.constant 0 : index
    %c0_1 = arith.constant 0 : index
    %c0_2 = arith.constant 0 : index
    %0 = vector.load %arg0[%c0, %c0_0, %c0_1, %c0_2] : memref<2x16x24x4xf32, #tpu.memory_space<vmem>>, vector<2x16x24x4xf32>
    %c0_3 = arith.constant 0 : index
    %c0_4 = arith.constant 0 : index
    %c0_5 = arith.constant 0 : index
    %c0_6 = arith.constant 0 : index
    %1 = vector.load %arg1[%c0_3, %c0_4, %c0_5, %c0_6] : memref<2x16x23x4xf32, #tpu.memory_space<vmem>>, vector<2x16x23x4xf32>
    %c0_7 = arith.constant 0 : index
    %c0_8 = arith.constant 0 : index
    %c0_9 = arith.constant 0 : index
    %c0_10 = arith.constant 0 : index
    %2 = vector.load %arg2[%c0_7, %c0_8, %c0_9, %c0_10] : memref<2x15x24x4xf32, #tpu.memory_space<vmem>>, vector<2x15x24x4xf32>
    %c0_11 = arith.constant 0 : index
    %c0_12 = arith.constant 0 : index
    %c0_13 = arith.constant 0 : index
    %c0_14 = arith.constant 0 : index
    %3 = vector.load %arg3[%c0_11, %c0_12, %c0_13, %c0_14] : memref<2x15x23x4xf32, #tpu.memory_space<vmem>>, vector<2x15x23x4xf32>
    %4 = vector.extract_strided_slice %0 {offsets = [0, 0, 0, 0], sizes = [2, 15, 23, 4], strides = [1, 1, 1, 1]} : vector<2x16x24x4xf32> to vector<2x15x23x4xf32>
    %5 = vector.extract_strided_slice %0 {offsets = [0, 0, 1, 0], sizes = [2, 15, 23, 4], strides = [1, 1, 1, 1]} : vector<2x16x24x4xf32> to vector<2x15x23x4xf32>
    %6 = arith.maximumf %4, %5 : vector<2x15x23x4xf32>
    %7 = vector.extract_strided_slice %0 {offsets = [0, 1, 0, 0], sizes = [2, 15, 23, 4], strides = [1, 1, 1, 1]} : vector<2x16x24x4xf32> to vector<2x15x23x4xf32>
    %8 = arith.maximumf %6, %7 : vector<2x15x23x4xf32>
    %9 = vector.extract_strided_slice %0 {offsets = [0, 1, 1, 0], sizes = [2, 15, 23, 4], strides = [1, 1, 1, 1]} : vector<2x16x24x4xf32> to vector<2x15x23x4xf32>
    %10 = arith.maximumf %8, %9 : vector<2x15x23x4xf32>
    %11 = vector.extract_strided_slice %1 {offsets = [0, 0, 0, 0], sizes = [2, 15, 23, 4], strides = [1, 1, 1, 1]} : vector<2x16x23x4xf32> to vector<2x15x23x4xf32>
    %12 = arith.maximumf %10, %11 : vector<2x15x23x4xf32>
    %13 = vector.extract_strided_slice %1 {offsets = [0, 1, 0, 0], sizes = [2, 15, 23, 4], strides = [1, 1, 1, 1]} : vector<2x16x23x4xf32> to vector<2x15x23x4xf32>
    %14 = arith.maximumf %12, %13 : vector<2x15x23x4xf32>
    %15 = vector.extract_strided_slice %2 {offsets = [0, 0, 0, 0], sizes = [2, 15, 23, 4], strides = [1, 1, 1, 1]} : vector<2x15x24x4xf32> to vector<2x15x23x4xf32>
    %16 = arith.maximumf %14, %15 : vector<2x15x23x4xf32>
    %17 = vector.extract_strided_slice %2 {offsets = [0, 0, 1, 0], sizes = [2, 15, 23, 4], strides = [1, 1, 1, 1]} : vector<2x15x24x4xf32> to vector<2x15x23x4xf32>
    %18 = arith.maximumf %16, %17 : vector<2x15x23x4xf32>
    %19 = arith.maximumf %18, %3 : vector<2x15x23x4xf32>
    %c0_15 = arith.constant 0 : index
    %c0_16 = arith.constant 0 : index
    %c0_17 = arith.constant 0 : index
    %c0_18 = arith.constant 0 : index
    %20 = vector.load %arg4[%c0_15, %c0_16, %c0_17, %c0_18] : memref<2x15x23x4xf32, #tpu.memory_space<vmem>>, vector<2x15x23x4xf32>
    tpu.vector_store %arg4[%c0_15, %c0_16, %c0_17, %c0_18], %19 {strides = array<i32>} : memref<2x15x23x4xf32, #tpu.memory_space<vmem>>, vector<2x15x23x4xf32>,
    return
  }
}

module attributes {stable_mosaic.version = 11 : i64} {
  func.func @_gemm_bias_kernel(%arg0: memref<546x484xbf16, #tpu.memory_space<vmem>>, %arg1: memref<484x8xbf16, #tpu.memory_space<vmem>>, %arg2: memref<1x8xf32, #tpu.memory_space<vmem>>, %arg3: memref<546x8xf32, #tpu.memory_space<vmem>>) attributes {dimension_semantics = [], scalar_prefetch = 0 : i64, scratch_operands = 0 : i64, tpu.core_type = #tpu.core_type<tc>} {
    %c0 = arith.constant 0 : index
    %c0_0 = arith.constant 0 : index
    %0 = vector.load %arg0[%c0, %c0_0] : memref<546x484xbf16, #tpu.memory_space<vmem>>, vector<546x484xbf16>
    %c0_1 = arith.constant 0 : index
    %c0_2 = arith.constant 0 : index
    %1 = vector.load %arg1[%c0_1, %c0_2] : memref<484x8xbf16, #tpu.memory_space<vmem>>, vector<484x8xbf16>
    %cst = arith.constant dense<0.000000e+00> : vector<546x8xf32>
    %2 = tpu.matmul %0, %1, %cst {dimension_numbers = #tpu.dot_dimension_numbers<[1], [0], [0], [1], [0, 0, 1, 1], [], []>} : vector<546x484xbf16>, vector<484x8xbf16>, vector<546x8xf32> -> vector<546x8xf32>
    %c0_3 = arith.constant 0 : index
    %c0_4 = arith.constant 0 : index
    %3 = vector.load %arg2[%c0_3, %c0_4] : memref<1x8xf32, #tpu.memory_space<vmem>>, vector<1x8xf32>
    %4 = vector.broadcast %3 : vector<1x8xf32> to vector<546x8xf32>
    %5 = arith.addf %2, %4 : vector<546x8xf32>
    %c0_5 = arith.constant 0 : index
    %c0_6 = arith.constant 0 : index
    %6 = vector.load %arg3[%c0_5, %c0_6] : memref<546x8xf32, #tpu.memory_space<vmem>>, vector<546x8xf32>
    tpu.vector_store %arg3[%c0_5, %c0_6], %5 {strides = array<i32>} : memref<546x8xf32, #tpu.memory_space<vmem>>, vector<546x8xf32>,
    return
  }
}

module attributes {stable_mosaic.version = 11 : i64} {
  func.func @_maxpool_kernel(%arg0: memref<2x7x11x8xf32, #tpu.memory_space<vmem>>, %arg1: memref<2x7x10x8xf32, #tpu.memory_space<vmem>>, %arg2: memref<2x6x11x8xf32, #tpu.memory_space<vmem>>, %arg3: memref<2x6x10x8xf32, #tpu.memory_space<vmem>>, %arg4: memref<2x6x10x8xf32, #tpu.memory_space<vmem>>) attributes {dimension_semantics = [], scalar_prefetch = 0 : i64, scratch_operands = 0 : i64, tpu.core_type = #tpu.core_type<tc>} {
    %c0 = arith.constant 0 : index
    %c0_0 = arith.constant 0 : index
    %c0_1 = arith.constant 0 : index
    %c0_2 = arith.constant 0 : index
    %0 = vector.load %arg0[%c0, %c0_0, %c0_1, %c0_2] : memref<2x7x11x8xf32, #tpu.memory_space<vmem>>, vector<2x7x11x8xf32>
    %c0_3 = arith.constant 0 : index
    %c0_4 = arith.constant 0 : index
    %c0_5 = arith.constant 0 : index
    %c0_6 = arith.constant 0 : index
    %1 = vector.load %arg1[%c0_3, %c0_4, %c0_5, %c0_6] : memref<2x7x10x8xf32, #tpu.memory_space<vmem>>, vector<2x7x10x8xf32>
    %c0_7 = arith.constant 0 : index
    %c0_8 = arith.constant 0 : index
    %c0_9 = arith.constant 0 : index
    %c0_10 = arith.constant 0 : index
    %2 = vector.load %arg2[%c0_7, %c0_8, %c0_9, %c0_10] : memref<2x6x11x8xf32, #tpu.memory_space<vmem>>, vector<2x6x11x8xf32>
    %c0_11 = arith.constant 0 : index
    %c0_12 = arith.constant 0 : index
    %c0_13 = arith.constant 0 : index
    %c0_14 = arith.constant 0 : index
    %3 = vector.load %arg3[%c0_11, %c0_12, %c0_13, %c0_14] : memref<2x6x10x8xf32, #tpu.memory_space<vmem>>, vector<2x6x10x8xf32>
    %4 = vector.extract_strided_slice %0 {offsets = [0, 0, 0, 0], sizes = [2, 6, 10, 8], strides = [1, 1, 1, 1]} : vector<2x7x11x8xf32> to vector<2x6x10x8xf32>
    %5 = vector.extract_strided_slice %0 {offsets = [0, 0, 1, 0], sizes = [2, 6, 10, 8], strides = [1, 1, 1, 1]} : vector<2x7x11x8xf32> to vector<2x6x10x8xf32>
    %6 = arith.maximumf %4, %5 : vector<2x6x10x8xf32>
    %7 = vector.extract_strided_slice %0 {offsets = [0, 1, 0, 0], sizes = [2, 6, 10, 8], strides = [1, 1, 1, 1]} : vector<2x7x11x8xf32> to vector<2x6x10x8xf32>
    %8 = arith.maximumf %6, %7 : vector<2x6x10x8xf32>
    %9 = vector.extract_strided_slice %0 {offsets = [0, 1, 1, 0], sizes = [2, 6, 10, 8], strides = [1, 1, 1, 1]} : vector<2x7x11x8xf32> to vector<2x6x10x8xf32>
    %10 = arith.maximumf %8, %9 : vector<2x6x10x8xf32>
    %11 = vector.extract_strided_slice %1 {offsets = [0, 0, 0, 0], sizes = [2, 6, 10, 8], strides = [1, 1, 1, 1]} : vector<2x7x10x8xf32> to vector<2x6x10x8xf32>
    %12 = arith.maximumf %10, %11 : vector<2x6x10x8xf32>
    %13 = vector.extract_strided_slice %1 {offsets = [0, 1, 0, 0], sizes = [2, 6, 10, 8], strides = [1, 1, 1, 1]} : vector<2x7x10x8xf32> to vector<2x6x10x8xf32>
    %14 = arith.maximumf %12, %13 : vector<2x6x10x8xf32>
    %15 = vector.extract_strided_slice %2 {offsets = [0, 0, 0, 0], sizes = [2, 6, 10, 8], strides = [1, 1, 1, 1]} : vector<2x6x11x8xf32> to vector<2x6x10x8xf32>
    %16 = arith.maximumf %14, %15 : vector<2x6x10x8xf32>
    %17 = vector.extract_strided_slice %2 {offsets = [0, 0, 1, 0], sizes = [2, 6, 10, 8], strides = [1, 1, 1, 1]} : vector<2x6x11x8xf32> to vector<2x6x10x8xf32>
    %18 = arith.maximumf %16, %17 : vector<2x6x10x8xf32>
    %19 = arith.maximumf %18, %3 : vector<2x6x10x8xf32>
    %c0_15 = arith.constant 0 : index
    %c0_16 = arith.constant 0 : index
    %c0_17 = arith.constant 0 : index
    %c0_18 = arith.constant 0 : index
    %20 = vector.load %arg4[%c0_15, %c0_16, %c0_17, %c0_18] : memref<2x6x10x8xf32, #tpu.memory_space<vmem>>, vector<2x6x10x8xf32>
    tpu.vector_store %arg4[%c0_15, %c0_16, %c0_17, %c0_18], %19 {strides = array<i32>} : memref<2x6x10x8xf32, #tpu.memory_space<vmem>>, vector<2x6x10x8xf32>,
    return
  }
}

module attributes {stable_mosaic.version = 11 : i64} {
  func.func @_fc_head_kernel(%arg0: memref<2x480xbf16, #tpu.memory_space<vmem>>, %arg1: memref<480x512xbf16, #tpu.memory_space<vmem>>, %arg2: memref<1x512xf32, #tpu.memory_space<vmem>>, %arg3: memref<512x256xbf16, #tpu.memory_space<vmem>>, %arg4: memref<1x256xf32, #tpu.memory_space<vmem>>, %arg5: memref<1x256xbf16, #tpu.memory_space<vmem>>, %arg6: memref<1x1xf32, #tpu.memory_space<vmem>>, %arg7: memref<2x1xf32, #tpu.memory_space<vmem>>) attributes {dimension_semantics = [], scalar_prefetch = 0 : i64, scratch_operands = 0 : i64, tpu.core_type = #tpu.core_type<tc>} {
    %c0 = arith.constant 0 : index
    %c0_0 = arith.constant 0 : index
    %0 = vector.load %arg0[%c0, %c0_0] : memref<2x480xbf16, #tpu.memory_space<vmem>>, vector<2x480xbf16>
    %c0_1 = arith.constant 0 : index
    %c0_2 = arith.constant 0 : index
    %1 = vector.load %arg1[%c0_1, %c0_2] : memref<480x512xbf16, #tpu.memory_space<vmem>>, vector<480x512xbf16>
    %cst = arith.constant dense<0.000000e+00> : vector<2x512xf32>
    %2 = tpu.matmul %0, %1, %cst {dimension_numbers = #tpu.dot_dimension_numbers<[1], [0], [0], [1], [0, 0, 1, 1], [], []>} : vector<2x480xbf16>, vector<480x512xbf16>, vector<2x512xf32> -> vector<2x512xf32>
    %c0_3 = arith.constant 0 : index
    %c0_4 = arith.constant 0 : index
    %3 = vector.load %arg2[%c0_3, %c0_4] : memref<1x512xf32, #tpu.memory_space<vmem>>, vector<1x512xf32>
    %4 = vector.broadcast %3 : vector<1x512xf32> to vector<2x512xf32>
    %5 = arith.addf %2, %4 : vector<2x512xf32>
    %cst_5 = arith.constant 0.000000e+00 : f32
    %6 = vector.broadcast %cst_5 : f32 to vector<2x512xf32>
    %7 = arith.maximumf %5, %6 : vector<2x512xf32>
    %8 = arith.truncf %7 : vector<2x512xf32> to vector<2x512xbf16>
    %c0_6 = arith.constant 0 : index
    %c0_7 = arith.constant 0 : index
    %9 = vector.load %arg3[%c0_6, %c0_7] : memref<512x256xbf16, #tpu.memory_space<vmem>>, vector<512x256xbf16>
    %cst_8 = arith.constant dense<0.000000e+00> : vector<2x256xf32>
    %10 = tpu.matmul %8, %9, %cst_8 {dimension_numbers = #tpu.dot_dimension_numbers<[1], [0], [0], [1], [0, 0, 1, 1], [], []>} : vector<2x512xbf16>, vector<512x256xbf16>, vector<2x256xf32> -> vector<2x256xf32>
    %c0_9 = arith.constant 0 : index
    %c0_10 = arith.constant 0 : index
    %11 = vector.load %arg4[%c0_9, %c0_10] : memref<1x256xf32, #tpu.memory_space<vmem>>, vector<1x256xf32>
    %12 = vector.broadcast %11 : vector<1x256xf32> to vector<2x256xf32>
    %13 = arith.addf %10, %12 : vector<2x256xf32>
    %cst_11 = arith.constant 0.000000e+00 : f32
    %14 = vector.broadcast %cst_11 : f32 to vector<2x256xf32>
    %15 = arith.maximumf %13, %14 : vector<2x256xf32>
    %c0_12 = arith.constant 0 : index
    %c0_13 = arith.constant 0 : index
    %16 = vector.load %arg5[%c0_12, %c0_13] : memref<1x256xbf16, #tpu.memory_space<vmem>>, vector<1x256xbf16>
    %17 = arith.extf %16 : vector<1x256xbf16> to vector<1x256xf32>
    %18 = vector.broadcast %17 : vector<1x256xf32> to vector<2x256xf32>
    %19 = arith.mulf %15, %18 : vector<2x256xf32>
    %cst_14 = arith.constant dense<0.000000e+00> : vector<2xf32>
    %20 = vector.multi_reduction <add>, %19, %cst_14 [1] : vector<2x256xf32> to vector<2xf32>
    %21 = vector.shape_cast %20 : vector<2xf32> to vector<2x1xf32>
    %c0_15 = arith.constant 0 : index
    %c0_16 = arith.constant 0 : index
    %22 = vector.load %arg6[%c0_15, %c0_16] : memref<1x1xf32, #tpu.memory_space<vmem>>, vector<1x1xf32>
    %23 = vector.broadcast %22 : vector<1x1xf32> to vector<2x1xf32>
    %24 = arith.addf %21, %23 : vector<2x1xf32>
    %cst_17 = arith.constant dense<0xFF800000> : vector<1xf32>
    %25 = vector.multi_reduction <maximumf>, %24, %cst_17 [0] : vector<2x1xf32> to vector<1xf32>
    %26 = vector.shape_cast %25 : vector<1xf32> to vector<1x1xf32>
    %27 = vector.broadcast %26 : vector<1x1xf32> to vector<2x1xf32>
    %28 = arith.subf %24, %27 : vector<2x1xf32>
    %29 = math.exp %28 : vector<2x1xf32>
    %cst_18 = arith.constant dense<0.000000e+00> : vector<1xf32>
    %30 = vector.multi_reduction <add>, %29, %cst_18 [0] : vector<2x1xf32> to vector<1xf32>
    %31 = vector.shape_cast %30 : vector<1xf32> to vector<1x1xf32>
    %32 = vector.broadcast %31 : vector<1x1xf32> to vector<2x1xf32>
    %33 = arith.divf %29, %32 : vector<2x1xf32>
    %c0_19 = arith.constant 0 : index
    %c0_20 = arith.constant 0 : index
    %34 = vector.load %arg7[%c0_19, %c0_20] : memref<2x1xf32, #tpu.memory_space<vmem>>, vector<2x1xf32>
    tpu.vector_store %arg7[%c0_19, %c0_20], %33 {strides = array<i32>} : memref<2x1xf32, #tpu.memory_space<vmem>>, vector<2x1xf32>,
    return
  }
}

</mosaic_0001>

<llo_original>
// kernel: coughnet_nano_forward.6
$region0: #{coughnet_nano_forward.6}
  #allocation0 [shape = 'u32[]', space=smem, size = 0x4, offset = 0x4, fixed_abs, tag = 'smem constant byte address 0x4 - core index']
  #allocation1 [shape = 'u32[72,128]{1,0:T(1,128)}', space=vmem, size = 0x9000, scoped, tag = 'internal scratch']
  %s0 = inlined_call_operand.vmem [shape: f32[2,16,24,4], index: 0, kind: input, shape index: {}]
  %s1 = inlined_call_operand.vmem [shape: f32[2,16,23,4], index: 1, kind: input, shape index: {}]
  %s2 = inlined_call_operand.vmem [shape: f32[2,15,24,4], index: 2, kind: input, shape index: {}]
  %s3 = inlined_call_operand.vmem [shape: f32[2,15,23,4], index: 3, kind: input, shape index: {}]
  %s4 = inlined_call_operand.vmem [shape: f32[2,15,23,4], index: 4, kind: output, shape index: {}]
  %s5 = sld [smem:[#allocation0]]
  $region26: #{coughnet_nano_forward.6} parent=0
    _
  %s7 = ssub.s32 1, %s5
  %s8 = scalar_select 0, %s7, %s5
  // Predicated region
  $region2: #{coughnet_nano_forward.6} parent=0 // pred_check
    _
  $region3: #{coughnet_nano_forward.6} parent=0 // pred_check_branch
    %10 = sbr.rel (0) target = $region5
  $region4: #{coughnet_nano_forward.6} parent=0 // pred_region
    _
  $region5: #{coughnet_nano_forward.6} parent=0 // pred_fallthru
    _
  // Predicated region
  $region6: #{coughnet_nano_forward.6} parent=0 // pred_check
    _
  $region7: #{coughnet_nano_forward.6} parent=0 // pred_check_branch
    %12 = sbr.rel (0) target = $region9
  $region8: #{coughnet_nano_forward.6} parent=0 // pred_region
    _
  $region9: #{coughnet_nano_forward.6} parent=0 // pred_fallthru
    _
  // Predicated region
  $region10: #{coughnet_nano_forward.6} parent=0 // pred_check
    _
  $region11: #{coughnet_nano_forward.6} parent=0 // pred_check_branch
    %14 = sbr.rel (0) target = $region13
  $region12: #{coughnet_nano_forward.6} parent=0 // pred_region
    _
  $region13: #{coughnet_nano_forward.6} parent=0 // pred_fallthru
    _
  // Predicated region
  $region14: #{coughnet_nano_forward.6} parent=0 // pred_check
    _
  $region15: #{coughnet_nano_forward.6} parent=0 // pred_check_branch
    %16 = sbr.rel (0) target = $region17
  $region16: #{coughnet_nano_forward.6} parent=0 // pred_region
    _
  $region17: #{coughnet_nano_forward.6} parent=0 // pred_fallthru
    _
  %v17 = vld [vmem:[%s0] sm:$0xff]
  %v18 = vld [vmem:[%s0 + $0x8] sm:$0xff]
  %v19 = vld [vmem:[%s0 + $0x10] sm:$0xff]
  %v20 = vld [vmem:[%s0 + $0x18] sm:$0xff]
  %v21 = vld [vmem:[%s0 + $0x20] sm:$0xff]
  %v22 = vld [vmem:[%s0 + $0x28] sm:$0xff]
  %v23 = vld [vmem:[%s0 + $0x30] sm:$0xff]
  %v24 = vld [vmem:[%s0 + $0x38] sm:$0xff]
  %v25 = vld [vmem:[%s0 + $0x40] sm:$0xff]
  %v26 = vld [vmem:[%s0 + $0x48] sm:$0xff]
  %v27 = vld [vmem:[%s0 + $0x50] sm:$0xff]
  %v28 = vld [vmem:[%s0 + $0x58] sm:$0xff]
  %v29 = vld [vmem:[%s0 + $0x60] sm:$0xff]
  %v30 = vld [vmem:[%s0 + $0x68] sm:$0xff]
  %v31 = vld [vmem:[%s0 + $0x70] sm:$0xff]
  %v32 = vld [vmem:[%s0 + $0x78] sm:$0xff]
  %v33 = vld [vmem:[%s0 + $0x80] sm:$0xff]
  %v34 = vld [vmem:[%s0 + $0x88] sm:$0xff]
  %v35 = vld [vmem:[%s0 + $0x90] sm:$0xff]
  %v36 = vld [vmem:[%s0 + $0x98] sm:$0xff]
  %v37 = vld [vmem:[%s0 + $0xa0] sm:$0xff]
  %v38 = vld [vmem:[%s0 + $0xa8] sm:$0xff]
  %v39 = vld [vmem:[%s0 + $0xb0] sm:$0xff]
  %v40 = vld [vmem:[%s0 + $0xb8] sm:$0xff]
  %v41 = vld [vmem:[%s0 + $0xc0] sm:$0xff]
  %v42 = vld [vmem:[%s0 + $0xc8] sm:$0xff]
  %v43 = vld [vmem:[%s0 + $0xd0] sm:$0xff]
  %v44 = vld [vmem:[%s0 + $0xd8] sm:$0xff]
  %v45 = vld [vmem:[%s0 + $0xe0] sm:$0xff]
  %v46 = vld [vmem:[%s0 + $0xe8] sm:$0xff]
  %v47 = vld [vmem:[%s0 + $0xf0] sm:$0xff]
  %v48 = vld [vmem:[%s0 + $0xf8] sm:$0xff]
  %v49 = vld [vmem:[%s0 + $0x100] sm:$0xff]
  %v50 = vld [vmem:[%s0 + $0x108] sm:$0xff]
  %v51 = vld [vmem:[%s0 + $0x110] sm:$0xff]
  %v52 = vld [vmem:[%s0 + $0x118] sm:$0xff]
  %v53 = vld [vmem:[%s0 + $0x120] sm:$0xff]
  %v54 = vld [vmem:[%s0 + $0x128] sm:$0xff]
  %v55 = vld [vmem:[%s0 + $0x130] sm:$0xff]
  %v56 = vld [vmem:[%s0 + $0x138] sm:$0xff]
  %v57 = vld [vmem:[%s0 + $0x140] sm:$0xff]
  %v58 = vld [vmem:[%s0 + $0x148] sm:$0xff]
  %v59 = vld [vmem:[%s0 + $0x150] sm:$0xff]
  %v60 = vld [vmem:[%s0 + $0x158] sm:$0xff]
  %v61 = vld [vmem:[%s0 + $0x160] sm:$0xff]
  %v62 = vld [vmem:[%s0 + $0x168] sm:$0xff]
  %v63 = vld [vmem:[%s0 + $0x170] sm:$0xff]
  %v64 = vld [vmem:[%s0 + $0x178] sm:$0xff]
  %v65 = vld [vmem:[%s0 + $0x180] sm:$0xff]
  %v66 = vld [vmem:[%s0 + $0x188] sm:$0xff]
  %v67 = vld [vmem:[%s0 + $0x190] sm:$0xff]
  %v68 = vld [vmem:[%s0 + $0x198] sm:$0xff]
  %v69 = vld [vmem:[%s0 + $0x1a0] sm:$0xff]
  %v70 = vld [vmem:[%s0 + $0x1a8] sm:$0xff]
  %v71 = vld [vmem:[%s0 + $0x1b0] sm:$0xff]
  %v72 = vld [vmem:[%s0 + $0x1b8] sm:$0xff]
  %v73 = vld [vmem:[%s0 + $0x1c0] sm:$0xff]
  %v74 = vld [vmem:[%s0 + $0x1c8] sm:$0xff]
  %v75 = vld [vmem:[%s0 + $0x1d0] sm:$0xff]
  %v76 = vld [vmem:[%s0 + $0x1d8] sm:$0xff]
  %v77 = vld [vmem:[%s0 + $0x1e0] sm:$0xff]
  %v78 = vld [vmem:[%s0 + $0x1e8] sm:$0xff]
  %v79 = vld [vmem:[%s0 + $0x1f0] sm:$0xff]
  %v80 = vld [vmem:[%s0 + $0x1f8] sm:$0xff]
  %v81 = vld [vmem:[%s0 + $0x200] sm:$0xff]
  %v82 = vld [vmem:[%s0 + $0x208] sm:$0xff]
  %v83 = vld [vmem:[%s0 + $0x210] sm:$0xff]
  %v84 = vld [vmem:[%s0 + $0x218] sm:$0xff]
  %v85 = vld [vmem:[%s0 + $0x220] sm:$0xff]
  %v86 = vld [vmem:[%s0 + $0x228] sm:$0xff]
  %v87 = vld [vmem:[%s0 + $0x230] sm:$0xff]
  %v88 = vld [vmem:[%s0 + $0x238] sm:$0xff]
  %v89 = vld [vmem:[%s0 + $0x240] sm:$0xff]
  %v90 = vld [vmem:[%s0 + $0x248] sm:$0xff]
  %v91 = vld [vmem:[%s0 + $0x250] sm:$0xff]
  %v92 = vld [vmem:[%s0 + $0x258] sm:$0xff]
  %v93 = vld [vmem:[%s0 + $0x260] sm:$0xff]
  %v94 = vld [vmem:[%s0 + $0x268] sm:$0xff]
  %v95 = vld [vmem:[%s0 + $0x270] sm:$0xff]
  %v96 = vld [vmem:[%s0 + $0x278] sm:$0xff]
  %v97 = vld [vmem:[%s0 + $0x280] sm:$0xff]
  %v98 = vld [vmem:[%s0 + $0x288] sm:$0xff]
  %v99 = vld [vmem:[%s0 + $0x290] sm:$0xff]
  %v100 = vld [vmem:[%s0 + $0x298] sm:$0xff]
  %v101 = vld [vmem:[%s0 + $0x2a0] sm:$0xff]
  %v102 = vld [vmem:[%s0 + $0x2a8] sm:$0xff]
  %v103 = vld [vmem:[%s0 + $0x2b0] sm:$0xff]
  %v104 = vld [vmem:[%s0 + $0x2b8] sm:$0xff]
  %v105 = vld [vmem:[%s0 + $0x2c0] sm:$0xff]
  %v106 = vld [vmem:[%s0 + $0x2c8] sm:$0xff]
  %v107 = vld [vmem:[%s0 + $0x2d0] sm:$0xff]
  %v108 = vld [vmem:[%s0 + $0x2d8] sm:$0xff]
  %v109 = vld [vmem:[%s0 + $0x2e0] sm:$0xff]
  %v110 = vld [vmem:[%s0 + $0x2e8] sm:$0xff]
  %v111 = vld [vmem:[%s0 + $0x2f0] sm:$0xff]
  %v112 = vld [vmem:[%s0 + $0x2f8] sm:$0xff]
  %v113 = vld [vmem:[%s1] sm:$0xff]
  %v114 = vld [vmem:[%s1 + $0x8] sm:$0xff]
  %v115 = vld [vmem:[%s1 + $0x10] sm:$0x7f]
  %v116 = vld [vmem:[%s1 + $0x18] sm:$0xff]
  %v117 = vld [vmem:[%s1 + $0x20] sm:$0xff]
  %v118 = vld [vmem:[%s1 + $0x28] sm:$0x7f]
  %v119 = vld [vmem:[%s1 + $0x30] sm:$0xff]
  %v120 = vld [vmem:[%s1 + $0x38] sm:$0xff]
  %v121 = vld [vmem:[%s1 + $0x40] sm:$0x7f]
  %v122 = vld [vmem:[%s1 + $0x48] sm:$0xff]
  %v123 = vld [vmem:[%s1 + $0x50] sm:$0xff]
  %v124 = vld [vmem:[%s1 + $0x58] sm:$0x7f]
  %v125 = vld [vmem:[%s1 + $0x60] sm:$0xff]
  %v126 = vld [vmem:[%s1 + $0x68] sm:$0xff]
  %v127 = vld [vmem:[%s1 + $0x70] sm:$0x7f]
  %v128 = vld [vmem:[%s1 + $0x78] sm:$0xff]
  %v129 = vld [vmem:[%s1 + $0x80] sm:$0xff]
  %v130 = vld [vmem:[%s1 + $0x88] sm:$0x7f]
  %v131 = vld [vmem:[%s1 + $0x90] sm:$0xff]
  %v132 = vld [vmem:[%s1 + $0x98] sm:$0xff]
  %v133 = vld [vmem:[%s1 + $0xa0] sm:$0x7f]
  %v134 = vld [vmem:[%s1 + $0xa8] sm:$0xff]
  %v135 = vld [vmem:[%s1 + $0xb0] sm:$0xff]
  %v136 = vld [vmem:[%s1 + $0xb8] sm:$0x7f]
  %v137 = vld [vmem:[%s1 + $0xc0] sm:$0xff]
  %v138 = vld [vmem:[%s1 + $0xc8] sm:$0xff]
  %v139 = vld [vmem:[%s1 + $0xd0] sm:$0x7f]
  %v140 = vld [vmem:[%s1 + $0xd8] sm:$0xff]
  %v141 = vld [vmem:[%s1 + $0xe0] sm:$0xff]
  %v142 = vld [vmem:[%s1 + $0xe8] sm:$0x7f]
  %v143 = vld [vmem:[%s1 + $0xf0] sm:$0xff]
  %v144 = vld [vmem:[%s1 + $0xf8] sm:$0xff]
  %v145 = vld [vmem:[%s1 + $0x100] sm:$0x7f]
  %v146 = vld [vmem:[%s1 + $0x108] sm:$0xff]
  %v147 = vld [vmem:[%s1 + $0x110] sm:$0xff]
  %v148 = vld [vmem:[%s1 + $0x118] sm:$0x7f]
  %v149 = vld [vmem:[%s1 + $0x120] sm:$0xff]
  %v150 = vld [vmem:[%s1 + $0x128] sm:$0xff]
  %v151 = vld [vmem:[%s1 + $0x130] sm:$0x7f]
  %v152 = vld [vmem:[%s1 + $0x138] sm:$0xff]
  %v153 = vld [vmem:[%s1 + $0x140] sm:$0xff]
  %v154 = vld [vmem:[%s1 + $0x148] sm:$0x7f]
  %v155 = vld [vmem:[%s1 + $0x150] sm:$0xff]
  %v156 = vld [vmem:[%s1 + $0x158] sm:$0xff]
  %v157 = vld [vmem:[%s1 + $0x160] sm:$0x7f]
  %v158 = vld [vmem:[%s1 + $0x168] sm:$0xff]
  %v159 = vld [vmem:[%s1 + $0x170] sm:$0xff]
  %v160 = vld [vmem:[%s1 + $0x178] sm:$0x7f]
  %v161 = vld [vmem:[%s1 + $0x180] sm:$0xff]
  %v162 = vld [vmem:[%s1 + $0x188] sm:$0xff]
  %v163 = vld [vmem:[%s1 + $0x190] sm:$0x7f]
  %v164 = vld [vmem:[%s1 + $0x198] sm:$0xff]
  %v165 = vld [vmem:[%s1 + $0x1a0] sm:$0xff]
  %v166 = vld [vmem:[%s1 + $0x1a8] sm:$0x7f]
  %v167 = vld [vmem:[%s1 + $0x1b0] sm:$0xff]
  %v168 = vld [vmem:[%s1 + $0x1b8] sm:$0xff]
  %v169 = vld [vmem:[%s1 + $0x1c0] sm:$0x7f]
  %v170 = vld [vmem:[%s1 + $0x1c8] sm:$0xff]
  %v171 = vld [vmem:[%s1 + $0x1d0] sm:$0xff]
  %v172 = vld [vmem:[%s1 + $0x1d8] sm:$0x7f]
  %v173 = vld [vmem:[%s1 + $0x1e0] sm:$0xff]
  %v174 = vld [vmem:[%s1 + $0x1e8] sm:$0xff]
  %v175 = vld [vmem:[%s1 + $0x1f0] sm:$0x7f]
  %v176 = vld [vmem:[%s1 + $0x1f8] sm:$0xff]
  %v177 = vld [vmem:[%s1 + $0x200] sm:$0xff]
  %v178 = vld [vmem:[%s1 + $0x208] sm:$0x7f]
  %v179 = vld [vmem:[%s1 + $0x210] sm:$0xff]
  %v180 = vld [vmem:[%s1 + $0x218] sm:$0xff]
  %v181 = vld [vmem:[%s1 + $0x220] sm:$0x7f]
  %v182 = vld [vmem:[%s1 + $0x228] sm:$0xff]
  %v183 = vld [vmem:[%s1 + $0x230] sm:$0xff]
  %v184 = vld [vmem:[%s1 + $0x238] sm:$0x7f]
  %v185 = vld [vmem:[%s1 + $0x240] sm:$0xff]
  %v186 = vld [vmem:[%s1 + $0x248] sm:$0xff]
  %v187 = vld [vmem:[%s1 + $0x250] sm:$0x7f]
  %v188 = vld [vmem:[%s1 + $0x258] sm:$0xff]
  %v189 = vld [vmem:[%s1 + $0x260] sm:$0xff]
  %v190 = vld [vmem:[%s1 + $0x268] sm:$0x7f]
  %v191 = vld [vmem:[%s1 + $0x270] sm:$0xff]
  %v192 = vld [vmem:[%s1 + $0x278] sm:$0xff]
  %v193 = vld [vmem:[%s1 + $0x280] sm:$0x7f]
  %v194 = vld [vmem:[%s1 + $0x288] sm:$0xff]
  %v195 = vld [vmem:[%s1 + $0x290] sm:$0xff]
  %v196 = vld [vmem:[%s1 + $0x298] sm:$0x7f]
  %v197 = vld [vmem:[%s1 + $0x2a0] sm:$0xff]
  %v198 = vld [vmem:[%s1 + $0x2a8] sm:$0xff]
  %v199 = vld [vmem:[%s1 + $0x2b0] sm:$0x7f]
  %v200 = vld [vmem:[%s1 + $0x2b8] sm:$0xff]
  %v201 = vld [vmem:[%s1 + $0x2c0] sm:$0xff]
  %v202 = vld [vmem:[%s1 + $0x2c8] sm:$0x7f]
  %v203 = vld [vmem:[%s1 + $0x2d0] sm:$0xff]
  %v204 = vld [vmem:[%s1 + $0x2d8] sm:$0xff]
  %v205 = vld [vmem:[%s1 + $0x2e0] sm:$0x7f]
  %v206 = vld [vmem:[%s1 + $0x2e8] sm:$0xff]
  %v207 = vld [vmem:[%s1 + $0x2f0] sm:$0xff]
  %v208 = vld [vmem:[%s1 + $0x2f8] sm:$0x7f]
  %v209 = vld [vmem:[%s2] sm:$0xff]
  %v210 = vld [vmem:[%s2 + $0x8] sm:$0xff]
  %v211 = vld [vmem:[%s2 + $0x10] sm:$0xff]
  %v212 = vld [vmem:[%s2 + $0x18] sm:$0xff]
  %v213 = vld [vmem:[%s2 + $0x20] sm:$0xff]
  %v214 = vld [vmem:[%s2 + $0x28] sm:$0xff]
  %v215 = vld [vmem:[%s2 + $0x30] sm:$0xff]
  %v216 = vld [vmem:[%s2 + $0x38] sm:$0xff]
  %v217 = vld [vmem:[%s2 + $0x40] sm:$0xff]
  %v218 = vld [vmem:[%s2 + $0x48] sm:$0xff]
  %v219 = vld [vmem:[%s2 + $0x50] sm:$0xff]
  %v220 = vld [vmem:[%s2 + $0x58] sm:$0xff]
  %v221 = vld [vmem:[%s2 + $0x60] sm:$0xff]
  %v222 = vld [vmem:[%s2 + $0x68] sm:$0xff]
  %v223 = vld [vmem:[%s2 + $0x70] sm:$0xff]
  %v224 = vld [vmem:[%s2 + $0x78] sm:$0xff]
  %v225 = vld [vmem:[%s2 + $0x80] sm:$0xff]
  %v226 = vld [vmem:[%s2 + $0x88] sm:$0xff]
  %v227 = vld [vmem:[%s2 + $0x90] sm:$0xff]
  %v228 = vld [vmem:[%s2 + $0x98] sm:$0xff]
  %v229 = vld [vmem:[%s2 + $0xa0] sm:$0xff]
  %v230 = vld [vmem:[%s2 + $0xa8] sm:$0xff]
  %v231 = vld [vmem:[%s2 + $0xb0] sm:$0xff]
  %v232 = vld [vmem:[%s2 + $0xb8] sm:$0xff]
  %v233 = vld [vmem:[%s2 + $0xc0] sm:$0xff]
  %v234 = vld [vmem:[%s2 + $0xc8] sm:$0xff]
  %v235 = vld [vmem:[%s2 + $0xd0] sm:$0xff]
  %v236 = vld [vmem:[%s2 + $0xd8] sm:$0xff]
  %v237 = vld [vmem:[%s2 + $0xe0] sm:$0xff]
  %v238 = vld [vmem:[%s2 + $0xe8] sm:$0xff]
  %v239 = vld [vmem:[%s2 + $0xf0] sm:$0xff]
  %v240 = vld [vmem:[%s2 + $0xf8] sm:$0xff]
  %v241 = vld [vmem:[%s2 + $0x100] sm:$0xff]
  %v242 = vld [vmem:[%s2 + $0x108] sm:$0xff]
  %v243 = vld [vmem:[%s2 + $0x110] sm:$0xff]
  %v244 = vld [vmem:[%s2 + $0x118] sm:$0xff]
  %v245 = vld [vmem:[%s2 + $0x120] sm:$0xff]
  %v246 = vld [vmem:[%s2 + $0x128] sm:$0xff]
  %v247 = vld [vmem:[%s2 + $0x130] sm:$0xff]
  %v248 = vld [vmem:[%s2 + $0x138] sm:$0xff]
  %v249 = vld [vmem:[%s2 + $0x140] sm:$0xff]
  %v250 = vld [vmem:[%s2 + $0x148] sm:$0xff]
  %v251 = vld [vmem:[%s2 + $0x150] sm:$0xff]
  %v252 = vld [vmem:[%s2 + $0x158] sm:$0xff]
  %v253 = vld [vmem:[%s2 + $0x160] sm:$0xff]
  %v254 = vld [vmem:[%s2 + $0x168] sm:$0xff]
  %v255 = vld [vmem:[%s2 + $0x170] sm:$0xff]
  %v256 = vld [vmem:[%s2 + $0x178] sm:$0xff]
  %v257 = vld [vmem:[%s2 + $0x180] sm:$0xff]
  %v258 = vld [vmem:[%s2 + $0x188] sm:$0xff]
  %v259 = vld [vmem:[%s2 + $0x190] sm:$0xff]
  %v260 = vld [vmem:[%s2 + $0x198] sm:$0xff]
  %v261 = vld [vmem:[%s2 + $0x1a0] sm:$0xff]
  %v262 = vld [vmem:[%s2 + $0x1a8] sm:$0xff]
  %v263 = vld [vmem:[%s2 + $0x1b0] sm:$0xff]
  %v264 = vld [vmem:[%s2 + $0x1b8] sm:$0xff]
  %v265 = vld [vmem:[%s2 + $0x1c0] sm:$0xff]
  %v266 = vld [vmem:[%s2 + $0x1c8] sm:$0xff]
  %v267 = vld [vmem:[%s2 + $0x1d0] sm:$0xff]
  %v268 = vld [vmem:[%s2 + $0x1d8] sm:$0xff]
  %v269 = vld [vmem:[%s2 + $0x1e0] sm:$0xff]
  %v270 = vld [vmem:[%s2 + $0x1e8] sm:$0xff]
  %v271 = vld [vmem:[%s2 + $0x1f0] sm:$0xff]
  %v272 = vld [vmem:[%s2 + $0x1f8] sm:$0xff]
  %v273 = vld [vmem:[%s2 + $0x200] sm:$0xff]
  %v274 = vld [vmem:[%s2 + $0x208] sm:$0xff]
  %v275 = vld [vmem:[%s2 + $0x210] sm:$0xff]
  %v276 = vld [vmem:[%s2 + $0x218] sm:$0xff]
  %v277 = vld [vmem:[%s2 + $0x220] sm:$0xff]
  %v278 = vld [vmem:[%s2 + $0x228] sm:$0xff]
  %v279 = vld [vmem:[%s2 + $0x230] sm:$0xff]
  %v280 = vld [vmem:[%s2 + $0x238] sm:$0xff]
  %v281 = vld [vmem:[%s2 + $0x240] sm:$0xff]
  %v282 = vld [vmem:[%s2 + $0x248] sm:$0xff]
  %v283 = vld [vmem:[%s2 + $0x250] sm:$0xff]
  %v284 = vld [vmem:[%s2 + $0x258] sm:$0xff]
  %v285 = vld [vmem:[%s2 + $0x260] sm:$0xff]
  %v286 = vld [vmem:[%s2 + $0x268] sm:$0xff]
  %v287 = vld [vmem:[%s2 + $0x270] sm:$0xff]
  %v288 = vld [vmem:[%s2 + $0x278] sm:$0xff]
  %v289 = vld [vmem:[%s2 + $0x280] sm:$0xff]
  %v290 = vld [vmem:[%s2 + $0x288] sm:$0xff]
  %v291 = vld [vmem:[%s2 + $0x290] sm:$0xff]
  %v292 = vld [vmem:[%s2 + $0x298] sm:$0xff]
  %v293 = vld [vmem:[%s2 + $0x2a0] sm:$0xff]
  %v294 = vld [vmem:[%s2 + $0x2a8] sm:$0xff]
  %v295 = vld [vmem:[%s2 + $0x2b0] sm:$0xff]
  %v296 = vld [vmem:[%s2 + $0x2b8] sm:$0xff]
  %v297 = vld [vmem:[%s2 + $0x2c0] sm:$0xff]
  %v298 = vld [vmem:[%s2 + $0x2c8] sm:$0xff]
  %v299 = vld [vmem:[%s3] sm:$0xff]
  %v300 = vld [vmem:[%s3 + $0x8] sm:$0xff]
  %v301 = vld [vmem:[%s3 + $0x10] sm:$0x7f]
  %v302 = vld [vmem:[%s3 + $0x18] sm:$0xff]
  %v303 = vld [vmem:[%s3 + $0x20] sm:$0xff]
  %v304 = vld [vmem:[%s3 + $0x28] sm:$0x7f]
  %v305 = vld [vmem:[%s3 + $0x30] sm:$0xff]
  %v306 = vld [vmem:[%s3 + $0x38] sm:$0xff]
  %v307 = vld [vmem:[%s3 + $0x40] sm:$0x7f]
  %v308 = vld [vmem:[%s3 + $0x48] sm:$0xff]
  %v309 = vld [vmem:[%s3 + $0x50] sm:$0xff]
  %v310 = vld [vmem:[%s3 + $0x58] sm:$0x7f]
  %v311 = vld [vmem:[%s3 + $0x60] sm:$0xff]
  %v312 = vld [vmem:[%s3 + $0x68] sm:$0xff]
  %v313 = vld [vmem:[%s3 + $0x70] sm:$0x7f]
  %v314 = vld [vmem:[%s3 + $0x78] sm:$0xff]
  %v315 = vld [vmem:[%s3 + $0x80] sm:$0xff]
  %v316 = vld [vmem:[%s3 + $0x88] sm:$0x7f]
  %v317 = vld [vmem:[%s3 + $0x90] sm:$0xff]
  %v318 = vld [vmem:[%s3 + $0x98] sm:$0xff]
  %v319 = vld [vmem:[%s3 + $0xa0] sm:$0x7f]
  %v320 = vld [vmem:[%s3 + $0xa8] sm:$0xff]
  %v321 = vld [vmem:[%s3 + $0xb0] sm:$0xff]
  %v322 = vld [vmem:[%s3 + $0xb8] sm:$0x7f]
  %v323 = vld [vmem:[%s3 + $0xc0] sm:$0xff]
  %v324 = vld [vmem:[%s3 + $0xc8] sm:$0xff]
  %v325 = vld [vmem:[%s3 + $0xd0] sm:$0x7f]
  %v326 = vld [vmem:[%s3 + $0xd8] sm:$0xff]
  %v327 = vld [vmem:[%s3 + $0xe0] sm:$0xff]
  %v328 = vld [vmem:[%s3 + $0xe8] sm:$0x7f]
  %v329 = vld [vmem:[%s3 + $0xf0] sm:$0xff]
  %v330 = vld [vmem:[%s3 + $0xf8] sm:$0xff]
  %v331 = vld [vmem:[%s3 + $0x100] sm:$0x7f]
  %v332 = vld [vmem:[%s3 + $0x108] sm:$0xff]
  %v333 = vld [vmem:[%s3 + $0x110] sm:$0xff]
  %v334 = vld [vmem:[%s3 + $0x118] sm:$0x7f]
  %v335 = vld [vmem:[%s3 + $0x120] sm:$0xff]
  %v336 = vld [vmem:[%s3 + $0x128] sm:$0xff]
  %v337 = vld [vmem:[%s3 + $0x130] sm:$0x7f]
  %v338 = vld [vmem:[%s3 + $0x138] sm:$0xff]
  %v339 = vld [vmem:[%s3 + $0x140] sm:$0xff]
  %v340 = vld [vmem:[%s3 + $0x148] sm:$0x7f]
  %v341 = vld [vmem:[%s3 + $0x150] sm:$0xff]
  %v342 = vld [vmem:[%s3 + $0x158] sm:$0xff]
  %v343 = vld [vmem:[%s3 + $0x160] sm:$0x7f]
  %v344 = vld [vmem:[%s3 + $0x168] sm:$0xff]
  %v345 = vld [vmem:[%s3 + $0x170] sm:$0xff]
  %v346 = vld [vmem:[%s3 + $0x178] sm:$0x7f]
  %v347 = vld [vmem:[%s3 + $0x180] sm:$0xff]
  %v348 = vld [vmem:[%s3 + $0x188] sm:$0xff]
  %v349 = vld [vmem:[%s3 + $0x190] sm:$0x7f]
  %v350 = vld [vmem:[%s3 + $0x198] sm:$0xff]
  %v351 = vld [vmem:[%s3 + $0x1a0] sm:$0xff]
  %v352 = vld [vmem:[%s3 + $0x1a8] sm:$0x7f]
  %v353 = vld [vmem:[%s3 + $0x1b0] sm:$0xff]
  %v354 = vld [vmem:[%s3 + $0x1b8] sm:$0xff]
  %v355 = vld [vmem:[%s3 + $0x1c0] sm:$0x7f]
  %v356 = vld [vmem:[%s3 + $0x1c8] sm:$0xff]
  %v357 = vld [vmem:[%s3 + $0x1d0] sm:$0xff]
  %v358 = vld [vmem:[%s3 + $0x1d8] sm:$0x7f]
  %v359 = vld [vmem:[%s3 + $0x1e0] sm:$0xff]
  %v360 = vld [vmem:[%s3 + $0x1e8] sm:$0xff]
  %v361 = vld [vmem:[%s3 + $0x1f0] sm:$0x7f]
  %v362 = vld [vmem:[%s3 + $0x1f8] sm:$0xff]
  %v363 = vld [vmem:[%s3 + $0x200] sm:$0xff]
  %v364 = vld [vmem:[%s3 + $0x208] sm:$0x7f]
  %v365 = vld [vmem:[%s3 + $0x210] sm:$0xff]
  %v366 = vld [vmem:[%s3 + $0x218] sm:$0xff]
  %v367 = vld [vmem:[%s3 + $0x220] sm:$0x7f]
  %v368 = vld [vmem:[%s3 + $0x228] sm:$0xff]
  %v369 = vld [vmem:[%s3 + $0x230] sm:$0xff]
  %v370 = vld [vmem:[%s3 + $0x238] sm:$0x7f]
  %v371 = vld [vmem:[%s3 + $0x240] sm:$0xff]
  %v372 = vld [vmem:[%s3 + $0x248] sm:$0xff]
  %v373 = vld [vmem:[%s3 + $0x250] sm:$0x7f]
  %v374 = vld [vmem:[%s3 + $0x258] sm:$0xff]
  %v375 = vld [vmem:[%s3 + $0x260] sm:$0xff]
  %v376 = vld [vmem:[%s3 + $0x268] sm:$0x7f]
  %v377 = vld [vmem:[%s3 + $0x270] sm:$0xff]
  %v378 = vld [vmem:[%s3 + $0x278] sm:$0xff]
  %v379 = vld [vmem:[%s3 + $0x280] sm:$0x7f]
  %v380 = vld [vmem:[%s3 + $0x288] sm:$0xff]
  %v381 = vld [vmem:[%s3 + $0x290] sm:$0xff]
  %v382 = vld [vmem:[%s3 + $0x298] sm:$0x7f]
  %v383 = vld [vmem:[%s3 + $0x2a0] sm:$0xff]
  %v384 = vld [vmem:[%s3 + $0x2a8] sm:$0xff]
  %v385 = vld [vmem:[%s3 + $0x2b0] sm:$0x7f]
  %v386 = vld [vmem:[%s3 + $0x2b8] sm:$0xff]
  %v387 = vld [vmem:[%s3 + $0x2c0] sm:$0xff]
  %v388 = vld [vmem:[%s3 + $0x2c8] sm:$0x7f]
  %vm479 = vcmask 1046528
  %v480 = vrot.slane %v17, 1
  %v481 = vrot.slane %v18, 1
  %v482 = vsel %vm479, %v480, %v481
  %v483 = vrot.slane %v19, 1
  %v484 = vsel %vm479, %v481, %v483
  %v485 = vrot.slane %v20, 1
  %v486 = vrot.slane %v21, 1
  %v487 = vsel %vm479, %v485, %v486
  %v488 = vrot.slane %v22, 1
  %v489 = vsel %vm479, %v486, %v488
  %v490 = vrot.slane %v23, 1
  %v491 = vrot.slane %v24, 1
  %v492 = vsel %vm479, %v490, %v491
  %v493 = vrot.slane %v25, 1
  %v494 = vsel %vm479, %v491, %v493
  %v495 = vrot.slane %v26, 1
  %v496 = vrot.slane %v27, 1
  %v497 = vsel %vm479, %v495, %v496
  %v498 = vrot.slane %v28, 1
  %v499 = vsel %vm479, %v496, %v498
  %v500 = vrot.slane %v29, 1
  %v501 = vrot.slane %v30, 1
  %v502 = vsel %vm479, %v500, %v501
  %v503 = vrot.slane %v31, 1
  %v504 = vsel %vm479, %v501, %v503
  %v505 = vrot.slane %v32, 1
  %v506 = vrot.slane %v33, 1
  %v507 = vsel %vm479, %v505, %v506
  %v508 = vrot.slane %v34, 1
  %v509 = vsel %vm479, %v506, %v508
  %v510 = vrot.slane %v35, 1
  %v511 = vrot.slane %v36, 1
  %v512 = vsel %vm479, %v510, %v511
  %v513 = vrot.slane %v37, 1
  %v514 = vsel %vm479, %v511, %v513
  %v515 = vrot.slane %v38, 1
  %v516 = vrot.slane %v39, 1
  %v517 = vsel %vm479, %v515, %v516
  %v518 = vrot.slane %v40, 1
  %v519 = vsel %vm479, %v516, %v518
  %v520 = vrot.slane %v41, 1
  %v521 = vrot.slane %v42, 1
  %v522 = vsel %vm479, %v520, %v521
  %v523 = vrot.slane %v43, 1
  %v524 = vsel %vm479, %v521, %v523
  %v525 = vrot.slane %v44, 1
  %v526 = vrot.slane %v45, 1
  %v527 = vsel %vm479, %v525, %v526
  %v528 = vrot.slane %v46, 1
  %v529 = vsel %vm479, %v526, %v528
  %v530 = vrot.slane %v47, 1
  %v531 = vrot.slane %v48, 1
  %v532 = vsel %vm479, %v530, %v531
  %v533 = vrot.slane %v49, 1
  %v534 = vsel %vm479, %v531, %v533
  %v535 = vrot.slane %v50, 1
  %v536 = vrot.slane %v51, 1
  %v537 = vsel %vm479, %v535, %v536
  %v538 = vrot.slane %v52, 1
  %v539 = vsel %vm479, %v536, %v538
  %v540 = vrot.slane %v53, 1
  %v541 = vrot.slane %v54, 1
  %v542 = vsel %vm479, %v540, %v541
  %v543 = vrot.slane %v55, 1
  %v544 = vsel %vm479, %v541, %v543
  %v545 = vrot.slane %v56, 1
  %v546 = vrot.slane %v57, 1
  %v547 = vsel %vm479, %v545, %v546
  %v548 = vrot.slane %v58, 1
  %v549 = vsel %vm479, %v546, %v548
  %v550 = vrot.slane %v59, 1
  %v551 = vrot.slane %v60, 1
  %v552 = vsel %vm479, %v550, %v551
  %v553 = vrot.slane %v61, 1
  %v554 = vsel %vm479, %v551, %v553
  %v555 = vrot.slane %v65, 1
  %v556 = vrot.slane %v66, 1
  %v557 = vsel %vm479, %v555, %v556
  %v558 = vrot.slane %v67, 1
  %v559 = vsel %vm479, %v556, %v558
  %v560 = vrot.slane %v68, 1
  %v561 = vrot.slane %v69, 1
  %v562 = vsel %vm479, %v560, %v561
  %v563 = vrot.slane %v70, 1
  %v564 = vsel %vm479, %v561, %v563
  %v565 = vrot.slane %v71, 1
  %v566 = vrot.slane %v72, 1
  %v567 = vsel %vm479, %v565, %v566
  %v568 = vrot.slane %v73, 1
  %v569 = vsel %vm479, %v566, %v568
  %v570 = vrot.slane %v74, 1
  %v571 = vrot.slane %v75, 1
  %v572 = vsel %vm479, %v570, %v571
  %v573 = vrot.slane %v76, 1
  %v574 = vsel %vm479, %v571, %v573
  %v575 = vrot.slane %v77, 1
  %v576 = vrot.slane %v78, 1
  %v577 = vsel %vm479, %v575, %v576
  %v578 = vrot.slane %v79, 1
  %v579 = vsel %vm479, %v576, %v578
  %v580 = vrot.slane %v80, 1
  %v581 = vrot.slane %v81, 1
  %v582 = vsel %vm479, %v580, %v581
  %v583 = vrot.slane %v82, 1
  %v584 = vsel %vm479, %v581, %v583
  %v585 = vrot.slane %v83, 1
  %v586 = vrot.slane %v84, 1
  %v587 = vsel %vm479, %v585, %v586
  %v588 = vrot.slane %v85, 1
  %v589 = vsel %vm479, %v586, %v588
  %v590 = vrot.slane %v86, 1
  %v591 = vrot.slane %v87, 1
  %v592 = vsel %vm479, %v590, %v591
  %v593 = vrot.slane %v88, 1
  %v594 = vsel %vm479, %v591, %v593
  %v595 = vrot.slane %v89, 1
  %v596 = vrot.slane %v90, 1
  %v597 = vsel %vm479, %v595, %v596
  %v598 = vrot.slane %v91, 1
  %v599 = vsel %vm479, %v596, %v598
  %v600 = vrot.slane %v92, 1
  %v601 = vrot.slane %v93, 1
  %v602 = vsel %vm479, %v600, %v601
  %v603 = vrot.slane %v94, 1
  %v604 = vsel %vm479, %v601, %v603
  %v605 = vrot.slane %v95, 1
  %v606 = vrot.slane %v96, 1
  %v607 = vsel %vm479, %v605, %v606
  %v608 = vrot.slane %v97, 1
  %v609 = vsel %vm479, %v606, %v608
  %v610 = vrot.slane %v98, 1
  %v611 = vrot.slane %v99, 1
  %v612 = vsel %vm479, %v610, %v611
  %v613 = vrot.slane %v100, 1
  %v614 = vsel %vm479, %v611, %v613
  %v615 = vrot.slane %v101, 1
  %v616 = vrot.slane %v102, 1
  %v617 = vsel %vm479, %v615, %v616
  %v618 = vrot.slane %v103, 1
  %v619 = vsel %vm479, %v616, %v618
  %v620 = vrot.slane %v104, 1
  %v621 = vrot.slane %v105, 1
  %v622 = vsel %vm479, %v620, %v621
  %v623 = vrot.slane %v106, 1
  %v624 = vsel %vm479, %v621, %v623
  %v625 = vrot.slane %v107, 1
  %v626 = vrot.slane %v108, 1
  %v627 = vsel %vm479, %v625, %v626
  %v628 = vrot.slane %v109, 1
  %v629 = vsel %vm479, %v626, %v628
  %v720 = vmax.f32 %v17, %v482
  %v721 = vmax.f32 %v18, %v484
  %v722 = vmax.f32 %v19, %v483
  %v723 = vmax.f32 %v20, %v487
  %v724 = vmax.f32 %v21, %v489
  %v725 = vmax.f32 %v22, %v488
  %v726 = vmax.f32 %v23, %v492
  %v727 = vmax.f32 %v24, %v494
  %v728 = vmax.f32 %v25, %v493
  %v729 = vmax.f32 %v26, %v497
  %v730 = vmax.f32 %v27, %v499
  %v731 = vmax.f32 %v28, %v498
  %v732 = vmax.f32 %v29, %v502
  %v733 = vmax.f32 %v30, %v504
  %v734 = vmax.f32 %v31, %v503
  %v735 = vmax.f32 %v32, %v507
  %v736 = vmax.f32 %v33, %v509
  %v737 = vmax.f32 %v34, %v508
  %v738 = vmax.f32 %v35, %v512
  %v739 = vmax.f32 %v36, %v514
  %v740 = vmax.f32 %v37, %v513
  %v741 = vmax.f32 %v38, %v517
  %v742 = vmax.f32 %v39, %v519
  %v743 = vmax.f32 %v40, %v518
  %v744 = vmax.f32 %v41, %v522
  %v745 = vmax.f32 %v42, %v524
  %v746 = vmax.f32 %v43, %v523
  %v747 = vmax.f32 %v44, %v527
  %v748 = vmax.f32 %v45, %v529
  %v749 = vmax.f32 %v46, %v528
  %v750 = vmax.f32 %v47, %v532
  %v751 = vmax.f32 %v48, %v534
  %v752 = vmax.f32 %v49, %v533
  %v753 = vmax.f32 %v50, %v537
  %v754 = vmax.f32 %v51, %v539
  %v755 = vmax.f32 %v52, %v538
  %v756 = vmax.f32 %v53, %v542
  %v757 = vmax.f32 %v54, %v544
  %v758 = vmax.f32 %v55, %v543
  %v759 = vmax.f32 %v56, %v547
  %v760 = vmax.f32 %v57, %v549
  %v761 = vmax.f32 %v58, %v548
  %v762 = vmax.f32 %v59, %v552
  %v763 = vmax.f32 %v60, %v554
  %v764 = vmax.f32 %v61, %v553
  %v765 = vmax.f32 %v65, %v557
  %v766 = vmax.f32 %v66, %v559
  %v767 = vmax.f32 %v67, %v558
  %v768 = vmax.f32 %v68, %v562
  %v769 = vmax.f32 %v69, %v564
  %v770 = vmax.f32 %v70, %v563
  %v771 = vmax.f32 %v71, %v567
  %v772 = vmax.f32 %v72, %v569
  %v773 = vmax.f32 %v73, %v568
  %v774 = vmax.f32 %v74, %v572
  %v775 = vmax.f32 %v75, %v574
  %v776 = vmax.f32 %v76, %v573
  %v777 = vmax.f32 %v77, %v577
  %v778 = vmax.f32 %v78, %v579
  %v779 = vmax.f32 %v79, %v578
  %v780 = vmax.f32 %v80, %v582
  %v781 = vmax.f32 %v81, %v584
  %v782 = vmax.f32 %v82, %v583
  %v783 = vmax.f32 %v83, %v587
  %v784 = vmax.f32 %v84, %v589
  %v785 = vmax.f32 %v85, %v588
  %v786 = vmax.f32 %v86, %v592
  %v787 = vmax.f32 %v87, %v594
  %v788 = vmax.f32 %v88, %v593
  %v789 = vmax.f32 %v89, %v597
  %v790 = vmax.f32 %v90, %v599
  %v791 = vmax.f32 %v91, %v598
  %v792 = vmax.f32 %v92, %v602
  %v793 = vmax.f32 %v93, %v604
  %v794 = vmax.f32 %v94, %v603
  %v795 = vmax.f32 %v95, %v607
  %v796 = vmax.f32 %v96, %v609
  %v797 = vmax.f32 %v97, %v608
  %v798 = vmax.f32 %v98, %v612
  %v799 = vmax.f32 %v99, %v614
  %v800 = vmax.f32 %v100, %v613
  %v801 = vmax.f32 %v101, %v617
  %v802 = vmax.f32 %v102, %v619
  %v803 = vmax.f32 %v103, %v618
  %v804 = vmax.f32 %v104, %v622
  %v805 = vmax.f32 %v105, %v624
  %v806 = vmax.f32 %v106, %v623
  %v807 = vmax.f32 %v107, %v627
  %v808 = vmax.f32 %v108, %v629
  %v809 = vmax.f32 %v109, %v628
  %v810 = vmax.f32 %v720, %v20
  %v811 = vmax.f32 %v721, %v21
  %v812 = vmax.f32 %v722, %v22
  %v813 = vmax.f32 %v723, %v23
  %v814 = vmax.f32 %v724, %v24
  %v815 = vmax.f32 %v725, %v25
  %v816 = vmax.f32 %v726, %v26
  %v817 = vmax.f32 %v727, %v27
  %v818 = vmax.f32 %v728, %v28
  %v819 = vmax.f32 %v729, %v29
  %v820 = vmax.f32 %v730, %v30
  %v821 = vmax.f32 %v731, %v31
  %v822 = vmax.f32 %v732, %v32
  %v823 = vmax.f32 %v733, %v33
  %v824 = vmax.f32 %v734, %v34
  %v825 = vmax.f32 %v735, %v35
  %v826 = vmax.f32 %v736, %v36
  %v827 = vmax.f32 %v737, %v37
  %v828 = vmax.f32 %v738, %v38
  %v829 = vmax.f32 %v739, %v39
  %v830 = vmax.f32 %v740, %v40
  %v831 = vmax.f32 %v741, %v41
  %v832 = vmax.f32 %v742, %v42
  %v833 = vmax.f32 %v743, %v43
  %v834 = vmax.f32 %v744, %v44
  %v835 = vmax.f32 %v745, %v45
  %v836 = vmax.f32 %v746, %v46
  %v837 = vmax.f32 %v747, %v47
  %v838 = vmax.f32 %v748, %v48
  %v839 = vmax.f32 %v749, %v49
  %v840 = vmax.f32 %v750, %v50
  %v841 = vmax.f32 %v751, %v51
  %v842 = vmax.f32 %v752, %v52
  %v843 = vmax.f32 %v753, %v53
  %v844 = vmax.f32 %v754, %v54
  %v845 = vmax.f32 %v755, %v55
  %v846 = vmax.f32 %v756, %v56
  %v847 = vmax.f32 %v757, %v57
  %v848 = vmax.f32 %v758, %v58
  %v849 = vmax.f32 %v759, %v59
  %v850 = vmax.f32 %v760, %v60
  %v851 = vmax.f32 %v761, %v61
  %v852 = vmax.f32 %v762, %v62
  %v853 = vmax.f32 %v763, %v63
  %v854 = vmax.f32 %v764, %v64
  %v855 = vmax.f32 %v765, %v68
  %v856 = vmax.f32 %v766, %v69
  %v857 = vmax.f32 %v767, %v70
  %v858 = vmax.f32 %v768, %v71
  %v859 = vmax.f32 %v769, %v72
  %v860 = vmax.f32 %v770, %v73
  %v861 = vmax.f32 %v771, %v74
  %v862 = vmax.f32 %v772, %v75
  %v863 = vmax.f32 %v773, %v76
  %v864 = vmax.f32 %v774, %v77
  %v865 = vmax.f32 %v775, %v78
  %v866 = vmax.f32 %v776, %v79
  %v867 = vmax.f32 %v777, %v80
  %v868 = vmax.f32 %v778, %v81
  %v869 = vmax.f32 %v779, %v82
  %v870 = vmax.f32 %v780, %v83
  %v871 = vmax.f32 %v781, %v84
  %v872 = vmax.f32 %v782, %v85
  %v873 = vmax.f32 %v783, %v86
  %v874 = vmax.f32 %v784, %v87
  %v875 = vmax.f32 %v785, %v88
  %v876 = vmax.f32 %v786, %v89
  %v877 = vmax.f32 %v787, %v90
  %v878 = vmax.f32 %v788, %v91
  %v879 = vmax.f32 %v789, %v92
  %v880 = vmax.f32 %v790, %v93
  %v881 = vmax.f32 %v791, %v94
  %v882 = vmax.f32 %v792, %v95
  %v883 = vmax.f32 %v793, %v96
  %v884 = vmax.f32 %v794, %v97
  %v885 = vmax.f32 %v795, %v98
  %v886 = vmax.f32 %v796, %v99
  %v887 = vmax.f32 %v797, %v100
  %v888 = vmax.f32 %v798, %v101
  %v889 = vmax.f32 %v799, %v102
  %v890 = vmax.f32 %v800, %v103
  %v891 = vmax.f32 %v801, %v104
  %v892 = vmax.f32 %v802, %v105
  %v893 = vmax.f32 %v803, %v106
  %v894 = vmax.f32 %v804, %v107
  %v895 = vmax.f32 %v805, %v108
  %v896 = vmax.f32 %v806, %v109
  %v897 = vmax.f32 %v807, %v110
  %v898 = vmax.f32 %v808, %v111
  %v899 = vmax.f32 %v809, %v112
  %v906 = vrot.slane %v62, 1
  %v907 = vrot.slane %v63, 1
  %v908 = vsel %vm479, %v906, %v907
  %v909 = vrot.slane %v64, 1
  %v910 = vsel %vm479, %v907, %v909
  %v911 = vrot.slane %v110, 1
  %v912 = vrot.slane %v111, 1
  %v913 = vsel %vm479, %v911, %v912
  %v914 = vrot.slane %v112, 1
  %v915 = vsel %vm479, %v912, %v914
  %v922 = vmax.f32 %v810, %v487
  %v923 = vmax.f32 %v811, %v489
  %v924 = vmax.f32 %v812, %v488
  %v925 = vmax.f32 %v813, %v492
  %v926 = vmax.f32 %v814, %v494
  %v927 = vmax.f32 %v815, %v493
  %v928 = vmax.f32 %v816, %v497
  %v929 = vmax.f32 %v817, %v499
  %v930 = vmax.f32 %v818, %v498
  %v931 = vmax.f32 %v819, %v502
  %v932 = vmax.f32 %v820, %v504
  %v933 = vmax.f32 %v821, %v503
  %v934 = vmax.f32 %v822, %v507
  %v935 = vmax.f32 %v823, %v509
  %v936 = vmax.f32 %v824, %v508
  %v937 = vmax.f32 %v825, %v512
  %v938 = vmax.f32 %v826, %v514
  %v939 = vmax.f32 %v827, %v513
  %v940 = vmax.f32 %v828, %v517
  %v941 = vmax.f32 %v829, %v519
  %v942 = vmax.f32 %v830, %v518
  %v943 = vmax.f32 %v831, %v522
  %v944 = vmax.f32 %v832, %v524
  %v945 = vmax.f32 %v833, %v523
  %v946 = vmax.f32 %v834, %v527
  %v947 = vmax.f32 %v835, %v529
  %v948 = vmax.f32 %v836, %v528
  %v949 = vmax.f32 %v837, %v532
  %v950 = vmax.f32 %v838, %v534
  %v951 = vmax.f32 %v839, %v533
  %v952 = vmax.f32 %v840, %v537
  %v953 = vmax.f32 %v841, %v539
  %v954 = vmax.f32 %v842, %v538
  %v955 = vmax.f32 %v843, %v542
  %v956 = vmax.f32 %v844, %v544
  %v957 = vmax.f32 %v845, %v543
  %v958 = vmax.f32 %v846, %v547
  %v959 = vmax.f32 %v847, %v549
  %v960 = vmax.f32 %v848, %v548
  %v961 = vmax.f32 %v849, %v552
  %v962 = vmax.f32 %v850, %v554
  %v963 = vmax.f32 %v851, %v553
  %v964 = vmax.f32 %v852, %v908
  %v965 = vmax.f32 %v853, %v910
  %v966 = vmax.f32 %v854, %v909
  %v967 = vmax.f32 %v855, %v562
  %v968 = vmax.f32 %v856, %v564
  %v969 = vmax.f32 %v857, %v563
  %v970 = vmax.f32 %v858, %v567
  %v971 = vmax.f32 %v859, %v569
  %v972 = vmax.f32 %v860, %v568
  %v973 = vmax.f32 %v861, %v572
  %v974 = vmax.f32 %v862, %v574
  %v975 = vmax.f32 %v863, %v573
  %v976 = vmax.f32 %v864, %v577
  %v977 = vmax.f32 %v865, %v579
  %v978 = vmax.f32 %v866, %v578
  %v979 = vmax.f32 %v867, %v582
  %v980 = vmax.f32 %v868, %v584
  %v981 = vmax.f32 %v869, %v583
  %v982 = vmax.f32 %v870, %v587
  %v983 = vmax.f32 %v871, %v589
  %v984 = vmax.f32 %v872, %v588
  %v985 = vmax.f32 %v873, %v592
  %v986 = vmax.f32 %v874, %v594
  %v987 = vmax.f32 %v875, %v593
  %v988 = vmax.f32 %v876, %v597
  %v989 = vmax.f32 %v877, %v599
  %v990 = vmax.f32 %v878, %v598
  %v991 = vmax.f32 %v879, %v602
  %v992 = vmax.f32 %v880, %v604
  %v993 = vmax.f32 %v881, %v603
  %v994 = vmax.f32 %v882, %v607
  %v995 = vmax.f32 %v883, %v609
  %v996 = vmax.f32 %v884, %v608
  %v997 = vmax.f32 %v885, %v612
  %v998 = vmax.f32 %v886, %v614
  %v999 = vmax.f32 %v887, %v613
  %v1000 = vmax.f32 %v888, %v617
  %v1001 = vmax.f32 %v889, %v619
  %v1002 = vmax.f32 %v890, %v618
  %v1003 = vmax.f32 %v891, %v622
  %v1004 = vmax.f32 %v892, %v624
  %v1005 = vmax.f32 %v893, %v623
  %v1006 = vmax.f32 %v894, %v627
  %v1007 = vmax.f32 %v895, %v629
  %v1008 = vmax.f32 %v896, %v628
  %v1009 = vmax.f32 %v897, %v913
  %v1010 = vmax.f32 %v898, %v915
  %v1011 = vmax.f32 %v899, %v914
  %v1012 = vmax.f32 %v922, %v113
  %v1013 = vmax.f32 %v923, %v114
  %v1014 = vmax.f32 %v924, %v115
  %v1015 = vmax.f32 %v925, %v116
  %v1016 = vmax.f32 %v926, %v117
  %v1017 = vmax.f32 %v927, %v118
  %v1018 = vmax.f32 %v928, %v119
  %v1019 = vmax.f32 %v929, %v120
  %v1020 = vmax.f32 %v930, %v121
  %v1021 = vmax.f32 %v931, %v122
  %v1022 = vmax.f32 %v932, %v123
  %v1023 = vmax.f32 %v933, %v124
  %v1024 = vmax.f32 %v934, %v125
  %v1025 = vmax.f32 %v935, %v126
  %v1026 = vmax.f32 %v936, %v127
  %v1027 = vmax.f32 %v937, %v128
  %v1028 = vmax.f32 %v938, %v129
  %v1029 = vmax.f32 %v939, %v130
  %v1030 = vmax.f32 %v940, %v131
  %v1031 = vmax.f32 %v941, %v132
  %v1032 = vmax.f32 %v942, %v133
  %v1033 = vmax.f32 %v943, %v134
  %v1034 = vmax.f32 %v944, %v135
  %v1035 = vmax.f32 %v945, %v136
  %v1036 = vmax.f32 %v946, %v137
  %v1037 = vmax.f32 %v947, %v138
  %v1038 = vmax.f32 %v948, %v139
  %v1039 = vmax.f32 %v949, %v140
  %v1040 = vmax.f32 %v950, %v141
  %v1041 = vmax.f32 %v951, %v142
  %v1042 = vmax.f32 %v952, %v143
  %v1043 = vmax.f32 %v953, %v144
  %v1044 = vmax.f32 %v954, %v145
  %v1045 = vmax.f32 %v955, %v146
  %v1046 = vmax.f32 %v956, %v147
  %v1047 = vmax.f32 %v957, %v148
  %v1048 = vmax.f32 %v958, %v149
  %v1049 = vmax.f32 %v959, %v150
  %v1050 = vmax.f32 %v960, %v151
  %v1051 = vmax.f32 %v961, %v152
  %v1052 = vmax.f32 %v962, %v153
  %v1053 = vmax.f32 %v963, %v154
  %v1054 = vmax.f32 %v964, %v155
  %v1055 = vmax.f32 %v965, %v156
  %v1056 = vmax.f32 %v966, %v157
  %v1057 = vmax.f32 %v967, %v161
  %v1058 = vmax.f32 %v968, %v162
  %v1059 = vmax.f32 %v969, %v163
  %v1060 = vmax.f32 %v970, %v164
  %v1061 = vmax.f32 %v971, %v165
  %v1062 = vmax.f32 %v972, %v166
  %v1063 = vmax.f32 %v973, %v167
  %v1064 = vmax.f32 %v974, %v168
  %v1065 = vmax.f32 %v975, %v169
  %v1066 = vmax.f32 %v976, %v170
  %v1067 = vmax.f32 %v977, %v171
  %v1068 = vmax.f32 %v978, %v172
  %v1069 = vmax.f32 %v979, %v173
  %v1070 = vmax.f32 %v980, %v174
  %v1071 = vmax.f32 %v981, %v175
  %v1072 = vmax.f32 %v982, %v176
  %v1073 = vmax.f32 %v983, %v177
  %v1074 = vmax.f32 %v984, %v178
  %v1075 = vmax.f32 %v985, %v179
  %v1076 = vmax.f32 %v986, %v180
  %v1077 = vmax.f32 %v987, %v181
  %v1078 = vmax.f32 %v988, %v182
  %v1079 = vmax.f32 %v989, %v183
  %v1080 = vmax.f32 %v990, %v184
  %v1081 = vmax.f32 %v991, %v185
  %v1082 = vmax.f32 %v992, %v186
  %v1083 = vmax.f32 %v993, %v187
  %v1084 = vmax.f32 %v994, %v188
  %v1085 = vmax.f32 %v995, %v189
  %v1086 = vmax.f32 %v996, %v190
  %v1087 = vmax.f32 %v997, %v191
  %v1088 = vmax.f32 %v998, %v192
  %v1089 = vmax.f32 %v999, %v193
  %v1090 = vmax.f32 %v1000, %v194
  %v1091 = vmax.f32 %v1001, %v195
  %v1092 = vmax.f32 %v1002, %v196
  %v1093 = vmax.f32 %v1003, %v197
  %v1094 = vmax.f32 %v1004, %v198
  %v1095 = vmax.f32 %v1005, %v199
  %v1096 = vmax.f32 %v1006, %v200
  %v1097 = vmax.f32 %v1007, %v201
  %v1098 = vmax.f32 %v1008, %v202
  %v1099 = vmax.f32 %v1009, %v203
  %v1100 = vmax.f32 %v1010, %v204
  %v1101 = vmax.f32 %v1011, %v205
  %v1102 = vmax.f32 %v1012, %v116
  %v1103 = vmax.f32 %v1013, %v117
  %v1104 = vmax.f32 %v1014, %v118
  %v1105 = vmax.f32 %v1015, %v119
  %v1106 = vmax.f32 %v1016, %v120
  %v1107 = vmax.f32 %v1017, %v121
  %v1108 = vmax.f32 %v1018, %v122
  %v1109 = vmax.f32 %v1019, %v123
  %v1110 = vmax.f32 %v1020, %v124
  %v1111 = vmax.f32 %v1021, %v125
  %v1112 = vmax.f32 %v1022, %v126
  %v1113 = vmax.f32 %v1023, %v127
  %v1114 = vmax.f32 %v1024, %v128
  %v1115 = vmax.f32 %v1025, %v129
  %v1116 = vmax.f32 %v1026, %v130
  %v1117 = vmax.f32 %v1027, %v131
  %v1118 = vmax.f32 %v1028, %v132
  %v1119 = vmax.f32 %v1029, %v133
  %v1120 = vmax.f32 %v1030, %v134
  %v1121 = vmax.f32 %v1031, %v135
  %v1122 = vmax.f32 %v1032, %v136
  %v1123 = vmax.f32 %v1033, %v137
  %v1124 = vmax.f32 %v1034, %v138
  %v1125 = vmax.f32 %v1035, %v139
  %v1126 = vmax.f32 %v1036, %v140
  %v1127 = vmax.f32 %v1037, %v141
  %v1128 = vmax.f32 %v1038, %v142
  %v1129 = vmax.f32 %v1039, %v143
  %v1130 = vmax.f32 %v1040, %v144
  %v1131 = vmax.f32 %v1041, %v145
  %v1132 = vmax.f32 %v1042, %v146
  %v1133 = vmax.f32 %v1043, %v147
  %v1134 = vmax.f32 %v1044, %v148
  %v1135 = vmax.f32 %v1045, %v149
  %v1136 = vmax.f32 %v1046, %v150
  %v1137 = vmax.f32 %v1047, %v151
  %v1138 = vmax.f32 %v1048, %v152
  %v1139 = vmax.f32 %v1049, %v153
  %v1140 = vmax.f32 %v1050, %v154
  %v1141 = vmax.f32 %v1051, %v155
  %v1142 = vmax.f32 %v1052, %v156
  %v1143 = vmax.f32 %v1053, %v157
  %v1144 = vmax.f32 %v1054, %v158
  %v1145 = vmax.f32 %v1055, %v159
  %v1146 = vmax.f32 %v1056, %v160
  %v1147 = vmax.f32 %v1057, %v164
  %v1148 = vmax.f32 %v1058, %v165
  %v1149 = vmax.f32 %v1059, %v166
  %v1150 = vmax.f32 %v1060, %v167
  %v1151 = vmax.f32 %v1061, %v168
  %v1152 = vmax.f32 %v1062, %v169
  %v1153 = vmax.f32 %v1063, %v170
  %v1154 = vmax.f32 %v1064, %v171
  %v1155 = vmax.f32 %v1065, %v172
  %v1156 = vmax.f32 %v1066, %v173
  %v1157 = vmax.f32 %v1067, %v174
  %v1158 = vmax.f32 %v1068, %v175
  %v1159 = vmax.f32 %v1069, %v176
  %v1160 = vmax.f32 %v1070, %v177
  %v1161 = vmax.f32 %v1071, %v178
  %v1162 = vmax.f32 %v1072, %v179
  %v1163 = vmax.f32 %v1073, %v180
  %v1164 = vmax.f32 %v1074, %v181
  %v1165 = vmax.f32 %v1075, %v182
  %v1166 = vmax.f32 %v1076, %v183
  %v1167 = vmax.f32 %v1077, %v184
  %v1168 = vmax.f32 %v1078, %v185
  %v1169 = vmax.f32 %v1079, %v186
  %v1170 = vmax.f32 %v1080, %v187
  %v1171 = vmax.f32 %v1081, %v188
  %v1172 = vmax.f32 %v1082, %v189
  %v1173 = vmax.f32 %v1083, %v190
  %v1174 = vmax.f32 %v1084, %v191
  %v1175 = vmax.f32 %v1085, %v192
  %v1176 = vmax.f32 %v1086, %v193
  %v1177 = vmax.f32 %v1087, %v194
  %v1178 = vmax.f32 %v1088, %v195
  %v1179 = vmax.f32 %v1089, %v196
  %v1180 = vmax.f32 %v1090, %v197
  %v1181 = vmax.f32 %v1091, %v198
  %v1182 = vmax.f32 %v1092, %v199
  %v1183 = vmax.f32 %v1093, %v200
  %v1184 = vmax.f32 %v1094, %v201
  %v1185 = vmax.f32 %v1095, %v202
  %v1186 = vmax.f32 %v1096, %v203
  %v1187 = vmax.f32 %v1097, %v204
  %v1188 = vmax.f32 %v1098, %v205
  %v1189 = vmax.f32 %v1099, %v206
  %v1190 = vmax.f32 %v1100, %v207
  %v1191 = vmax.f32 %v1101, %v208
  %v1192 = vmax.f32 %v1102, %v209
  %v1193 = vmax.f32 %v1103, %v210
  %v1194 = vmax.f32 %v1104, %v211
  %v1195 = vmax.f32 %v1105, %v212
  %v1196 = vmax.f32 %v1106, %v213
  %v1197 = vmax.f32 %v1107, %v214
  %v1198 = vmax.f32 %v1108, %v215
  %v1199 = vmax.f32 %v1109, %v216
  %v1200 = vmax.f32 %v1110, %v217
  %v1201 = vmax.f32 %v1111, %v218
  %v1202 = vmax.f32 %v1112, %v219
  %v1203 = vmax.f32 %v1113, %v220
  %v1204 = vmax.f32 %v1114, %v221
  %v1205 = vmax.f32 %v1115, %v222
  %v1206 = vmax.f32 %v1116, %v223
  %v1207 = vmax.f32 %v1117, %v224
  %v1208 = vmax.f32 %v1118, %v225
  %v1209 = vmax.f32 %v1119, %v226
  %v1210 = vmax.f32 %v1120, %v227
  %v1211 = vmax.f32 %v1121, %v228
  %v1212 = vmax.f32 %v1122, %v229
  %v1213 = vmax.f32 %v1123, %v230
  %v1214 = vmax.f32 %v1124, %v231
  %v1215 = vmax.f32 %v1125, %v232
  %v1216 = vmax.f32 %v1126, %v233
  %v1217 = vmax.f32 %v1127, %v234
  %v1218 = vmax.f32 %v1128, %v235
  %v1219 = vmax.f32 %v1129, %v236
  %v1220 = vmax.f32 %v1130, %v237
  %v1221 = vmax.f32 %v1131, %v238
  %v1222 = vmax.f32 %v1132, %v239
  %v1223 = vmax.f32 %v1133, %v240
  %v1224 = vmax.f32 %v1134, %v241
  %v1225 = vmax.f32 %v1135, %v242
  %v1226 = vmax.f32 %v1136, %v243
  %v1227 = vmax.f32 %v1137, %v244
  %v1228 = vmax.f32 %v1138, %v245
  %v1229 = vmax.f32 %v1139, %v246
  %v1230 = vmax.f32 %v1140, %v247
  %v1231 = vmax.f32 %v1141, %v248
  %v1232 = vmax.f32 %v1142, %v249
  %v1233 = vmax.f32 %v1143, %v250
  %v1234 = vmax.f32 %v1144, %v251
  %v1235 = vmax.f32 %v1145, %v252
  %v1236 = vmax.f32 %v1146, %v253
  %v1237 = vmax.f32 %v1147, %v254
  %v1238 = vmax.f32 %v1148, %v255
  %v1239 = vmax.f32 %v1149, %v256
  %v1240 = vmax.f32 %v1150, %v257
  %v1241 = vmax.f32 %v1151, %v258
  %v1242 = vmax.f32 %v1152, %v259
  %v1243 = vmax.f32 %v1153, %v260
  %v1244 = vmax.f32 %v1154, %v261
  %v1245 = vmax.f32 %v1155, %v262
  %v1246 = vmax.f32 %v1156, %v263
  %v1247 = vmax.f32 %v1157, %v264
  %v1248 = vmax.f32 %v1158, %v265
  %v1249 = vmax.f32 %v1159, %v266
  %v1250 = vmax.f32 %v1160, %v267
  %v1251 = vmax.f32 %v1161, %v268
  %v1252 = vmax.f32 %v1162, %v269
  %v1253 = vmax.f32 %v1163, %v270
  %v1254 = vmax.f32 %v1164, %v271
  %v1255 = vmax.f32 %v1165, %v272
  %v1256 = vmax.f32 %v1166, %v273
  %v1257 = vmax.f32 %v1167, %v274
  %v1258 = vmax.f32 %v1168, %v275
  %v1259 = vmax.f32 %v1169, %v276
  %v1260 = vmax.f32 %v1170, %v277
  %v1261 = vmax.f32 %v1171, %v278
  %v1262 = vmax.f32 %v1172, %v279
  %v1263 = vmax.f32 %v1173, %v280
  %v1264 = vmax.f32 %v1174, %v281
  %v1265 = vmax.f32 %v1175, %v282
  %v1266 = vmax.f32 %v1176, %v283
  %v1267 = vmax.f32 %v1177, %v284
  %v1268 = vmax.f32 %v1178, %v285
  %v1269 = vmax.f32 %v1179, %v286
  %v1270 = vmax.f32 %v1180, %v287
  %v1271 = vmax.f32 %v1181, %v288
  %v1272 = vmax.f32 %v1182, %v289
  %v1273 = vmax.f32 %v1183, %v290
  %v1274 = vmax.f32 %v1184, %v291
  %v1275 = vmax.f32 %v1185, %v292
  %v1276 = vmax.f32 %v1186, %v293
  %v1277 = vmax.f32 %v1187, %v294
  %v1278 = vmax.f32 %v1188, %v295
  %v1279 = vmax.f32 %v1189, %v296
  %v1280 = vmax.f32 %v1190, %v297
  %v1281 = vmax.f32 %v1191, %v298
  %v1372 = vrot.slane %v209, 1
  %v1373 = vrot.slane %v210, 1
  %v1374 = vsel %vm479, %v1372, %v1373
  %v1375 = vrot.slane %v211, 1
  %v1376 = vsel %vm479, %v1373, %v1375
  %v1377 = vrot.slane %v212, 1
  %v1378 = vrot.slane %v213, 1
  %v1379 = vsel %vm479, %v1377, %v1378
  %v1380 = vrot.slane %v214, 1
  %v1381 = vsel %vm479, %v1378, %v1380
  %v1382 = vrot.slane %v215, 1
  %v1383 = vrot.slane %v216, 1
  %v1384 = vsel %vm479, %v1382, %v1383
  %v1385 = vrot.slane %v217, 1
  %v1386 = vsel %vm479, %v1383, %v1385
  %v1387 = vrot.slane %v218, 1
  %v1388 = vrot.slane %v219, 1
  %v1389 = vsel %vm479, %v1387, %v1388
  %v1390 = vrot.slane %v220, 1
  %v1391 = vsel %vm479, %v1388, %v1390
  %v1392 = vrot.slane %v221, 1
  %v1393 = vrot.slane %v222, 1
  %v1394 = vsel %vm479, %v1392, %v1393
  %v1395 = vrot.slane %v223, 1
  %v1396 = vsel %vm479, %v1393, %v1395
  %v1397 = vrot.slane %v224, 1
  %v1398 = vrot.slane %v225, 1
  %v1399 = vsel %vm479, %v1397, %v1398
  %v1400 = vrot.slane %v226, 1
  %v1401 = vsel %vm479, %v1398, %v1400
  %v1402 = vrot.slane %v227, 1
  %v1403 = vrot.slane %v228, 1
  %v1404 = vsel %vm479, %v1402, %v1403
  %v1405 = vrot.slane %v229, 1
  %v1406 = vsel %vm479, %v1403, %v1405
  %v1407 = vrot.slane %v230, 1
  %v1408 = vrot.slane %v231, 1
  %v1409 = vsel %vm479, %v1407, %v1408
  %v1410 = vrot.slane %v232, 1
  %v1411 = vsel %vm479, %v1408, %v1410
  %v1412 = vrot.slane %v233, 1
  %v1413 = vrot.slane %v234, 1
  %v1414 = vsel %vm479, %v1412, %v1413
  %v1415 = vrot.slane %v235, 1
  %v1416 = vsel %vm479, %v1413, %v1415
  %v1417 = vrot.slane %v236, 1
  %v1418 = vrot.slane %v237, 1
  %v1419 = vsel %vm479, %v1417, %v1418
  %v1420 = vrot.slane %v238, 1
  %v1421 = vsel %vm479, %v1418, %v1420
  %v1422 = vrot.slane %v239, 1
  %v1423 = vrot.slane %v240, 1
  %v1424 = vsel %vm479, %v1422, %v1423
  %v1425 = vrot.slane %v241, 1
  %v1426 = vsel %vm479, %v1423, %v1425
  %v1427 = vrot.slane %v242, 1
  %v1428 = vrot.slane %v243, 1
  %v1429 = vsel %vm479, %v1427, %v1428
  %v1430 = vrot.slane %v244, 1
  %v1431 = vsel %vm479, %v1428, %v1430
  %v1432 = vrot.slane %v245, 1
  %v1433 = vrot.slane %v246, 1
  %v1434 = vsel %vm479, %v1432, %v1433
  %v1435 = vrot.slane %v247, 1
  %v1436 = vsel %vm479, %v1433, %v1435
  %v1437 = vrot.slane %v248, 1
  %v1438 = vrot.slane %v249, 1
  %v1439 = vsel %vm479, %v1437, %v1438
  %v1440 = vrot.slane %v250, 1
  %v1441 = vsel %vm479, %v1438, %v1440
  %v1442 = vrot.slane %v251, 1
  %v1443 = vrot.slane %v252, 1
  %v1444 = vsel %vm479, %v1442, %v1443
  %v1445 = vrot.slane %v253, 1
  %v1446 = vsel %vm479, %v1443, %v1445
  %v1447 = vrot.slane %v254, 1
  %v1448 = vrot.slane %v255, 1
  %v1449 = vsel %vm479, %v1447, %v1448
  %v1450 = vrot.slane %v256, 1
  %v1451 = vsel %vm479, %v1448, %v1450
  %v1452 = vrot.slane %v257, 1
  %v1453 = vrot.slane %v258, 1
  %v1454 = vsel %vm479, %v1452, %v1453
  %v1455 = vrot.slane %v259, 1
  %v1456 = vsel %vm479, %v1453, %v1455
  %v1457 = vrot.slane %v260, 1
  %v1458 = vrot.slane %v261, 1
  %v1459 = vsel %vm479, %v1457, %v1458
  %v1460 = vrot.slane %v262, 1
  %v1461 = vsel %vm479, %v1458, %v1460
  %v1462 = vrot.slane %v263, 1
  %v1463 = vrot.slane %v264, 1
  %v1464 = vsel %vm479, %v1462, %v1463
  %v1465 = vrot.slane %v265, 1
  %v1466 = vsel %vm479, %v1463, %v1465
  %v1467 = vrot.slane %v266, 1
  %v1468 = vrot.slane %v267, 1
  %v1469 = vsel %vm479, %v1467, %v1468
  %v1470 = vrot.slane %v268, 1
  %v1471 = vsel %vm479, %v1468, %v1470
  %v1472 = vrot.slane %v269, 1
  %v1473 = vrot.slane %v270, 1
  %v1474 = vsel %vm479, %v1472, %v1473
  %v1475 = vrot.slane %v271, 1
  %v1476 = vsel %vm479, %v1473, %v1475
  %v1477 = vrot.slane %v272, 1
  %v1478 = vrot.slane %v273, 1
  %v1479 = vsel %vm479, %v1477, %v1478
  %v1480 = vrot.slane %v274, 1
  %v1481 = vsel %vm479, %v1478, %v1480
  %v1482 = vrot.slane %v275, 1
  %v1483 = vrot.slane %v276, 1
  %v1484 = vsel %vm479, %v1482, %v1483
  %v1485 = vrot.slane %v277, 1
  %v1486 = vsel %vm479, %v1483, %v1485
  %v1487 = vrot.slane %v278, 1
  %v1488 = vrot.slane %v279, 1
  %v1489 = vsel %vm479, %v1487, %v1488
  %v1490 = vrot.slane %v280, 1
  %v1491 = vsel %vm479, %v1488, %v1490
  %v1492 = vrot.slane %v281, 1
  %v1493 = vrot.slane %v282, 1
  %v1494 = vsel %vm479, %v1492, %v1493
  %v1495 = vrot.slane %v283, 1
  %v1496 = vsel %vm479, %v1493, %v1495
  %v1497 = vrot.slane %v284, 1
  %v1498 = vrot.slane %v285, 1
  %v1499 = vsel %vm479, %v1497, %v1498
  %v1500 = vrot.slane %v286, 1
  %v1501 = vsel %vm479, %v1498, %v1500
  %v1502 = vrot.slane %v287, 1
  %v1503 = vrot.slane %v288, 1
  %v1504 = vsel %vm479, %v1502, %v1503
  %v1505 = vrot.slane %v289, 1
  %v1506 = vsel %vm479, %v1503, %v1505
  %v1507 = vrot.slane %v290, 1
  %v1508 = vrot.slane %v291, 1
  %v1509 = vsel %vm479, %v1507, %v1508
  %v1510 = vrot.slane %v292, 1
  %v1511 = vsel %vm479, %v1508, %v1510
  %v1512 = vrot.slane %v293, 1
  %v1513 = vrot.slane %v294, 1
  %v1514 = vsel %vm479, %v1512, %v1513
  %v1515 = vrot.slane %v295, 1
  %v1516 = vsel %vm479, %v1513, %v1515
  %v1517 = vrot.slane %v296, 1
  %v1518 = vrot.slane %v297, 1
  %v1519 = vsel %vm479, %v1517, %v1518
  %v1520 = vrot.slane %v298, 1
  %v1521 = vsel %vm479, %v1518, %v1520
  %v1612 = vmax.f32 %v1192, %v1374
  %v1613 = vmax.f32 %v1193, %v1376
  %v1614 = vmax.f32 %v1194, %v1375
  %v1615 = vmax.f32 %v1195, %v1379
  %v1616 = vmax.f32 %v1196, %v1381
  %v1617 = vmax.f32 %v1197, %v1380
  %v1618 = vmax.f32 %v1198, %v1384
  %v1619 = vmax.f32 %v1199, %v1386
  %v1620 = vmax.f32 %v1200, %v1385
  %v1621 = vmax.f32 %v1201, %v1389
  %v1622 = vmax.f32 %v1202, %v1391
  %v1623 = vmax.f32 %v1203, %v1390
  %v1624 = vmax.f32 %v1204, %v1394
  %v1625 = vmax.f32 %v1205, %v1396
  %v1626 = vmax.f32 %v1206, %v1395
  %v1627 = vmax.f32 %v1207, %v1399
  %v1628 = vmax.f32 %v1208, %v1401
  %v1629 = vmax.f32 %v1209, %v1400
  %v1630 = vmax.f32 %v1210, %v1404
  %v1631 = vmax.f32 %v1211, %v1406
  %v1632 = vmax.f32 %v1212, %v1405
  %v1633 = vmax.f32 %v1213, %v1409
  %v1634 = vmax.f32 %v1214, %v1411
  %v1635 = vmax.f32 %v1215, %v1410
  %v1636 = vmax.f32 %v1216, %v1414
  %v1637 = vmax.f32 %v1217, %v1416
  %v1638 = vmax.f32 %v1218, %v1415
  %v1639 = vmax.f32 %v1219, %v1419
  %v1640 = vmax.f32 %v1220, %v1421
  %v1641 = vmax.f32 %v1221, %v1420
  %v1642 = vmax.f32 %v1222, %v1424
  %v1643 = vmax.f32 %v1223, %v1426
  %v1644 = vmax.f32 %v1224, %v1425
  %v1645 = vmax.f32 %v1225, %v1429
  %v1646 = vmax.f32 %v1226, %v1431
  %v1647 = vmax.f32 %v1227, %v1430
  %v1648 = vmax.f32 %v1228, %v1434
  %v1649 = vmax.f32 %v1229, %v1436
  %v1650 = vmax.f32 %v1230, %v1435
  %v1651 = vmax.f32 %v1231, %v1439
  %v1652 = vmax.f32 %v1232, %v1441
  %v1653 = vmax.f32 %v1233, %v1440
  %v1654 = vmax.f32 %v1234, %v1444
  %v1655 = vmax.f32 %v1235, %v1446
  %v1656 = vmax.f32 %v1236, %v1445
  %v1657 = vmax.f32 %v1237, %v1449
  %v1658 = vmax.f32 %v1238, %v1451
  %v1659 = vmax.f32 %v1239, %v1450
  %v1660 = vmax.f32 %v1240, %v1454
  %v1661 = vmax.f32 %v1241, %v1456
  %v1662 = vmax.f32 %v1242, %v1455
  %v1663 = vmax.f32 %v1243, %v1459
  %v1664 = vmax.f32 %v1244, %v1461
  %v1665 = vmax.f32 %v1245, %v1460
  %v1666 = vmax.f32 %v1246, %v1464
  %v1667 = vmax.f32 %v1247, %v1466
  %v1668 = vmax.f32 %v1248, %v1465
  %v1669 = vmax.f32 %v1249, %v1469
  %v1670 = vmax.f32 %v1250, %v1471
  %v1671 = vmax.f32 %v1251, %v1470
  %v1672 = vmax.f32 %v1252, %v1474
  %v1673 = vmax.f32 %v1253, %v1476
  %v1674 = vmax.f32 %v1254, %v1475
  %v1675 = vmax.f32 %v1255, %v1479
  %v1676 = vmax.f32 %v1256, %v1481
  %v1677 = vmax.f32 %v1257, %v1480
  %v1678 = vmax.f32 %v1258, %v1484
  %v1679 = vmax.f32 %v1259, %v1486
  %v1680 = vmax.f32 %v1260, %v1485
  %v1681 = vmax.f32 %v1261, %v1489
  %v1682 = vmax.f32 %v1262, %v1491
  %v1683 = vmax.f32 %v1263, %v1490
  %v1684 = vmax.f32 %v1264, %v1494
  %v1685 = vmax.f32 %v1265, %v1496
  %v1686 = vmax.f32 %v1266, %v1495
  %v1687 = vmax.f32 %v1267, %v1499
  %v1688 = vmax.f32 %v1268, %v1501
  %v1689 = vmax.f32 %v1269, %v1500
  %v1690 = vmax.f32 %v1270, %v1504
  %v1691 = vmax.f32 %v1271, %v1506
  %v1692 = vmax.f32 %v1272, %v1505
  %v1693 = vmax.f32 %v1273, %v1509
  %v1694 = vmax.f32 %v1274, %v1511
  %v1695 = vmax.f32 %v1275, %v1510
  %v1696 = vmax.f32 %v1276, %v1514
  %v1697 = vmax.f32 %v1277, %v1516
  %v1698 = vmax.f32 %v1278, %v1515
  %v1699 = vmax.f32 %v1279, %v1519
  %v1700 = vmax.f32 %v1280, %v1521
  %v1701 = vmax.f32 %v1281, %v1520
  %v1702 = vmax.f32 %v1612, %v299
  %v1703 = vmax.f32 %v1613, %v300
  %v1704 = vmax.f32 %v1614, %v301
  %v1705 = vmax.f32 %v1615, %v302
  %v1706 = vmax.f32 %v1616, %v303
  %v1707 = vmax.f32 %v1617, %v304
  %v1708 = vmax.f32 %v1618, %v305
  %v1709 = vmax.f32 %v1619, %v306
  %v1710 = vmax.f32 %v1620, %v307
  %v1711 = vmax.f32 %v1621, %v308
  %v1712 = vmax.f32 %v1622, %v309
  %v1713 = vmax.f32 %v1623, %v310
  %v1714 = vmax.f32 %v1624, %v311
  %v1715 = vmax.f32 %v1625, %v312
  %v1716 = vmax.f32 %v1626, %v313
  %v1717 = vmax.f32 %v1627, %v314
  %v1718 = vmax.f32 %v1628, %v315
  %v1719 = vmax.f32 %v1629, %v316
  %v1720 = vmax.f32 %v1630, %v317
  %v1721 = vmax.f32 %v1631, %v318
  %v1722 = vmax.f32 %v1632, %v319
  %v1723 = vmax.f32 %v1633, %v320
  %v1724 = vmax.f32 %v1634, %v321
  %v1725 = vmax.f32 %v1635, %v322
  %v1726 = vmax.f32 %v1636, %v323
  %v1727 = vmax.f32 %v1637, %v324
  %v1728 = vmax.f32 %v1638, %v325
  %v1729 = vmax.f32 %v1639, %v326
  %v1730 = vmax.f32 %v1640, %v327
  %v1731 = vmax.f32 %v1641, %v328
  %v1732 = vmax.f32 %v1642, %v329
  %v1733 = vmax.f32 %v1643, %v330
  %v1734 = vmax.f32 %v1644, %v331
  %v1735 = vmax.f32 %v1645, %v332
  %v1736 = vmax.f32 %v1646, %v333
  %v1737 = vmax.f32 %v1647, %v334
  %v1738 = vmax.f32 %v1648, %v335
  %v1739 = vmax.f32 %v1649, %v336
  %v1740 = vmax.f32 %v1650, %v337
  %v1741 = vmax.f32 %v1651, %v338
  %v1742 = vmax.f32 %v1652, %v339
  %v1743 = vmax.f32 %v1653, %v340
  %v1744 = vmax.f32 %v1654, %v341
  %v1745 = vmax.f32 %v1655, %v342
  %v1746 = vmax.f32 %v1656, %v343
  %v1747 = vmax.f32 %v1657, %v344
  %v1748 = vmax.f32 %v1658, %v345
  %v1749 = vmax.f32 %v1659, %v346
  %v1750 = vmax.f32 %v1660, %v347
  %v1751 = vmax.f32 %v1661, %v348
  %v1752 = vmax.f32 %v1662, %v349
  %v1753 = vmax.f32 %v1663, %v350
  %v1754 = vmax.f32 %v1664, %v351
  %v1755 = vmax.f32 %v1665, %v352
  %v1756 = vmax.f32 %v1666, %v353
  %v1757 = vmax.f32 %v1667, %v354
  %v1758 = vmax.f32 %v1668, %v355
  %v1759 = vmax.f32 %v1669, %v356
  %v1760 = vmax.f32 %v1670, %v357
  %v1761 = vmax.f32 %v1671, %v358
  %v1762 = vmax.f32 %v1672, %v359
  %v1763 = vmax.f32 %v1673, %v360
  %v1764 = vmax.f32 %v1674, %v361
  %v1765 = vmax.f32 %v1675, %v362
  %v1766 = vmax.f32 %v1676, %v363
  %v1767 = vmax.f32 %v1677, %v364
  %v1768 = vmax.f32 %v1678, %v365
  %v1769 = vmax.f32 %v1679, %v366
  %v1770 = vmax.f32 %v1680, %v367
  %v1771 = vmax.f32 %v1681, %v368
  %v1772 = vmax.f32 %v1682, %v369
  %v1773 = vmax.f32 %v1683, %v370
  %v1774 = vmax.f32 %v1684, %v371
  %v1775 = vmax.f32 %v1685, %v372
  %v1776 = vmax.f32 %v1686, %v373
  %v1777 = vmax.f32 %v1687, %v374
  %v1778 = vmax.f32 %v1688, %v375
  %v1779 = vmax.f32 %v1689, %v376
  %v1780 = vmax.f32 %v1690, %v377
  %v1781 = vmax.f32 %v1691, %v378
  %v1782 = vmax.f32 %v1692, %v379
  %v1783 = vmax.f32 %v1693, %v380
  %v1784 = vmax.f32 %v1694, %v381
  %v1785 = vmax.f32 %v1695, %v382
  %v1786 = vmax.f32 %v1696, %v383
  %v1787 = vmax.f32 %v1697, %v384
  %v1788 = vmax.f32 %v1698, %v385
  %v1789 = vmax.f32 %v1699, %v386
  %v1790 = vmax.f32 %v1700, %v387
  %v1791 = vmax.f32 %v1701, %v388
  %vm1792 = vcmask 31744
  %1793 = vst.msk [vmem:[%s4] sm:$0xff] %vm1792, %v1702
  %1794 = vst.msk [vmem:[%s4 + $0x8] sm:$0xff] %vm1792, %v1703
  %vm1795 = vcmask 30720
  %1796 = vst.msk [vmem:[%s4 + $0x10] sm:$0x7f] %vm1795, %v1704
  %1797 = vst.msk [vmem:[%s4 + $0x18] sm:$0xff] %vm1792, %v1705
  %1798 = vst.msk [vmem:[%s4 + $0x20] sm:$0xff] %vm1792, %v1706
  %1799 = vst.msk [vmem:[%s4 + $0x28] sm:$0x7f] %vm1795, %v1707
  %1800 = vst.msk [vmem:[%s4 + $0x30] sm:$0xff] %vm1792, %v1708
  %1801 = vst.msk [vmem:[%s4 + $0x38] sm:$0xff] %vm1792, %v1709
  %1802 = vst.msk [vmem:[%s4 + $0x40] sm:$0x7f] %vm1795, %v1710
  %1803 = vst.msk [vmem:[%s4 + $0x48] sm:$0xff] %vm1792, %v1711
  %1804 = vst.msk [vmem:[%s4 + $0x50] sm:$0xff] %vm1792, %v1712
  %1805 = vst.msk [vmem:[%s4 + $0x58] sm:$0x7f] %vm1795, %v1713
  %1806 = vst.msk [vmem:[%s4 + $0x60] sm:$0xff] %vm1792, %v1714
  %1807 = vst.msk [vmem:[%s4 + $0x68] sm:$0xff] %vm1792, %v1715
  %1808 = vst.msk [vmem:[%s4 + $0x70] sm:$0x7f] %vm1795, %v1716
  %1809 = vst.msk [vmem:[%s4 + $0x78] sm:$0xff] %vm1792, %v1717
  %1810 = vst.msk [vmem:[%s4 + $0x80] sm:$0xff] %vm1792, %v1718
  %1811 = vst.msk [vmem:[%s4 + $0x88] sm:$0x7f] %vm1795, %v1719
  %1812 = vst.msk [vmem:[%s4 + $0x90] sm:$0xff] %vm1792, %v1720
  %1813 = vst.msk [vmem:[%s4 + $0x98] sm:$0xff] %vm1792, %v1721
  %1814 = vst.msk [vmem:[%s4 + $0xa0] sm:$0x7f] %vm1795, %v1722
  %1815 = vst.msk [vmem:[%s4 + $0xa8] sm:$0xff] %vm1792, %v1723
  %1816 = vst.msk [vmem:[%s4 + $0xb0] sm:$0xff] %vm1792, %v1724
  %1817 = vst.msk [vmem:[%s4 + $0xb8] sm:$0x7f] %vm1795, %v1725
  %1818 = vst.msk [vmem:[%s4 + $0xc0] sm:$0xff] %vm1792, %v1726
  %1819 = vst.msk [vmem:[%s4 + $0xc8] sm:$0xff] %vm1792, %v1727
  %1820 = vst.msk [vmem:[%s4 + $0xd0] sm:$0x7f] %vm1795, %v1728
  %1821 = vst.msk [vmem:[%s4 + $0xd8] sm:$0xff] %vm1792, %v1729
  %1822 = vst.msk [vmem:[%s4 + $0xe0] sm:$0xff] %vm1792, %v1730
  %1823 = vst.msk [vmem:[%s4 + $0xe8] sm:$0x7f] %vm1795, %v1731
  %1824 = vst.msk [vmem:[%s4 + $0xf0] sm:$0xff] %vm1792, %v1732
  %1825 = vst.msk [vmem:[%s4 + $0xf8] sm:$0xff] %vm1792, %v1733
  %1826 = vst.msk [vmem:[%s4 + $0x100] sm:$0x7f] %vm1795, %v1734
  %1827 = vst.msk [vmem:[%s4 + $0x108] sm:$0xff] %vm1792, %v1735
  %1828 = vst.msk [vmem:[%s4 + $0x110] sm:$0xff] %vm1792, %v1736
  %1829 = vst.msk [vmem:[%s4 + $0x118] sm:$0x7f] %vm1795, %v1737
  %1830 = vst.msk [vmem:[%s4 + $0x120] sm:$0xff] %vm1792, %v1738
  %1831 = vst.msk [vmem:[%s4 + $0x128] sm:$0xff] %vm1792, %v1739
  %1832 = vst.msk [vmem:[%s4 + $0x130] sm:$0x7f] %vm1795, %v1740
  %1833 = vst.msk [vmem:[%s4 + $0x138] sm:$0xff] %vm1792, %v1741
  %1834 = vst.msk [vmem:[%s4 + $0x140] sm:$0xff] %vm1792, %v1742
  %1835 = vst.msk [vmem:[%s4 + $0x148] sm:$0x7f] %vm1795, %v1743
  %1836 = vst.msk [vmem:[%s4 + $0x150] sm:$0xff] %vm1792, %v1744
  %1837 = vst.msk [vmem:[%s4 + $0x158] sm:$0xff] %vm1792, %v1745
  %1838 = vst.msk [vmem:[%s4 + $0x160] sm:$0x7f] %vm1795, %v1746
  %1839 = vst.msk [vmem:[%s4 + $0x168] sm:$0xff] %vm1792, %v1747
  %1840 = vst.msk [vmem:[%s4 + $0x170] sm:$0xff] %vm1792, %v1748
  %1841 = vst.msk [vmem:[%s4 + $0x178] sm:$0x7f] %vm1795, %v1749
  %1842 = vst.msk [vmem:[%s4 + $0x180] sm:$0xff] %vm1792, %v1750
  %1843 = vst.msk [vmem:[%s4 + $0x188] sm:$0xff] %vm1792, %v1751
  %1844 = vst.msk [vmem:[%s4 + $0x190] sm:$0x7f] %vm1795, %v1752
  %1845 = vst.msk [vmem:[%s4 + $0x198] sm:$0xff] %vm1792, %v1753
  %1846 = vst.msk [vmem:[%s4 + $0x1a0] sm:$0xff] %vm1792, %v1754
  %1847 = vst.msk [vmem:[%s4 + $0x1a8] sm:$0x7f] %vm1795, %v1755
  %1848 = vst.msk [vmem:[%s4 + $0x1b0] sm:$0xff] %vm1792, %v1756
  %1849 = vst.msk [vmem:[%s4 + $0x1b8] sm:$0xff] %vm1792, %v1757
  %1850 = vst.msk [vmem:[%s4 + $0x1c0] sm:$0x7f] %vm1795, %v1758
  %1851 = vst.msk [vmem:[%s4 + $0x1c8] sm:$0xff] %vm1792, %v1759
  %1852 = vst.msk [vmem:[%s4 + $0x1d0] sm:$0xff] %vm1792, %v1760
  %1853 = vst.msk [vmem:[%s4 + $0x1d8] sm:$0x7f] %vm1795, %v1761
  %1854 = vst.msk [vmem:[%s4 + $0x1e0] sm:$0xff] %vm1792, %v1762
  %1855 = vst.msk [vmem:[%s4 + $0x1e8] sm:$0xff] %vm1792, %v1763
  %1856 = vst.msk [vmem:[%s4 + $0x1f0] sm:$0x7f] %vm1795, %v1764
  %1857 = vst.msk [vmem:[%s4 + $0x1f8] sm:$0xff] %vm1792, %v1765
  %1858 = vst.msk [vmem:[%s4 + $0x200] sm:$0xff] %vm1792, %v1766
  %1859 = vst.msk [vmem:[%s4 + $0x208] sm:$0x7f] %vm1795, %v1767
  %1860 = vst.msk [vmem:[%s4 + $0x210] sm:$0xff] %vm1792, %v1768
  %1861 = vst.msk [vmem:[%s4 + $0x218] sm:$0xff] %vm1792, %v1769
  %1862 = vst.msk [vmem:[%s4 + $0x220] sm:$0x7f] %vm1795, %v1770
  %1863 = vst.msk [vmem:[%s4 + $0x228] sm:$0xff] %vm1792, %v1771
  %1864 = vst.msk [vmem:[%s4 + $0x230] sm:$0xff] %vm1792, %v1772
  %1865 = vst.msk [vmem:[%s4 + $0x238] sm:$0x7f] %vm1795, %v1773
  %1866 = vst.msk [vmem:[%s4 + $0x240] sm:$0xff] %vm1792, %v1774
  %1867 = vst.msk [vmem:[%s4 + $0x248] sm:$0xff] %vm1792, %v1775
  %1868 = vst.msk [vmem:[%s4 + $0x250] sm:$0x7f] %vm1795, %v1776
  %1869 = vst.msk [vmem:[%s4 + $0x258] sm:$0xff] %vm1792, %v1777
  %1870 = vst.msk [vmem:[%s4 + $0x260] sm:$0xff] %vm1792, %v1778
  %1871 = vst.msk [vmem:[%s4 + $0x268] sm:$0x7f] %vm1795, %v1779
  %1872 = vst.msk [vmem:[%s4 + $0x270] sm:$0xff] %vm1792, %v1780
  %1873 = vst.msk [vmem:[%s4 + $0x278] sm:$0xff] %vm1792, %v1781
  %1874 = vst.msk [vmem:[%s4 + $0x280] sm:$0x7f] %vm1795, %v1782
  %1875 = vst.msk [vmem:[%s4 + $0x288] sm:$0xff] %vm1792, %v1783
  %1876 = vst.msk [vmem:[%s4 + $0x290] sm:$0xff] %vm1792, %v1784
  %1877 = vst.msk [vmem:[%s4 + $0x298] sm:$0x7f] %vm1795, %v1785
  %1878 = vst.msk [vmem:[%s4 + $0x2a0] sm:$0xff] %vm1792, %v1786
  %1879 = vst.msk [vmem:[%s4 + $0x2a8] sm:$0xff] %vm1792, %v1787
  %1880 = vst.msk [vmem:[%s4 + $0x2b0] sm:$0x7f] %vm1795, %v1788
  %1881 = vst.msk [vmem:[%s4 + $0x2b8] sm:$0xff] %vm1792, %v1789
  %1882 = vst.msk [vmem:[%s4 + $0x2c0] sm:$0xff] %vm1792, %v1790
  %1883 = vst.msk [vmem:[%s4 + $0x2c8] sm:$0x7f] %vm1795, %v1791
  // Predicated region
  $region18: #{coughnet_nano_forward.6} parent=0 // pred_check
    _
  $region19: #{coughnet_nano_forward.6} parent=0 // pred_check_branch
    %1885 = sbr.rel (0) target = $region21
  $region20: #{coughnet_nano_forward.6} parent=0 // pred_region
    _
  $region21: #{coughnet_nano_forward.6} parent=0 // pred_fallthru
    _
  // Predicated region
  $region22: #{coughnet_nano_forward.6} parent=0 // pred_check
    _
  $region23: #{coughnet_nano_forward.6} parent=0 // pred_check_branch
    %1887 = sbr.rel (0) target = $region25
  $region24: #{coughnet_nano_forward.6} parent=0 // pred_region
    _
  $region25: #{coughnet_nano_forward.6} parent=0 // pred_fallthru
    _

// kernel: coughnet_nano_forward.5
$region0: #{coughnet_nano_forward.5}
  #allocation0 [shape = 'u32[]', space=smem, size = 0x4, offset = 0x4, fixed_abs, tag = 'smem constant byte address 0x4 - core index']
  #allocation1 [shape = 'u32[72,128]{1,0:T(1,128)}', space=vmem, size = 0x9000, scoped, tag = 'internal scratch']
  %s0 = inlined_call_operand.vmem [shape: bf16[2914,289], index: 0, kind: input, shape index: {}]
  %s1 = inlined_call_operand.vmem [shape: bf16[289,4], index: 1, kind: input, shape index: {}]
  %s2 = inlined_call_operand.vmem [shape: f32[1,4], index: 2, kind: input, shape index: {}]
  %s3 = inlined_call_operand.vmem [shape: f32[2914,4], index: 3, kind: output, shape index: {}]
  %s4 = sld [smem:[#allocation0]]
  $region22: #{coughnet_nano_forward.5} parent=0
    _
  %s6 = ssub.s32 1, %s4
  %s7 = scalar_select 0, %s6, %s4
  // Predicated region
  $region2: #{coughnet_nano_forward.5} parent=0 // pred_check
    _
  $region3: #{coughnet_nano_forward.5} parent=0 // pred_check_branch
    %9 = sbr.rel (0) target = $region5
  $region4: #{coughnet_nano_forward.5} parent=0 // pred_region
    _
  $region5: #{coughnet_nano_forward.5} parent=0 // pred_fallthru
    _
  // Predicated region
  $region6: #{coughnet_nano_forward.5} parent=0 // pred_check
    _
  $region7: #{coughnet_nano_forward.5} parent=0 // pred_check_branch
    %11 = sbr.rel (0) target = $region9
  $region8: #{coughnet_nano_forward.5} parent=0 // pred_region
    _
  $region9: #{coughnet_nano_forward.5} parent=0 // pred_fallthru
    _
  // Predicated region
  $region10: #{coughnet_nano_forward.5} parent=0 // pred_check
    _
  $region11: #{coughnet_nano_forward.5} parent=0 // pred_check_branch
    %13 = sbr.rel (0) target = $region13
  $region12: #{coughnet_nano_forward.5} parent=0 // pred_region
    _
  $region13: #{coughnet_nano_forward.5} parent=0 // pred_fallthru
    _
  %v15 = vld [vmem:[%s0] sm:$0xff]
  %v16 = vld [vmem:[%s0 + $0x8] sm:$0xf]
  %v17 = vld [vmem:[%s0 + $0xc] sm:$0xff]
  %v18 = vld [vmem:[%s0 + $0x14] sm:$0xf]
  %v19 = vld [vmem:[%s0 + $0x18] sm:$0xff]
  %v20 = vld [vmem:[%s0 + $0x20] sm:$0xf]
  %v21 = vld [vmem:[%s0 + $0x24] sm:$0xff]
  %v22 = vld [vmem:[%s0 + $0x2c] sm:$0xf]
  %v23 = vld [vmem:[%s0 + $0x30] sm:$0xff]
  %v24 = vld [vmem:[%s0 + $0x38] sm:$0xf]
  %v25 = vld [vmem:[%s0 + $0x3c] sm:$0xff]
  %v26 = vld [vmem:[%s0 + $0x44] sm:$0xf]
  %v27 = vld [vmem:[%s0 + $0x48] sm:$0xff]
  %v28 = vld [vmem:[%s0 + $0x50] sm:$0xf]
  %v29 = vld [vmem:[%s0 + $0x54] sm:$0xff]
  %v30 = vld [vmem:[%s0 + $0x5c] sm:$0xf]
  %v31 = vld [vmem:[%s0 + $0x60] sm:$0xff]
  %v32 = vld [vmem:[%s0 + $0x68] sm:$0xf]
  %v33 = vld [vmem:[%s0 + $0x6c] sm:$0xff]
  %v34 = vld [vmem:[%s0 + $0x74] sm:$0xf]
  %v35 = vld [vmem:[%s0 + $0x78] sm:$0xff]
  %v36 = vld [vmem:[%s0 + $0x80] sm:$0xf]
  %v37 = vld [vmem:[%s0 + $0x84] sm:$0xff]
  %v38 = vld [vmem:[%s0 + $0x8c] sm:$0xf]
  %v39 = vld [vmem:[%s0 + $0x90] sm:$0xff]
  %v40 = vld [vmem:[%s0 + $0x98] sm:$0xf]
  %v41 = vld [vmem:[%s0 + $0x9c] sm:$0xff]
  %v42 = vld [vmem:[%s0 + $0xa4] sm:$0xf]
  %v43 = vld [vmem:[%s0 + $0xa8] sm:$0xff]
  %v44 = vld [vmem:[%s0 + $0xb0] sm:$0xf]
  %v45 = vld [vmem:[%s0 + $0xb4] sm:$0xff]
  %v46 = vld [vmem:[%s0 + $0xbc] sm:$0xf]
  %v47 = vld [vmem:[%s0 + $0xc0] sm:$0xff]
  %v48 = vld [vmem:[%s0 + $0xc8] sm:$0xf]
  %v49 = vld [vmem:[%s0 + $0xcc] sm:$0xff]
  %v50 = vld [vmem:[%s0 + $0xd4] sm:$0xf]
  %v51 = vld [vmem:[%s0 + $0xd8] sm:$0xff]
  %v52 = vld [vmem:[%s0 + $0xe0] sm:$0xf]
  %v53 = vld [vmem:[%s0 + $0xe4] sm:$0xff]
  %v54 = vld [vmem:[%s0 + $0xec] sm:$0xf]
  %v55 = vld [vmem:[%s0 + $0xf0] sm:$0xff]
  %v56 = vld [vmem:[%s0 + $0xf8] sm:$0xf]
  %v57 = vld [vmem:[%s0 + $0xfc] sm:$0xff]
  %v58 = vld [vmem:[%s0 + $0x104] sm:$0xf]
  %v59 = vld [vmem:[%s0 + $0x108] sm:$0xff]
  %v60 = vld [vmem:[%s0 + $0x110] sm:$0xf]
  %v61 = vld [vmem:[%s0 + $0x114] sm:$0xff]
  %v62 = vld [vmem:[%s0 + $0x11c] sm:$0xf]
  %v63 = vld [vmem:[%s0 + $0x120] sm:$0xff]
  %v64 = vld [vmem:[%s0 + $0x128] sm:$0xf]
  %v65 = vld [vmem:[%s0 + $0x12c] sm:$0xff]
  %v66 = vld [vmem:[%s0 + $0x134] sm:$0xf]
  %v67 = vld [vmem:[%s0 + $0x138] sm:$0xff]
  %v68 = vld [vmem:[%s0 + $0x140] sm:$0xf]
  %v69 = vld [vmem:[%s0 + $0x144] sm:$0xff]
  %v70 = vld [vmem:[%s0 + $0x14c] sm:$0xf]
  %v71 = vld [vmem:[%s0 + $0x150] sm:$0xff]
  %v72 = vld [vmem:[%s0 + $0x158] sm:$0xf]
  %v73 = vld [vmem:[%s0 + $0x15c] sm:$0xff]
  %v74 = vld [vmem:[%s0 + $0x164] sm:$0xf]
  %v75 = vld [vmem:[%s0 + $0x168] sm:$0xff]
  %v76 = vld [vmem:[%s0 + $0x170] sm:$0xf]
  %v77 = vld [vmem:[%s0 + $0x174] sm:$0xff]
  %v78 = vld [vmem:[%s0 + $0x17c] sm:$0xf]
  %v79 = vld [vmem:[%s0 + $0x180] sm:$0xff]
  %v80 = vld [vmem:[%s0 + $0x188] sm:$0xf]
  %v81 = vld [vmem:[%s0 + $0x18c] sm:$0xff]
  %v82 = vld [vmem:[%s0 + $0x194] sm:$0xf]
  %v83 = vld [vmem:[%s0 + $0x198] sm:$0xff]
  %v84 = vld [vmem:[%s0 + $0x1a0] sm:$0xf]
  %v85 = vld [vmem:[%s0 + $0x1a4] sm:$0xff]
  %v86 = vld [vmem:[%s0 + $0x1ac] sm:$0xf]
  %v87 = vld [vmem:[%s0 + $0x1b0] sm:$0xff]
  %v88 = vld [vmem:[%s0 + $0x1b8] sm:$0xf]
  %v89 = vld [vmem:[%s0 + $0x1bc] sm:$0xff]
  %v90 = vld [vmem:[%s0 + $0x1c4] sm:$0xf]
  %v91 = vld [vmem:[%s0 + $0x1c8] sm:$0xff]
  %v92 = vld [vmem:[%s0 + $0x1d0] sm:$0xf]
  %v93 = vld [vmem:[%s0 + $0x1d4] sm:$0xff]
  %v94 = vld [vmem:[%s0 + $0x1dc] sm:$0xf]
  %v95 = vld [vmem:[%s0 + $0x1e0] sm:$0xff]
  %v96 = vld [vmem:[%s0 + $0x1e8] sm:$0xf]
  %v97 = vld [vmem:[%s0 + $0x1ec] sm:$0xff]
  %v98 = vld [vmem:[%s0 + $0x1f4] sm:$0xf]
  %v99 = vld [vmem:[%s0 + $0x1f8] sm:$0xff]
  %v100 = vld [vmem:[%s0 + $0x200] sm:$0xf]
  %v101 = vld [vmem:[%s0 + $0x204] sm:$0xff]
  %v102 = vld [vmem:[%s0 + $0x20c] sm:$0xf]
  %v103 = vld [vmem:[%s0 + $0x210] sm:$0xff]
  %v104 = vld [vmem:[%s0 + $0x218] sm:$0xf]
  %v105 = vld [vmem:[%s0 + $0x21c] sm:$0xff]
  %v106 = vld [vmem:[%s0 + $0x224] sm:$0xf]
  %v107 = vld [vmem:[%s0 + $0x228] sm:$0xff]
  %v108 = vld [vmem:[%s0 + $0x230] sm:$0xf]
  %v109 = vld [vmem:[%s0 + $0x234] sm:$0xff]
  %v110 = vld [vmem:[%s0 + $0x23c] sm:$0xf]
  %v111 = vld [vmem:[%s0 + $0x240] sm:$0xff]
  %v112 = vld [vmem:[%s0 + $0x248] sm:$0xf]
  %v113 = vld [vmem:[%s0 + $0x24c] sm:$0xff]
  %v114 = vld [vmem:[%s0 + $0x254] sm:$0xf]
  %v115 = vld [vmem:[%s0 + $0x258] sm:$0xff]
  %v116 = vld [vmem:[%s0 + $0x260] sm:$0xf]
  %v117 = vld [vmem:[%s0 + $0x264] sm:$0xff]
  %v118 = vld [vmem:[%s0 + $0x26c] sm:$0xf]
  %v119 = vld [vmem:[%s0 + $0x270] sm:$0xff]
  %v120 = vld [vmem:[%s0 + $0x278] sm:$0xf]
  %v121 = vld [vmem:[%s0 + $0x27c] sm:$0xff]
  %v122 = vld [vmem:[%s0 + $0x284] sm:$0xf]
  %v123 = vld [vmem:[%s0 + $0x288] sm:$0xff]
  %v124 = vld [vmem:[%s0 + $0x290] sm:$0xf]
  %v125 = vld [vmem:[%s0 + $0x294] sm:$0xff]
  %v126 = vld [vmem:[%s0 + $0x29c] sm:$0xf]
  %v127 = vld [vmem:[%s0 + $0x2a0] sm:$0xff]
  %v128 = vld [vmem:[%s0 + $0x2a8] sm:$0xf]
  %v129 = vld [vmem:[%s0 + $0x2ac] sm:$0xff]
  %v130 = vld [vmem:[%s0 + $0x2b4] sm:$0xf]
  %v131 = vld [vmem:[%s0 + $0x2b8] sm:$0xff]
  %v132 = vld [vmem:[%s0 + $0x2c0] sm:$0xf]
  %v133 = vld [vmem:[%s0 + $0x2c4] sm:$0xff]
  %v134 = vld [vmem:[%s0 + $0x2cc] sm:$0xf]
  %v135 = vld [vmem:[%s0 + $0x2d0] sm:$0xff]
  %v136 = vld [vmem:[%s0 + $0x2d8] sm:$0xf]
  %v137 = vld [vmem:[%s0 + $0x2dc] sm:$0xff]
  %v138 = vld [vmem:[%s0 + $0x2e4] sm:$0xf]
  %v139 = vld [vmem:[%s0 + $0x2e8] sm:$0xff]
  %v140 = vld [vmem:[%s0 + $0x2f0] sm:$0xf]
  %v141 = vld [vmem:[%s0 + $0x2f4] sm:$0xff]
  %v142 = vld [vmem:[%s0 + $0x2fc] sm:$0xf]
  %v143 = vld [vmem:[%s0 + $0x300] sm:$0xff]
  %v144 = vld [vmem:[%s0 + $0x308] sm:$0xf]
  %v145 = vld [vmem:[%s0 + $0x30c] sm:$0xff]
  %v146 = vld [vmem:[%s0 + $0x314] sm:$0xf]
  %v147 = vld [vmem:[%s0 + $0x318] sm:$0xff]
  %v148 = vld [vmem:[%s0 + $0x320] sm:$0xf]
  %v149 = vld [vmem:[%s0 + $0x324] sm:$0xff]
  %v150 = vld [vmem:[%s0 + $0x32c] sm:$0xf]
  %v151 = vld [vmem:[%s0 + $0x330] sm:$0xff]
  %v152 = vld [vmem:[%s0 + $0x338] sm:$0xf]
  %v153 = vld [vmem:[%s0 + $0x33c] sm:$0xff]
  %v154 = vld [vmem:[%s0 + $0x344] sm:$0xf]
  %v155 = vld [vmem:[%s0 + $0x348] sm:$0xff]
  %v156 = vld [vmem:[%s0 + $0x350] sm:$0xf]
  %v157 = vld [vmem:[%s0 + $0x354] sm:$0xff]
  %v158 = vld [vmem:[%s0 + $0x35c] sm:$0xf]
  %v159 = vld [vmem:[%s0 + $0x360] sm:$0xff]
  %v160 = vld [vmem:[%s0 + $0x368] sm:$0xf]
  %v161 = vld [vmem:[%s0 + $0x36c] sm:$0xff]
  %v162 = vld [vmem:[%s0 + $0x374] sm:$0xf]
  %v163 = vld [vmem:[%s0 + $0x378] sm:$0xff]
  %v164 = vld [vmem:[%s0 + $0x380] sm:$0xf]
  %v165 = vld [vmem:[%s0 + $0x384] sm:$0xff]
  %v166 = vld [vmem:[%s0 + $0x38c] sm:$0xf]
  %v167 = vld [vmem:[%s0 + $0x390] sm:$0xff]
  %v168 = vld [vmem:[%s0 + $0x398] sm:$0xf]
  %v169 = vld [vmem:[%s0 + $0x39c] sm:$0xff]
  %v170 = vld [vmem:[%s0 + $0x3a4] sm:$0xf]
  %v171 = vld [vmem:[%s0 + $0x3a8] sm:$0xff]
  %v172 = vld [vmem:[%s0 + $0x3b0] sm:$0xf]
  %v173 = vld [vmem:[%s0 + $0x3b4] sm:$0xff]
  %v174 = vld [vmem:[%s0 + $0x3bc] sm:$0xf]
  %v175 = vld [vmem:[%s0 + $0x3c0] sm:$0xff]
  %v176 = vld [vmem:[%s0 + $0x3c8] sm:$0xf]
  %v177 = vld [vmem:[%s0 + $0x3cc] sm:$0xff]
  %v178 = vld [vmem:[%s0 + $0x3d4] sm:$0xf]
  %v179 = vld [vmem:[%s0 + $0x3d8] sm:$0xff]
  %v180 = vld [vmem:[%s0 + $0x3e0] sm:$0xf]
  %v181 = vld [vmem:[%s0 + $0x3e4] sm:$0xff]
  %v182 = vld [vmem:[%s0 + $0x3ec] sm:$0xf]
  %v183 = vld [vmem:[%s0 + $0x3f0] sm:$0xff]
  %v184 = vld [vmem:[%s0 + $0x3f8] sm:$0xf]
  %v185 = vld [vmem:[%s0 + $0x3fc] sm:$0xff]
  %v186 = vld [vmem:[%s0 + $0x404] sm:$0xf]
  %v187 = vld [vmem:[%s0 + $0x408] sm:$0xff]
  %v188 = vld [vmem:[%s0 + $0x410] sm:$0xf]
  %v189 = vld [vmem:[%s0 + $0x414] sm:$0xff]
  %v190 = vld [vmem:[%s0 + $0x41c] sm:$0xf]
  %v191 = vld [vmem:[%s0 + $0x420] sm:$0xff]
  %v192 = vld [vmem:[%s0 + $0x428] sm:$0xf]
  %v193 = vld [vmem:[%s0 + $0x42c] sm:$0xff]
  %v194 = vld [vmem:[%s0 + $0x434] sm:$0xf]
  %v195 = vld [vmem:[%s0 + $0x438] sm:$0xff]
  %v196 = vld [vmem:[%s0 + $0x440] sm:$0xf]
  %v197 = vld [vmem:[%s0 + $0x444] sm:$0xff]
  %v198 = vld [vmem:[%s0 + $0x44c] sm:$0xf]
  %v199 = vld [vmem:[%s0 + $0x450] sm:$0xff]
  %v200 = vld [vmem:[%s0 + $0x458] sm:$0xf]
  %v201 = vld [vmem:[%s0 + $0x45c] sm:$0xff]
  %v202 = vld [vmem:[%s0 + $0x464] sm:$0xf]
  %v203 = vld [vmem:[%s0 + $0x468] sm:$0xff]
  %v204 = vld [vmem:[%s0 + $0x470] sm:$0xf]
  %v205 = vld [vmem:[%s0 + $0x474] sm:$0xff]
  %v206 = vld [vmem:[%s0 + $0x47c] sm:$0xf]
  %v207 = vld [vmem:[%s0 + $0x480] sm:$0xff]
  %v208 = vld [vmem:[%s0 + $0x488] sm:$0xf]
  %v209 = vld [vmem:[%s0 + $0x48c] sm:$0xff]
  %v210 = vld [vmem:[%s0 + $0x494] sm:$0xf]
  %v211 = vld [vmem:[%s0 + $0x498] sm:$0xff]
  %v212 = vld [vmem:[%s0 + $0x4a0] sm:$0xf]
  %v213 = vld [vmem:[%s0 + $0x4a4] sm:$0xff]
  %v214 = vld [vmem:[%s0 + $0x4ac] sm:$0xf]
  %v215 = vld [vmem:[%s0 + $0x4b0] sm:$0xff]
  %v216 = vld [vmem:[%s0 + $0x4b8] sm:$0xf]
  %v217 = vld [vmem:[%s0 + $0x4bc] sm:$0xff]
  %v218 = vld [vmem:[%s0 + $0x4c4] sm:$0xf]
  %v219 = vld [vmem:[%s0 + $0x4c8] sm:$0xff]
  %v220 = vld [vmem:[%s0 + $0x4d0] sm:$0xf]
  %v221 = vld [vmem:[%s0 + $0x4d4] sm:$0xff]
  %v222 = vld [vmem:[%s0 + $0x4dc] sm:$0xf]
  %v223 = vld [vmem:[%s0 + $0x4e0] sm:$0xff]
  %v224 = vld [vmem:[%s0 + $0x4e8] sm:$0xf]
  %v225 = vld [vmem:[%s0 + $0x4ec] sm:$0xff]
  %v226 = vld [vmem:[%s0 + $0x4f4] sm:$0xf]
  %v227 = vld [vmem:[%s0 + $0x4f8] sm:$0xff]
  %v228 = vld [vmem:[%s0 + $0x500] sm:$0xf]
  %v229 = vld [vmem:[%s0 + $0x504] sm:$0xff]
  %v230 = vld [vmem:[%s0 + $0x50c] sm:$0xf]
  %v231 = vld [vmem:[%s0 + $0x510] sm:$0xff]
  %v232 = vld [vmem:[%s0 + $0x518] sm:$0xf]
  %v233 = vld [vmem:[%s0 + $0x51c] sm:$0xff]
  %v234 = vld [vmem:[%s0 + $0x524] sm:$0xf]
  %v235 = vld [vmem:[%s0 + $0x528] sm:$0xff]
  %v236 = vld [vmem:[%s0 + $0x530] sm:$0xf]
  %v237 = vld [vmem:[%s0 + $0x534] sm:$0xff]
  %v238 = vld [vmem:[%s0 + $0x53c] sm:$0xf]
  %v239 = vld [vmem:[%s0 + $0x540] sm:$0xff]
  %v240 = vld [vmem:[%s0 + $0x548] sm:$0xf]
  %v241 = vld [vmem:[%s0 + $0x54c] sm:$0xff]
  %v242 = vld [vmem:[%s0 + $0x554] sm:$0xf]
  %v243 = vld [vmem:[%s0 + $0x558] sm:$0xff]
  %v244 = vld [vmem:[%s0 + $0x560] sm:$0xf]
  %v245 = vld [vmem:[%s0 + $0x564] sm:$0xff]
  %v246 = vld [vmem:[%s0 + $0x56c] sm:$0xf]
  %v247 = vld [vmem:[%s0 + $0x570] sm:$0xff]
  %v248 = vld [vmem:[%s0 + $0x578] sm:$0xf]
  %v249 = vld [vmem:[%s0 + $0x57c] sm:$0xff]
  %v250 = vld [vmem:[%s0 + $0x584] sm:$0xf]
  %v251 = vld [vmem:[%s0 + $0x588] sm:$0xff]
  %v252 = vld [vmem:[%s0 + $0x590] sm:$0xf]
  %v253 = vld [vmem:[%s0 + $0x594] sm:$0xff]
  %v254 = vld [vmem:[%s0 + $0x59c] sm:$0xf]
  %v255 = vld [vmem:[%s0 + $0x5a0] sm:$0xff]
  %v256 = vld [vmem:[%s0 + $0x5a8] sm:$0xf]
  %v257 = vld [vmem:[%s0 + $0x5ac] sm:$0xff]
  %v258 = vld [vmem:[%s0 + $0x5b4] sm:$0xf]
  %v259 = vld [vmem:[%s0 + $0x5b8] sm:$0xff]
  %v260 = vld [vmem:[%s0 + $0x5c0] sm:$0xf]
  %v261 = vld [vmem:[%s0 + $0x5c4] sm:$0xff]
  %v262 = vld [vmem:[%s0 + $0x5cc] sm:$0xf]
  %v263 = vld [vmem:[%s0 + $0x5d0] sm:$0xff]
  %v264 = vld [vmem:[%s0 + $0x5d8] sm:$0xf]
  %v265 = vld [vmem:[%s0 + $0x5dc] sm:$0xff]
  %v266 = vld [vmem:[%s0 + $0x5e4] sm:$0xf]
  %v267 = vld [vmem:[%s0 + $0x5e8] sm:$0xff]
  %v268 = vld [vmem:[%s0 + $0x5f0] sm:$0xf]
  %v269 = vld [vmem:[%s0 + $0x5f4] sm:$0xff]
  %v270 = vld [vmem:[%s0 + $0x5fc] sm:$0xf]
  %v271 = vld [vmem:[%s0 + $0x600] sm:$0xff]
  %v272 = vld [vmem:[%s0 + $0x608] sm:$0xf]
  %v273 = vld [vmem:[%s0 + $0x60c] sm:$0xff]
  %v274 = vld [vmem:[%s0 + $0x614] sm:$0xf]
  %v275 = vld [vmem:[%s0 + $0x618] sm:$0xff]
  %v276 = vld [vmem:[%s0 + $0x620] sm:$0xf]
  %v277 = vld [vmem:[%s0 + $0x624] sm:$0xff]
  %v278 = vld [vmem:[%s0 + $0x62c] sm:$0xf]
  %v279 = vld [vmem:[%s0 + $0x630] sm:$0xff]
  %v280 = vld [vmem:[%s0 + $0x638] sm:$0xf]
  %v281 = vld [vmem:[%s0 + $0x63c] sm:$0xff]
  %v282 = vld [vmem:[%s0 + $0x644] sm:$0xf]
  %v283 = vld [vmem:[%s0 + $0x648] sm:$0xff]
  %v284 = vld [vmem:[%s0 + $0x650] sm:$0xf]
  %v285 = vld [vmem:[%s0 + $0x654] sm:$0xff]
  %v286 = vld [vmem:[%s0 + $0x65c] sm:$0xf]
  %v287 = vld [vmem:[%s0 + $0x660] sm:$0xff]
  %v288 = vld [vmem:[%s0 + $0x668] sm:$0xf]
  %v289 = vld [vmem:[%s0 + $0x66c] sm:$0xff]
  %v290 = vld [vmem:[%s0 + $0x674] sm:$0xf]
  %v291 = vld [vmem:[%s0 + $0x678] sm:$0xff]
  %v292 = vld [vmem:[%s0 + $0x680] sm:$0xf]
  %v293 = vld [vmem:[%s0 + $0x684] sm:$0xff]
  %v294 = vld [vmem:[%s0 + $0x68c] sm:$0xf]
  %v295 = vld [vmem:[%s0 + $0x690] sm:$0xff]
  %v296 = vld [vmem:[%s0 + $0x698] sm:$0xf]
  %v297 = vld [vmem:[%s0 + $0x69c] sm:$0xff]
  %v298 = vld [vmem:[%s0 + $0x6a4] sm:$0xf]
  %v299 = vld [vmem:[%s0 + $0x6a8] sm:$0xff]
  %v300 = vld [vmem:[%s0 + $0x6b0] sm:$0xf]
  %v301 = vld [vmem:[%s0 + $0x6b4] sm:$0xff]
  %v302 = vld [vmem:[%s0 + $0x6bc] sm:$0xf]
  %v303 = vld [vmem:[%s0 + $0x6c0] sm:$0xff]
  %v304 = vld [vmem:[%s0 + $0x6c8] sm:$0xf]
  %v305 = vld [vmem:[%s0 + $0x6cc] sm:$0xff]
  %v306 = vld [vmem:[%s0 + $0x6d4] sm:$0xf]
  %v307 = vld [vmem:[%s0 + $0x6d8] sm:$0xff]
  %v308 = vld [vmem:[%s0 + $0x6e0] sm:$0xf]
  %v309 = vld [vmem:[%s0 + $0x6e4] sm:$0xff]
  %v310 = vld [vmem:[%s0 + $0x6ec] sm:$0xf]
  %v311 = vld [vmem:[%s0 + $0x6f0] sm:$0xff]
  %v312 = vld [vmem:[%s0 + $0x6f8] sm:$0xf]
  %v313 = vld [vmem:[%s0 + $0x6fc] sm:$0xff]
  %v314 = vld [vmem:[%s0 + $0x704] sm:$0xf]
  %v315 = vld [vmem:[%s0 + $0x708] sm:$0xff]
  %v316 = vld [vmem:[%s0 + $0x710] sm:$0xf]
  %v317 = vld [vmem:[%s0 + $0x714] sm:$0xff]
  %v318 = vld [vmem:[%s0 + $0x71c] sm:$0xf]
  %v319 = vld [vmem:[%s0 + $0x720] sm:$0xff]
  %v320 = vld [vmem:[%s0 + $0x728] sm:$0xf]
  %v321 = vld [vmem:[%s0 + $0x72c] sm:$0xff]
  %v322 = vld [vmem:[%s0 + $0x734] sm:$0xf]
  %v323 = vld [vmem:[%s0 + $0x738] sm:$0xff]
  %v324 = vld [vmem:[%s0 + $0x740] sm:$0xf]
  %v325 = vld [vmem:[%s0 + $0x744] sm:$0xff]
  %v326 = vld [vmem:[%s0 + $0x74c] sm:$0xf]
  %v327 = vld [vmem:[%s0 + $0x750] sm:$0xff]
  %v328 = vld [vmem:[%s0 + $0x758] sm:$0xf]
  %v329 = vld [vmem:[%s0 + $0x75c] sm:$0xff]
  %v330 = vld [vmem:[%s0 + $0x764] sm:$0xf]
  %v331 = vld [vmem:[%s0 + $0x768] sm:$0xff]
  %v332 = vld [vmem:[%s0 + $0x770] sm:$0xf]
  %v333 = vld [vmem:[%s0 + $0x774] sm:$0xff]
  %v334 = vld [vmem:[%s0 + $0x77c] sm:$0xf]
  %v335 = vld [vmem:[%s0 + $0x780] sm:$0xff]
  %v336 = vld [vmem:[%s0 + $0x788] sm:$0xf]
  %v337 = vld [vmem:[%s0 + $0x78c] sm:$0xff]
  %v338 = vld [vmem:[%s0 + $0x794] sm:$0xf]
  %v339 = vld [vmem:[%s0 + $0x798] sm:$0xff]
  %v340 = vld [vmem:[%s0 + $0x7a0] sm:$0xf]
  %v341 = vld [vmem:[%s0 + $0x7a4] sm:$0xff]
  %v342 = vld [vmem:[%s0 + $0x7ac] sm:$0xf]
  %v343 = vld [vmem:[%s0 + $0x7b0] sm:$0xff]
  %v344 = vld [vmem:[%s0 + $0x7b8] sm:$0xf]
  %v345 = vld [vmem:[%s0 + $0x7bc] sm:$0xff]
  %v346 = vld [vmem:[%s0 + $0x7c4] sm:$0xf]
  %v347 = vld [vmem:[%s0 + $0x7c8] sm:$0xff]
  %v348 = vld [vmem:[%s0 + $0x7d0] sm:$0xf]
  %v349 = vld [vmem:[%s0 + $0x7d4] sm:$0xff]
  %v350 = vld [vmem:[%s0 + $0x7dc] sm:$0xf]
  %v351 = vld [vmem:[%s0 + $0x7e0] sm:$0xff]
  %v352 = vld [vmem:[%s0 + $0x7e8] sm:$0xf]
  %v353 = vld [vmem:[%s0 + $0x7ec] sm:$0xff]
  %v354 = vld [vmem:[%s0 + $0x7f4] sm:$0xf]
  %v355 = vld [vmem:[%s0 + $0x7f8] sm:$0xff]
  %v356 = vld [vmem:[%s0 + $0x800] sm:$0xf]
  %v357 = vld [vmem:[%s0 + $0x804] sm:$0xff]
  %v358 = vld [vmem:[%s0 + $0x80c] sm:$0xf]
  %v359 = vld [vmem:[%s0 + $0x810] sm:$0xff]
  %v360 = vld [vmem:[%s0 + $0x818] sm:$0xf]
  %v361 = vld [vmem:[%s0 + $0x81c] sm:$0xff]
  %v362 = vld [vmem:[%s0 + $0x824] sm:$0xf]
  %v363 = vld [vmem:[%s0 + $0x828] sm:$0xff]
  %v364 = vld [vmem:[%s0 + $0x830] sm:$0xf]
  %v365 = vld [vmem:[%s0 + $0x834] sm:$0xff]
  %v366 = vld [vmem:[%s0 + $0x83c] sm:$0xf]
  %v367 = vld [vmem:[%s0 + $0x840] sm:$0xff]
  %v368 = vld [vmem:[%s0 + $0x848] sm:$0xf]
  %v369 = vld [vmem:[%s0 + $0x84c] sm:$0xff]
  %v370 = vld [vmem:[%s0 + $0x854] sm:$0xf]
  %v371 = vld [vmem:[%s0 + $0x858] sm:$0xff]
  %v372 = vld [vmem:[%s0 + $0x860] sm:$0xf]
  %v373 = vld [vmem:[%s0 + $0x864] sm:$0xff]
  %v374 = vld [vmem:[%s0 + $0x86c] sm:$0xf]
  %v375 = vld [vmem:[%s0 + $0x870] sm:$0xff]
  %v376 = vld [vmem:[%s0 + $0x878] sm:$0xf]
  %v377 = vld [vmem:[%s0 + $0x87c] sm:$0xff]
  %v378 = vld [vmem:[%s0 + $0x884] sm:$0xf]
  %v379 = vld [vmem:[%s0 + $0x888] sm:$0xff]
  %v380 = vld [vmem:[%s0 + $0x890] sm:$0xf]
  %v381 = vld [vmem:[%s0 + $0x894] sm:$0xff]
  %v382 = vld [vmem:[%s0 + $0x89c] sm:$0xf]
  %v383 = vld [vmem:[%s0 + $0x8a0] sm:$0xff]
  %v384 = vld [vmem:[%s0 + $0x8a8] sm:$0xf]
  %v385 = vld [vmem:[%s0 + $0x8ac] sm:$0xff]
  %v386 = vld [vmem:[%s0 + $0x8b4] sm:$0xf]
  %v387 = vld [vmem:[%s0 + $0x8b8] sm:$0xff]
  %v388 = vld [vmem:[%s0 + $0x8c0] sm:$0xf]
  %v389 = vld [vmem:[%s0 + $0x8c4] sm:$0xff]
  %v390 = vld [vmem:[%s0 + $0x8cc] sm:$0xf]
  %v391 = vld [vmem:[%s0 + $0x8d0] sm:$0xff]
  %v392 = vld [vmem:[%s0 + $0x8d8] sm:$0xf]
  %v393 = vld [vmem:[%s0 + $0x8dc] sm:$0xff]
  %v394 = vld [vmem:[%s0 + $0x8e4] sm:$0xf]
  %v395 = vld [vmem:[%s0 + $0x8e8] sm:$0xff]
  %v396 = vld [vmem:[%s0 + $0x8f0] sm:$0xf]
  %v397 = vld [vmem:[%s0 + $0x8f4] sm:$0xff]
  %v398 = vld [vmem:[%s0 + $0x8fc] sm:$0xf]
  %v399 = vld [vmem:[%s0 + $0x900] sm:$0xff]
  %v400 = vld [vmem:[%s0 + $0x908] sm:$0xf]
  %v401 = vld [vmem:[%s0 + $0x90c] sm:$0xff]
  %v402 = vld [vmem:[%s0 + $0x914] sm:$0xf]
  %v403 = vld [vmem:[%s0 + $0x918] sm:$0xff]
  %v404 = vld [vmem:[%s0 + $0x920] sm:$0xf]
  %v405 = vld [vmem:[%s0 + $0x924] sm:$0xff]
  %v406 = vld [vmem:[%s0 + $0x92c] sm:$0xf]
  %v407 = vld [vmem:[%s0 + $0x930] sm:$0xff]
  %v408 = vld [vmem:[%s0 + $0x938] sm:$0xf]
  %v409 = vld [vmem:[%s0 + $0x93c] sm:$0xff]
  %v410 = vld [vmem:[%s0 + $0x944] sm:$0xf]
  %v411 = vld [vmem:[%s0 + $0x948] sm:$0xff]
  %v412 = vld [vmem:[%s0 + $0x950] sm:$0xf]
  %v413 = vld [vmem:[%s0 + $0x954] sm:$0xff]
  %v414 = vld [vmem:[%s0 + $0x95c] sm:$0xf]
  %v415 = vld [vmem:[%s0 + $0x960] sm:$0xff]
  %v416 = vld [vmem:[%s0 + $0x968] sm:$0xf]
  %v417 = vld [vmem:[%s0 + $0x96c] sm:$0xff]
  %v418 = vld [vmem:[%s0 + $0x974] sm:$0xf]
  %v419 = vld [vmem:[%s0 + $0x978] sm:$0xff]
  %v420 = vld [vmem:[%s0 + $0x980] sm:$0xf]
  %v421 = vld [vmem:[%s0 + $0x984] sm:$0xff]
  %v422 = vld [vmem:[%s0 + $0x98c] sm:$0xf]
  %v423 = vld [vmem:[%s0 + $0x990] sm:$0xff]
  %v424 = vld [vmem:[%s0 + $0x998] sm:$0xf]
  %v425 = vld [vmem:[%s0 + $0x99c] sm:$0xff]
  %v426 = vld [vmem:[%s0 + $0x9a4] sm:$0xf]
  %v427 = vld [vmem:[%s0 + $0x9a8] sm:$0xff]
  %v428 = vld [vmem:[%s0 + $0x9b0] sm:$0xf]
  %v429 = vld [vmem:[%s0 + $0x9b4] sm:$0xff]
  %v430 = vld [vmem:[%s0 + $0x9bc] sm:$0xf]
  %v431 = vld [vmem:[%s0 + $0x9c0] sm:$0xff]
  %v432 = vld [vmem:[%s0 + $0x9c8] sm:$0xf]
  %v433 = vld [vmem:[%s0 + $0x9cc] sm:$0xff]
  %v434 = vld [vmem:[%s0 + $0x9d4] sm:$0xf]
  %v435 = vld [vmem:[%s0 + $0x9d8] sm:$0xff]
  %v436 = vld [vmem:[%s0 + $0x9e0] sm:$0xf]
  %v437 = vld [vmem:[%s0 + $0x9e4] sm:$0xff]
  %v438 = vld [vmem:[%s0 + $0x9ec] sm:$0xf]
  %v439 = vld [vmem:[%s0 + $0x9f0] sm:$0xff]
  %v440 = vld [vmem:[%s0 + $0x9f8] sm:$0xf]
  %v441 = vld [vmem:[%s0 + $0x9fc] sm:$0xff]
  %v442 = vld [vmem:[%s0 + $0xa04] sm:$0xf]
  %v443 = vld [vmem:[%s0 + $0xa08] sm:$0xff]
  %v444 = vld [vmem:[%s0 + $0xa10] sm:$0xf]
  %v445 = vld [vmem:[%s0 + $0xa14] sm:$0xff]
  %v446 = vld [vmem:[%s0 + $0xa1c] sm:$0xf]
  %v447 = vld [vmem:[%s0 + $0xa20] sm:$0xff]
  %v448 = vld [vmem:[%s0 + $0xa28] sm:$0xf]
  %v449 = vld [vmem:[%s0 + $0xa2c] sm:$0xff]
  %v450 = vld [vmem:[%s0 + $0xa34] sm:$0xf]
  %v451 = vld [vmem:[%s0 + $0xa38] sm:$0xff]
  %v452 = vld [vmem:[%s0 + $0xa40] sm:$0xf]
  %v453 = vld [vmem:[%s0 + $0xa44] sm:$0xff]
  %v454 = vld [vmem:[%s0 + $0xa4c] sm:$0xf]
  %v455 = vld [vmem:[%s0 + $0xa50] sm:$0xff]
  %v456 = vld [vmem:[%s0 + $0xa58] sm:$0xf]
  %v457 = vld [vmem:[%s0 + $0xa5c] sm:$0xff]
  %v458 = vld [vmem:[%s0 + $0xa64] sm:$0xf]
  %v459 = vld [vmem:[%s0 + $0xa68] sm:$0xff]
  %v460 = vld [vmem:[%s0 + $0xa70] sm:$0xf]
  %v461 = vld [vmem:[%s0 + $0xa74] sm:$0xff]
  %v462 = vld [vmem:[%s0 + $0xa7c] sm:$0xf]
  %v463 = vld [vmem:[%s0 + $0xa80] sm:$0xff]
  %v464 = vld [vmem:[%s0 + $0xa88] sm:$0xf]
  %v465 = vld [vmem:[%s0 + $0xa8c] sm:$0xff]
  %v466 = vld [vmem:[%s0 + $0xa94] sm:$0xf]
  %v467 = vld [vmem:[%s0 + $0xa98] sm:$0xff]
  %v468 = vld [vmem:[%s0 + $0xaa0] sm:$0xf]
  %v469 = vld [vmem:[%s0 + $0xaa4] sm:$0xff]
  %v470 = vld [vmem:[%s0 + $0xaac] sm:$0xf]
  %v471 = vld [vmem:[%s0 + $0xab0] sm:$0xff]
  %v472 = vld [vmem:[%s0 + $0xab8] sm:$0xf]
  %v473 = vld [vmem:[%s0 + $0xabc] sm:$0xff]
  %v474 = vld [vmem:[%s0 + $0xac4] sm:$0xf]
  %v475 = vld [vmem:[%s0 + $0xac8] sm:$0xff]
  %v476 = vld [vmem:[%s0 + $0xad0] sm:$0xf]
  %v477 = vld [vmem:[%s0 + $0xad4] sm:$0xff]
  %v478 = vld [vmem:[%s0 + $0xadc] sm:$0xf]
  %v479 = vld [vmem:[%s0 + $0xae0] sm:$0xff]
  %v480 = vld [vmem:[%s0 + $0xae8] sm:$0xf]
  %v481 = vld [vmem:[%s0 + $0xaec] sm:$0xff]
  %v482 = vld [vmem:[%s0 + $0xaf4] sm:$0xf]
  %v483 = vld [vmem:[%s0 + $0xaf8] sm:$0xff]
  %v484 = vld [vmem:[%s0 + $0xb00] sm:$0xf]
  %v485 = vld [vmem:[%s0 + $0xb04] sm:$0xff]
  %v486 = vld [vmem:[%s0 + $0xb0c] sm:$0xf]
  %v487 = vld [vmem:[%s0 + $0xb10] sm:$0xff]
  %v488 = vld [vmem:[%s0 + $0xb18] sm:$0xf]
  %v489 = vld [vmem:[%s0 + $0xb1c] sm:$0xff]
  %v490 = vld [vmem:[%s0 + $0xb24] sm:$0xf]
  %v491 = vld [vmem:[%s0 + $0xb28] sm:$0xff]
  %v492 = vld [vmem:[%s0 + $0xb30] sm:$0xf]
  %v493 = vld [vmem:[%s0 + $0xb34] sm:$0xff]
  %v494 = vld [vmem:[%s0 + $0xb3c] sm:$0xf]
  %v495 = vld [vmem:[%s0 + $0xb40] sm:$0xff]
  %v496 = vld [vmem:[%s0 + $0xb48] sm:$0xf]
  %v497 = vld [vmem:[%s0 + $0xb4c] sm:$0xff]
  %v498 = vld [vmem:[%s0 + $0xb54] sm:$0xf]
  %v499 = vld [vmem:[%s0 + $0xb58] sm:$0xff]
  %v500 = vld [vmem:[%s0 + $0xb60] sm:$0xf]
  %v501 = vld [vmem:[%s0 + $0xb64] sm:$0xff]
  %v502 = vld [vmem:[%s0 + $0xb6c] sm:$0xf]
  %v503 = vld [vmem:[%s0 + $0xb70] sm:$0xff]
  %v504 = vld [vmem:[%s0 + $0xb78] sm:$0xf]
  %v505 = vld [vmem:[%s0 + $0xb7c] sm:$0xff]
  %v506 = vld [vmem:[%s0 + $0xb84] sm:$0xf]
  %v507 = vld [vmem:[%s0 + $0xb88] sm:$0xff]
  %v508 = vld [vmem:[%s0 + $0xb90] sm:$0xf]
  %v509 = vld [vmem:[%s0 + $0xb94] sm:$0xff]
  %v510 = vld [vmem:[%s0 + $0xb9c] sm:$0xf]
  %v511 = vld [vmem:[%s0 + $0xba0] sm:$0xff]
  %v512 = vld [vmem:[%s0 + $0xba8] sm:$0xf]
  %v513 = vld [vmem:[%s0 + $0xbac] sm:$0xff]
  %v514 = vld [vmem:[%s0 + $0xbb4] sm:$0xf]
  %v515 = vld [vmem:[%s0 + $0xbb8] sm:$0xff]
  %v516 = vld [vmem:[%s0 + $0xbc0] sm:$0xf]
  %v517 = vld [vmem:[%s0 + $0xbc4] sm:$0xff]
  %v518 = vld [vmem:[%s0 + $0xbcc] sm:$0xf]
  %v519 = vld [vmem:[%s0 + $0xbd0] sm:$0xff]
  %v520 = vld [vmem:[%s0 + $0xbd8] sm:$0xf]
  %v521 = vld [vmem:[%s0 + $0xbdc] sm:$0xff]
  %v522 = vld [vmem:[%s0 + $0xbe4] sm:$0xf]
  %v523 = vld [vmem:[%s0 + $0xbe8] sm:$0xff]
  %v524 = vld [vmem:[%s0 + $0xbf0] sm:$0xf]
  %v525 = vld [vmem:[%s0 + $0xbf4] sm:$0xff]
  %v526 = vld [vmem:[%s0 + $0xbfc] sm:$0xf]
  %v527 = vld [vmem:[%s0 + $0xc00] sm:$0xff]
  %v528 = vld [vmem:[%s0 + $0xc08] sm:$0xf]
  %v529 = vld [vmem:[%s0 + $0xc0c] sm:$0xff]
  %v530 = vld [vmem:[%s0 + $0xc14] sm:$0xf]
  %v531 = vld [vmem:[%s0 + $0xc18] sm:$0xff]
  %v532 = vld [vmem:[%s0 + $0xc20] sm:$0xf]
  %v533 = vld [vmem:[%s0 + $0xc24] sm:$0xff]
  %v534 = vld [vmem:[%s0 + $0xc2c] sm:$0xf]
  %v535 = vld [vmem:[%s0 + $0xc30] sm:$0xff]
  %v536 = vld [vmem:[%s0 + $0xc38] sm:$0xf]
  %v537 = vld [vmem:[%s0 + $0xc3c] sm:$0xff]
  %v538 = vld [vmem:[%s0 + $0xc44] sm:$0xf]
  %v539 = vld [vmem:[%s0 + $0xc48] sm:$0xff]
  %v540 = vld [vmem:[%s0 + $0xc50] sm:$0xf]
  %v541 = vld [vmem:[%s0 + $0xc54] sm:$0xff]
  %v542 = vld [vmem:[%s0 + $0xc5c] sm:$0xf]
  %v543 = vld [vmem:[%s0 + $0xc60] sm:$0xff]
  %v544 = vld [vmem:[%s0 + $0xc68] sm:$0xf]
  %v545 = vld [vmem:[%s0 + $0xc6c] sm:$0xff]
  %v546 = vld [vmem:[%s0 + $0xc74] sm:$0xf]
  %v547 = vld [vmem:[%s0 + $0xc78] sm:$0xff]
  %v548 = vld [vmem:[%s0 + $0xc80] sm:$0xf]
  %v549 = vld [vmem:[%s0 + $0xc84] sm:$0xff]
  %v550 = vld [vmem:[%s0 + $0xc8c] sm:$0xf]
  %v551 = vld [vmem:[%s0 + $0xc90] sm:$0xff]
  %v552 = vld [vmem:[%s0 + $0xc98] sm:$0xf]
  %v553 = vld [vmem:[%s0 + $0xc9c] sm:$0xff]
  %v554 = vld [vmem:[%s0 + $0xca4] sm:$0xf]
  %v555 = vld [vmem:[%s0 + $0xca8] sm:$0xff]
  %v556 = vld [vmem:[%s0 + $0xcb0] sm:$0xf]
  %v557 = vld [vmem:[%s0 + $0xcb4] sm:$0xff]
  %v558 = vld [vmem:[%s0 + $0xcbc] sm:$0xf]
  %v559 = vld [vmem:[%s0 + $0xcc0] sm:$0xff]
  %v560 = vld [vmem:[%s0 + $0xcc8] sm:$0xf]
  %v561 = vld [vmem:[%s0 + $0xccc] sm:$0xff]
  %v562 = vld [vmem:[%s0 + $0xcd4] sm:$0xf]
  %v563 = vld [vmem:[%s0 + $0xcd8] sm:$0xff]
  %v564 = vld [vmem:[%s0 + $0xce0] sm:$0xf]
  %v565 = vld [vmem:[%s0 + $0xce4] sm:$0xff]
  %v566 = vld [vmem:[%s0 + $0xcec] sm:$0xf]
  %v567 = vld [vmem:[%s0 + $0xcf0] sm:$0xff]
  %v568 = vld [vmem:[%s0 + $0xcf8] sm:$0xf]
  %v569 = vld [vmem:[%s0 + $0xcfc] sm:$0xff]
  %v570 = vld [vmem:[%s0 + $0xd04] sm:$0xf]
  %v571 = vld [vmem:[%s0 + $0xd08] sm:$0xff]
  %v572 = vld [vmem:[%s0 + $0xd10] sm:$0xf]
  %v573 = vld [vmem:[%s0 + $0xd14] sm:$0xff]
  %v574 = vld [vmem:[%s0 + $0xd1c] sm:$0xf]
  %v575 = vld [vmem:[%s0 + $0xd20] sm:$0xff]
  %v576 = vld [vmem:[%s0 + $0xd28] sm:$0xf]
  %v577 = vld [vmem:[%s0 + $0xd2c] sm:$0xff]
  %v578 = vld [vmem:[%s0 + $0xd34] sm:$0xf]
  %v579 = vld [vmem:[%s0 + $0xd38] sm:$0xff]
  %v580 = vld [vmem:[%s0 + $0xd40] sm:$0xf]
  %v581 = vld [vmem:[%s0 + $0xd44] sm:$0xff]
  %v582 = vld [vmem:[%s0 + $0xd4c] sm:$0xf]
  %v583 = vld [vmem:[%s0 + $0xd50] sm:$0xff]
  %v584 = vld [vmem:[%s0 + $0xd58] sm:$0xf]
  %v585 = vld [vmem:[%s0 + $0xd5c] sm:$0xff]
  %v586 = vld [vmem:[%s0 + $0xd64] sm:$0xf]
  %v587 = vld [vmem:[%s0 + $0xd68] sm:$0xff]
  %v588 = vld [vmem:[%s0 + $0xd70] sm:$0xf]
  %v589 = vld [vmem:[%s0 + $0xd74] sm:$0xff]
  %v590 = vld [vmem:[%s0 + $0xd7c] sm:$0xf]
  %v591 = vld [vmem:[%s0 + $0xd80] sm:$0xff]
  %v592 = vld [vmem:[%s0 + $0xd88] sm:$0xf]
  %v593 = vld [vmem:[%s0 + $0xd8c] sm:$0xff]
  %v594 = vld [vmem:[%s0 + $0xd94] sm:$0xf]
  %v595 = vld [vmem:[%s0 + $0xd98] sm:$0xff]
  %v596 = vld [vmem:[%s0 + $0xda0] sm:$0xf]
  %v597 = vld [vmem:[%s0 + $0xda4] sm:$0xff]
  %v598 = vld [vmem:[%s0 + $0xdac] sm:$0xf]
  %v599 = vld [vmem:[%s0 + $0xdb0] sm:$0xff]
  %v600 = vld [vmem:[%s0 + $0xdb8] sm:$0xf]
  %v601 = vld [vmem:[%s0 + $0xdbc] sm:$0xff]
  %v602 = vld [vmem:[%s0 + $0xdc4] sm:$0xf]
  %v603 = vld [vmem:[%s0 + $0xdc8] sm:$0xff]
  %v604 = vld [vmem:[%s0 + $0xdd0] sm:$0xf]
  %v605 = vld [vmem:[%s0 + $0xdd4] sm:$0xff]
  %v606 = vld [vmem:[%s0 + $0xddc] sm:$0xf]
  %v607 = vld [vmem:[%s0 + $0xde0] sm:$0xff]
  %v608 = vld [vmem:[%s0 + $0xde8] sm:$0xf]
  %v609 = vld [vmem:[%s0 + $0xdec] sm:$0xff]
  %v610 = vld [vmem:[%s0 + $0xdf4] sm:$0xf]
  %v611 = vld [vmem:[%s0 + $0xdf8] sm:$0xff]
  %v612 = vld [vmem:[%s0 + $0xe00] sm:$0xf]
  %v613 = vld [vmem:[%s0 + $0xe04] sm:$0xff]
  %v614 = vld [vmem:[%s0 + $0xe0c] sm:$0xf]
  %v615 = vld [vmem:[%s0 + $0xe10] sm:$0xff]
  %v616 = vld [vmem:[%s0 + $0xe18] sm:$0xf]
  %v617 = vld [vmem:[%s0 + $0xe1c] sm:$0xff]
  %v618 = vld [vmem:[%s0 + $0xe24] sm:$0xf]
  %v619 = vld [vmem:[%s0 + $0xe28] sm:$0xff]
  %v620 = vld [vmem:[%s0 + $0xe30] sm:$0xf]
  %v621 = vld [vmem:[%s0 + $0xe34] sm:$0xff]
  %v622 = vld [vmem:[%s0 + $0xe3c] sm:$0xf]
  %v623 = vld [vmem:[%s0 + $0xe40] sm:$0xff]
  %v624 = vld [vmem:[%s0 + $0xe48] sm:$0xf]
  %v625 = vld [vmem:[%s0 + $0xe4c] sm:$0xff]
  %v626 = vld [vmem:[%s0 + $0xe54] sm:$0xf]
  %v627 = vld [vmem:[%s0 + $0xe58] sm:$0xff]
  %v628 = vld [vmem:[%s0 + $0xe60] sm:$0xf]
  %v629 = vld [vmem:[%s0 + $0xe64] sm:$0xff]
  %v630 = vld [vmem:[%s0 + $0xe6c] sm:$0xf]
  %v631 = vld [vmem:[%s0 + $0xe70] sm:$0xff]
  %v632 = vld [vmem:[%s0 + $0xe78] sm:$0xf]
  %v633 = vld [vmem:[%s0 + $0xe7c] sm:$0xff]
  %v634 = vld [vmem:[%s0 + $0xe84] sm:$0xf]
  %v635 = vld [vmem:[%s0 + $0xe88] sm:$0xff]
  %v636 = vld [vmem:[%s0 + $0xe90] sm:$0xf]
  %v637 = vld [vmem:[%s0 + $0xe94] sm:$0xff]
  %v638 = vld [vmem:[%s0 + $0xe9c] sm:$0xf]
  %v639 = vld [vmem:[%s0 + $0xea0] sm:$0xff]
  %v640 = vld [vmem:[%s0 + $0xea8] sm:$0xf]
  %v641 = vld [vmem:[%s0 + $0xeac] sm:$0xff]
  %v642 = vld [vmem:[%s0 + $0xeb4] sm:$0xf]
  %v643 = vld [vmem:[%s0 + $0xeb8] sm:$0xff]
  %v644 = vld [vmem:[%s0 + $0xec0] sm:$0xf]
  %v645 = vld [vmem:[%s0 + $0xec4] sm:$0xff]
  %v646 = vld [vmem:[%s0 + $0xecc] sm:$0xf]
  %v647 = vld [vmem:[%s0 + $0xed0] sm:$0xff]
  %v648 = vld [vmem:[%s0 + $0xed8] sm:$0xf]
  %v649 = vld [vmem:[%s0 + $0xedc] sm:$0xff]
  %v650 = vld [vmem:[%s0 + $0xee4] sm:$0xf]
  %v651 = vld [vmem:[%s0 + $0xee8] sm:$0xff]
  %v652 = vld [vmem:[%s0 + $0xef0] sm:$0xf]
  %v653 = vld [vmem:[%s0 + $0xef4] sm:$0xff]
  %v654 = vld [vmem:[%s0 + $0xefc] sm:$0xf]
  %v655 = vld [vmem:[%s0 + $0xf00] sm:$0xff]
  %v656 = vld [vmem:[%s0 + $0xf08] sm:$0xf]
  %v657 = vld [vmem:[%s0 + $0xf0c] sm:$0xff]
  %v658 = vld [vmem:[%s0 + $0xf14] sm:$0xf]
  %v659 = vld [vmem:[%s0 + $0xf18] sm:$0xff]
  %v660 = vld [vmem:[%s0 + $0xf20] sm:$0xf]
  %v661 = vld [vmem:[%s0 + $0xf24] sm:$0xff]
  %v662 = vld [vmem:[%s0 + $0xf2c] sm:$0xf]
  %v663 = vld [vmem:[%s0 + $0xf30] sm:$0xff]
  %v664 = vld [vmem:[%s0 + $0xf38] sm:$0xf]
  %v665 = vld [vmem:[%s0 + $0xf3c] sm:$0xff]
  %v666 = vld [vmem:[%s0 + $0xf44] sm:$0xf]
  %v667 = vld [vmem:[%s0 + $0xf48] sm:$0xff]
  %v668 = vld [vmem:[%s0 + $0xf50] sm:$0xf]
  %v669 = vld [vmem:[%s0 + $0xf54] sm:$0xff]
  %v670 = vld [vmem:[%s0 + $0xf5c] sm:$0xf]
  %v671 = vld [vmem:[%s0 + $0xf60] sm:$0xff]
  %v672 = vld [vmem:[%s0 + $0xf68] sm:$0xf]
  %v673 = vld [vmem:[%s0 + $0xf6c] sm:$0xff]
  %v674 = vld [vmem:[%s0 + $0xf74] sm:$0xf]
  %v675 = vld [vmem:[%s0 + $0xf78] sm:$0xff]
  %v676 = vld [vmem:[%s0 + $0xf80] sm:$0xf]
  %v677 = vld [vmem:[%s0 + $0xf84] sm:$0xff]
  %v678 = vld [vmem:[%s0 + $0xf8c] sm:$0xf]
  %v679 = vld [vmem:[%s0 + $0xf90] sm:$0xff]
  %v680 = vld [vmem:[%s0 + $0xf98] sm:$0xf]
  %v681 = vld [vmem:[%s0 + $0xf9c] sm:$0xff]
  %v682 = vld [vmem:[%s0 + $0xfa4] sm:$0xf]
  %v683 = vld [vmem:[%s0 + $0xfa8] sm:$0xff]
  %v684 = vld [vmem:[%s0 + $0xfb0] sm:$0xf]
  %v685 = vld [vmem:[%s0 + $0xfb4] sm:$0xff]
  %v686 = vld [vmem:[%s0 + $0xfbc] sm:$0xf]
  %v687 = vld [vmem:[%s0 + $0xfc0] sm:$0xff]
  %v688 = vld [vmem:[%s0 + $0xfc8] sm:$0xf]
  %v689 = vld [vmem:[%s0 + $0xfcc] sm:$0xff]
  %v690 = vld [vmem:[%s0 + $0xfd4] sm:$0xf]
  %v691 = vld [vmem:[%s0 + $0xfd8] sm:$0xff]
  %v692 = vld [vmem:[%s0 + $0xfe0] sm:$0xf]
  %v693 = vld [vmem:[%s0 + $0xfe4] sm:$0xff]
  %v694 = vld [vmem:[%s0 + $0xfec] sm:$0xf]
  %v695 = vld [vmem:[%s0 + $0xff0] sm:$0xff]
  %v696 = vld [vmem:[%s0 + $0xff8] sm:$0xf]
  %v697 = vld [vmem:[%s0 + $0xffc] sm:$0xff]
  %v698 = vld [vmem:[%s0 + $0x1004] sm:$0xf]
  %v699 = vld [vmem:[%s0 + $0x1008] sm:$0xff]
  %v700 = vld [vmem:[%s0 + $0x1010] sm:$0xf]
  %v701 = vld [vmem:[%s0 + $0x1014] sm:$0xff]
  %v702 = vld [vmem:[%s0 + $0x101c] sm:$0xf]
  %v703 = vld [vmem:[%s0 + $0x1020] sm:$0xff]
  %v704 = vld [vmem:[%s0 + $0x1028] sm:$0xf]
  %v705 = vld [vmem:[%s0 + $0x102c] sm:$0xff]
  %v706 = vld [vmem:[%s0 + $0x1034] sm:$0xf]
  %v707 = vld [vmem:[%s0 + $0x1038] sm:$0xff]
  %v708 = vld [vmem:[%s0 + $0x1040] sm:$0xf]
  %v709 = vld [vmem:[%s0 + $0x1044] sm:$0xff]
  %v710 = vld [vmem:[%s0 + $0x104c] sm:$0xf]
  %v711 = vld [vmem:[%s0 + $0x1050] sm:$0xff]
  %v712 = vld [vmem:[%s0 + $0x1058] sm:$0xf]
  %v713 = vld [vmem:[%s0 + $0x105c] sm:$0xff]
  %v714 = vld [vmem:[%s0 + $0x1064] sm:$0xf]
  %v715 = vld [vmem:[%s0 + $0x1068] sm:$0xff]
  %v716 = vld [vmem:[%s0 + $0x1070] sm:$0xf]
  %v717 = vld [vmem:[%s0 + $0x1074] sm:$0xff]
  %v718 = vld [vmem:[%s0 + $0x107c] sm:$0xf]
  %v719 = vld [vmem:[%s0 + $0x1080] sm:$0xff]
  %v720 = vld [vmem:[%s0 + $0x1088] sm:$0xf]
  %v721 = vld [vmem:[%s0 + $0x108c] sm:$0xff]
  %v722 = vld [vmem:[%s0 + $0x1094] sm:$0xf]
  %v723 = vld [vmem:[%s0 + $0x1098] sm:$0xff]
  %v724 = vld [vmem:[%s0 + $0x10a0] sm:$0xf]
  %v725 = vld [vmem:[%s0 + $0x10a4] sm:$0xff]
  %v726 = vld [vmem:[%s0 + $0x10ac] sm:$0xf]
  %v727 = vld [vmem:[%s0 + $0x10b0] sm:$0xff]
  %v728 = vld [vmem:[%s0 + $0x10b8] sm:$0xf]
  %v729 = vld [vmem:[%s0 + $0x10bc] sm:$0xff]
  %v730 = vld [vmem:[%s0 + $0x10c4] sm:$0xf]
  %v731 = vld [vmem:[%s0 + $0x10c8] sm:$0xff]
  %v732 = vld [vmem:[%s0 + $0x10d0] sm:$0xf]
  %v733 = vld [vmem:[%s0 + $0x10d4] sm:$0xff]
  %v734 = vld [vmem:[%s0 + $0x10dc] sm:$0xf]
  %v735 = vld [vmem:[%s0 + $0x10e0] sm:$0xff]
  %v736 = vld [vmem:[%s0 + $0x10e8] sm:$0xf]
  %v737 = vld [vmem:[%s0 + $0x10ec] sm:$0xff]
  %v738 = vld [vmem:[%s0 + $0x10f4] sm:$0xf]
  %v739 = vld [vmem:[%s0 + $0x10f8] sm:$0xff]
  %v740 = vld [vmem:[%s0 + $0x1100] sm:$0xf]
  %v741 = vld [vmem:[%s0 + $0x1104] sm:$0xff]
  %v742 = vld [vmem:[%s0 + $0x110c] sm:$0xf]
  %v743 = vld [vmem:[%s0 + $0x1110] sm:$0x11]
  %v744 = vld [vmem:[%s0 + $0x1118] sm:$0x1]
  %v745 = vld [vmem:[%s1] sm:$0xf]
  %v746 = vld [vmem:[%s1 + $0x4] sm:$0xf]
  %v747 = vld [vmem:[%s1 + $0x8] sm:$0xf]
  %v748 = vld [vmem:[%s1 + $0xc] sm:$0xf]
  %v749 = vld [vmem:[%s1 + $0x10] sm:$0xf]
  %v750 = vld [vmem:[%s1 + $0x14] sm:$0xf]
  %v751 = vld [vmem:[%s1 + $0x18] sm:$0xf]
  %v752 = vld [vmem:[%s1 + $0x1c] sm:$0xf]
  %v753 = vld [vmem:[%s1 + $0x20] sm:$0xf]
  %v754 = vld [vmem:[%s1 + $0x24] sm:$0xf]
  %v755 = vld [vmem:[%s1 + $0x28] sm:$0xf]
  %v756 = vld [vmem:[%s1 + $0x2c] sm:$0xf]
  %v757 = vld [vmem:[%s1 + $0x30] sm:$0xf]
  %v758 = vld [vmem:[%s1 + $0x34] sm:$0xf]
  %v759 = vld [vmem:[%s1 + $0x38] sm:$0xf]
  %v760 = vld [vmem:[%s1 + $0x3c] sm:$0xf]
  %v761 = vld [vmem:[%s1 + $0x40] sm:$0xf]
  %v762 = vld [vmem:[%s1 + $0x44] sm:$0xf]
  %v763 = vld [vmem:[%s1 + $0x48] sm:$0xf]
  %v764 = vld [vmem:[%s1 + $0x4c] sm:$0xf]
  %v765 = vld [vmem:[%s1 + $0x50] sm:$0xf]
  %v766 = vld [vmem:[%s1 + $0x54] sm:$0xf]
  %v767 = vld [vmem:[%s1 + $0x58] sm:$0xf]
  %v768 = vld [vmem:[%s1 + $0x5c] sm:$0xf]
  %v769 = vld [vmem:[%s1 + $0x60] sm:$0xf]
  %v770 = vld [vmem:[%s1 + $0x64] sm:$0xf]
  %v771 = vld [vmem:[%s1 + $0x68] sm:$0xf]
  %v772 = vld [vmem:[%s1 + $0x6c] sm:$0xf]
  %v773 = vld [vmem:[%s1 + $0x70] sm:$0xf]
  %v774 = vld [vmem:[%s1 + $0x74] sm:$0xf]
  %v775 = vld [vmem:[%s1 + $0x78] sm:$0xf]
  %v776 = vld [vmem:[%s1 + $0x7c] sm:$0xf]
  %v777 = vld [vmem:[%s1 + $0x80] sm:$0xf]
  %v778 = vld [vmem:[%s1 + $0x84] sm:$0xf]
  %v779 = vld [vmem:[%s1 + $0x88] sm:$0xf]
  %v780 = vld [vmem:[%s1 + $0x8c] sm:$0xf]
  %v781 = vld [vmem:[%s1 + $0x90] sm:$0x1]
  %v782 = vld [vmem:[%s2] sm:$0x1]
  %v784 = vperm.slane %v782, 0
  %v1516 = vunpack.c.l.b16 %v15
  %v1517 = vunpack.c.h.b16 %v15
  %v1518 = vunpack.c.l.b16 %v16
  %v1519 = vunpack.c.l.b16 %v17
  %v1520 = vunpack.c.h.b16 %v17
  %v1521 = vunpack.c.l.b16 %v18
  %v1522 = vunpack.c.l.b16 %v19
  %v1523 = vunpack.c.h.b16 %v19
  %v1524 = vunpack.c.l.b16 %v20
  %v1525 = vunpack.c.l.b16 %v21
  %v1526 = vunpack.c.h.b16 %v21
  %v1527 = vunpack.c.l.b16 %v22
  %v1528 = vunpack.c.l.b16 %v23
  %v1529 = vunpack.c.h.b16 %v23
  %v1530 = vunpack.c.l.b16 %v24
  %v1531 = vunpack.c.l.b16 %v25
  %v1532 = vunpack.c.h.b16 %v25
  %v1533 = vunpack.c.l.b16 %v26
  %v1534 = vunpack.c.l.b16 %v27
  %v1535 = vunpack.c.h.b16 %v27
  %v1536 = vunpack.c.l.b16 %v28
  %v1537 = vunpack.c.l.b16 %v29
  %v1538 = vunpack.c.h.b16 %v29
  %v1539 = vunpack.c.l.b16 %v30
  %v1540 = vunpack.c.l.b16 %v31
  %v1541 = vunpack.c.h.b16 %v31
  %v1542 = vunpack.c.l.b16 %v32
  %v1543 = vunpack.c.l.b16 %v33
  %v1544 = vunpack.c.h.b16 %v33
  %v1545 = vunpack.c.l.b16 %v34
  %v1546 = vunpack.c.l.b16 %v35
  %v1547 = vunpack.c.h.b16 %v35
  %v1548 = vunpack.c.l.b16 %v36
  %v1549 = vunpack.c.l.b16 %v37
  %v1550 = vunpack.c.h.b16 %v37
  %v1551 = vunpack.c.l.b16 %v38
  %v1552 = vunpack.c.l.b16 %v39
  %v1553 = vunpack.c.h.b16 %v39
  %v1554 = vunpack.c.l.b16 %v40
  %v1555 = vunpack.c.l.b16 %v41
  %v1556 = vunpack.c.h.b16 %v41
  %v1557 = vunpack.c.l.b16 %v42
  %v1558 = vunpack.c.l.b16 %v43
  %v1559 = vunpack.c.h.b16 %v43
  %v1560 = vunpack.c.l.b16 %v44
  %v1561 = vunpack.c.l.b16 %v45
  %v1562 = vunpack.c.h.b16 %v45
  %v1563 = vunpack.c.l.b16 %v46
  %v1564 = vunpack.c.l.b16 %v47
  %v1565 = vunpack.c.h.b16 %v47
  %v1566 = vunpack.c.l.b16 %v48
  %v1567 = vunpack.c.l.b16 %v49
  %v1568 = vunpack.c.h.b16 %v49
  %v1569 = vunpack.c.l.b16 %v50
  %v1570 = vunpack.c.l.b16 %v51
  %v1571 = vunpack.c.h.b16 %v51
  %v1572 = vunpack.c.l.b16 %v52
  %v1573 = vunpack.c.l.b16 %v53
  %v1574 = vunpack.c.h.b16 %v53
  %v1575 = vunpack.c.l.b16 %v54
  %v1576 = vunpack.c.l.b16 %v55
  %v1577 = vunpack.c.h.b16 %v55
  %v1578 = vunpack.c.l.b16 %v56
  %v1579 = vunpack.c.l.b16 %v57
  %v1580 = vunpack.c.h.b16 %v57
  %v1581 = vunpack.c.l.b16 %v58
  %v1582 = vunpack.c.l.b16 %v59
  %v1583 = vunpack.c.h.b16 %v59
  %v1584 = vunpack.c.l.b16 %v60
  %v1585 = vunpack.c.l.b16 %v61
  %v1586 = vunpack.c.h.b16 %v61
  %v1587 = vunpack.c.l.b16 %v62
  %v1588 = vunpack.c.l.b16 %v63
  %v1589 = vunpack.c.h.b16 %v63
  %v1590 = vunpack.c.l.b16 %v64
  %v1591 = vunpack.c.l.b16 %v65
  %v1592 = vunpack.c.h.b16 %v65
  %v1593 = vunpack.c.l.b16 %v66
  %v1594 = vunpack.c.l.b16 %v67
  %v1595 = vunpack.c.h.b16 %v67
  %v1596 = vunpack.c.l.b16 %v68
  %v1597 = vunpack.c.l.b16 %v69
  %v1598 = vunpack.c.h.b16 %v69
  %v1599 = vunpack.c.l.b16 %v70
  %v1600 = vunpack.c.l.b16 %v71
  %v1601 = vunpack.c.h.b16 %v71
  %v1602 = vunpack.c.l.b16 %v72
  %v1603 = vunpack.c.l.b16 %v73
  %v1604 = vunpack.c.h.b16 %v73
  %v1605 = vunpack.c.l.b16 %v74
  %v1606 = vunpack.c.l.b16 %v75
  %v1607 = vunpack.c.h.b16 %v75
  %v1608 = vunpack.c.l.b16 %v76
  %v1609 = vunpack.c.l.b16 %v77
  %v1610 = vunpack.c.h.b16 %v77
  %v1611 = vunpack.c.l.b16 %v78
  %v1612 = vunpack.c.l.b16 %v79
  %v1613 = vunpack.c.h.b16 %v79
  %v1614 = vunpack.c.l.b16 %v80
  %v1615 = vunpack.c.l.b16 %v81
  %v1616 = vunpack.c.h.b16 %v81
  %v1617 = vunpack.c.l.b16 %v82
  %v1618 = vunpack.c.l.b16 %v83
  %v1619 = vunpack.c.h.b16 %v83
  %v1620 = vunpack.c.l.b16 %v84
  %v1621 = vunpack.c.l.b16 %v85
  %v1622 = vunpack.c.h.b16 %v85
  %v1623 = vunpack.c.l.b16 %v86
  %v1624 = vunpack.c.l.b16 %v87
  %v1625 = vunpack.c.h.b16 %v87
  %v1626 = vunpack.c.l.b16 %v88
  %v1627 = vunpack.c.l.b16 %v89
  %v1628 = vunpack.c.h.b16 %v89
  %v1629 = vunpack.c.l.b16 %v90
  %v1630 = vunpack.c.l.b16 %v91
  %v1631 = vunpack.c.h.b16 %v91
  %v1632 = vunpack.c.l.b16 %v92
  %v1633 = vunpack.c.l.b16 %v93
  %v1634 = vunpack.c.h.b16 %v93
  %v1635 = vunpack.c.l.b16 %v94
  %v1636 = vunpack.c.l.b16 %v95
  %v1637 = vunpack.c.h.b16 %v95
  %v1638 = vunpack.c.l.b16 %v96
  %v1639 = vunpack.c.l.b16 %v97
  %v1640 = vunpack.c.h.b16 %v97
  %v1641 = vunpack.c.l.b16 %v98
  %v1642 = vunpack.c.l.b16 %v99
  %v1643 = vunpack.c.h.b16 %v99
  %v1644 = vunpack.c.l.b16 %v100
  %v1645 = vunpack.c.l.b16 %v101
  %v1646 = vunpack.c.h.b16 %v101
  %v1647 = vunpack.c.l.b16 %v102
  %v1648 = vunpack.c.l.b16 %v103
  %v1649 = vunpack.c.h.b16 %v103
  %v1650 = vunpack.c.l.b16 %v104
  %v1651 = vunpack.c.l.b16 %v105
  %v1652 = vunpack.c.h.b16 %v105
  %v1653 = vunpack.c.l.b16 %v106
  %v1654 = vunpack.c.l.b16 %v107
  %v1655 = vunpack.c.h.b16 %v107
  %v1656 = vunpack.c.l.b16 %v108
  %v1657 = vunpack.c.l.b16 %v109
  %v1658 = vunpack.c.h.b16 %v109
  %v1659 = vunpack.c.l.b16 %v110
  %v1660 = vunpack.c.l.b16 %v111
  %v1661 = vunpack.c.h.b16 %v111
  %v1662 = vunpack.c.l.b16 %v112
  %v1663 = vunpack.c.l.b16 %v113
  %v1664 = vunpack.c.h.b16 %v113
  %v1665 = vunpack.c.l.b16 %v114
  %v1666 = vunpack.c.l.b16 %v115
  %v1667 = vunpack.c.h.b16 %v115
  %v1668 = vunpack.c.l.b16 %v116
  %v1669 = vunpack.c.l.b16 %v117
  %v1670 = vunpack.c.h.b16 %v117
  %v1671 = vunpack.c.l.b16 %v118
  %v1672 = vunpack.c.l.b16 %v119
  %v1673 = vunpack.c.h.b16 %v119
  %v1674 = vunpack.c.l.b16 %v120
  %v1675 = vunpack.c.l.b16 %v121
  %v1676 = vunpack.c.h.b16 %v121
  %v1677 = vunpack.c.l.b16 %v122
  %v1678 = vunpack.c.l.b16 %v123
  %v1679 = vunpack.c.h.b16 %v123
  %v1680 = vunpack.c.l.b16 %v124
  %v1681 = vunpack.c.l.b16 %v125
  %v1682 = vunpack.c.h.b16 %v125
  %v1683 = vunpack.c.l.b16 %v126
  %v1684 = vunpack.c.l.b16 %v127
  %v1685 = vunpack.c.h.b16 %v127
  %v1686 = vunpack.c.l.b16 %v128
  %v1687 = vunpack.c.l.b16 %v129
  %v1688 = vunpack.c.h.b16 %v129
  %v1689 = vunpack.c.l.b16 %v130
  %v1690 = vunpack.c.l.b16 %v131
  %v1691 = vunpack.c.h.b16 %v131
  %v1692 = vunpack.c.l.b16 %v132
  %v1693 = vunpack.c.l.b16 %v133
  %v1694 = vunpack.c.h.b16 %v133
  %v1695 = vunpack.c.l.b16 %v134
  %v1696 = vunpack.c.l.b16 %v135
  %v1697 = vunpack.c.h.b16 %v135
  %v1698 = vunpack.c.l.b16 %v136
  %v1699 = vunpack.c.l.b16 %v137
  %v1700 = vunpack.c.h.b16 %v137
  %v1701 = vunpack.c.l.b16 %v138
  %v1702 = vunpack.c.l.b16 %v139
  %v1703 = vunpack.c.h.b16 %v139
  %v1704 = vunpack.c.l.b16 %v140
  %v1705 = vunpack.c.l.b16 %v141
  %v1706 = vunpack.c.h.b16 %v141
  %v1707 = vunpack.c.l.b16 %v142
  %v1708 = vunpack.c.l.b16 %v143
  %v1709 = vunpack.c.h.b16 %v143
  %v1710 = vunpack.c.l.b16 %v144
  %v1711 = vunpack.c.l.b16 %v145
  %v1712 = vunpack.c.h.b16 %v145
  %v1713 = vunpack.c.l.b16 %v146
  %v1714 = vunpack.c.l.b16 %v147
  %v1715 = vunpack.c.h.b16 %v147
  %v1716 = vunpack.c.l.b16 %v148
  %v1717 = vunpack.c.l.b16 %v149
  %v1718 = vunpack.c.h.b16 %v149
  %v1719 = vunpack.c.l.b16 %v150
  %v1720 = vunpack.c.l.b16 %v151
  %v1721 = vunpack.c.h.b16 %v151
  %v1722 = vunpack.c.l.b16 %v152
  %v1723 = vunpack.c.l.b16 %v153
  %v1724 = vunpack.c.h.b16 %v153
  %v1725 = vunpack.c.l.b16 %v154
  %v1726 = vunpack.c.l.b16 %v155
  %v1727 = vunpack.c.h.b16 %v155
  %v1728 = vunpack.c.l.b16 %v156
  %v1729 = vunpack.c.l.b16 %v157
  %v1730 = vunpack.c.h.b16 %v157
  %v1731 = vunpack.c.l.b16 %v158
  %v1732 = vunpack.c.l.b16 %v159
  %v1733 = vunpack.c.h.b16 %v159
  %v1734 = vunpack.c.l.b16 %v160
  %v1735 = vunpack.c.l.b16 %v161
  %v1736 = vunpack.c.h.b16 %v161
  %v1737 = vunpack.c.l.b16 %v162
  %v1738 = vunpack.c.l.b16 %v163
  %v1739 = vunpack.c.h.b16 %v163
  %v1740 = vunpack.c.l.b16 %v164
  %v1741 = vunpack.c.l.b16 %v165
  %v1742 = vunpack.c.h.b16 %v165
  %v1743 = vunpack.c.l.b16 %v166
  %v1744 = vunpack.c.l.b16 %v167
  %v1745 = vunpack.c.h.b16 %v167
  %v1746 = vunpack.c.l.b16 %v168
  %v1747 = vunpack.c.l.b16 %v169
  %v1748 = vunpack.c.h.b16 %v169
  %v1749 = vunpack.c.l.b16 %v170
  %v1750 = vunpack.c.l.b16 %v171
  %v1751 = vunpack.c.h.b16 %v171
  %v1752 = vunpack.c.l.b16 %v172
  %v1753 = vunpack.c.l.b16 %v173
  %v1754 = vunpack.c.h.b16 %v173
  %v1755 = vunpack.c.l.b16 %v174
  %v1756 = vunpack.c.l.b16 %v175
  %v1757 = vunpack.c.h.b16 %v175
  %v1758 = vunpack.c.l.b16 %v176
  %v1759 = vunpack.c.l.b16 %v177
  %v1760 = vunpack.c.h.b16 %v177
  %v1761 = vunpack.c.l.b16 %v178
  %v1762 = vunpack.c.l.b16 %v179
  %v1763 = vunpack.c.h.b16 %v179
  %v1764 = vunpack.c.l.b16 %v180
  %v1765 = vunpack.c.l.b16 %v181
  %v1766 = vunpack.c.h.b16 %v181
  %v1767 = vunpack.c.l.b16 %v182
  %v1768 = vunpack.c.l.b16 %v183
  %v1769 = vunpack.c.h.b16 %v183
  %v1770 = vunpack.c.l.b16 %v184
  %v1771 = vunpack.c.l.b16 %v185
  %v1772 = vunpack.c.h.b16 %v185
  %v1773 = vunpack.c.l.b16 %v186
  %v1774 = vunpack.c.l.b16 %v187
  %v1775 = vunpack.c.h.b16 %v187
  %v1776 = vunpack.c.l.b16 %v188
  %v1777 = vunpack.c.l.b16 %v189
  %v1778 = vunpack.c.h.b16 %v189
  %v1779 = vunpack.c.l.b16 %v190
  %v1780 = vunpack.c.l.b16 %v191
  %v1781 = vunpack.c.h.b16 %v191
  %v1782 = vunpack.c.l.b16 %v192
  %v1783 = vunpack.c.l.b16 %v193
  %v1784 = vunpack.c.h.b16 %v193
  %v1785 = vunpack.c.l.b16 %v194
  %v1786 = vunpack.c.l.b16 %v195
  %v1787 = vunpack.c.h.b16 %v195
  %v1788 = vunpack.c.l.b16 %v196
  %v1789 = vunpack.c.l.b16 %v197
  %v1790 = vunpack.c.h.b16 %v197
  %v1791 = vunpack.c.l.b16 %v198
  %v1792 = vunpack.c.l.b16 %v199
  %v1793 = vunpack.c.h.b16 %v199
  %v1794 = vunpack.c.l.b16 %v200
  %v1795 = vunpack.c.l.b16 %v201
  %v1796 = vunpack.c.h.b16 %v201
  %v1797 = vunpack.c.l.b16 %v202
  %v1798 = vunpack.c.l.b16 %v203
  %v1799 = vunpack.c.h.b16 %v203
  %v1800 = vunpack.c.l.b16 %v204
  %v1801 = vunpack.c.l.b16 %v205
  %v1802 = vunpack.c.h.b16 %v205
  %v1803 = vunpack.c.l.b16 %v206
  %v1804 = vunpack.c.l.b16 %v207
  %v1805 = vunpack.c.h.b16 %v207
  %v1806 = vunpack.c.l.b16 %v208
  %v1807 = vunpack.c.l.b16 %v209
  %v1808 = vunpack.c.h.b16 %v209
  %v1809 = vunpack.c.l.b16 %v210
  %v1810 = vunpack.c.l.b16 %v211
  %v1811 = vunpack.c.h.b16 %v211
  %v1812 = vunpack.c.l.b16 %v212
  %v1813 = vunpack.c.l.b16 %v213
  %v1814 = vunpack.c.h.b16 %v213
  %v1815 = vunpack.c.l.b16 %v214
  %v1816 = vunpack.c.l.b16 %v215
  %v1817 = vunpack.c.h.b16 %v215
  %v1818 = vunpack.c.l.b16 %v216
  %v1819 = vunpack.c.l.b16 %v217
  %v1820 = vunpack.c.h.b16 %v217
  %v1821 = vunpack.c.l.b16 %v218
  %v1822 = vunpack.c.l.b16 %v219
  %v1823 = vunpack.c.h.b16 %v219
  %v1824 = vunpack.c.l.b16 %v220
  %v1825 = vunpack.c.l.b16 %v221
  %v1826 = vunpack.c.h.b16 %v221
  %v1827 = vunpack.c.l.b16 %v222
  %v1828 = vunpack.c.l.b16 %v223
  %v1829 = vunpack.c.h.b16 %v223
  %v1830 = vunpack.c.l.b16 %v224
  %v1831 = vunpack.c.l.b16 %v225
  %v1832 = vunpack.c.h.b16 %v225
  %v1833 = vunpack.c.l.b16 %v226
  %v1834 = vunpack.c.l.b16 %v227
  %v1835 = vunpack.c.h.b16 %v227
  %v1836 = vunpack.c.l.b16 %v228
  %v1837 = vunpack.c.l.b16 %v229
  %v1838 = vunpack.c.h.b16 %v229
  %v1839 = vunpack.c.l.b16 %v230
  %v1840 = vunpack.c.l.b16 %v231
  %v1841 = vunpack.c.h.b16 %v231
  %v1842 = vunpack.c.l.b16 %v232
  %v1843 = vunpack.c.l.b16 %v233
  %v1844 = vunpack.c.h.b16 %v233
  %v1845 = vunpack.c.l.b16 %v234
  %v1846 = vunpack.c.l.b16 %v235
  %v1847 = vunpack.c.h.b16 %v235
  %v1848 = vunpack.c.l.b16 %v236
  %v1849 = vunpack.c.l.b16 %v237
  %v1850 = vunpack.c.h.b16 %v237
  %v1851 = vunpack.c.l.b16 %v238
  %v1852 = vunpack.c.l.b16 %v239
  %v1853 = vunpack.c.h.b16 %v239
  %v1854 = vunpack.c.l.b16 %v240
  %v1855 = vunpack.c.l.b16 %v241
  %v1856 = vunpack.c.h.b16 %v241
  %v1857 = vunpack.c.l.b16 %v242
  %v1858 = vunpack.c.l.b16 %v243
  %v1859 = vunpack.c.h.b16 %v243
  %v1860 = vunpack.c.l.b16 %v244
  %v1861 = vunpack.c.l.b16 %v245
  %v1862 = vunpack.c.h.b16 %v245
  %v1863 = vunpack.c.l.b16 %v246
  %v1864 = vunpack.c.l.b16 %v247
  %v1865 = vunpack.c.h.b16 %v247
  %v1866 = vunpack.c.l.b16 %v248
  %v1867 = vunpack.c.l.b16 %v249
  %v1868 = vunpack.c.h.b16 %v249
  %v1869 = vunpack.c.l.b16 %v250
  %v1870 = vunpack.c.l.b16 %v251
  %v1871 = vunpack.c.h.b16 %v251
  %v1872 = vunpack.c.l.b16 %v252
  %v1873 = vunpack.c.l.b16 %v253
  %v1874 = vunpack.c.h.b16 %v253
  %v1875 = vunpack.c.l.b16 %v254
  %v1876 = vunpack.c.l.b16 %v255
  %v1877 = vunpack.c.h.b16 %v255
  %v1878 = vunpack.c.l.b16 %v256
  %v1879 = vunpack.c.l.b16 %v257
  %v1880 = vunpack.c.h.b16 %v257
  %v1881 = vunpack.c.l.b16 %v258
  %v1882 = vunpack.c.l.b16 %v259
  %v1883 = vunpack.c.h.b16 %v259
  %v1884 = vunpack.c.l.b16 %v260
  %v1885 = vunpack.c.l.b16 %v261
  %v1886 = vunpack.c.h.b16 %v261
  %v1887 = vunpack.c.l.b16 %v262
  %v1888 = vunpack.c.l.b16 %v263
  %v1889 = vunpack.c.h.b16 %v263
  %v1890 = vunpack.c.l.b16 %v264
  %v1891 = vunpack.c.l.b16 %v265
  %v1892 = vunpack.c.h.b16 %v265
  %v1893 = vunpack.c.l.b16 %v266
  %v1894 = vunpack.c.l.b16 %v267
  %v1895 = vunpack.c.h.b16 %v267
  %v1896 = vunpack.c.l.b16 %v268
  %v1897 = vunpack.c.l.b16 %v269
  %v1898 = vunpack.c.h.b16 %v269
  %v1899 = vunpack.c.l.b16 %v270
  %v1900 = vunpack.c.l.b16 %v271
  %v1901 = vunpack.c.h.b16 %v271
  %v1902 = vunpack.c.l.b16 %v272
  %v1903 = vunpack.c.l.b16 %v273
  %v1904 = vunpack.c.h.b16 %v273
  %v1905 = vunpack.c.l.b16 %v274
  %v1906 = vunpack.c.l.b16 %v275
  %v1907 = vunpack.c.h.b16 %v275
  %v1908 = vunpack.c.l.b16 %v276
  %v1909 = vunpack.c.l.b16 %v277
  %v1910 = vunpack.c.h.b16 %v277
  %v1911 = vunpack.c.l.b16 %v278
  %v1912 = vunpack.c.l.b16 %v279
  %v1913 = vunpack.c.h.b16 %v279
  %v1914 = vunpack.c.l.b16 %v280
  %v1915 = vunpack.c.l.b16 %v281
  %v1916 = vunpack.c.h.b16 %v281
  %v1917 = vunpack.c.l.b16 %v282
  %v1918 = vunpack.c.l.b16 %v283
  %v1919 = vunpack.c.h.b16 %v283
  %v1920 = vunpack.c.l.b16 %v284
  %v1921 = vunpack.c.l.b16 %v285
  %v1922 = vunpack.c.h.b16 %v285
  %v1923 = vunpack.c.l.b16 %v286
  %v1924 = vunpack.c.l.b16 %v287
  %v1925 = vunpack.c.h.b16 %v287
  %v1926 = vunpack.c.l.b16 %v288
  %v1927 = vunpack.c.l.b16 %v289
  %v1928 = vunpack.c.h.b16 %v289
  %v1929 = vunpack.c.l.b16 %v290
  %v1930 = vunpack.c.l.b16 %v291
  %v1931 = vunpack.c.h.b16 %v291
  %v1932 = vunpack.c.l.b16 %v292
  %v1933 = vunpack.c.l.b16 %v293
  %v1934 = vunpack.c.h.b16 %v293
  %v1935 = vunpack.c.l.b16 %v294
  %v1936 = vunpack.c.l.b16 %v295
  %v1937 = vunpack.c.h.b16 %v295
  %v1938 = vunpack.c.l.b16 %v296
  %v1939 = vunpack.c.l.b16 %v297
  %v1940 = vunpack.c.h.b16 %v297
  %v1941 = vunpack.c.l.b16 %v298
  %v1942 = vunpack.c.l.b16 %v299
  %v1943 = vunpack.c.h.b16 %v299
  %v1944 = vunpack.c.l.b16 %v300
  %v1945 = vunpack.c.l.b16 %v301
  %v1946 = vunpack.c.h.b16 %v301
  %v1947 = vunpack.c.l.b16 %v302
  %v1948 = vunpack.c.l.b16 %v303
  %v1949 = vunpack.c.h.b16 %v303
  %v1950 = vunpack.c.l.b16 %v304
  %v1951 = vunpack.c.l.b16 %v305
  %v1952 = vunpack.c.h.b16 %v305
  %v1953 = vunpack.c.l.b16 %v306
  %v1954 = vunpack.c.l.b16 %v307
  %v1955 = vunpack.c.h.b16 %v307
  %v1956 = vunpack.c.l.b16 %v308
  %v1957 = vunpack.c.l.b16 %v309
  %v1958 = vunpack.c.h.b16 %v309
  %v1959 = vunpack.c.l.b16 %v310
  %v1960 = vunpack.c.l.b16 %v311
  %v1961 = vunpack.c.h.b16 %v311
  %v1962 = vunpack.c.l.b16 %v312
  %v1963 = vunpack.c.l.b16 %v313
  %v1964 = vunpack.c.h.b16 %v313
  %v1965 = vunpack.c.l.b16 %v314
  %v1966 = vunpack.c.l.b16 %v315
  %v1967 = vunpack.c.h.b16 %v315
  %v1968 = vunpack.c.l.b16 %v316
  %v1969 = vunpack.c.l.b16 %v317
  %v1970 = vunpack.c.h.b16 %v317
  %v1971 = vunpack.c.l.b16 %v318
  %v1972 = vunpack.c.l.b16 %v319
  %v1973 = vunpack.c.h.b16 %v319
  %v1974 = vunpack.c.l.b16 %v320
  %v1975 = vunpack.c.l.b16 %v321
  %v1976 = vunpack.c.h.b16 %v321
  %v1977 = vunpack.c.l.b16 %v322
  %v1978 = vunpack.c.l.b16 %v323
  %v1979 = vunpack.c.h.b16 %v323
  %v1980 = vunpack.c.l.b16 %v324
  %v1981 = vunpack.c.l.b16 %v325
  %v1982 = vunpack.c.h.b16 %v325
  %v1983 = vunpack.c.l.b16 %v326
  %v1984 = vunpack.c.l.b16 %v327
  %v1985 = vunpack.c.h.b16 %v327
  %v1986 = vunpack.c.l.b16 %v328
  %v1987 = vunpack.c.l.b16 %v329
  %v1988 = vunpack.c.h.b16 %v329
  %v1989 = vunpack.c.l.b16 %v330
  %v1990 = vunpack.c.l.b16 %v331
  %v1991 = vunpack.c.h.b16 %v331
  %v1992 = vunpack.c.l.b16 %v332
  %v1993 = vunpack.c.l.b16 %v333
  %v1994 = vunpack.c.h.b16 %v333
  %v1995 = vunpack.c.l.b16 %v334
  %v1996 = vunpack.c.l.b16 %v335
  %v1997 = vunpack.c.h.b16 %v335
  %v1998 = vunpack.c.l.b16 %v336
  %v1999 = vunpack.c.l.b16 %v337
  %v2000 = vunpack.c.h.b16 %v337
  %v2001 = vunpack.c.l.b16 %v338
  %v2002 = vunpack.c.l.b16 %v339
  %v2003 = vunpack.c.h.b16 %v339
  %v2004 = vunpack.c.l.b16 %v340
  %v2005 = vunpack.c.l.b16 %v341
  %v2006 = vunpack.c.h.b16 %v341
  %v2007 = vunpack.c.l.b16 %v342
  %v2008 = vunpack.c.l.b16 %v343
  %v2009 = vunpack.c.h.b16 %v343
  %v2010 = vunpack.c.l.b16 %v344
  %v2011 = vunpack.c.l.b16 %v345
  %v2012 = vunpack.c.h.b16 %v345
  %v2013 = vunpack.c.l.b16 %v346
  %v2014 = vunpack.c.l.b16 %v347
  %v2015 = vunpack.c.h.b16 %v347
  %v2016 = vunpack.c.l.b16 %v348
  %v2017 = vunpack.c.l.b16 %v349
  %v2018 = vunpack.c.h.b16 %v349
  %v2019 = vunpack.c.l.b16 %v350
  %v2020 = vunpack.c.l.b16 %v351
  %v2021 = vunpack.c.h.b16 %v351
  %v2022 = vunpack.c.l.b16 %v352
  %v2023 = vunpack.c.l.b16 %v353
  %v2024 = vunpack.c.h.b16 %v353
  %v2025 = vunpack.c.l.b16 %v354
  %v2026 = vunpack.c.l.b16 %v355
  %v2027 = vunpack.c.h.b16 %v355
  %v2028 = vunpack.c.l.b16 %v356
  %v2029 = vunpack.c.l.b16 %v357
  %v2030 = vunpack.c.h.b16 %v357
  %v2031 = vunpack.c.l.b16 %v358
  %v2032 = vunpack.c.l.b16 %v359
  %v2033 = vunpack.c.h.b16 %v359
  %v2034 = vunpack.c.l.b16 %v360
  %v2035 = vunpack.c.l.b16 %v361
  %v2036 = vunpack.c.h.b16 %v361
  %v2037 = vunpack.c.l.b16 %v362
  %v2038 = vunpack.c.l.b16 %v363
  %v2039 = vunpack.c.h.b16 %v363
  %v2040 = vunpack.c.l.b16 %v364
  %v2041 = vunpack.c.l.b16 %v365
  %v2042 = vunpack.c.h.b16 %v365
  %v2043 = vunpack.c.l.b16 %v366
  %v2044 = vunpack.c.l.b16 %v367
  %v2045 = vunpack.c.h.b16 %v367
  %v2046 = vunpack.c.l.b16 %v368
  %v2047 = vunpack.c.l.b16 %v369
  %v2048 = vunpack.c.h.b16 %v369
  %v2049 = vunpack.c.l.b16 %v370
  %v2050 = vunpack.c.l.b16 %v371
  %v2051 = vunpack.c.h.b16 %v371
  %v2052 = vunpack.c.l.b16 %v372
  %v2053 = vunpack.c.l.b16 %v373
  %v2054 = vunpack.c.h.b16 %v373
  %v2055 = vunpack.c.l.b16 %v374
  %v2056 = vunpack.c.l.b16 %v375
  %v2057 = vunpack.c.h.b16 %v375
  %v2058 = vunpack.c.l.b16 %v376
  %v2059 = vunpack.c.l.b16 %v377
  %v2060 = vunpack.c.h.b16 %v377
  %v2061 = vunpack.c.l.b16 %v378
  %v2062 = vunpack.c.l.b16 %v379
  %v2063 = vunpack.c.h.b16 %v379
  %v2064 = vunpack.c.l.b16 %v380
  %v2065 = vunpack.c.l.b16 %v381
  %v2066 = vunpack.c.h.b16 %v381
  %v2067 = vunpack.c.l.b16 %v382
  %v2068 = vunpack.c.l.b16 %v383
  %v2069 = vunpack.c.h.b16 %v383
  %v2070 = vunpack.c.l.b16 %v384
  %v2071 = vunpack.c.l.b16 %v385
  %v2072 = vunpack.c.h.b16 %v385
  %v2073 = vunpack.c.l.b16 %v386
  %v2074 = vunpack.c.l.b16 %v387
  %v2075 = vunpack.c.h.b16 %v387
  %v2076 = vunpack.c.l.b16 %v388
  %v2077 = vunpack.c.l.b16 %v389
  %v2078 = vunpack.c.h.b16 %v389
  %v2079 = vunpack.c.l.b16 %v390
  %v2080 = vunpack.c.l.b16 %v391
  %v2081 = vunpack.c.h.b16 %v391
  %v2082 = vunpack.c.l.b16 %v392
  %v2083 = vunpack.c.l.b16 %v393
  %v2084 = vunpack.c.h.b16 %v393
  %v2085 = vunpack.c.l.b16 %v394
  %v2086 = vunpack.c.l.b16 %v395
  %v2087 = vunpack.c.h.b16 %v395
  %v2088 = vunpack.c.l.b16 %v396
  %v2089 = vunpack.c.l.b16 %v397
  %v2090 = vunpack.c.h.b16 %v397
  %v2091 = vunpack.c.l.b16 %v398
  %v2092 = vunpack.c.l.b16 %v399
  %v2093 = vunpack.c.h.b16 %v399
  %v2094 = vunpack.c.l.b16 %v400
  %v2095 = vunpack.c.l.b16 %v401
  %v2096 = vunpack.c.h.b16 %v401
  %v2097 = vunpack.c.l.b16 %v402
  %v2098 = vunpack.c.l.b16 %v403
  %v2099 = vunpack.c.h.b16 %v403
  %v2100 = vunpack.c.l.b16 %v404
  %v2101 = vunpack.c.l.b16 %v405
  %v2102 = vunpack.c.h.b16 %v405
  %v2103 = vunpack.c.l.b16 %v406
  %v2104 = vunpack.c.l.b16 %v407
  %v2105 = vunpack.c.h.b16 %v407
  %v2106 = vunpack.c.l.b16 %v408
  %v2107 = vunpack.c.l.b16 %v409
  %v2108 = vunpack.c.h.b16 %v409
  %v2109 = vunpack.c.l.b16 %v410
  %v2110 = vunpack.c.l.b16 %v411
  %v2111 = vunpack.c.h.b16 %v411
  %v2112 = vunpack.c.l.b16 %v412
  %v2113 = vunpack.c.l.b16 %v413
  %v2114 = vunpack.c.h.b16 %v413
  %v2115 = vunpack.c.l.b16 %v414
  %v2116 = vunpack.c.l.b16 %v415
  %v2117 = vunpack.c.h.b16 %v415
  %v2118 = vunpack.c.l.b16 %v416
  %v2119 = vunpack.c.l.b16 %v417
  %v2120 = vunpack.c.h.b16 %v417
  %v2121 = vunpack.c.l.b16 %v418
  %v2122 = vunpack.c.l.b16 %v419
  %v2123 = vunpack.c.h.b16 %v419
  %v2124 = vunpack.c.l.b16 %v420
  %v2125 = vunpack.c.l.b16 %v421
  %v2126 = vunpack.c.h.b16 %v421
  %v2127 = vunpack.c.l.b16 %v422
  %v2128 = vunpack.c.l.b16 %v423
  %v2129 = vunpack.c.h.b16 %v423
  %v2130 = vunpack.c.l.b16 %v424
  %v2131 = vunpack.c.l.b16 %v425
  %v2132 = vunpack.c.h.b16 %v425
  %v2133 = vunpack.c.l.b16 %v426
  %v2134 = vunpack.c.l.b16 %v427
  %v2135 = vunpack.c.h.b16 %v427
  %v2136 = vunpack.c.l.b16 %v428
  %v2137 = vunpack.c.l.b16 %v429
  %v2138 = vunpack.c.h.b16 %v429
  %v2139 = vunpack.c.l.b16 %v430
  %v2140 = vunpack.c.l.b16 %v431
  %v2141 = vunpack.c.h.b16 %v431
  %v2142 = vunpack.c.l.b16 %v432
  %v2143 = vunpack.c.l.b16 %v433
  %v2144 = vunpack.c.h.b16 %v433
  %v2145 = vunpack.c.l.b16 %v434
  %v2146 = vunpack.c.l.b16 %v435
  %v2147 = vunpack.c.h.b16 %v435
  %v2148 = vunpack.c.l.b16 %v436
  %v2149 = vunpack.c.l.b16 %v437
  %v2150 = vunpack.c.h.b16 %v437
  %v2151 = vunpack.c.l.b16 %v438
  %v2152 = vunpack.c.l.b16 %v439
  %v2153 = vunpack.c.h.b16 %v439
  %v2154 = vunpack.c.l.b16 %v440
  %v2155 = vunpack.c.l.b16 %v441
  %v2156 = vunpack.c.h.b16 %v441
  %v2157 = vunpack.c.l.b16 %v442
  %v2158 = vunpack.c.l.b16 %v443
  %v2159 = vunpack.c.h.b16 %v443
  %v2160 = vunpack.c.l.b16 %v444
  %v2161 = vunpack.c.l.b16 %v445
  %v2162 = vunpack.c.h.b16 %v445
  %v2163 = vunpack.c.l.b16 %v446
  %v2164 = vunpack.c.l.b16 %v447
  %v2165 = vunpack.c.h.b16 %v447
  %v2166 = vunpack.c.l.b16 %v448
  %v2167 = vunpack.c.l.b16 %v449
  %v2168 = vunpack.c.h.b16 %v449
  %v2169 = vunpack.c.l.b16 %v450
  %v2170 = vunpack.c.l.b16 %v451
  %v2171 = vunpack.c.h.b16 %v451
  %v2172 = vunpack.c.l.b16 %v452
  %v2173 = vunpack.c.l.b16 %v453
  %v2174 = vunpack.c.h.b16 %v453
  %v2175 = vunpack.c.l.b16 %v454
  %v2176 = vunpack.c.l.b16 %v455
  %v2177 = vunpack.c.h.b16 %v455
  %v2178 = vunpack.c.l.b16 %v456
  %v2179 = vunpack.c.l.b16 %v457
  %v2180 = vunpack.c.h.b16 %v457
  %v2181 = vunpack.c.l.b16 %v458
  %v2182 = vunpack.c.l.b16 %v459
  %v2183 = vunpack.c.h.b16 %v459
  %v2184 = vunpack.c.l.b16 %v460
  %v2185 = vunpack.c.l.b16 %v461
  %v2186 = vunpack.c.h.b16 %v461
  %v2187 = vunpack.c.l.b16 %v462
  %v2188 = vunpack.c.l.b16 %v463
  %v2189 = vunpack.c.h.b16 %v463
  %v2190 = vunpack.c.l.b16 %v464
  %v2191 = vunpack.c.l.b16 %v465
  %v2192 = vunpack.c.h.b16 %v465
  %v2193 = vunpack.c.l.b16 %v466
  %v2194 = vunpack.c.l.b16 %v467
  %v2195 = vunpack.c.h.b16 %v467
  %v2196 = vunpack.c.l.b16 %v468
  %v2197 = vunpack.c.l.b16 %v469
  %v2198 = vunpack.c.h.b16 %v469
  %v2199 = vunpack.c.l.b16 %v470
  %v2200 = vunpack.c.l.b16 %v471
  %v2201 = vunpack.c.h.b16 %v471
  %v2202 = vunpack.c.l.b16 %v472
  %v2203 = vunpack.c.l.b16 %v473
  %v2204 = vunpack.c.h.b16 %v473
  %v2205 = vunpack.c.l.b16 %v474
  %v2206 = vunpack.c.l.b16 %v475
  %v2207 = vunpack.c.h.b16 %v475
  %v2208 = vunpack.c.l.b16 %v476
  %v2209 = vunpack.c.l.b16 %v477
  %v2210 = vunpack.c.h.b16 %v477
  %v2211 = vunpack.c.l.b16 %v478
  %v2212 = vunpack.c.l.b16 %v479
  %v2213 = vunpack.c.h.b16 %v479
  %v2214 = vunpack.c.l.b16 %v480
  %v2215 = vunpack.c.l.b16 %v481
  %v2216 = vunpack.c.h.b16 %v481
  %v2217 = vunpack.c.l.b16 %v482
  %v2218 = vunpack.c.l.b16 %v483
  %v2219 = vunpack.c.h.b16 %v483
  %v2220 = vunpack.c.l.b16 %v484
  %v2221 = vunpack.c.l.b16 %v485
  %v2222 = vunpack.c.h.b16 %v485
  %v2223 = vunpack.c.l.b16 %v486
  %v2224 = vunpack.c.l.b16 %v487
  %v2225 = vunpack.c.h.b16 %v487
  %v2226 = vunpack.c.l.b16 %v488
  %v2227 = vunpack.c.l.b16 %v489
  %v2228 = vunpack.c.h.b16 %v489
  %v2229 = vunpack.c.l.b16 %v490
  %v2230 = vunpack.c.l.b16 %v491
  %v2231 = vunpack.c.h.b16 %v491
  %v2232 = vunpack.c.l.b16 %v492
  %v2233 = vunpack.c.l.b16 %v493
  %v2234 = vunpack.c.h.b16 %v493
  %v2235 = vunpack.c.l.b16 %v494
  %v2236 = vunpack.c.l.b16 %v495
  %v2237 = vunpack.c.h.b16 %v495
  %v2238 = vunpack.c.l.b16 %v496
  %v2239 = vunpack.c.l.b16 %v497
  %v2240 = vunpack.c.h.b16 %v497
  %v2241 = vunpack.c.l.b16 %v498
  %v2242 = vunpack.c.l.b16 %v499
  %v2243 = vunpack.c.h.b16 %v499
  %v2244 = vunpack.c.l.b16 %v500
  %v2245 = vunpack.c.l.b16 %v501
  %v2246 = vunpack.c.h.b16 %v501
  %v2247 = vunpack.c.l.b16 %v502
  %v2248 = vunpack.c.l.b16 %v503
  %v2249 = vunpack.c.h.b16 %v503
  %v2250 = vunpack.c.l.b16 %v504
  %v2251 = vunpack.c.l.b16 %v505
  %v2252 = vunpack.c.h.b16 %v505
  %v2253 = vunpack.c.l.b16 %v506
  %v2254 = vunpack.c.l.b16 %v507
  %v2255 = vunpack.c.h.b16 %v507
  %v2256 = vunpack.c.l.b16 %v508
  %v2257 = vunpack.c.l.b16 %v509
  %v2258 = vunpack.c.h.b16 %v509
  %v2259 = vunpack.c.l.b16 %v510
  %v2260 = vunpack.c.l.b16 %v511
  %v2261 = vunpack.c.h.b16 %v511
  %v2262 = vunpack.c.l.b16 %v512
  %v2263 = vunpack.c.l.b16 %v513
  %v2264 = vunpack.c.h.b16 %v513
  %v2265 = vunpack.c.l.b16 %v514
  %v2266 = vunpack.c.l.b16 %v515
  %v2267 = vunpack.c.h.b16 %v515
  %v2268 = vunpack.c.l.b16 %v516
  %v2269 = vunpack.c.l.b16 %v517
  %v2270 = vunpack.c.h.b16 %v517
  %v2271 = vunpack.c.l.b16 %v518
  %v2272 = vunpack.c.l.b16 %v519
  %v2273 = vunpack.c.h.b16 %v519
  %v2274 = vunpack.c.l.b16 %v520
  %v2275 = vunpack.c.l.b16 %v521
  %v2276 = vunpack.c.h.b16 %v521
  %v2277 = vunpack.c.l.b16 %v522
  %v2278 = vunpack.c.l.b16 %v523
  %v2279 = vunpack.c.h.b16 %v523
  %v2280 = vunpack.c.l.b16 %v524
  %v2281 = vunpack.c.l.b16 %v525
  %v2282 = vunpack.c.h.b16 %v525
  %v2283 = vunpack.c.l.b16 %v526
  %v2284 = vunpack.c.l.b16 %v527
  %v2285 = vunpack.c.h.b16 %v527
  %v2286 = vunpack.c.l.b16 %v528
  %v2287 = vunpack.c.l.b16 %v529
  %v2288 = vunpack.c.h.b16 %v529
  %v2289 = vunpack.c.l.b16 %v530
  %v2290 = vunpack.c.l.b16 %v531
  %v2291 = vunpack.c.h.b16 %v531
  %v2292 = vunpack.c.l.b16 %v532
  %v2293 = vunpack.c.l.b16 %v533
  %v2294 = vunpack.c.h.b16 %v533
  %v2295 = vunpack.c.l.b16 %v534
  %v2296 = vunpack.c.l.b16 %v535
  %v2297 = vunpack.c.h.b16 %v535
  %v2298 = vunpack.c.l.b16 %v536
  %v2299 = vunpack.c.l.b16 %v537
  %v2300 = vunpack.c.h.b16 %v537
  %v2301 = vunpack.c.l.b16 %v538
  %v2302 = vunpack.c.l.b16 %v539
  %v2303 = vunpack.c.h.b16 %v539
  %v2304 = vunpack.c.l.b16 %v540
  %v2305 = vunpack.c.l.b16 %v541
  %v2306 = vunpack.c.h.b16 %v541
  %v2307 = vunpack.c.l.b16 %v542
  %v2308 = vunpack.c.l.b16 %v543
  %v2309 = vunpack.c.h.b16 %v543
  %v2310 = vunpack.c.l.b16 %v544
  %v2311 = vunpack.c.l.b16 %v545
  %v2312 = vunpack.c.h.b16 %v545
  %v2313 = vunpack.c.l.b16 %v546
  %v2314 = vunpack.c.l.b16 %v547
  %v2315 = vunpack.c.h.b16 %v547
  %v2316 = vunpack.c.l.b16 %v548
  %v2317 = vunpack.c.l.b16 %v549
  %v2318 = vunpack.c.h.b16 %v549
  %v2319 = vunpack.c.l.b16 %v550
  %v2320 = vunpack.c.l.b16 %v551
  %v2321 = vunpack.c.h.b16 %v551
  %v2322 = vunpack.c.l.b16 %v552
  %v2323 = vunpack.c.l.b16 %v553
  %v2324 = vunpack.c.h.b16 %v553
  %v2325 = vunpack.c.l.b16 %v554
  %v2326 = vunpack.c.l.b16 %v555
  %v2327 = vunpack.c.h.b16 %v555
  %v2328 = vunpack.c.l.b16 %v556
  %v2329 = vunpack.c.l.b16 %v557
  %v2330 = vunpack.c.h.b16 %v557
  %v2331 = vunpack.c.l.b16 %v558
  %v2332 = vunpack.c.l.b16 %v559
  %v2333 = vunpack.c.h.b16 %v559
  %v2334 = vunpack.c.l.b16 %v560
  %v2335 = vunpack.c.l.b16 %v561
  %v2336 = vunpack.c.h.b16 %v561
  %v2337 = vunpack.c.l.b16 %v562
  %v2338 = vunpack.c.l.b16 %v563
  %v2339 = vunpack.c.h.b16 %v563
  %v2340 = vunpack.c.l.b16 %v564
  %v2341 = vunpack.c.l.b16 %v565
  %v2342 = vunpack.c.h.b16 %v565
  %v2343 = vunpack.c.l.b16 %v566
  %v2344 = vunpack.c.l.b16 %v567
  %v2345 = vunpack.c.h.b16 %v567
  %v2346 = vunpack.c.l.b16 %v568
  %v2347 = vunpack.c.l.b16 %v569
  %v2348 = vunpack.c.h.b16 %v569
  %v2349 = vunpack.c.l.b16 %v570
  %v2350 = vunpack.c.l.b16 %v571
  %v2351 = vunpack.c.h.b16 %v571
  %v2352 = vunpack.c.l.b16 %v572
  %v2353 = vunpack.c.l.b16 %v573
  %v2354 = vunpack.c.h.b16 %v573
  %v2355 = vunpack.c.l.b16 %v574
  %v2356 = vunpack.c.l.b16 %v575
  %v2357 = vunpack.c.h.b16 %v575
  %v2358 = vunpack.c.l.b16 %v576
  %v2359 = vunpack.c.l.b16 %v577
  %v2360 = vunpack.c.h.b16 %v577
  %v2361 = vunpack.c.l.b16 %v578
  %v2362 = vunpack.c.l.b16 %v579
  %v2363 = vunpack.c.h.b16 %v579
  %v2364 = vunpack.c.l.b16 %v580
  %v2365 = vunpack.c.l.b16 %v581
  %v2366 = vunpack.c.h.b16 %v581
  %v2367 = vunpack.c.l.b16 %v582
  %v2368 = vunpack.c.l.b16 %v583
  %v2369 = vunpack.c.h.b16 %v583
  %v2370 = vunpack.c.l.b16 %v584
  %v2371 = vunpack.c.l.b16 %v585
  %v2372 = vunpack.c.h.b16 %v585
  %v2373 = vunpack.c.l.b16 %v586
  %v2374 = vunpack.c.l.b16 %v587
  %v2375 = vunpack.c.h.b16 %v587
  %v2376 = vunpack.c.l.b16 %v588
  %v2377 = vunpack.c.l.b16 %v589
  %v2378 = vunpack.c.h.b16 %v589
  %v2379 = vunpack.c.l.b16 %v590
  %v2380 = vunpack.c.l.b16 %v591
  %v2381 = vunpack.c.h.b16 %v591
  %v2382 = vunpack.c.l.b16 %v592
  %v2383 = vunpack.c.l.b16 %v593
  %v2384 = vunpack.c.h.b16 %v593
  %v2385 = vunpack.c.l.b16 %v594
  %v2386 = vunpack.c.l.b16 %v595
  %v2387 = vunpack.c.h.b16 %v595
  %v2388 = vunpack.c.l.b16 %v596
  %v2389 = vunpack.c.l.b16 %v597
  %v2390 = vunpack.c.h.b16 %v597
  %v2391 = vunpack.c.l.b16 %v598
  %v2392 = vunpack.c.l.b16 %v599
  %v2393 = vunpack.c.h.b16 %v599
  %v2394 = vunpack.c.l.b16 %v600
  %v2395 = vunpack.c.l.b16 %v601
  %v2396 = vunpack.c.h.b16 %v601
  %v2397 = vunpack.c.l.b16 %v602
  %v2398 = vunpack.c.l.b16 %v603
  %v2399 = vunpack.c.h.b16 %v603
  %v2400 = vunpack.c.l.b16 %v604
  %v2401 = vunpack.c.l.b16 %v605
  %v2402 = vunpack.c.h.b16 %v605
  %v2403 = vunpack.c.l.b16 %v606
  %v2404 = vunpack.c.l.b16 %v607
  %v2405 = vunpack.c.h.b16 %v607
  %v2406 = vunpack.c.l.b16 %v608
  %v2407 = vunpack.c.l.b16 %v609
  %v2408 = vunpack.c.h.b16 %v609
  %v2409 = vunpack.c.l.b16 %v610
  %v2410 = vunpack.c.l.b16 %v611
  %v2411 = vunpack.c.h.b16 %v611
  %v2412 = vunpack.c.l.b16 %v612
  %v2413 = vunpack.c.l.b16 %v613
  %v2414 = vunpack.c.h.b16 %v613
  %v2415 = vunpack.c.l.b16 %v614
  %v2416 = vunpack.c.l.b16 %v615
  %v2417 = vunpack.c.h.b16 %v615
  %v2418 = vunpack.c.l.b16 %v616
  %v2419 = vunpack.c.l.b16 %v617
  %v2420 = vunpack.c.h.b16 %v617
  %v2421 = vunpack.c.l.b16 %v618
  %v2422 = vunpack.c.l.b16 %v619
  %v2423 = vunpack.c.h.b16 %v619
  %v2424 = vunpack.c.l.b16 %v620
  %v2425 = vunpack.c.l.b16 %v621
  %v2426 = vunpack.c.h.b16 %v621
  %v2427 = vunpack.c.l.b16 %v622
  %v2428 = vunpack.c.l.b16 %v623
  %v2429 = vunpack.c.h.b16 %v623
  %v2430 = vunpack.c.l.b16 %v624
  %v2431 = vunpack.c.l.b16 %v625
  %v2432 = vunpack.c.h.b16 %v625
  %v2433 = vunpack.c.l.b16 %v626
  %v2434 = vunpack.c.l.b16 %v627
  %v2435 = vunpack.c.h.b16 %v627
  %v2436 = vunpack.c.l.b16 %v628
  %v2437 = vunpack.c.l.b16 %v629
  %v2438 = vunpack.c.h.b16 %v629
  %v2439 = vunpack.c.l.b16 %v630
  %v2440 = vunpack.c.l.b16 %v631
  %v2441 = vunpack.c.h.b16 %v631
  %v2442 = vunpack.c.l.b16 %v632
  %v2443 = vunpack.c.l.b16 %v633
  %v2444 = vunpack.c.h.b16 %v633
  %v2445 = vunpack.c.l.b16 %v634
  %v2446 = vunpack.c.l.b16 %v635
  %v2447 = vunpack.c.h.b16 %v635
  %v2448 = vunpack.c.l.b16 %v636
  %v2449 = vunpack.c.l.b16 %v637
  %v2450 = vunpack.c.h.b16 %v637
  %v2451 = vunpack.c.l.b16 %v638
  %v2452 = vunpack.c.l.b16 %v639
  %v2453 = vunpack.c.h.b16 %v639
  %v2454 = vunpack.c.l.b16 %v640
  %v2455 = vunpack.c.l.b16 %v641
  %v2456 = vunpack.c.h.b16 %v641
  %v2457 = vunpack.c.l.b16 %v642
  %v2458 = vunpack.c.l.b16 %v643
  %v2459 = vunpack.c.h.b16 %v643
  %v2460 = vunpack.c.l.b16 %v644
  %v2461 = vunpack.c.l.b16 %v645
  %v2462 = vunpack.c.h.b16 %v645
  %v2463 = vunpack.c.l.b16 %v646
  %v2464 = vunpack.c.l.b16 %v647
  %v2465 = vunpack.c.h.b16 %v647
  %v2466 = vunpack.c.l.b16 %v648
  %v2467 = vunpack.c.l.b16 %v649
  %v2468 = vunpack.c.h.b16 %v649
  %v2469 = vunpack.c.l.b16 %v650
  %v2470 = vunpack.c.l.b16 %v651
  %v2471 = vunpack.c.h.b16 %v651
  %v2472 = vunpack.c.l.b16 %v652
  %v2473 = vunpack.c.l.b16 %v653
  %v2474 = vunpack.c.h.b16 %v653
  %v2475 = vunpack.c.l.b16 %v654
  %v2476 = vunpack.c.l.b16 %v655
  %v2477 = vunpack.c.h.b16 %v655
  %v2478 = vunpack.c.l.b16 %v656
  %v2479 = vunpack.c.l.b16 %v657
  %v2480 = vunpack.c.h.b16 %v657
  %v2481 = vunpack.c.l.b16 %v658
  %v2482 = vunpack.c.l.b16 %v659
  %v2483 = vunpack.c.h.b16 %v659
  %v2484 = vunpack.c.l.b16 %v660
  %v2485 = vunpack.c.l.b16 %v661
  %v2486 = vunpack.c.h.b16 %v661
  %v2487 = vunpack.c.l.b16 %v662
  %v2488 = vunpack.c.l.b16 %v663
  %v2489 = vunpack.c.h.b16 %v663
  %v2490 = vunpack.c.l.b16 %v664
  %v2491 = vunpack.c.l.b16 %v665
  %v2492 = vunpack.c.h.b16 %v665
  %v2493 = vunpack.c.l.b16 %v666
  %v2494 = vunpack.c.l.b16 %v667
  %v2495 = vunpack.c.h.b16 %v667
  %v2496 = vunpack.c.l.b16 %v668
  %v2497 = vunpack.c.l.b16 %v669
  %v2498 = vunpack.c.h.b16 %v669
  %v2499 = vunpack.c.l.b16 %v670
  %v2500 = vunpack.c.l.b16 %v671
  %v2501 = vunpack.c.h.b16 %v671
  %v2502 = vunpack.c.l.b16 %v672
  %v2503 = vunpack.c.l.b16 %v673
  %v2504 = vunpack.c.h.b16 %v673
  %v2505 = vunpack.c.l.b16 %v674
  %v2506 = vunpack.c.l.b16 %v675
  %v2507 = vunpack.c.h.b16 %v675
  %v2508 = vunpack.c.l.b16 %v676
  %v2509 = vunpack.c.l.b16 %v677
  %v2510 = vunpack.c.h.b16 %v677
  %v2511 = vunpack.c.l.b16 %v678
  %v2512 = vunpack.c.l.b16 %v679
  %v2513 = vunpack.c.h.b16 %v679
  %v2514 = vunpack.c.l.b16 %v680
  %v2515 = vunpack.c.l.b16 %v681
  %v2516 = vunpack.c.h.b16 %v681
  %v2517 = vunpack.c.l.b16 %v682
  %v2518 = vunpack.c.l.b16 %v683
  %v2519 = vunpack.c.h.b16 %v683
  %v2520 = vunpack.c.l.b16 %v684
  %v2521 = vunpack.c.l.b16 %v685
  %v2522 = vunpack.c.h.b16 %v685
  %v2523 = vunpack.c.l.b16 %v686
  %v2524 = vunpack.c.l.b16 %v687
  %v2525 = vunpack.c.h.b16 %v687
  %v2526 = vunpack.c.l.b16 %v688
  %v2527 = vunpack.c.l.b16 %v689
  %v2528 = vunpack.c.h.b16 %v689
  %v2529 = vunpack.c.l.b16 %v690
  %v2530 = vunpack.c.l.b16 %v691
  %v2531 = vunpack.c.h.b16 %v691
  %v2532 = vunpack.c.l.b16 %v692
  %v2533 = vunpack.c.l.b16 %v693
  %v2534 = vunpack.c.h.b16 %v693
  %v2535 = vunpack.c.l.b16 %v694
  %v2536 = vunpack.c.l.b16 %v695
  %v2537 = vunpack.c.h.b16 %v695
  %v2538 = vunpack.c.l.b16 %v696
  %v2539 = vunpack.c.l.b16 %v697
  %v2540 = vunpack.c.h.b16 %v697
  %v2541 = vunpack.c.l.b16 %v698
  %v2542 = vunpack.c.l.b16 %v699
  %v2543 = vunpack.c.h.b16 %v699
  %v2544 = vunpack.c.l.b16 %v700
  %v2545 = vunpack.c.l.b16 %v701
  %v2546 = vunpack.c.h.b16 %v701
  %v2547 = vunpack.c.l.b16 %v702
  %v2548 = vunpack.c.l.b16 %v703
  %v2549 = vunpack.c.h.b16 %v703
  %v2550 = vunpack.c.l.b16 %v704
  %v2551 = vunpack.c.l.b16 %v705
  %v2552 = vunpack.c.h.b16 %v705
  %v2553 = vunpack.c.l.b16 %v706
  %v2554 = vunpack.c.l.b16 %v707
  %v2555 = vunpack.c.h.b16 %v707
  %v2556 = vunpack.c.l.b16 %v708
  %v2557 = vunpack.c.l.b16 %v709
  %v2558 = vunpack.c.h.b16 %v709
  %v2559 = vunpack.c.l.b16 %v710
  %v2560 = vunpack.c.l.b16 %v711
  %v2561 = vunpack.c.h.b16 %v711
  %v2562 = vunpack.c.l.b16 %v712
  %v2563 = vunpack.c.l.b16 %v713
  %v2564 = vunpack.c.h.b16 %v713
  %v2565 = vunpack.c.l.b16 %v714
  %v2566 = vunpack.c.l.b16 %v715
  %v2567 = vunpack.c.h.b16 %v715
  %v2568 = vunpack.c.l.b16 %v716
  %v2569 = vunpack.c.l.b16 %v717
  %v2570 = vunpack.c.h.b16 %v717
  %v2571 = vunpack.c.l.b16 %v718
  %v2572 = vunpack.c.l.b16 %v719
  %v2573 = vunpack.c.h.b16 %v719
  %v2574 = vunpack.c.l.b16 %v720
  %v2575 = vunpack.c.l.b16 %v721
  %v2576 = vunpack.c.h.b16 %v721
  %v2577 = vunpack.c.l.b16 %v722
  %v2578 = vunpack.c.l.b16 %v723
  %v2579 = vunpack.c.h.b16 %v723
  %v2580 = vunpack.c.l.b16 %v724
  %v2581 = vunpack.c.l.b16 %v725
  %v2582 = vunpack.c.h.b16 %v725
  %v2583 = vunpack.c.l.b16 %v726
  %v2584 = vunpack.c.l.b16 %v727
  %v2585 = vunpack.c.h.b16 %v727
  %v2586 = vunpack.c.l.b16 %v728
  %v2587 = vunpack.c.l.b16 %v729
  %v2588 = vunpack.c.h.b16 %v729
  %v2589 = vunpack.c.l.b16 %v730
  %v2590 = vunpack.c.l.b16 %v731
  %v2591 = vunpack.c.h.b16 %v731
  %v2592 = vunpack.c.l.b16 %v732
  %v2593 = vunpack.c.l.b16 %v733
  %v2594 = vunpack.c.h.b16 %v733
  %v2595 = vunpack.c.l.b16 %v734
  %v2596 = vunpack.c.l.b16 %v735
  %v2597 = vunpack.c.h.b16 %v735
  %v2598 = vunpack.c.l.b16 %v736
  %v2599 = vunpack.c.l.b16 %v737
  %v2600 = vunpack.c.h.b16 %v737
  %v2601 = vunpack.c.l.b16 %v738
  %v2602 = vunpack.c.l.b16 %v739
  %v2603 = vunpack.c.h.b16 %v739
  %v2604 = vunpack.c.l.b16 %v740
  %v2605 = vunpack.c.l.b16 %v741
  %v2606 = vunpack.c.h.b16 %v741
  %v2607 = vunpack.c.l.b16 %v742
  %v2608 = vunpack.c.l.b16 %v743
  %v2609 = vunpack.c.h.b16 %v743
  %v2610 = vunpack.c.l.b16 %v744
  %v2611 = vpack.c.b16 %v1519, %v1516
  %v2612 = vpack.c.b16 %v1520, %v1517
  %v2613 = vpack.c.b16 %v1521, %v1518
  %v2614 = vpack.c.b16 %v1525, %v1522
  %v2615 = vpack.c.b16 %v1526, %v1523
  %v2616 = vpack.c.b16 %v1527, %v1524
  %v2617 = vpack.c.b16 %v1531, %v1528
  %v2618 = vpack.c.b16 %v1532, %v1529
  %v2619 = vpack.c.b16 %v1533, %v1530
  %v2620 = vpack.c.b16 %v1537, %v1534
  %v2621 = vpack.c.b16 %v1538, %v1535
  %v2622 = vpack.c.b16 %v1539, %v1536
  %v2623 = vpack.c.b16 %v1543, %v1540
  %v2624 = vpack.c.b16 %v1544, %v1541
  %v2625 = vpack.c.b16 %v1545, %v1542
  %v2626 = vpack.c.b16 %v1549, %v1546
  %v2627 = vpack.c.b16 %v1550, %v1547
  %v2628 = vpack.c.b16 %v1551, %v1548
  %v2629 = vpack.c.b16 %v1555, %v1552
  %v2630 = vpack.c.b16 %v1556, %v1553
  %v2631 = vpack.c.b16 %v1557, %v1554
  %v2632 = vpack.c.b16 %v1561, %v1558
  %v2633 = vpack.c.b16 %v1562, %v1559
  %v2634 = vpack.c.b16 %v1563, %v1560
  %v2635 = vpack.c.b16 %v1567, %v1564
  %v2636 = vpack.c.b16 %v1568, %v1565
  %v2637 = vpack.c.b16 %v1569, %v1566
  %v2638 = vpack.c.b16 %v1573, %v1570
  %v2639 = vpack.c.b16 %v1574, %v1571
  %v2640 = vpack.c.b16 %v1575, %v1572
  %v2641 = vpack.c.b16 %v1579, %v1576
  %v2642 = vpack.c.b16 %v1580, %v1577
  %v2643 = vpack.c.b16 %v1581, %v1578
  %v2644 = vpack.c.b16 %v1585, %v1582
  %v2645 = vpack.c.b16 %v1586, %v1583
  %v2646 = vpack.c.b16 %v1587, %v1584
  %v2647 = vpack.c.b16 %v1591, %v1588
  %v2648 = vpack.c.b16 %v1592, %v1589
  %v2649 = vpack.c.b16 %v1593, %v1590
  %v2650 = vpack.c.b16 %v1597, %v1594
  %v2651 = vpack.c.b16 %v1598, %v1595
  %v2652 = vpack.c.b16 %v1599, %v1596
  %v2653 = vpack.c.b16 %v1603, %v1600
  %v2654 = vpack.c.b16 %v1604, %v1601
  %v2655 = vpack.c.b16 %v1605, %v1602
  %v2656 = vpack.c.b16 %v1609, %v1606
  %v2657 = vpack.c.b16 %v1610, %v1607
  %v2658 = vpack.c.b16 %v1611, %v1608
  %v2659 = vpack.c.b16 %v1615, %v1612
  %v2660 = vpack.c.b16 %v1616, %v1613
  %v2661 = vpack.c.b16 %v1617, %v1614
  %v2662 = vpack.c.b16 %v1621, %v1618
  %v2663 = vpack.c.b16 %v1622, %v1619
  %v2664 = vpack.c.b16 %v1623, %v1620
  %v2665 = vpack.c.b16 %v1627, %v1624
  %v2666 = vpack.c.b16 %v1628, %v1625
  %v2667 = vpack.c.b16 %v1629, %v1626
  %v2668 = vpack.c.b16 %v1633, %v1630
  %v2669 = vpack.c.b16 %v1634, %v1631
  %v2670 = vpack.c.b16 %v1635, %v1632
  %v2671 = vpack.c.b16 %v1639, %v1636
  %v2672 = vpack.c.b16 %v1640, %v1637
  %v2673 = vpack.c.b16 %v1641, %v1638
  %v2674 = vpack.c.b16 %v1645, %v1642
  %v2675 = vpack.c.b16 %v1646, %v1643
  %v2676 = vpack.c.b16 %v1647, %v1644
  %v2677 = vpack.c.b16 %v1651, %v1648
  %v2678 = vpack.c.b16 %v1652, %v1649
  %v2679 = vpack.c.b16 %v1653, %v1650
  %v2680 = vpack.c.b16 %v1657, %v1654
  %v2681 = vpack.c.b16 %v1658, %v1655
  %v2682 = vpack.c.b16 %v1659, %v1656
  %v2683 = vpack.c.b16 %v1663, %v1660
  %v2684 = vpack.c.b16 %v1664, %v1661
  %v2685 = vpack.c.b16 %v1665, %v1662
  %v2686 = vpack.c.b16 %v1669, %v1666
  %v2687 = vpack.c.b16 %v1670, %v1667
  %v2688 = vpack.c.b16 %v1671, %v1668
  %v2689 = vpack.c.b16 %v1675, %v1672
  %v2690 = vpack.c.b16 %v1676, %v1673
  %v2691 = vpack.c.b16 %v1677, %v1674
  %v2692 = vpack.c.b16 %v1681, %v1678
  %v2693 = vpack.c.b16 %v1682, %v1679
  %v2694 = vpack.c.b16 %v1683, %v1680
  %v2695 = vpack.c.b16 %v1687, %v1684
  %v2696 = vpack.c.b16 %v1688, %v1685
  %v2697 = vpack.c.b16 %v1689, %v1686
  %v2698 = vpack.c.b16 %v1693, %v1690
  %v2699 = vpack.c.b16 %v1694, %v1691
  %v2700 = vpack.c.b16 %v1695, %v1692
  %v2701 = vpack.c.b16 %v1699, %v1696
  %v2702 = vpack.c.b16 %v1700, %v1697
  %v2703 = vpack.c.b16 %v1701, %v1698
  %v2704 = vpack.c.b16 %v1705, %v1702
  %v2705 = vpack.c.b16 %v1706, %v1703
  %v2706 = vpack.c.b16 %v1707, %v1704
  %v2707 = vpack.c.b16 %v1711, %v1708
  %v2708 = vpack.c.b16 %v1712, %v1709
  %v2709 = vpack.c.b16 %v1713, %v1710
  %v2710 = vpack.c.b16 %v1717, %v1714
  %v2711 = vpack.c.b16 %v1718, %v1715
  %v2712 = vpack.c.b16 %v1719, %v1716
  %v2713 = vpack.c.b16 %v1723, %v1720
  %v2714 = vpack.c.b16 %v1724, %v1721
  %v2715 = vpack.c.b16 %v1725, %v1722
  %v2716 = vpack.c.b16 %v1729, %v1726
  %v2717 = vpack.c.b16 %v1730, %v1727
  %v2718 = vpack.c.b16 %v1731, %v1728
  %v2719 = vpack.c.b16 %v1735, %v1732
  %v2720 = vpack.c.b16 %v1736, %v1733
  %v2721 = vpack.c.b16 %v1737, %v1734
  %v2722 = vpack.c.b16 %v1741, %v1738
  %v2723 = vpack.c.b16 %v1742, %v1739
  %v2724 = vpack.c.b16 %v1743, %v1740
  %v2725 = vpack.c.b16 %v1747, %v1744
  %v2726 = vpack.c.b16 %v1748, %v1745
  %v2727 = vpack.c.b16 %v1749, %v1746
  %v2728 = vpack.c.b16 %v1753, %v1750
  %v2729 = vpack.c.b16 %v1754, %v1751
  %v2730 = vpack.c.b16 %v1755, %v1752
  %v2731 = vpack.c.b16 %v1759, %v1756
  %v2732 = vpack.c.b16 %v1760, %v1757
  %v2733 = vpack.c.b16 %v1761, %v1758
  %v2734 = vpack.c.b16 %v1765, %v1762
  %v2735 = vpack.c.b16 %v1766, %v1763
  %v2736 = vpack.c.b16 %v1767, %v1764
  %v2737 = vpack.c.b16 %v1771, %v1768
  %v2738 = vpack.c.b16 %v1772, %v1769
  %v2739 = vpack.c.b16 %v1773, %v1770
  %v2740 = vpack.c.b16 %v1777, %v1774
  %v2741 = vpack.c.b16 %v1778, %v1775
  %v2742 = vpack.c.b16 %v1779, %v1776
  %v2743 = vpack.c.b16 %v1783, %v1780
  %v2744 = vpack.c.b16 %v1784, %v1781
  %v2745 = vpack.c.b16 %v1785, %v1782
  %v2746 = vpack.c.b16 %v1789, %v1786
  %v2747 = vpack.c.b16 %v1790, %v1787
  %v2748 = vpack.c.b16 %v1791, %v1788
  %v2749 = vpack.c.b16 %v1795, %v1792
  %v2750 = vpack.c.b16 %v1796, %v1793
  %v2751 = vpack.c.b16 %v1797, %v1794
  %v2752 = vpack.c.b16 %v1801, %v1798
  %v2753 = vpack.c.b16 %v1802, %v1799
  %v2754 = vpack.c.b16 %v1803, %v1800
  %v2755 = vpack.c.b16 %v1807, %v1804
  %v2756 = vpack.c.b16 %v1808, %v1805
  %v2757 = vpack.c.b16 %v1809, %v1806
  %v2758 = vpack.c.b16 %v1813, %v1810
  %v2759 = vpack.c.b16 %v1814, %v1811
  %v2760 = vpack.c.b16 %v1815, %v1812
  %v2761 = vpack.c.b16 %v1819, %v1816
  %v2762 = vpack.c.b16 %v1820, %v1817
  %v2763 = vpack.c.b16 %v1821, %v1818
  %v2764 = vpack.c.b16 %v1825, %v1822
  %v2765 = vpack.c.b16 %v1826, %v1823
  %v2766 = vpack.c.b16 %v1827, %v1824
  %v2767 = vpack.c.b16 %v1831, %v1828
  %v2768 = vpack.c.b16 %v1832, %v1829
  %v2769 = vpack.c.b16 %v1833, %v1830
  %v2770 = vpack.c.b16 %v1837, %v1834
  %v2771 = vpack.c.b16 %v1838, %v1835
  %v2772 = vpack.c.b16 %v1839, %v1836
  %v2773 = vpack.c.b16 %v1843, %v1840
  %v2774 = vpack.c.b16 %v1844, %v1841
  %v2775 = vpack.c.b16 %v1845, %v1842
  %v2776 = vpack.c.b16 %v1849, %v1846
  %v2777 = vpack.c.b16 %v1850, %v1847
  %v2778 = vpack.c.b16 %v1851, %v1848
  %v2779 = vpack.c.b16 %v1855, %v1852
  %v2780 = vpack.c.b16 %v1856, %v1853
  %v2781 = vpack.c.b16 %v1857, %v1854
  %v2782 = vpack.c.b16 %v1861, %v1858
  %v2783 = vpack.c.b16 %v1862, %v1859
  %v2784 = vpack.c.b16 %v1863, %v1860
  %v2785 = vpack.c.b16 %v1867, %v1864
  %v2786 = vpack.c.b16 %v1868, %v1865
  %v2787 = vpack.c.b16 %v1869, %v1866
  %v2788 = vpack.c.b16 %v1873, %v1870
  %v2789 = vpack.c.b16 %v1874, %v1871
  %v2790 = vpack.c.b16 %v1875, %v1872
  %v2791 = vpack.c.b16 %v1879, %v1876
  %v2792 = vpack.c.b16 %v1880, %v1877
  %v2793 = vpack.c.b16 %v1881, %v1878
  %v2794 = vpack.c.b16 %v1885, %v1882
  %v2795 = vpack.c.b16 %v1886, %v1883
  %v2796 = vpack.c.b16 %v1887, %v1884
  %v2797 = vpack.c.b16 %v1891, %v1888
  %v2798 = vpack.c.b16 %v1892, %v1889
  %v2799 = vpack.c.b16 %v1893, %v1890
  %v2800 = vpack.c.b16 %v1897, %v1894
  %v2801 = vpack.c.b16 %v1898, %v1895
  %v2802 = vpack.c.b16 %v1899, %v1896
  %v2803 = vpack.c.b16 %v1903, %v1900
  %v2804 = vpack.c.b16 %v1904, %v1901
  %v2805 = vpack.c.b16 %v1905, %v1902
  %v2806 = vpack.c.b16 %v1909, %v1906
  %v2807 = vpack.c.b16 %v1910, %v1907
  %v2808 = vpack.c.b16 %v1911, %v1908
  %v2809 = vpack.c.b16 %v1915, %v1912
  %v2810 = vpack.c.b16 %v1916, %v1913
  %v2811 = vpack.c.b16 %v1917, %v1914
  %v2812 = vpack.c.b16 %v1921, %v1918
  %v2813 = vpack.c.b16 %v1922, %v1919
  %v2814 = vpack.c.b16 %v1923, %v1920
  %v2815 = vpack.c.b16 %v1927, %v1924
  %v2816 = vpack.c.b16 %v1928, %v1925
  %v2817 = vpack.c.b16 %v1929, %v1926
  %v2818 = vpack.c.b16 %v1933, %v1930
  %v2819 = vpack.c.b16 %v1934, %v1931
  %v2820 = vpack.c.b16 %v1935, %v1932
  %v2821 = vpack.c.b16 %v1939, %v1936
  %v2822 = vpack.c.b16 %v1940, %v1937
  %v2823 = vpack.c.b16 %v1941, %v1938
  %v2824 = vpack.c.b16 %v1945, %v1942
  %v2825 = vpack.c.b16 %v1946, %v1943
  %v2826 = vpack.c.b16 %v1947, %v1944
  %v2827 = vpack.c.b16 %v1951, %v1948
  %v2828 = vpack.c.b16 %v1952, %v1949
  %v2829 = vpack.c.b16 %v1953, %v1950
  %v2830 = vpack.c.b16 %v1957, %v1954
  %v2831 = vpack.c.b16 %v1958, %v1955
  %v2832 = vpack.c.b16 %v1959, %v1956
  %v2833 = vpack.c.b16 %v1963, %v1960
  %v2834 = vpack.c.b16 %v1964, %v1961
  %v2835 = vpack.c.b16 %v1965, %v1962
  %v2836 = vpack.c.b16 %v1969, %v1966
  %v2837 = vpack.c.b16 %v1970, %v1967
  %v2838 = vpack.c.b16 %v1971, %v1968
  %v2839 = vpack.c.b16 %v1975, %v1972
  %v2840 = vpack.c.b16 %v1976, %v1973
  %v2841 = vpack.c.b16 %v1977, %v1974
  %v2842 = vpack.c.b16 %v1981, %v1978
  %v2843 = vpack.c.b16 %v1982, %v1979
  %v2844 = vpack.c.b16 %v1983, %v1980
  %v2845 = vpack.c.b16 %v1987, %v1984
  %v2846 = vpack.c.b16 %v1988, %v1985
  %v2847 = vpack.c.b16 %v1989, %v1986
  %v2848 = vpack.c.b16 %v1993, %v1990
  %v2849 = vpack.c.b16 %v1994, %v1991
  %v2850 = vpack.c.b16 %v1995, %v1992
  %v2851 = vpack.c.b16 %v1999, %v1996
  %v2852 = vpack.c.b16 %v2000, %v1997
  %v2853 = vpack.c.b16 %v2001, %v1998
  %v2854 = vpack.c.b16 %v2005, %v2002
  %v2855 = vpack.c.b16 %v2006, %v2003
  %v2856 = vpack.c.b16 %v2007, %v2004
  %v2857 = vpack.c.b16 %v2011, %v2008
  %v2858 = vpack.c.b16 %v2012, %v2009
  %v2859 = vpack.c.b16 %v2013, %v2010
  %v2860 = vpack.c.b16 %v2017, %v2014
  %v2861 = vpack.c.b16 %v2018, %v2015
  %v2862 = vpack.c.b16 %v2019, %v2016
  %v2863 = vpack.c.b16 %v2023, %v2020
  %v2864 = vpack.c.b16 %v2024, %v2021
  %v2865 = vpack.c.b16 %v2025, %v2022
  %v2866 = vpack.c.b16 %v2029, %v2026
  %v2867 = vpack.c.b16 %v2030, %v2027
  %v2868 = vpack.c.b16 %v2031, %v2028
  %v2869 = vpack.c.b16 %v2035, %v2032
  %v2870 = vpack.c.b16 %v2036, %v2033
  %v2871 = vpack.c.b16 %v2037, %v2034
  %v2872 = vpack.c.b16 %v2041, %v2038
  %v2873 = vpack.c.b16 %v2042, %v2039
  %v2874 = vpack.c.b16 %v2043, %v2040
  %v2875 = vpack.c.b16 %v2047, %v2044
  %v2876 = vpack.c.b16 %v2048, %v2045
  %v2877 = vpack.c.b16 %v2049, %v2046
  %v2878 = vpack.c.b16 %v2053, %v2050
  %v2879 = vpack.c.b16 %v2054, %v2051
  %v2880 = vpack.c.b16 %v2055, %v2052
  %v2881 = vpack.c.b16 %v2059, %v2056
  %v2882 = vpack.c.b16 %v2060, %v2057
  %v2883 = vpack.c.b16 %v2061, %v2058
  %v2884 = vpack.c.b16 %v2065, %v2062
  %v2885 = vpack.c.b16 %v2066, %v2063
  %v2886 = vpack.c.b16 %v2067, %v2064
  %v2887 = vpack.c.b16 %v2071, %v2068
  %v2888 = vpack.c.b16 %v2072, %v2069
  %v2889 = vpack.c.b16 %v2073, %v2070
  %v2890 = vpack.c.b16 %v2077, %v2074
  %v2891 = vpack.c.b16 %v2078, %v2075
  %v2892 = vpack.c.b16 %v2079, %v2076
  %v2893 = vpack.c.b16 %v2083, %v2080
  %v2894 = vpack.c.b16 %v2084, %v2081
  %v2895 = vpack.c.b16 %v2085, %v2082
  %v2896 = vpack.c.b16 %v2089, %v2086
  %v2897 = vpack.c.b16 %v2090, %v2087
  %v2898 = vpack.c.b16 %v2091, %v2088
  %v2899 = vpack.c.b16 %v2095, %v2092
  %v2900 = vpack.c.b16 %v2096, %v2093
  %v2901 = vpack.c.b16 %v2097, %v2094
  %v2902 = vpack.c.b16 %v2101, %v2098
  %v2903 = vpack.c.b16 %v2102, %v2099
  %v2904 = vpack.c.b16 %v2103, %v2100
  %v2905 = vpack.c.b16 %v2107, %v2104
  %v2906 = vpack.c.b16 %v2108, %v2105
  %v2907 = vpack.c.b16 %v2109, %v2106
  %v2908 = vpack.c.b16 %v2113, %v2110
  %v2909 = vpack.c.b16 %v2114, %v2111
  %v2910 = vpack.c.b16 %v2115, %v2112
  %v2911 = vpack.c.b16 %v2119, %v2116
  %v2912 = vpack.c.b16 %v2120, %v2117
  %v2913 = vpack.c.b16 %v2121, %v2118
  %v2914 = vpack.c.b16 %v2125, %v2122
  %v2915 = vpack.c.b16 %v2126, %v2123
  %v2916 = vpack.c.b16 %v2127, %v2124
  %v2917 = vpack.c.b16 %v2131, %v2128
  %v2918 = vpack.c.b16 %v2132, %v2129
  %v2919 = vpack.c.b16 %v2133, %v2130
  %v2920 = vpack.c.b16 %v2137, %v2134
  %v2921 = vpack.c.b16 %v2138, %v2135
  %v2922 = vpack.c.b16 %v2139, %v2136
  %v2923 = vpack.c.b16 %v2143, %v2140
  %v2924 = vpack.c.b16 %v2144, %v2141
  %v2925 = vpack.c.b16 %v2145, %v2142
  %v2926 = vpack.c.b16 %v2149, %v2146
  %v2927 = vpack.c.b16 %v2150, %v2147
  %v2928 = vpack.c.b16 %v2151, %v2148
  %v2929 = vpack.c.b16 %v2155, %v2152
  %v2930 = vpack.c.b16 %v2156, %v2153
  %v2931 = vpack.c.b16 %v2157, %v2154
  %v2932 = vpack.c.b16 %v2161, %v2158
  %v2933 = vpack.c.b16 %v2162, %v2159
  %v2934 = vpack.c.b16 %v2163, %v2160
  %v2935 = vpack.c.b16 %v2167, %v2164
  %v2936 = vpack.c.b16 %v2168, %v2165
  %v2937 = vpack.c.b16 %v2169, %v2166
  %v2938 = vpack.c.b16 %v2173, %v2170
  %v2939 = vpack.c.b16 %v2174, %v2171
  %v2940 = vpack.c.b16 %v2175, %v2172
  %v2941 = vpack.c.b16 %v2179, %v2176
  %v2942 = vpack.c.b16 %v2180, %v2177
  %v2943 = vpack.c.b16 %v2181, %v2178
  %v2944 = vpack.c.b16 %v2185, %v2182
  %v2945 = vpack.c.b16 %v2186, %v2183
  %v2946 = vpack.c.b16 %v2187, %v2184
  %v2947 = vpack.c.b16 %v2191, %v2188
  %v2948 = vpack.c.b16 %v2192, %v2189
  %v2949 = vpack.c.b16 %v2193, %v2190
  %v2950 = vpack.c.b16 %v2197, %v2194
  %v2951 = vpack.c.b16 %v2198, %v2195
  %v2952 = vpack.c.b16 %v2199, %v2196
  %v2953 = vpack.c.b16 %v2203, %v2200
  %v2954 = vpack.c.b16 %v2204, %v2201
  %v2955 = vpack.c.b16 %v2205, %v2202
  %v2956 = vpack.c.b16 %v2209, %v2206
  %v2957 = vpack.c.b16 %v2210, %v2207
  %v2958 = vpack.c.b16 %v2211, %v2208
  %v2959 = vpack.c.b16 %v2215, %v2212
  %v2960 = vpack.c.b16 %v2216, %v2213
  %v2961 = vpack.c.b16 %v2217, %v2214
  %v2962 = vpack.c.b16 %v2221, %v2218
  %v2963 = vpack.c.b16 %v2222, %v2219
  %v2964 = vpack.c.b16 %v2223, %v2220
  %v2965 = vpack.c.b16 %v2227, %v2224
  %v2966 = vpack.c.b16 %v2228, %v2225
  %v2967 = vpack.c.b16 %v2229, %v2226
  %v2968 = vpack.c.b16 %v2233, %v2230
  %v2969 = vpack.c.b16 %v2234, %v2231
  %v2970 = vpack.c.b16 %v2235, %v2232
  %v2971 = vpack.c.b16 %v2239, %v2236
  %v2972 = vpack.c.b16 %v2240, %v2237
  %v2973 = vpack.c.b16 %v2241, %v2238
  %v2974 = vpack.c.b16 %v2245, %v2242
  %v2975 = vpack.c.b16 %v2246, %v2243
  %v2976 = vpack.c.b16 %v2247, %v2244
  %v2977 = vpack.c.b16 %v2251, %v2248
  %v2978 = vpack.c.b16 %v2252, %v2249
  %v2979 = vpack.c.b16 %v2253, %v2250
  %v2980 = vpack.c.b16 %v2257, %v2254
  %v2981 = vpack.c.b16 %v2258, %v2255
  %v2982 = vpack.c.b16 %v2259, %v2256
  %v2983 = vpack.c.b16 %v2263, %v2260
  %v2984 = vpack.c.b16 %v2264, %v2261
  %v2985 = vpack.c.b16 %v2265, %v2262
  %v2986 = vpack.c.b16 %v2269, %v2266
  %v2987 = vpack.c.b16 %v2270, %v2267
  %v2988 = vpack.c.b16 %v2271, %v2268
  %v2989 = vpack.c.b16 %v2275, %v2272
  %v2990 = vpack.c.b16 %v2276, %v2273
  %v2991 = vpack.c.b16 %v2277, %v2274
  %v2992 = vpack.c.b16 %v2281, %v2278
  %v2993 = vpack.c.b16 %v2282, %v2279
  %v2994 = vpack.c.b16 %v2283, %v2280
  %v2995 = vpack.c.b16 %v2287, %v2284
  %v2996 = vpack.c.b16 %v2288, %v2285
  %v2997 = vpack.c.b16 %v2289, %v2286
  %v2998 = vpack.c.b16 %v2293, %v2290
  %v2999 = vpack.c.b16 %v2294, %v2291
  %v3000 = vpack.c.b16 %v2295, %v2292
  %v3001 = vpack.c.b16 %v2299, %v2296
  %v3002 = vpack.c.b16 %v2300, %v2297
  %v3003 = vpack.c.b16 %v2301, %v2298
  %v3004 = vpack.c.b16 %v2305, %v2302
  %v3005 = vpack.c.b16 %v2306, %v2303
  %v3006 = vpack.c.b16 %v2307, %v2304
  %v3007 = vpack.c.b16 %v2311, %v2308
  %v3008 = vpack.c.b16 %v2312, %v2309
  %v3009 = vpack.c.b16 %v2313, %v2310
  %v3010 = vpack.c.b16 %v2317, %v2314
  %v3011 = vpack.c.b16 %v2318, %v2315
  %v3012 = vpack.c.b16 %v2319, %v2316
  %v3013 = vpack.c.b16 %v2323, %v2320
  %v3014 = vpack.c.b16 %v2324, %v2321
  %v3015 = vpack.c.b16 %v2325, %v2322
  %v3016 = vpack.c.b16 %v2329, %v2326
  %v3017 = vpack.c.b16 %v2330, %v2327
  %v3018 = vpack.c.b16 %v2331, %v2328
  %v3019 = vpack.c.b16 %v2335, %v2332
  %v3020 = vpack.c.b16 %v2336, %v2333
  %v3021 = vpack.c.b16 %v2337, %v2334
  %v3022 = vpack.c.b16 %v2341, %v2338
  %v3023 = vpack.c.b16 %v2342, %v2339
  %v3024 = vpack.c.b16 %v2343, %v2340
  %v3025 = vpack.c.b16 %v2347, %v2344
  %v3026 = vpack.c.b16 %v2348, %v2345
  %v3027 = vpack.c.b16 %v2349, %v2346
  %v3028 = vpack.c.b16 %v2353, %v2350
  %v3029 = vpack.c.b16 %v2354, %v2351
  %v3030 = vpack.c.b16 %v2355, %v2352
  %v3031 = vpack.c.b16 %v2359, %v2356
  %v3032 = vpack.c.b16 %v2360, %v2357
  %v3033 = vpack.c.b16 %v2361, %v2358
  %v3034 = vpack.c.b16 %v2365, %v2362
  %v3035 = vpack.c.b16 %v2366, %v2363
  %v3036 = vpack.c.b16 %v2367, %v2364
  %v3037 = vpack.c.b16 %v2371, %v2368
  %v3038 = vpack.c.b16 %v2372, %v2369
  %v3039 = vpack.c.b16 %v2373, %v2370
  %v3040 = vpack.c.b16 %v2377, %v2374
  %v3041 = vpack.c.b16 %v2378, %v2375
  %v3042 = vpack.c.b16 %v2379, %v2376
  %v3043 = vpack.c.b16 %v2383, %v2380
  %v3044 = vpack.c.b16 %v2384, %v2381
  %v3045 = vpack.c.b16 %v2385, %v2382
  %v3046 = vpack.c.b16 %v2389, %v2386
  %v3047 = vpack.c.b16 %v2390, %v2387
  %v3048 = vpack.c.b16 %v2391, %v2388
  %v3049 = vpack.c.b16 %v2395, %v2392
  %v3050 = vpack.c.b16 %v2396, %v2393
  %v3051 = vpack.c.b16 %v2397, %v2394
  %v3052 = vpack.c.b16 %v2401, %v2398
  %v3053 = vpack.c.b16 %v2402, %v2399
  %v3054 = vpack.c.b16 %v2403, %v2400
  %v3055 = vpack.c.b16 %v2407, %v2404
  %v3056 = vpack.c.b16 %v2408, %v2405
  %v3057 = vpack.c.b16 %v2409, %v2406
  %v3058 = vpack.c.b16 %v2413, %v2410
  %v3059 = vpack.c.b16 %v2414, %v2411
  %v3060 = vpack.c.b16 %v2415, %v2412
  %v3061 = vpack.c.b16 %v2419, %v2416
  %v3062 = vpack.c.b16 %v2420, %v2417
  %v3063 = vpack.c.b16 %v2421, %v2418
  %v3064 = vpack.c.b16 %v2425, %v2422
  %v3065 = vpack.c.b16 %v2426, %v2423
  %v3066 = vpack.c.b16 %v2427, %v2424
  %v3067 = vpack.c.b16 %v2431, %v2428
  %v3068 = vpack.c.b16 %v2432, %v2429
  %v3069 = vpack.c.b16 %v2433, %v2430
  %v3070 = vpack.c.b16 %v2437, %v2434
  %v3071 = vpack.c.b16 %v2438, %v2435
  %v3072 = vpack.c.b16 %v2439, %v2436
  %v3073 = vpack.c.b16 %v2443, %v2440
  %v3074 = vpack.c.b16 %v2444, %v2441
  %v3075 = vpack.c.b16 %v2445, %v2442
  %v3076 = vpack.c.b16 %v2449, %v2446
  %v3077 = vpack.c.b16 %v2450, %v2447
  %v3078 = vpack.c.b16 %v2451, %v2448
  %v3079 = vpack.c.b16 %v2455, %v2452
  %v3080 = vpack.c.b16 %v2456, %v2453
  %v3081 = vpack.c.b16 %v2457, %v2454
  %v3082 = vpack.c.b16 %v2461, %v2458
  %v3083 = vpack.c.b16 %v2462, %v2459
  %v3084 = vpack.c.b16 %v2463, %v2460
  %v3085 = vpack.c.b16 %v2467, %v2464
  %v3086 = vpack.c.b16 %v2468, %v2465
  %v3087 = vpack.c.b16 %v2469, %v2466
  %v3088 = vpack.c.b16 %v2473, %v2470
  %v3089 = vpack.c.b16 %v2474, %v2471
  %v3090 = vpack.c.b16 %v2475, %v2472
  %v3091 = vpack.c.b16 %v2479, %v2476
  %v3092 = vpack.c.b16 %v2480, %v2477
  %v3093 = vpack.c.b16 %v2481, %v2478
  %v3094 = vpack.c.b16 %v2485, %v2482
  %v3095 = vpack.c.b16 %v2486, %v2483
  %v3096 = vpack.c.b16 %v2487, %v2484
  %v3097 = vpack.c.b16 %v2491, %v2488
  %v3098 = vpack.c.b16 %v2492, %v2489
  %v3099 = vpack.c.b16 %v2493, %v2490
  %v3100 = vpack.c.b16 %v2497, %v2494
  %v3101 = vpack.c.b16 %v2498, %v2495
  %v3102 = vpack.c.b16 %v2499, %v2496
  %v3103 = vpack.c.b16 %v2503, %v2500
  %v3104 = vpack.c.b16 %v2504, %v2501
  %v3105 = vpack.c.b16 %v2505, %v2502
  %v3106 = vpack.c.b16 %v2509, %v2506
  %v3107 = vpack.c.b16 %v2510, %v2507
  %v3108 = vpack.c.b16 %v2511, %v2508
  %v3109 = vpack.c.b16 %v2515, %v2512
  %v3110 = vpack.c.b16 %v2516, %v2513
  %v3111 = vpack.c.b16 %v2517, %v2514
  %v3112 = vpack.c.b16 %v2521, %v2518
  %v3113 = vpack.c.b16 %v2522, %v2519
  %v3114 = vpack.c.b16 %v2523, %v2520
  %v3115 = vpack.c.b16 %v2527, %v2524
  %v3116 = vpack.c.b16 %v2528, %v2525
  %v3117 = vpack.c.b16 %v2529, %v2526
  %v3118 = vpack.c.b16 %v2533, %v2530
  %v3119 = vpack.c.b16 %v2534, %v2531
  %v3120 = vpack.c.b16 %v2535, %v2532
  %v3121 = vpack.c.b16 %v2539, %v2536
  %v3122 = vpack.c.b16 %v2540, %v2537
  %v3123 = vpack.c.b16 %v2541, %v2538
  %v3124 = vpack.c.b16 %v2545, %v2542
  %v3125 = vpack.c.b16 %v2546, %v2543
  %v3126 = vpack.c.b16 %v2547, %v2544
  %v3127 = vpack.c.b16 %v2551, %v2548
  %v3128 = vpack.c.b16 %v2552, %v2549
  %v3129 = vpack.c.b16 %v2553, %v2550
  %v3130 = vpack.c.b16 %v2557, %v2554
  %v3131 = vpack.c.b16 %v2558, %v2555
  %v3132 = vpack.c.b16 %v2559, %v2556
  %v3133 = vpack.c.b16 %v2563, %v2560
  %v3134 = vpack.c.b16 %v2564, %v2561
  %v3135 = vpack.c.b16 %v2565, %v2562
  %v3136 = vpack.c.b16 %v2569, %v2566
  %v3137 = vpack.c.b16 %v2570, %v2567
  %v3138 = vpack.c.b16 %v2571, %v2568
  %v3139 = vpack.c.b16 %v2575, %v2572
  %v3140 = vpack.c.b16 %v2576, %v2573
  %v3141 = vpack.c.b16 %v2577, %v2574
  %v3142 = vpack.c.b16 %v2581, %v2578
  %v3143 = vpack.c.b16 %v2582, %v2579
  %v3144 = vpack.c.b16 %v2583, %v2580
  %v3145 = vpack.c.b16 %v2587, %v2584
  %v3146 = vpack.c.b16 %v2588, %v2585
  %v3147 = vpack.c.b16 %v2589, %v2586
  %v3148 = vpack.c.b16 %v2593, %v2590
  %v3149 = vpack.c.b16 %v2594, %v2591
  %v3150 = vpack.c.b16 %v2595, %v2592
  %v3151 = vpack.c.b16 %v2599, %v2596
  %v3152 = vpack.c.b16 %v2600, %v2597
  %v3153 = vpack.c.b16 %v2601, %v2598
  %v3154 = vpack.c.b16 %v2605, %v2602
  %v3155 = vpack.c.b16 %v2606, %v2603
  %v3156 = vpack.c.b16 %v2607, %v2604
  %v3157 = vpack.c.b16 %v2608, %v2608
  %v3158 = vpack.c.b16 %v2609, %v2609
  %v3159 = vpack.c.b16 %v2610, %v2610
  %v3563 = vunpack.c.l.b16 %v745
  %v3564 = vunpack.c.l.b16 %v746
  %v3565 = vunpack.c.l.b16 %v747
  %v3566 = vunpack.c.l.b16 %v748
  %v3567 = vunpack.c.l.b16 %v749
  %v3568 = vunpack.c.l.b16 %v750
  %v3569 = vunpack.c.l.b16 %v751
  %v3570 = vunpack.c.l.b16 %v752
  %v3571 = vunpack.c.l.b16 %v753
  %v3572 = vunpack.c.l.b16 %v754
  %v3573 = vunpack.c.l.b16 %v755
  %v3574 = vunpack.c.l.b16 %v756
  %v3575 = vunpack.c.l.b16 %v757
  %v3576 = vunpack.c.l.b16 %v758
  %v3577 = vunpack.c.l.b16 %v759
  %v3578 = vunpack.c.l.b16 %v760
  %v3579 = vunpack.c.l.b16 %v761
  %v3580 = vunpack.c.l.b16 %v762
  %v3581 = vunpack.c.l.b16 %v763
  %v3582 = vunpack.c.l.b16 %v764
  %v3583 = vunpack.c.l.b16 %v765
  %v3584 = vunpack.c.l.b16 %v766
  %v3585 = vunpack.c.l.b16 %v767
  %v3586 = vunpack.c.l.b16 %v768
  %v3587 = vunpack.c.l.b16 %v769
  %v3588 = vunpack.c.l.b16 %v770
  %v3589 = vunpack.c.l.b16 %v771
  %v3590 = vunpack.c.l.b16 %v772
  %v3591 = vunpack.c.l.b16 %v773
  %v3592 = vunpack.c.l.b16 %v774
  %v3593 = vunpack.c.l.b16 %v775
  %v3594 = vunpack.c.l.b16 %v776
  %v3595 = vunpack.c.l.b16 %v777
  %v3596 = vunpack.c.l.b16 %v778
  %v3597 = vunpack.c.l.b16 %v779
  %v3598 = vunpack.c.l.b16 %v780
  %v3599 = vunpack.c.l.b16 %v781
  %v3600 = vpack.c.b16 %v3564, %v3563
  %v3601 = vpack.c.b16 %v3566, %v3565
  %v3602 = vpack.c.b16 %v3568, %v3567
  %v3603 = vpack.c.b16 %v3570, %v3569
  %v3604 = vpack.c.b16 %v3572, %v3571
  %v3605 = vpack.c.b16 %v3574, %v3573
  %v3606 = vpack.c.b16 %v3576, %v3575
  %v3607 = vpack.c.b16 %v3578, %v3577
  %v3608 = vpack.c.b16 %v3580, %v3579
  %v3609 = vpack.c.b16 %v3582, %v3581
  %v3610 = vpack.c.b16 %v3584, %v3583
  %v3611 = vpack.c.b16 %v3586, %v3585
  %v3612 = vpack.c.b16 %v3588, %v3587
  %v3613 = vpack.c.b16 %v3590, %v3589
  %v3614 = vpack.c.b16 %v3592, %v3591
  %v3615 = vpack.c.b16 %v3594, %v3593
  %v3616 = vpack.c.b16 %v3596, %v3595
  %v3617 = vpack.c.b16 %v3598, %v3597
  %v3618 = vpack.c.b16 %v3599, %v3599
  %vm3637 = vcmask 269312
  %v3639 = vsel %vm3637, %v2613, 0
  %v3642 = vsel %vm3637, %v2616, 0
  %v3645 = vsel %vm3637, %v2619, 0
  %v3648 = vsel %vm3637, %v2622, 0
  %v3651 = vsel %vm3637, %v2625, 0
  %v3654 = vsel %vm3637, %v2628, 0
  %v3657 = vsel %vm3637, %v2631, 0
  %v3660 = vsel %vm3637, %v2634, 0
  %v3663 = vsel %vm3637, %v2637, 0
  %v3666 = vsel %vm3637, %v2640, 0
  %v3669 = vsel %vm3637, %v2643, 0
  %v3672 = vsel %vm3637, %v2646, 0
  %v3675 = vsel %vm3637, %v2649, 0
  %v3678 = vsel %vm3637, %v2652, 0
  %v3681 = vsel %vm3637, %v2655, 0
  %v3684 = vsel %vm3637, %v2658, 0
  %v3687 = vsel %vm3637, %v2661, 0
  %v3690 = vsel %vm3637, %v2664, 0
  %v3693 = vsel %vm3637, %v2667, 0
  %v3696 = vsel %vm3637, %v2670, 0
  %v3699 = vsel %vm3637, %v2673, 0
  %v3702 = vsel %vm3637, %v2676, 0
  %v3705 = vsel %vm3637, %v2679, 0
  %v3708 = vsel %vm3637, %v2682, 0
  %v3711 = vsel %vm3637, %v2685, 0
  %v3714 = vsel %vm3637, %v2688, 0
  %v3717 = vsel %vm3637, %v2691, 0
  %v3720 = vsel %vm3637, %v2694, 0
  %v3723 = vsel %vm3637, %v2697, 0
  %v3726 = vsel %vm3637, %v2700, 0
  %v3729 = vsel %vm3637, %v2703, 0
  %v3732 = vsel %vm3637, %v2706, 0
  %v3735 = vsel %vm3637, %v2709, 0
  %v3738 = vsel %vm3637, %v2712, 0
  %v3741 = vsel %vm3637, %v2715, 0
  %v3744 = vsel %vm3637, %v2718, 0
  %v3747 = vsel %vm3637, %v2721, 0
  %v3750 = vsel %vm3637, %v2724, 0
  %v3753 = vsel %vm3637, %v2727, 0
  %v3756 = vsel %vm3637, %v2730, 0
  %v3759 = vsel %vm3637, %v2733, 0
  %v3762 = vsel %vm3637, %v2736, 0
  %v3765 = vsel %vm3637, %v2739, 0
  %v3768 = vsel %vm3637, %v2742, 0
  %v3771 = vsel %vm3637, %v2745, 0
  %v3774 = vsel %vm3637, %v2748, 0
  %v3777 = vsel %vm3637, %v2751, 0
  %v3780 = vsel %vm3637, %v2754, 0
  %v3783 = vsel %vm3637, %v2757, 0
  %v3786 = vsel %vm3637, %v2760, 0
  %v3789 = vsel %vm3637, %v2763, 0
  %v3792 = vsel %vm3637, %v2766, 0
  %v3795 = vsel %vm3637, %v2769, 0
  %v3798 = vsel %vm3637, %v2772, 0
  %v3801 = vsel %vm3637, %v2775, 0
  %v3804 = vsel %vm3637, %v2778, 0
  %v3807 = vsel %vm3637, %v2781, 0
  %v3810 = vsel %vm3637, %v2784, 0
  %v3813 = vsel %vm3637, %v2787, 0
  %v3816 = vsel %vm3637, %v2790, 0
  %v3819 = vsel %vm3637, %v2793, 0
  %v3822 = vsel %vm3637, %v2796, 0
  %v3825 = vsel %vm3637, %v2799, 0
  %v3828 = vsel %vm3637, %v2802, 0
  %v3831 = vsel %vm3637, %v2805, 0
  %v3834 = vsel %vm3637, %v2808, 0
  %v3837 = vsel %vm3637, %v2811, 0
  %v3840 = vsel %vm3637, %v2814, 0
  %v3843 = vsel %vm3637, %v2817, 0
  %v3846 = vsel %vm3637, %v2820, 0
  %v3849 = vsel %vm3637, %v2823, 0
  %v3852 = vsel %vm3637, %v2826, 0
  %v3855 = vsel %vm3637, %v2829, 0
  %v3858 = vsel %vm3637, %v2832, 0
  %v3861 = vsel %vm3637, %v2835, 0
  %v3864 = vsel %vm3637, %v2838, 0
  %v3867 = vsel %vm3637, %v2841, 0
  %v3870 = vsel %vm3637, %v2844, 0
  %v3873 = vsel %vm3637, %v2847, 0
  %v3876 = vsel %vm3637, %v2850, 0
  %v3879 = vsel %vm3637, %v2853, 0
  %v3882 = vsel %vm3637, %v2856, 0
  %v3885 = vsel %vm3637, %v2859, 0
  %v3888 = vsel %vm3637, %v2862, 0
  %v3891 = vsel %vm3637, %v2865, 0
  %v3894 = vsel %vm3637, %v2868, 0
  %v3897 = vsel %vm3637, %v2871, 0
  %v3900 = vsel %vm3637, %v2874, 0
  %v3903 = vsel %vm3637, %v2877, 0
  %v3906 = vsel %vm3637, %v2880, 0
  %v3909 = vsel %vm3637, %v2883, 0
  %v3912 = vsel %vm3637, %v2886, 0
  %v3915 = vsel %vm3637, %v2889, 0
  %v3918 = vsel %vm3637, %v2892, 0
  %v3921 = vsel %vm3637, %v2895, 0
  %v3924 = vsel %vm3637, %v2898, 0
  %v3927 = vsel %vm3637, %v2901, 0
  %v3930 = vsel %vm3637, %v2904, 0
  %v3933 = vsel %vm3637, %v2907, 0
  %v3936 = vsel %vm3637, %v2910, 0
  %v3939 = vsel %vm3637, %v2913, 0
  %v3942 = vsel %vm3637, %v2916, 0
  %v3945 = vsel %vm3637, %v2919, 0
  %v3948 = vsel %vm3637, %v2922, 0
  %v3951 = vsel %vm3637, %v2925, 0
  %v3954 = vsel %vm3637, %v2928, 0
  %v3957 = vsel %vm3637, %v2931, 0
  %v3960 = vsel %vm3637, %v2934, 0
  %v3963 = vsel %vm3637, %v2937, 0
  %v3966 = vsel %vm3637, %v2940, 0
  %v3969 = vsel %vm3637, %v2943, 0
  %v3972 = vsel %vm3637, %v2946, 0
  %v3975 = vsel %vm3637, %v2949, 0
  %v3978 = vsel %vm3637, %v2952, 0
  %v3981 = vsel %vm3637, %v2955, 0
  %v3984 = vsel %vm3637, %v2958, 0
  %v3987 = vsel %vm3637, %v2961, 0
  %v3990 = vsel %vm3637, %v2964, 0
  %v3993 = vsel %vm3637, %v2967, 0
  %v3996 = vsel %vm3637, %v2970, 0
  %v3999 = vsel %vm3637, %v2973, 0
  %v4002 = vsel %vm3637, %v2976, 0
  %v4005 = vsel %vm3637, %v2979, 0
  %v4008 = vsel %vm3637, %v2982, 0
  %v4011 = vsel %vm3637, %v2985, 0
  %v4014 = vsel %vm3637, %v2988, 0
  %v4017 = vsel %vm3637, %v2991, 0
  %v4020 = vsel %vm3637, %v2994, 0
  %v4023 = vsel %vm3637, %v2997, 0
  %v4026 = vsel %vm3637, %v3000, 0
  %v4029 = vsel %vm3637, %v3003, 0
  %v4032 = vsel %vm3637, %v3006, 0
  %v4035 = vsel %vm3637, %v3009, 0
  %v4038 = vsel %vm3637, %v3012, 0
  %v4041 = vsel %vm3637, %v3015, 0
  %v4044 = vsel %vm3637, %v3018, 0
  %v4047 = vsel %vm3637, %v3021, 0
  %v4050 = vsel %vm3637, %v3024, 0
  %v4053 = vsel %vm3637, %v3027, 0
  %v4056 = vsel %vm3637, %v3030, 0
  %v4059 = vsel %vm3637, %v3033, 0
  %v4062 = vsel %vm3637, %v3036, 0
  %v4065 = vsel %vm3637, %v3039, 0
  %v4068 = vsel %vm3637, %v3042, 0
  %v4071 = vsel %vm3637, %v3045, 0
  %v4074 = vsel %vm3637, %v3048, 0
  %v4077 = vsel %vm3637, %v3051, 0
  %v4080 = vsel %vm3637, %v3054, 0
  %v4083 = vsel %vm3637, %v3057, 0
  %v4086 = vsel %vm3637, %v3060, 0
  %v4089 = vsel %vm3637, %v3063, 0
  %v4092 = vsel %vm3637, %v3066, 0
  %v4095 = vsel %vm3637, %v3069, 0
  %v4098 = vsel %vm3637, %v3072, 0
  %v4101 = vsel %vm3637, %v3075, 0
  %v4104 = vsel %vm3637, %v3078, 0
  %v4107 = vsel %vm3637, %v3081, 0
  %v4110 = vsel %vm3637, %v3084, 0
  %v4113 = vsel %vm3637, %v3087, 0
  %v4116 = vsel %vm3637, %v3090, 0
  %v4119 = vsel %vm3637, %v3093, 0
  %v4122 = vsel %vm3637, %v3096, 0
  %v4125 = vsel %vm3637, %v3099, 0
  %v4128 = vsel %vm3637, %v3102, 0
  %v4131 = vsel %vm3637, %v3105, 0
  %v4134 = vsel %vm3637, %v3108, 0
  %v4137 = vsel %vm3637, %v3111, 0
  %v4140 = vsel %vm3637, %v3114, 0
  %v4143 = vsel %vm3637, %v3117, 0
  %v4146 = vsel %vm3637, %v3120, 0
  %v4149 = vsel %vm3637, %v3123, 0
  %v4152 = vsel %vm3637, %v3126, 0
  %v4155 = vsel %vm3637, %v3129, 0
  %v4158 = vsel %vm3637, %v3132, 0
  %v4161 = vsel %vm3637, %v3135, 0
  %v4164 = vsel %vm3637, %v3138, 0
  %v4167 = vsel %vm3637, %v3141, 0
  %v4170 = vsel %vm3637, %v3144, 0
  %v4173 = vsel %vm3637, %v3147, 0
  %v4176 = vsel %vm3637, %v3150, 0
  %v4179 = vsel %vm3637, %v3153, 0
  %v4182 = vsel %vm3637, %v3156, 0
  %v4185 = vsel %vm3637, %v3159, 0
  %vm4187 = vcmask 1040384
  %v4188 = vsel 0, 4294967295, 65535
  %v4189 = vsel %vm4187, %v4188, 0
  %v4191 = vand.u32 %v3618, %v4189
  %4193 = vmatpush.bf16.msra.mxu0 %v3607
  %4194 = vmatpush.bf16.msra.mxu0 %v3606
  %4195 = vmatpush.bf16.msra.mxu0 %v3605
  %4196 = vmatpush.bf16.msra.mxu0 %v3604
  %4197 = vmatpush.bf16.msra.mxu0 %v3603
  %4198 = vmatpush.bf16.msra.mxu0 %v3602
  %4199 = vmatpush.bf16.msra.mxu0 %v3601
  %4200 = vmatpush.bf16.msra.mxu0 %v3600
  %4201 = vmatmul.bf16.gmra.mxu0 %v2611
  %v4202 = vpop.f32.mrf.mxu0
  %v4203 = vadd.f32 %v784, %v4202
  %v4204 = vpop.f32.mrf.mxu0
  %v4205 = vadd.f32 %v784, %v4204
  %4206 = vmatmul.bf16.gmra.mxu0 %v2614
  %v4207 = vpop.f32.mrf.mxu0
  %v4208 = vadd.f32 %v784, %v4207
  %v4209 = vpop.f32.mrf.mxu0
  %v4210 = vadd.f32 %v784, %v4209
  %4211 = vmatmul.bf16.gmra.mxu0 %v2617
  %v4212 = vpop.f32.mrf.mxu0
  %v4213 = vadd.f32 %v784, %v4212
  %v4214 = vpop.f32.mrf.mxu0
  %v4215 = vadd.f32 %v784, %v4214
  %4216 = vmatmul.bf16.gmra.mxu0 %v2620
  %v4217 = vpop.f32.mrf.mxu0
  %v4218 = vadd.f32 %v784, %v4217
  %v4219 = vpop.f32.mrf.mxu0
  %v4220 = vadd.f32 %v784, %v4219
  %4221 = vmatmul.bf16.gmra.mxu0 %v2623
  %v4222 = vpop.f32.mrf.mxu0
  %v4223 = vadd.f32 %v784, %v4222
  %v4224 = vpop.f32.mrf.mxu0
  %v4225 = vadd.f32 %v784, %v4224
  %4226 = vmatmul.bf16.gmra.mxu0 %v2626
  %v4227 = vpop.f32.mrf.mxu0
  %v4228 = vadd.f32 %v784, %v4227
  %v4229 = vpop.f32.mrf.mxu0
  %v4230 = vadd.f32 %v784, %v4229
  %4231 = vmatmul.bf16.gmra.mxu0 %v2629
  %v4232 = vpop.f32.mrf.mxu0
  %v4233 = vadd.f32 %v784, %v4232
  %v4234 = vpop.f32.mrf.mxu0
  %v4235 = vadd.f32 %v784, %v4234
  %4236 = vmatmul.bf16.gmra.mxu0 %v2632
  %v4237 = vpop.f32.mrf.mxu0
  %v4238 = vadd.f32 %v784, %v4237
  %v4239 = vpop.f32.mrf.mxu0
  %v4240 = vadd.f32 %v784, %v4239
  %4241 = vmatmul.bf16.gmra.mxu0 %v2635
  %v4242 = vpop.f32.mrf.mxu0
  %v4243 = vadd.f32 %v784, %v4242
  %v4244 = vpop.f32.mrf.mxu0
  %v4245 = vadd.f32 %v784, %v4244
  %4246 = vmatmul.bf16.gmra.mxu0 %v2638
  %v4247 = vpop.f32.mrf.mxu0
  %v4248 = vadd.f32 %v784, %v4247
  %v4249 = vpop.f32.mrf.mxu0
  %v4250 = vadd.f32 %v784, %v4249
  %4251 = vmatmul.bf16.gmra.mxu0 %v2641
  %v4252 = vpop.f32.mrf.mxu0
  %v4253 = vadd.f32 %v784, %v4252
  %v4254 = vpop.f32.mrf.mxu0
  %v4255 = vadd.f32 %v784, %v4254
  %4256 = vmatmul.bf16.gmra.mxu0 %v2644
  %v4257 = vpop.f32.mrf.mxu0
  %v4258 = vadd.f32 %v784, %v4257
  %v4259 = vpop.f32.mrf.mxu0
  %v4260 = vadd.f32 %v784, %v4259
  %4261 = vmatmul.bf16.gmra.mxu0 %v2647
  %v4262 = vpop.f32.mrf.mxu0
  %v4263 = vadd.f32 %v784, %v4262
  %v4264 = vpop.f32.mrf.mxu0
  %v4265 = vadd.f32 %v784, %v4264
  %4266 = vmatmul.bf16.gmra.mxu0 %v2650
  %v4267 = vpop.f32.mrf.mxu0
  %v4268 = vadd.f32 %v784, %v4267
  %v4269 = vpop.f32.mrf.mxu0
  %v4270 = vadd.f32 %v784, %v4269
  %4271 = vmatmul.bf16.gmra.mxu0 %v2653
  %v4272 = vpop.f32.mrf.mxu0
  %v4273 = vadd.f32 %v784, %v4272
  %v4274 = vpop.f32.mrf.mxu0
  %v4275 = vadd.f32 %v784, %v4274
  %4276 = vmatmul.bf16.gmra.mxu0 %v2656
  %v4277 = vpop.f32.mrf.mxu0
  %v4278 = vadd.f32 %v784, %v4277
  %v4279 = vpop.f32.mrf.mxu0
  %v4280 = vadd.f32 %v784, %v4279
  %4281 = vmatmul.bf16.gmra.mxu0 %v2659
  %v4282 = vpop.f32.mrf.mxu0
  %v4283 = vadd.f32 %v784, %v4282
  %v4284 = vpop.f32.mrf.mxu0
  %v4285 = vadd.f32 %v784, %v4284
  %4286 = vmatmul.bf16.gmra.mxu0 %v2662
  %v4287 = vpop.f32.mrf.mxu0
  %v4288 = vadd.f32 %v784, %v4287
  %v4289 = vpop.f32.mrf.mxu0
  %v4290 = vadd.f32 %v784, %v4289
  %4291 = vmatmul.bf16.gmra.mxu0 %v2665
  %v4292 = vpop.f32.mrf.mxu0
  %v4293 = vadd.f32 %v784, %v4292
  %v4294 = vpop.f32.mrf.mxu0
  %v4295 = vadd.f32 %v784, %v4294
  %4296 = vmatmul.bf16.gmra.mxu0 %v2668
  %v4297 = vpop.f32.mrf.mxu0
  %v4298 = vadd.f32 %v784, %v4297
  %v4299 = vpop.f32.mrf.mxu0
  %v4300 = vadd.f32 %v784, %v4299
  %4301 = vmatmul.bf16.gmra.mxu0 %v2671
  %v4302 = vpop.f32.mrf.mxu0
  %v4303 = vadd.f32 %v784, %v4302
  %v4304 = vpop.f32.mrf.mxu0
  %v4305 = vadd.f32 %v784, %v4304
  %4306 = vmatmul.bf16.gmra.mxu0 %v2674
  %v4307 = vpop.f32.mrf.mxu0
  %v4308 = vadd.f32 %v784, %v4307
  %v4309 = vpop.f32.mrf.mxu0
  %v4310 = vadd.f32 %v784, %v4309
  %4311 = vmatmul.bf16.gmra.mxu0 %v2677
  %v4312 = vpop.f32.mrf.mxu0
  %v4313 = vadd.f32 %v784, %v4312
  %v4314 = vpop.f32.mrf.mxu0
  %v4315 = vadd.f32 %v784, %v4314
  %4316 = vmatmul.bf16.gmra.mxu0 %v2680
  %v4317 = vpop.f32.mrf.mxu0
  %v4318 = vadd.f32 %v784, %v4317
  %v4319 = vpop.f32.mrf.mxu0
  %v4320 = vadd.f32 %v784, %v4319
  %4321 = vmatmul.bf16.gmra.mxu0 %v2683
  %v4322 = vpop.f32.mrf.mxu0
  %v4323 = vadd.f32 %v784, %v4322
  %v4324 = vpop.f32.mrf.mxu0
  %v4325 = vadd.f32 %v784, %v4324
  %4326 = vmatmul.bf16.gmra.mxu0 %v2686
  %v4327 = vpop.f32.mrf.mxu0
  %v4328 = vadd.f32 %v784, %v4327
  %v4329 = vpop.f32.mrf.mxu0
  %v4330 = vadd.f32 %v784, %v4329
  %4331 = vmatmul.bf16.gmra.mxu0 %v2689
  %v4332 = vpop.f32.mrf.mxu0
  %v4333 = vadd.f32 %v784, %v4332
  %v4334 = vpop.f32.mrf.mxu0
  %v4335 = vadd.f32 %v784, %v4334
  %4336 = vmatmul.bf16.gmra.mxu0 %v2692
  %v4337 = vpop.f32.mrf.mxu0
  %v4338 = vadd.f32 %v784, %v4337
  %v4339 = vpop.f32.mrf.mxu0
  %v4340 = vadd.f32 %v784, %v4339
  %4341 = vmatmul.bf16.gmra.mxu0 %v2695
  %v4342 = vpop.f32.mrf.mxu0
  %v4343 = vadd.f32 %v784, %v4342
  %v4344 = vpop.f32.mrf.mxu0
  %v4345 = vadd.f32 %v784, %v4344
  %4346 = vmatmul.bf16.gmra.mxu0 %v2698
  %v4347 = vpop.f32.mrf.mxu0
  %v4348 = vadd.f32 %v784, %v4347
  %v4349 = vpop.f32.mrf.mxu0
  %v4350 = vadd.f32 %v784, %v4349
  %4351 = vmatmul.bf16.gmra.mxu0 %v2701
  %v4352 = vpop.f32.mrf.mxu0
  %v4353 = vadd.f32 %v784, %v4352
  %v4354 = vpop.f32.mrf.mxu0
  %v4355 = vadd.f32 %v784, %v4354
  %4356 = vmatmul.bf16.gmra.mxu0 %v2704
  %v4357 = vpop.f32.mrf.mxu0
  %v4358 = vadd.f32 %v784, %v4357
  %v4359 = vpop.f32.mrf.mxu0
  %v4360 = vadd.f32 %v784, %v4359
  %4361 = vmatmul.bf16.gmra.mxu0 %v2707
  %v4362 = vpop.f32.mrf.mxu0
  %v4363 = vadd.f32 %v784, %v4362
  %v4364 = vpop.f32.mrf.mxu0
  %v4365 = vadd.f32 %v784, %v4364
  %4366 = vmatmul.bf16.gmra.mxu0 %v2710
  %v4367 = vpop.f32.mrf.mxu0
  %v4368 = vadd.f32 %v784, %v4367
  %v4369 = vpop.f32.mrf.mxu0
  %v4370 = vadd.f32 %v784, %v4369
  %4371 = vmatmul.bf16.gmra.mxu0 %v2713
  %v4372 = vpop.f32.mrf.mxu0
  %v4373 = vadd.f32 %v784, %v4372
  %v4374 = vpop.f32.mrf.mxu0
  %v4375 = vadd.f32 %v784, %v4374
  %4376 = vmatmul.bf16.gmra.mxu0 %v2716
  %v4377 = vpop.f32.mrf.mxu0
  %v4378 = vadd.f32 %v784, %v4377
  %v4379 = vpop.f32.mrf.mxu0
  %v4380 = vadd.f32 %v784, %v4379
  %4381 = vmatmul.bf16.gmra.mxu0 %v2719
  %v4382 = vpop.f32.mrf.mxu0
  %v4383 = vadd.f32 %v784, %v4382
  %v4384 = vpop.f32.mrf.mxu0
  %v4385 = vadd.f32 %v784, %v4384
  %4386 = vmatmul.bf16.gmra.mxu0 %v2722
  %v4387 = vpop.f32.mrf.mxu0
  %v4388 = vadd.f32 %v784, %v4387
  %v4389 = vpop.f32.mrf.mxu0
  %v4390 = vadd.f32 %v784, %v4389
  %4391 = vmatmul.bf16.gmra.mxu0 %v2725
  %v4392 = vpop.f32.mrf.mxu0
  %v4393 = vadd.f32 %v784, %v4392
  %v4394 = vpop.f32.mrf.mxu0
  %v4395 = vadd.f32 %v784, %v4394
  %4396 = vmatmul.bf16.gmra.mxu0 %v2728
  %v4397 = vpop.f32.mrf.mxu0
  %v4398 = vadd.f32 %v784, %v4397
  %v4399 = vpop.f32.mrf.mxu0
  %v4400 = vadd.f32 %v784, %v4399
  %4401 = vmatmul.bf16.gmra.mxu0 %v2731
  %v4402 = vpop.f32.mrf.mxu0
  %v4403 = vadd.f32 %v784, %v4402
  %v4404 = vpop.f32.mrf.mxu0
  %v4405 = vadd.f32 %v784, %v4404
  %4406 = vmatmul.bf16.gmra.mxu0 %v2734
  %v4407 = vpop.f32.mrf.mxu0
  %v4408 = vadd.f32 %v784, %v4407
  %v4409 = vpop.f32.mrf.mxu0
  %v4410 = vadd.f32 %v784, %v4409
  %4411 = vmatmul.bf16.gmra.mxu0 %v2737
  %v4412 = vpop.f32.mrf.mxu0
  %v4413 = vadd.f32 %v784, %v4412
  %v4414 = vpop.f32.mrf.mxu0
  %v4415 = vadd.f32 %v784, %v4414
  %4416 = vmatmul.bf16.gmra.mxu0 %v2740
  %v4417 = vpop.f32.mrf.mxu0
  %v4418 = vadd.f32 %v784, %v4417
  %v4419 = vpop.f32.mrf.mxu0
  %v4420 = vadd.f32 %v784, %v4419
  %4421 = vmatmul.bf16.gmra.mxu0 %v2743
  %v4422 = vpop.f32.mrf.mxu0
  %v4423 = vadd.f32 %v784, %v4422
  %v4424 = vpop.f32.mrf.mxu0
  %v4425 = vadd.f32 %v784, %v4424
  %4426 = vmatmul.bf16.gmra.mxu0 %v2746
  %v4427 = vpop.f32.mrf.mxu0
  %v4428 = vadd.f32 %v784, %v4427
  %v4429 = vpop.f32.mrf.mxu0
  %v4430 = vadd.f32 %v784, %v4429
  %4431 = vmatmul.bf16.gmra.mxu0 %v2749
  %v4432 = vpop.f32.mrf.mxu0
  %v4433 = vadd.f32 %v784, %v4432
  %v4434 = vpop.f32.mrf.mxu0
  %v4435 = vadd.f32 %v784, %v4434
  %4436 = vmatmul.bf16.gmra.mxu0 %v2752
  %v4437 = vpop.f32.mrf.mxu0
  %v4438 = vadd.f32 %v784, %v4437
  %v4439 = vpop.f32.mrf.mxu0
  %v4440 = vadd.f32 %v784, %v4439
  %4441 = vmatmul.bf16.gmra.mxu0 %v2755
  %v4442 = vpop.f32.mrf.mxu0
  %v4443 = vadd.f32 %v784, %v4442
  %v4444 = vpop.f32.mrf.mxu0
  %v4445 = vadd.f32 %v784, %v4444
  %4446 = vmatmul.bf16.gmra.mxu0 %v2758
  %v4447 = vpop.f32.mrf.mxu0
  %v4448 = vadd.f32 %v784, %v4447
  %v4449 = vpop.f32.mrf.mxu0
  %v4450 = vadd.f32 %v784, %v4449
  %4451 = vmatmul.bf16.gmra.mxu0 %v2761
  %v4452 = vpop.f32.mrf.mxu0
  %v4453 = vadd.f32 %v784, %v4452
  %v4454 = vpop.f32.mrf.mxu0
  %v4455 = vadd.f32 %v784, %v4454
  %4456 = vmatmul.bf16.gmra.mxu0 %v2764
  %v4457 = vpop.f32.mrf.mxu0
  %v4458 = vadd.f32 %v784, %v4457
  %v4459 = vpop.f32.mrf.mxu0
  %v4460 = vadd.f32 %v784, %v4459
  %4461 = vmatmul.bf16.gmra.mxu0 %v2767
  %v4462 = vpop.f32.mrf.mxu0
  %v4463 = vadd.f32 %v784, %v4462
  %v4464 = vpop.f32.mrf.mxu0
  %v4465 = vadd.f32 %v784, %v4464
  %4466 = vmatmul.bf16.gmra.mxu0 %v2770
  %v4467 = vpop.f32.mrf.mxu0
  %v4468 = vadd.f32 %v784, %v4467
  %v4469 = vpop.f32.mrf.mxu0
  %v4470 = vadd.f32 %v784, %v4469
  %4471 = vmatmul.bf16.gmra.mxu0 %v2773
  %v4472 = vpop.f32.mrf.mxu0
  %v4473 = vadd.f32 %v784, %v4472
  %v4474 = vpop.f32.mrf.mxu0
  %v4475 = vadd.f32 %v784, %v4474
  %4476 = vmatmul.bf16.gmra.mxu0 %v2776
  %v4477 = vpop.f32.mrf.mxu0
  %v4478 = vadd.f32 %v784, %v4477
  %v4479 = vpop.f32.mrf.mxu0
  %v4480 = vadd.f32 %v784, %v4479
  %4481 = vmatmul.bf16.gmra.mxu0 %v2779
  %v4482 = vpop.f32.mrf.mxu0
  %v4483 = vadd.f32 %v784, %v4482
  %v4484 = vpop.f32.mrf.mxu0
  %v4485 = vadd.f32 %v784, %v4484
  %4486 = vmatmul.bf16.gmra.mxu0 %v2782
  %v4487 = vpop.f32.mrf.mxu0
  %v4488 = vadd.f32 %v784, %v4487
  %v4489 = vpop.f32.mrf.mxu0
  %v4490 = vadd.f32 %v784, %v4489
  %4491 = vmatmul.bf16.gmra.mxu0 %v2785
  %v4492 = vpop.f32.mrf.mxu0
  %v4493 = vadd.f32 %v784, %v4492
  %v4494 = vpop.f32.mrf.mxu0
  %v4495 = vadd.f32 %v784, %v4494
  %4496 = vmatmul.bf16.gmra.mxu0 %v2788
  %v4497 = vpop.f32.mrf.mxu0
  %v4498 = vadd.f32 %v784, %v4497
  %v4499 = vpop.f32.mrf.mxu0
  %v4500 = vadd.f32 %v784, %v4499
  %4501 = vmatmul.bf16.gmra.mxu0 %v2791
  %v4502 = vpop.f32.mrf.mxu0
  %v4503 = vadd.f32 %v784, %v4502
  %v4504 = vpop.f32.mrf.mxu0
  %v4505 = vadd.f32 %v784, %v4504
  %4506 = vmatmul.bf16.gmra.mxu0 %v2794
  %v4507 = vpop.f32.mrf.mxu0
  %v4508 = vadd.f32 %v784, %v4507
  %v4509 = vpop.f32.mrf.mxu0
  %v4510 = vadd.f32 %v784, %v4509
  %4511 = vmatmul.bf16.gmra.mxu0 %v2797
  %v4512 = vpop.f32.mrf.mxu0
  %v4513 = vadd.f32 %v784, %v4512
  %v4514 = vpop.f32.mrf.mxu0
  %v4515 = vadd.f32 %v784, %v4514
  %4516 = vmatmul.bf16.gmra.mxu0 %v2800
  %v4517 = vpop.f32.mrf.mxu0
  %v4518 = vadd.f32 %v784, %v4517
  %v4519 = vpop.f32.mrf.mxu0
  %v4520 = vadd.f32 %v784, %v4519
  %4521 = vmatmul.bf16.gmra.mxu0 %v2803
  %v4522 = vpop.f32.mrf.mxu0
  %v4523 = vadd.f32 %v784, %v4522
  %v4524 = vpop.f32.mrf.mxu0
  %v4525 = vadd.f32 %v784, %v4524
  %4526 = vmatmul.bf16.gmra.mxu0 %v2806
  %v4527 = vpop.f32.mrf.mxu0
  %v4528 = vadd.f32 %v784, %v4527
  %v4529 = vpop.f32.mrf.mxu0
  %v4530 = vadd.f32 %v784, %v4529
  %4531 = vmatmul.bf16.gmra.mxu0 %v2809
  %v4532 = vpop.f32.mrf.mxu0
  %v4533 = vadd.f32 %v784, %v4532
  %v4534 = vpop.f32.mrf.mxu0
  %v4535 = vadd.f32 %v784, %v4534
  %4536 = vmatmul.bf16.gmra.mxu0 %v2812
  %v4537 = vpop.f32.mrf.mxu0
  %v4538 = vadd.f32 %v784, %v4537
  %v4539 = vpop.f32.mrf.mxu0
  %v4540 = vadd.f32 %v784, %v4539
  %4541 = vmatmul.bf16.gmra.mxu0 %v2815
  %v4542 = vpop.f32.mrf.mxu0
  %v4543 = vadd.f32 %v784, %v4542
  %v4544 = vpop.f32.mrf.mxu0
  %v4545 = vadd.f32 %v784, %v4544
  %4546 = vmatmul.bf16.gmra.mxu0 %v2818
  %v4547 = vpop.f32.mrf.mxu0
  %v4548 = vadd.f32 %v784, %v4547
  %v4549 = vpop.f32.mrf.mxu0
  %v4550 = vadd.f32 %v784, %v4549
  %4551 = vmatmul.bf16.gmra.mxu0 %v2821
  %v4552 = vpop.f32.mrf.mxu0
  %v4553 = vadd.f32 %v784, %v4552
  %v4554 = vpop.f32.mrf.mxu0
  %v4555 = vadd.f32 %v784, %v4554
  %4556 = vmatmul.bf16.gmra.mxu0 %v2824
  %v4557 = vpop.f32.mrf.mxu0
  %v4558 = vadd.f32 %v784, %v4557
  %v4559 = vpop.f32.mrf.mxu0
  %v4560 = vadd.f32 %v784, %v4559
  %4561 = vmatmul.bf16.gmra.mxu0 %v2827
  %v4562 = vpop.f32.mrf.mxu0
  %v4563 = vadd.f32 %v784, %v4562
  %v4564 = vpop.f32.mrf.mxu0
  %v4565 = vadd.f32 %v784, %v4564
  %4566 = vmatmul.bf16.gmra.mxu0 %v2830
  %v4567 = vpop.f32.mrf.mxu0
  %v4568 = vadd.f32 %v784, %v4567
  %v4569 = vpop.f32.mrf.mxu0
  %v4570 = vadd.f32 %v784, %v4569
  %4571 = vmatmul.bf16.gmra.mxu0 %v2833
  %v4572 = vpop.f32.mrf.mxu0
  %v4573 = vadd.f32 %v784, %v4572
  %v4574 = vpop.f32.mrf.mxu0
  %v4575 = vadd.f32 %v784, %v4574
  %4576 = vmatmul.bf16.gmra.mxu0 %v2836
  %v4577 = vpop.f32.mrf.mxu0
  %v4578 = vadd.f32 %v784, %v4577
  %v4579 = vpop.f32.mrf.mxu0
  %v4580 = vadd.f32 %v784, %v4579
  %4581 = vmatmul.bf16.gmra.mxu0 %v2839
  %v4582 = vpop.f32.mrf.mxu0
  %v4583 = vadd.f32 %v784, %v4582
  %v4584 = vpop.f32.mrf.mxu0
  %v4585 = vadd.f32 %v784, %v4584
  %4586 = vmatmul.bf16.gmra.mxu0 %v2842
  %v4587 = vpop.f32.mrf.mxu0
  %v4588 = vadd.f32 %v784, %v4587
  %v4589 = vpop.f32.mrf.mxu0
  %v4590 = vadd.f32 %v784, %v4589
  %4591 = vmatmul.bf16.gmra.mxu0 %v2845
  %v4592 = vpop.f32.mrf.mxu0
  %v4593 = vadd.f32 %v784, %v4592
  %v4594 = vpop.f32.mrf.mxu0
  %v4595 = vadd.f32 %v784, %v4594
  %4596 = vmatmul.bf16.gmra.mxu0 %v2848
  %v4597 = vpop.f32.mrf.mxu0
  %v4598 = vadd.f32 %v784, %v4597
  %v4599 = vpop.f32.mrf.mxu0
  %v4600 = vadd.f32 %v784, %v4599
  %4601 = vmatmul.bf16.gmra.mxu0 %v2851
  %v4602 = vpop.f32.mrf.mxu0
  %v4603 = vadd.f32 %v784, %v4602
  %v4604 = vpop.f32.mrf.mxu0
  %v4605 = vadd.f32 %v784, %v4604
  %4606 = vmatmul.bf16.gmra.mxu0 %v2854
  %v4607 = vpop.f32.mrf.mxu0
  %v4608 = vadd.f32 %v784, %v4607
  %v4609 = vpop.f32.mrf.mxu0
  %v4610 = vadd.f32 %v784, %v4609
  %4611 = vmatmul.bf16.gmra.mxu0 %v2857
  %v4612 = vpop.f32.mrf.mxu0
  %v4613 = vadd.f32 %v784, %v4612
  %v4614 = vpop.f32.mrf.mxu0
  %v4615 = vadd.f32 %v784, %v4614
  %4616 = vmatmul.bf16.gmra.mxu0 %v2860
  %v4617 = vpop.f32.mrf.mxu0
  %v4618 = vadd.f32 %v784, %v4617
  %v4619 = vpop.f32.mrf.mxu0
  %v4620 = vadd.f32 %v784, %v4619
  %4621 = vmatmul.bf16.gmra.mxu0 %v2863
  %v4622 = vpop.f32.mrf.mxu0
  %v4623 = vadd.f32 %v784, %v4622
  %v4624 = vpop.f32.mrf.mxu0
  %v4625 = vadd.f32 %v784, %v4624
  %4626 = vmatmul.bf16.gmra.mxu0 %v2866
  %v4627 = vpop.f32.mrf.mxu0
  %v4628 = vadd.f32 %v784, %v4627
  %v4629 = vpop.f32.mrf.mxu0
  %v4630 = vadd.f32 %v784, %v4629
  %4631 = vmatmul.bf16.gmra.mxu0 %v2869
  %v4632 = vpop.f32.mrf.mxu0
  %v4633 = vadd.f32 %v784, %v4632
  %v4634 = vpop.f32.mrf.mxu0
  %v4635 = vadd.f32 %v784, %v4634
  %4636 = vmatmul.bf16.gmra.mxu0 %v2872
  %v4637 = vpop.f32.mrf.mxu0
  %v4638 = vadd.f32 %v784, %v4637
  %v4639 = vpop.f32.mrf.mxu0
  %v4640 = vadd.f32 %v784, %v4639
  %4641 = vmatmul.bf16.gmra.mxu0 %v2875
  %v4642 = vpop.f32.mrf.mxu0
  %v4643 = vadd.f32 %v784, %v4642
  %v4644 = vpop.f32.mrf.mxu0
  %v4645 = vadd.f32 %v784, %v4644
  %4646 = vmatmul.bf16.gmra.mxu0 %v2878
  %v4647 = vpop.f32.mrf.mxu0
  %v4648 = vadd.f32 %v784, %v4647
  %v4649 = vpop.f32.mrf.mxu0
  %v4650 = vadd.f32 %v784, %v4649
  %4651 = vmatmul.bf16.gmra.mxu0 %v2881
  %v4652 = vpop.f32.mrf.mxu0
  %v4653 = vadd.f32 %v784, %v4652
  %v4654 = vpop.f32.mrf.mxu0
  %v4655 = vadd.f32 %v784, %v4654
  %4656 = vmatmul.bf16.gmra.mxu0 %v2884
  %v4657 = vpop.f32.mrf.mxu0
  %v4658 = vadd.f32 %v784, %v4657
  %v4659 = vpop.f32.mrf.mxu0
  %v4660 = vadd.f32 %v784, %v4659
  %4661 = vmatmul.bf16.gmra.mxu0 %v2887
  %v4662 = vpop.f32.mrf.mxu0
  %v4663 = vadd.f32 %v784, %v4662
  %v4664 = vpop.f32.mrf.mxu0
  %v4665 = vadd.f32 %v784, %v4664
  %4666 = vmatmul.bf16.gmra.mxu0 %v2890
  %v4667 = vpop.f32.mrf.mxu0
  %v4668 = vadd.f32 %v784, %v4667
  %v4669 = vpop.f32.mrf.mxu0
  %v4670 = vadd.f32 %v784, %v4669
  %4671 = vmatmul.bf16.gmra.mxu0 %v2893
  %v4672 = vpop.f32.mrf.mxu0
  %v4673 = vadd.f32 %v784, %v4672
  %v4674 = vpop.f32.mrf.mxu0
  %v4675 = vadd.f32 %v784, %v4674
  %4676 = vmatmul.bf16.gmra.mxu0 %v2896
  %v4677 = vpop.f32.mrf.mxu0
  %v4678 = vadd.f32 %v784, %v4677
  %v4679 = vpop.f32.mrf.mxu0
  %v4680 = vadd.f32 %v784, %v4679
  %4681 = vmatmul.bf16.gmra.mxu0 %v2899
  %v4682 = vpop.f32.mrf.mxu0
  %v4683 = vadd.f32 %v784, %v4682
  %v4684 = vpop.f32.mrf.mxu0
  %v4685 = vadd.f32 %v784, %v4684
  %4686 = vmatmul.bf16.gmra.mxu0 %v2902
  %v4687 = vpop.f32.mrf.mxu0
  %v4688 = vadd.f32 %v784, %v4687
  %v4689 = vpop.f32.mrf.mxu0
  %v4690 = vadd.f32 %v784, %v4689
  %4691 = vmatmul.bf16.gmra.mxu0 %v2905
  %v4692 = vpop.f32.mrf.mxu0
  %v4693 = vadd.f32 %v784, %v4692
  %v4694 = vpop.f32.mrf.mxu0
  %v4695 = vadd.f32 %v784, %v4694
  %4696 = vmatmul.bf16.gmra.mxu0 %v2908
  %v4697 = vpop.f32.mrf.mxu0
  %v4698 = vadd.f32 %v784, %v4697
  %v4699 = vpop.f32.mrf.mxu0
  %v4700 = vadd.f32 %v784, %v4699
  %4701 = vmatmul.bf16.gmra.mxu0 %v2911
  %v4702 = vpop.f32.mrf.mxu0
  %v4703 = vadd.f32 %v784, %v4702
  %v4704 = vpop.f32.mrf.mxu0
  %v4705 = vadd.f32 %v784, %v4704
  %4706 = vmatmul.bf16.gmra.mxu0 %v2914
  %v4707 = vpop.f32.mrf.mxu0
  %v4708 = vadd.f32 %v784, %v4707
  %v4709 = vpop.f32.mrf.mxu0
  %v4710 = vadd.f32 %v784, %v4709
  %4711 = vmatmul.bf16.gmra.mxu0 %v2917
  %v4712 = vpop.f32.mrf.mxu0
  %v4713 = vadd.f32 %v784, %v4712
  %v4714 = vpop.f32.mrf.mxu0
  %v4715 = vadd.f32 %v784, %v4714
  %4716 = vmatmul.bf16.gmra.mxu0 %v2920
  %v4717 = vpop.f32.mrf.mxu0
  %v4718 = vadd.f32 %v784, %v4717
  %v4719 = vpop.f32.mrf.mxu0
  %v4720 = vadd.f32 %v784, %v4719
  %4721 = vmatmul.bf16.gmra.mxu0 %v2923
  %v4722 = vpop.f32.mrf.mxu0
  %v4723 = vadd.f32 %v784, %v4722
  %v4724 = vpop.f32.mrf.mxu0
  %v4725 = vadd.f32 %v784, %v4724
  %4726 = vmatmul.bf16.gmra.mxu0 %v2926
  %v4727 = vpop.f32.mrf.mxu0
  %v4728 = vadd.f32 %v784, %v4727
  %v4729 = vpop.f32.mrf.mxu0
  %v4730 = vadd.f32 %v784, %v4729
  %4731 = vmatmul.bf16.gmra.mxu0 %v2929
  %v4732 = vpop.f32.mrf.mxu0
  %v4733 = vadd.f32 %v784, %v4732
  %v4734 = vpop.f32.mrf.mxu0
  %v4735 = vadd.f32 %v784, %v4734
  %4736 = vmatmul.bf16.gmra.mxu0 %v2932
  %v4737 = vpop.f32.mrf.mxu0
  %v4738 = vadd.f32 %v784, %v4737
  %v4739 = vpop.f32.mrf.mxu0
  %v4740 = vadd.f32 %v784, %v4739
  %4741 = vmatmul.bf16.gmra.mxu0 %v2935
  %v4742 = vpop.f32.mrf.mxu0
  %v4743 = vadd.f32 %v784, %v4742
  %v4744 = vpop.f32.mrf.mxu0
  %v4745 = vadd.f32 %v784, %v4744
  %4746 = vmatmul.bf16.gmra.mxu0 %v2938
  %v4747 = vpop.f32.mrf.mxu0
  %v4748 = vadd.f32 %v784, %v4747
  %v4749 = vpop.f32.mrf.mxu0
  %v4750 = vadd.f32 %v784, %v4749
  %4751 = vmatmul.bf16.gmra.mxu0 %v2941
  %v4752 = vpop.f32.mrf.mxu0
  %v4753 = vadd.f32 %v784, %v4752
  %v4754 = vpop.f32.mrf.mxu0
  %v4755 = vadd.f32 %v784, %v4754
  %4756 = vmatmul.bf16.gmra.mxu0 %v2944
  %v4757 = vpop.f32.mrf.mxu0
  %v4758 = vadd.f32 %v784, %v4757
  %v4759 = vpop.f32.mrf.mxu0
  %v4760 = vadd.f32 %v784, %v4759
  %4761 = vmatmul.bf16.gmra.mxu0 %v2947
  %v4762 = vpop.f32.mrf.mxu0
  %v4763 = vadd.f32 %v784, %v4762
  %v4764 = vpop.f32.mrf.mxu0
  %v4765 = vadd.f32 %v784, %v4764
  %4766 = vmatmul.bf16.gmra.mxu0 %v2950
  %v4767 = vpop.f32.mrf.mxu0
  %v4768 = vadd.f32 %v784, %v4767
  %v4769 = vpop.f32.mrf.mxu0
  %v4770 = vadd.f32 %v784, %v4769
  %4771 = vmatmul.bf16.gmra.mxu0 %v2953
  %v4772 = vpop.f32.mrf.mxu0
  %v4773 = vadd.f32 %v784, %v4772
  %v4774 = vpop.f32.mrf.mxu0
  %v4775 = vadd.f32 %v784, %v4774
  %4776 = vmatmul.bf16.gmra.mxu0 %v2956
  %v4777 = vpop.f32.mrf.mxu0
  %v4778 = vadd.f32 %v784, %v4777
  %v4779 = vpop.f32.mrf.mxu0
  %v4780 = vadd.f32 %v784, %v4779
  %4781 = vmatmul.bf16.gmra.mxu0 %v2959
  %v4782 = vpop.f32.mrf.mxu0
  %v4783 = vadd.f32 %v784, %v4782
  %v4784 = vpop.f32.mrf.mxu0
  %v4785 = vadd.f32 %v784, %v4784
  %4786 = vmatmul.bf16.gmra.mxu0 %v2962
  %v4787 = vpop.f32.mrf.mxu0
  %v4788 = vadd.f32 %v784, %v4787
  %v4789 = vpop.f32.mrf.mxu0
  %v4790 = vadd.f32 %v784, %v4789
  %4791 = vmatmul.bf16.gmra.mxu0 %v2965
  %v4792 = vpop.f32.mrf.mxu0
  %v4793 = vadd.f32 %v784, %v4792
  %v4794 = vpop.f32.mrf.mxu0
  %v4795 = vadd.f32 %v784, %v4794
  %4796 = vmatmul.bf16.gmra.mxu0 %v2968
  %v4797 = vpop.f32.mrf.mxu0
  %v4798 = vadd.f32 %v784, %v4797
  %v4799 = vpop.f32.mrf.mxu0
  %v4800 = vadd.f32 %v784, %v4799
  %4801 = vmatmul.bf16.gmra.mxu0 %v2971
  %v4802 = vpop.f32.mrf.mxu0
  %v4803 = vadd.f32 %v784, %v4802
  %v4804 = vpop.f32.mrf.mxu0
  %v4805 = vadd.f32 %v784, %v4804
  %4806 = vmatmul.bf16.gmra.mxu0 %v2974
  %v4807 = vpop.f32.mrf.mxu0
  %v4808 = vadd.f32 %v784, %v4807
  %v4809 = vpop.f32.mrf.mxu0
  %v4810 = vadd.f32 %v784, %v4809
  %4811 = vmatmul.bf16.gmra.mxu0 %v2977
  %v4812 = vpop.f32.mrf.mxu0
  %v4813 = vadd.f32 %v784, %v4812
  %v4814 = vpop.f32.mrf.mxu0
  %v4815 = vadd.f32 %v784, %v4814
  %4816 = vmatmul.bf16.gmra.mxu0 %v2980
  %v4817 = vpop.f32.mrf.mxu0
  %v4818 = vadd.f32 %v784, %v4817
  %v4819 = vpop.f32.mrf.mxu0
  %v4820 = vadd.f32 %v784, %v4819
  %4821 = vmatmul.bf16.gmra.mxu0 %v2983
  %v4822 = vpop.f32.mrf.mxu0
  %v4823 = vadd.f32 %v784, %v4822
  %v4824 = vpop.f32.mrf.mxu0
  %v4825 = vadd.f32 %v784, %v4824
  %4826 = vmatmul.bf16.gmra.mxu0 %v2986
  %v4827 = vpop.f32.mrf.mxu0
  %v4828 = vadd.f32 %v784, %v4827
  %v4829 = vpop.f32.mrf.mxu0
  %v4830 = vadd.f32 %v784, %v4829
  %4831 = vmatmul.bf16.gmra.mxu0 %v2989
  %v4832 = vpop.f32.mrf.mxu0
  %v4833 = vadd.f32 %v784, %v4832
  %v4834 = vpop.f32.mrf.mxu0
  %v4835 = vadd.f32 %v784, %v4834
  %4836 = vmatmul.bf16.gmra.mxu0 %v2992
  %v4837 = vpop.f32.mrf.mxu0
  %v4838 = vadd.f32 %v784, %v4837
  %v4839 = vpop.f32.mrf.mxu0
  %v4840 = vadd.f32 %v784, %v4839
  %4841 = vmatmul.bf16.gmra.mxu0 %v2995
  %v4842 = vpop.f32.mrf.mxu0
  %v4843 = vadd.f32 %v784, %v4842
  %v4844 = vpop.f32.mrf.mxu0
  %v4845 = vadd.f32 %v784, %v4844
  %4846 = vmatmul.bf16.gmra.mxu0 %v2998
  %v4847 = vpop.f32.mrf.mxu0
  %v4848 = vadd.f32 %v784, %v4847
  %v4849 = vpop.f32.mrf.mxu0
  %v4850 = vadd.f32 %v784, %v4849
  %4851 = vmatmul.bf16.gmra.mxu0 %v3001
  %v4852 = vpop.f32.mrf.mxu0
  %v4853 = vadd.f32 %v784, %v4852
  %v4854 = vpop.f32.mrf.mxu0
  %v4855 = vadd.f32 %v784, %v4854
  %4856 = vmatmul.bf16.gmra.mxu0 %v3004
  %v4857 = vpop.f32.mrf.mxu0
  %v4858 = vadd.f32 %v784, %v4857
  %v4859 = vpop.f32.mrf.mxu0
  %v4860 = vadd.f32 %v784, %v4859
  %4861 = vmatmul.bf16.gmra.mxu0 %v3007
  %v4862 = vpop.f32.mrf.mxu0
  %v4863 = vadd.f32 %v784, %v4862
  %v4864 = vpop.f32.mrf.mxu0
  %v4865 = vadd.f32 %v784, %v4864
  %4866 = vmatmul.bf16.gmra.mxu0 %v3010
  %v4867 = vpop.f32.mrf.mxu0
  %v4868 = vadd.f32 %v784, %v4867
  %v4869 = vpop.f32.mrf.mxu0
  %v4870 = vadd.f32 %v784, %v4869
  %4871 = vmatmul.bf16.gmra.mxu0 %v3013
  %v4872 = vpop.f32.mrf.mxu0
  %v4873 = vadd.f32 %v784, %v4872
  %v4874 = vpop.f32.mrf.mxu0
  %v4875 = vadd.f32 %v784, %v4874
  %4876 = vmatmul.bf16.gmra.mxu0 %v3016
  %v4877 = vpop.f32.mrf.mxu0
  %v4878 = vadd.f32 %v784, %v4877
  %v4879 = vpop.f32.mrf.mxu0
  %v4880 = vadd.f32 %v784, %v4879
  %4881 = vmatmul.bf16.gmra.mxu0 %v3019
  %v4882 = vpop.f32.mrf.mxu0
  %v4883 = vadd.f32 %v784, %v4882
  %v4884 = vpop.f32.mrf.mxu0
  %v4885 = vadd.f32 %v784, %v4884
  %4886 = vmatmul.bf16.gmra.mxu0 %v3022
  %v4887 = vpop.f32.mrf.mxu0
  %v4888 = vadd.f32 %v784, %v4887
  %v4889 = vpop.f32.mrf.mxu0
  %v4890 = vadd.f32 %v784, %v4889
  %4891 = vmatmul.bf16.gmra.mxu0 %v3025
  %v4892 = vpop.f32.mrf.mxu0
  %v4893 = vadd.f32 %v784, %v4892
  %v4894 = vpop.f32.mrf.mxu0
  %v4895 = vadd.f32 %v784, %v4894
  %4896 = vmatmul.bf16.gmra.mxu0 %v3028
  %v4897 = vpop.f32.mrf.mxu0
  %v4898 = vadd.f32 %v784, %v4897
  %v4899 = vpop.f32.mrf.mxu0
  %v4900 = vadd.f32 %v784, %v4899
  %4901 = vmatmul.bf16.gmra.mxu0 %v3031
  %v4902 = vpop.f32.mrf.mxu0
  %v4903 = vadd.f32 %v784, %v4902
  %v4904 = vpop.f32.mrf.mxu0
  %v4905 = vadd.f32 %v784, %v4904
  %4906 = vmatmul.bf16.gmra.mxu0 %v3034
  %v4907 = vpop.f32.mrf.mxu0
  %v4908 = vadd.f32 %v784, %v4907
  %v4909 = vpop.f32.mrf.mxu0
  %v4910 = vadd.f32 %v784, %v4909
  %4911 = vmatmul.bf16.gmra.mxu0 %v3037
  %v4912 = vpop.f32.mrf.mxu0
  %v4913 = vadd.f32 %v784, %v4912
  %v4914 = vpop.f32.mrf.mxu0
  %v4915 = vadd.f32 %v784, %v4914
  %4916 = vmatmul.bf16.gmra.mxu0 %v3040
  %v4917 = vpop.f32.mrf.mxu0
  %v4918 = vadd.f32 %v784, %v4917
  %v4919 = vpop.f32.mrf.mxu0
  %v4920 = vadd.f32 %v784, %v4919
  %4921 = vmatmul.bf16.gmra.mxu0 %v3043
  %v4922 = vpop.f32.mrf.mxu0
  %v4923 = vadd.f32 %v784, %v4922
  %v4924 = vpop.f32.mrf.mxu0
  %v4925 = vadd.f32 %v784, %v4924
  %4926 = vmatmul.bf16.gmra.mxu0 %v3046
  %v4927 = vpop.f32.mrf.mxu0
  %v4928 = vadd.f32 %v784, %v4927
  %v4929 = vpop.f32.mrf.mxu0
  %v4930 = vadd.f32 %v784, %v4929
  %4931 = vmatmul.bf16.gmra.mxu0 %v3049
  %v4932 = vpop.f32.mrf.mxu0
  %v4933 = vadd.f32 %v784, %v4932
  %v4934 = vpop.f32.mrf.mxu0
  %v4935 = vadd.f32 %v784, %v4934
  %4936 = vmatmul.bf16.gmra.mxu0 %v3052
  %v4937 = vpop.f32.mrf.mxu0
  %v4938 = vadd.f32 %v784, %v4937
  %v4939 = vpop.f32.mrf.mxu0
  %v4940 = vadd.f32 %v784, %v4939
  %4941 = vmatmul.bf16.gmra.mxu0 %v3055
  %v4942 = vpop.f32.mrf.mxu0
  %v4943 = vadd.f32 %v784, %v4942
  %v4944 = vpop.f32.mrf.mxu0
  %v4945 = vadd.f32 %v784, %v4944
  %4946 = vmatmul.bf16.gmra.mxu0 %v3058
  %v4947 = vpop.f32.mrf.mxu0
  %v4948 = vadd.f32 %v784, %v4947
  %v4949 = vpop.f32.mrf.mxu0
  %v4950 = vadd.f32 %v784, %v4949
  %4951 = vmatmul.bf16.gmra.mxu0 %v3061
  %v4952 = vpop.f32.mrf.mxu0
  %v4953 = vadd.f32 %v784, %v4952
  %v4954 = vpop.f32.mrf.mxu0
  %v4955 = vadd.f32 %v784, %v4954
  %4956 = vmatmul.bf16.gmra.mxu0 %v3064
  %v4957 = vpop.f32.mrf.mxu0
  %v4958 = vadd.f32 %v784, %v4957
  %v4959 = vpop.f32.mrf.mxu0
  %v4960 = vadd.f32 %v784, %v4959
  %4961 = vmatmul.bf16.gmra.mxu0 %v3067
  %v4962 = vpop.f32.mrf.mxu0
  %v4963 = vadd.f32 %v784, %v4962
  %v4964 = vpop.f32.mrf.mxu0
  %v4965 = vadd.f32 %v784, %v4964
  %4966 = vmatmul.bf16.gmra.mxu0 %v3070
  %v4967 = vpop.f32.mrf.mxu0
  %v4968 = vadd.f32 %v784, %v4967
  %v4969 = vpop.f32.mrf.mxu0
  %v4970 = vadd.f32 %v784, %v4969
  %4971 = vmatmul.bf16.gmra.mxu0 %v3073
  %v4972 = vpop.f32.mrf.mxu0
  %v4973 = vadd.f32 %v784, %v4972
  %v4974 = vpop.f32.mrf.mxu0
  %v4975 = vadd.f32 %v784, %v4974
  %4976 = vmatmul.bf16.gmra.mxu0 %v3076
  %v4977 = vpop.f32.mrf.mxu0
  %v4978 = vadd.f32 %v784, %v4977
  %v4979 = vpop.f32.mrf.mxu0
  %v4980 = vadd.f32 %v784, %v4979
  %4981 = vmatmul.bf16.gmra.mxu0 %v3079
  %v4982 = vpop.f32.mrf.mxu0
  %v4983 = vadd.f32 %v784, %v4982
  %v4984 = vpop.f32.mrf.mxu0
  %v4985 = vadd.f32 %v784, %v4984
  %4986 = vmatmul.bf16.gmra.mxu0 %v3082
  %v4987 = vpop.f32.mrf.mxu0
  %v4988 = vadd.f32 %v784, %v4987
  %v4989 = vpop.f32.mrf.mxu0
  %v4990 = vadd.f32 %v784, %v4989
  %4991 = vmatmul.bf16.gmra.mxu0 %v3085
  %v4992 = vpop.f32.mrf.mxu0
  %v4993 = vadd.f32 %v784, %v4992
  %v4994 = vpop.f32.mrf.mxu0
  %v4995 = vadd.f32 %v784, %v4994
  %4996 = vmatmul.bf16.gmra.mxu0 %v3088
  %v4997 = vpop.f32.mrf.mxu0
  %v4998 = vadd.f32 %v784, %v4997
  %v4999 = vpop.f32.mrf.mxu0
  %v5000 = vadd.f32 %v784, %v4999
  %5001 = vmatmul.bf16.gmra.mxu0 %v3091
  %v5002 = vpop.f32.mrf.mxu0
  %v5003 = vadd.f32 %v784, %v5002
  %v5004 = vpop.f32.mrf.mxu0
  %v5005 = vadd.f32 %v784, %v5004
  %5006 = vmatmul.bf16.gmra.mxu0 %v3094
  %v5007 = vpop.f32.mrf.mxu0
  %v5008 = vadd.f32 %v784, %v5007
  %v5009 = vpop.f32.mrf.mxu0
  %v5010 = vadd.f32 %v784, %v5009
  %5011 = vmatmul.bf16.gmra.mxu0 %v3097
  %v5012 = vpop.f32.mrf.mxu0
  %v5013 = vadd.f32 %v784, %v5012
  %v5014 = vpop.f32.mrf.mxu0
  %v5015 = vadd.f32 %v784, %v5014
  %5016 = vmatmul.bf16.gmra.mxu0 %v3100
  %v5017 = vpop.f32.mrf.mxu0
  %v5018 = vadd.f32 %v784, %v5017
  %v5019 = vpop.f32.mrf.mxu0
  %v5020 = vadd.f32 %v784, %v5019
  %5021 = vmatmul.bf16.gmra.mxu0 %v3103
  %v5022 = vpop.f32.mrf.mxu0
  %v5023 = vadd.f32 %v784, %v5022
  %v5024 = vpop.f32.mrf.mxu0
  %v5025 = vadd.f32 %v784, %v5024
  %5026 = vmatmul.bf16.gmra.mxu0 %v3106
  %v5027 = vpop.f32.mrf.mxu0
  %v5028 = vadd.f32 %v784, %v5027
  %v5029 = vpop.f32.mrf.mxu0
  %v5030 = vadd.f32 %v784, %v5029
  %5031 = vmatmul.bf16.gmra.mxu0 %v3109
  %v5032 = vpop.f32.mrf.mxu0
  %v5033 = vadd.f32 %v784, %v5032
  %v5034 = vpop.f32.mrf.mxu0
  %v5035 = vadd.f32 %v784, %v5034
  %5036 = vmatmul.bf16.gmra.mxu0 %v3112
  %v5037 = vpop.f32.mrf.mxu0
  %v5038 = vadd.f32 %v784, %v5037
  %v5039 = vpop.f32.mrf.mxu0
  %v5040 = vadd.f32 %v784, %v5039
  %5041 = vmatmul.bf16.gmra.mxu0 %v3115
  %v5042 = vpop.f32.mrf.mxu0
  %v5043 = vadd.f32 %v784, %v5042
  %v5044 = vpop.f32.mrf.mxu0
  %v5045 = vadd.f32 %v784, %v5044
  %5046 = vmatmul.bf16.gmra.mxu0 %v3118
  %v5047 = vpop.f32.mrf.mxu0
  %v5048 = vadd.f32 %v784, %v5047
  %v5049 = vpop.f32.mrf.mxu0
  %v5050 = vadd.f32 %v784, %v5049
  %5051 = vmatmul.bf16.gmra.mxu0 %v3121
  %v5052 = vpop.f32.mrf.mxu0
  %v5053 = vadd.f32 %v784, %v5052
  %v5054 = vpop.f32.mrf.mxu0
  %v5055 = vadd.f32 %v784, %v5054
  %5056 = vmatmul.bf16.gmra.mxu0 %v3124
  %v5057 = vpop.f32.mrf.mxu0
  %v5058 = vadd.f32 %v784, %v5057
  %v5059 = vpop.f32.mrf.mxu0
  %v5060 = vadd.f32 %v784, %v5059
  %5061 = vmatmul.bf16.gmra.mxu0 %v3127
  %v5062 = vpop.f32.mrf.mxu0
  %v5063 = vadd.f32 %v784, %v5062
  %v5064 = vpop.f32.mrf.mxu0
  %v5065 = vadd.f32 %v784, %v5064
  %5066 = vmatmul.bf16.gmra.mxu0 %v3130
  %v5067 = vpop.f32.mrf.mxu0
  %v5068 = vadd.f32 %v784, %v5067
  %v5069 = vpop.f32.mrf.mxu0
  %v5070 = vadd.f32 %v784, %v5069
  %5071 = vmatmul.bf16.gmra.mxu0 %v3133
  %v5072 = vpop.f32.mrf.mxu0
  %v5073 = vadd.f32 %v784, %v5072
  %v5074 = vpop.f32.mrf.mxu0
  %v5075 = vadd.f32 %v784, %v5074
  %5076 = vmatmul.bf16.gmra.mxu0 %v3136
  %v5077 = vpop.f32.mrf.mxu0
  %v5078 = vadd.f32 %v784, %v5077
  %v5079 = vpop.f32.mrf.mxu0
  %v5080 = vadd.f32 %v784, %v5079
  %5081 = vmatmul.bf16.gmra.mxu0 %v3139
  %v5082 = vpop.f32.mrf.mxu0
  %v5083 = vadd.f32 %v784, %v5082
  %v5084 = vpop.f32.mrf.mxu0
  %v5085 = vadd.f32 %v784, %v5084
  %5086 = vmatmul.bf16.gmra.mxu0 %v3142
  %v5087 = vpop.f32.mrf.mxu0
  %v5088 = vadd.f32 %v784, %v5087
  %v5089 = vpop.f32.mrf.mxu0
  %v5090 = vadd.f32 %v784, %v5089
  %5091 = vmatmul.bf16.gmra.mxu0 %v3145
  %v5092 = vpop.f32.mrf.mxu0
  %v5093 = vadd.f32 %v784, %v5092
  %v5094 = vpop.f32.mrf.mxu0
  %v5095 = vadd.f32 %v784, %v5094
  %5096 = vmatmul.bf16.gmra.mxu0 %v3148
  %v5097 = vpop.f32.mrf.mxu0
  %v5098 = vadd.f32 %v784, %v5097
  %v5099 = vpop.f32.mrf.mxu0
  %v5100 = vadd.f32 %v784, %v5099
  %5101 = vmatmul.bf16.gmra.mxu0 %v3151
  %v5102 = vpop.f32.mrf.mxu0
  %v5103 = vadd.f32 %v784, %v5102
  %v5104 = vpop.f32.mrf.mxu0
  %v5105 = vadd.f32 %v784, %v5104
  %5106 = vmatmul.bf16.gmra.mxu0 %v3154
  %v5107 = vpop.f32.mrf.mxu0
  %v5108 = vadd.f32 %v784, %v5107
  %v5109 = vpop.f32.mrf.mxu0
  %v5110 = vadd.f32 %v784, %v5109
  %5111 = vmatmul.bf16.gmra.mxu0 %v3157
  %v5112 = vpop.f32.mrf.mxu0
  %v5113 = vadd.f32 %v784, %v5112
  %v5114 = vpop.f32.mrf.mxu0
  %5115 = vdwg.mxu0
  %5116 = vmatpush.bf16.msra.mxu0 %v3615
  %5117 = vmatpush.bf16.msra.mxu0 %v3614
  %5118 = vmatpush.bf16.msra.mxu0 %v3613
  %5119 = vmatpush.bf16.msra.mxu0 %v3612
  %5120 = vmatpush.bf16.msra.mxu0 %v3611
  %5121 = vmatpush.bf16.msra.mxu0 %v3610
  %5122 = vmatpush.bf16.msra.mxu0 %v3609
  %5123 = vmatpush.bf16.msra.mxu0 %v3608
  %5124 = vmatmul.bf16.gmra.mxu0 %v2612
  %v5125 = vpop.f32.mrf.mxu0
  %v5126 = vadd.f32 %v4203, %v5125
  %v5127 = vpop.f32.mrf.mxu0
  %v5128 = vadd.f32 %v4205, %v5127
  %5129 = vmatmul.bf16.gmra.mxu0 %v2615
  %v5130 = vpop.f32.mrf.mxu0
  %v5131 = vadd.f32 %v4208, %v5130
  %v5132 = vpop.f32.mrf.mxu0
  %v5133 = vadd.f32 %v4210, %v5132
  %5134 = vmatmul.bf16.gmra.mxu0 %v2618
  %v5135 = vpop.f32.mrf.mxu0
  %v5136 = vadd.f32 %v4213, %v5135
  %v5137 = vpop.f32.mrf.mxu0
  %v5138 = vadd.f32 %v4215, %v5137
  %5139 = vmatmul.bf16.gmra.mxu0 %v2621
  %v5140 = vpop.f32.mrf.mxu0
  %v5141 = vadd.f32 %v4218, %v5140
  %v5142 = vpop.f32.mrf.mxu0
  %v5143 = vadd.f32 %v4220, %v5142
  %5144 = vmatmul.bf16.gmra.mxu0 %v2624
  %v5145 = vpop.f32.mrf.mxu0
  %v5146 = vadd.f32 %v4223, %v5145
  %v5147 = vpop.f32.mrf.mxu0
  %v5148 = vadd.f32 %v4225, %v5147
  %5149 = vmatmul.bf16.gmra.mxu0 %v2627
  %v5150 = vpop.f32.mrf.mxu0
  %v5151 = vadd.f32 %v4228, %v5150
  %v5152 = vpop.f32.mrf.mxu0
  %v5153 = vadd.f32 %v4230, %v5152
  %5154 = vmatmul.bf16.gmra.mxu0 %v2630
  %v5155 = vpop.f32.mrf.mxu0
  %v5156 = vadd.f32 %v4233, %v5155
  %v5157 = vpop.f32.mrf.mxu0
  %v5158 = vadd.f32 %v4235, %v5157
  %5159 = vmatmul.bf16.gmra.mxu0 %v2633
  %v5160 = vpop.f32.mrf.mxu0
  %v5161 = vadd.f32 %v4238, %v5160
  %v5162 = vpop.f32.mrf.mxu0
  %v5163 = vadd.f32 %v4240, %v5162
  %5164 = vmatmul.bf16.gmra.mxu0 %v2636
  %v5165 = vpop.f32.mrf.mxu0
  %v5166 = vadd.f32 %v4243, %v5165
  %v5167 = vpop.f32.mrf.mxu0
  %v5168 = vadd.f32 %v4245, %v5167
  %5169 = vmatmul.bf16.gmra.mxu0 %v2639
  %v5170 = vpop.f32.mrf.mxu0
  %v5171 = vadd.f32 %v4248, %v5170
  %v5172 = vpop.f32.mrf.mxu0
  %v5173 = vadd.f32 %v4250, %v5172
  %5174 = vmatmul.bf16.gmra.mxu0 %v2642
  %v5175 = vpop.f32.mrf.mxu0
  %v5176 = vadd.f32 %v4253, %v5175
  %v5177 = vpop.f32.mrf.mxu0
  %v5178 = vadd.f32 %v4255, %v5177
  %5179 = vmatmul.bf16.gmra.mxu0 %v2645
  %v5180 = vpop.f32.mrf.mxu0
  %v5181 = vadd.f32 %v4258, %v5180
  %v5182 = vpop.f32.mrf.mxu0
  %v5183 = vadd.f32 %v4260, %v5182
  %5184 = vmatmul.bf16.gmra.mxu0 %v2648
  %v5185 = vpop.f32.mrf.mxu0
  %v5186 = vadd.f32 %v4263, %v5185
  %v5187 = vpop.f32.mrf.mxu0
  %v5188 = vadd.f32 %v4265, %v5187
  %5189 = vmatmul.bf16.gmra.mxu0 %v2651
  %v5190 = vpop.f32.mrf.mxu0
  %v5191 = vadd.f32 %v4268, %v5190
  %v5192 = vpop.f32.mrf.mxu0
  %v5193 = vadd.f32 %v4270, %v5192
  %5194 = vmatmul.bf16.gmra.mxu0 %v2654
  %v5195 = vpop.f32.mrf.mxu0
  %v5196 = vadd.f32 %v4273, %v5195
  %v5197 = vpop.f32.mrf.mxu0
  %v5198 = vadd.f32 %v4275, %v5197
  %5199 = vmatmul.bf16.gmra.mxu0 %v2657
  %v5200 = vpop.f32.mrf.mxu0
  %v5201 = vadd.f32 %v4278, %v5200
  %v5202 = vpop.f32.mrf.mxu0
  %v5203 = vadd.f32 %v4280, %v5202
  %5204 = vmatmul.bf16.gmra.mxu0 %v2660
  %v5205 = vpop.f32.mrf.mxu0
  %v5206 = vadd.f32 %v4283, %v5205
  %v5207 = vpop.f32.mrf.mxu0
  %v5208 = vadd.f32 %v4285, %v5207
  %5209 = vmatmul.bf16.gmra.mxu0 %v2663
  %v5210 = vpop.f32.mrf.mxu0
  %v5211 = vadd.f32 %v4288, %v5210
  %v5212 = vpop.f32.mrf.mxu0
  %v5213 = vadd.f32 %v4290, %v5212
  %5214 = vmatmul.bf16.gmra.mxu0 %v2666
  %v5215 = vpop.f32.mrf.mxu0
  %v5216 = vadd.f32 %v4293, %v5215
  %v5217 = vpop.f32.mrf.mxu0
  %v5218 = vadd.f32 %v4295, %v5217
  %5219 = vmatmul.bf16.gmra.mxu0 %v2669
  %v5220 = vpop.f32.mrf.mxu0
  %v5221 = vadd.f32 %v4298, %v5220
  %v5222 = vpop.f32.mrf.mxu0
  %v5223 = vadd.f32 %v4300, %v5222
  %5224 = vmatmul.bf16.gmra.mxu0 %v2672
  %v5225 = vpop.f32.mrf.mxu0
  %v5226 = vadd.f32 %v4303, %v5225
  %v5227 = vpop.f32.mrf.mxu0
  %v5228 = vadd.f32 %v4305, %v5227
  %5229 = vmatmul.bf16.gmra.mxu0 %v2675
  %v5230 = vpop.f32.mrf.mxu0
  %v5231 = vadd.f32 %v4308, %v5230
  %v5232 = vpop.f32.mrf.mxu0
  %v5233 = vadd.f32 %v4310, %v5232
  %5234 = vmatmul.bf16.gmra.mxu0 %v2678
  %v5235 = vpop.f32.mrf.mxu0
  %v5236 = vadd.f32 %v4313, %v5235
  %v5237 = vpop.f32.mrf.mxu0
  %v5238 = vadd.f32 %v4315, %v5237
  %5239 = vmatmul.bf16.gmra.mxu0 %v2681
  %v5240 = vpop.f32.mrf.mxu0
  %v5241 = vadd.f32 %v4318, %v5240
  %v5242 = vpop.f32.mrf.mxu0
  %v5243 = vadd.f32 %v4320, %v5242
  %5244 = vmatmul.bf16.gmra.mxu0 %v2684
  %v5245 = vpop.f32.mrf.mxu0
  %v5246 = vadd.f32 %v4323, %v5245
  %v5247 = vpop.f32.mrf.mxu0
  %v5248 = vadd.f32 %v4325, %v5247
  %5249 = vmatmul.bf16.gmra.mxu0 %v2687
  %v5250 = vpop.f32.mrf.mxu0
  %v5251 = vadd.f32 %v4328, %v5250
  %v5252 = vpop.f32.mrf.mxu0
  %v5253 = vadd.f32 %v4330, %v5252
  %5254 = vmatmul.bf16.gmra.mxu0 %v2690
  %v5255 = vpop.f32.mrf.mxu0
  %v5256 = vadd.f32 %v4333, %v5255
  %v5257 = vpop.f32.mrf.mxu0
  %v5258 = vadd.f32 %v4335, %v5257
  %5259 = vmatmul.bf16.gmra.mxu0 %v2693
  %v5260 = vpop.f32.mrf.mxu0
  %v5261 = vadd.f32 %v4338, %v5260
  %v5262 = vpop.f32.mrf.mxu0
  %v5263 = vadd.f32 %v4340, %v5262
  %5264 = vmatmul.bf16.gmra.mxu0 %v2696
  %v5265 = vpop.f32.mrf.mxu0
  %v5266 = vadd.f32 %v4343, %v5265
  %v5267 = vpop.f32.mrf.mxu0
  %v5268 = vadd.f32 %v4345, %v5267
  %5269 = vmatmul.bf16.gmra.mxu0 %v2699
  %v5270 = vpop.f32.mrf.mxu0
  %v5271 = vadd.f32 %v4348, %v5270
  %v5272 = vpop.f32.mrf.mxu0
  %v5273 = vadd.f32 %v4350, %v5272
  %5274 = vmatmul.bf16.gmra.mxu0 %v2702
  %v5275 = vpop.f32.mrf.mxu0
  %v5276 = vadd.f32 %v4353, %v5275
  %v5277 = vpop.f32.mrf.mxu0
  %v5278 = vadd.f32 %v4355, %v5277
  %5279 = vmatmul.bf16.gmra.mxu0 %v2705
  %v5280 = vpop.f32.mrf.mxu0
  %v5281 = vadd.f32 %v4358, %v5280
  %v5282 = vpop.f32.mrf.mxu0
  %v5283 = vadd.f32 %v4360, %v5282
  %5284 = vmatmul.bf16.gmra.mxu0 %v2708
  %v5285 = vpop.f32.mrf.mxu0
  %v5286 = vadd.f32 %v4363, %v5285
  %v5287 = vpop.f32.mrf.mxu0
  %v5288 = vadd.f32 %v4365, %v5287
  %5289 = vmatmul.bf16.gmra.mxu0 %v2711
  %v5290 = vpop.f32.mrf.mxu0
  %v5291 = vadd.f32 %v4368, %v5290
  %v5292 = vpop.f32.mrf.mxu0
  %v5293 = vadd.f32 %v4370, %v5292
  %5294 = vmatmul.bf16.gmra.mxu0 %v2714
  %v5295 = vpop.f32.mrf.mxu0
  %v5296 = vadd.f32 %v4373, %v5295
  %v5297 = vpop.f32.mrf.mxu0
  %v5298 = vadd.f32 %v4375, %v5297
  %5299 = vmatmul.bf16.gmra.mxu0 %v2717
  %v5300 = vpop.f32.mrf.mxu0
  %v5301 = vadd.f32 %v4378, %v5300
  %v5302 = vpop.f32.mrf.mxu0
  %v5303 = vadd.f32 %v4380, %v5302
  %5304 = vmatmul.bf16.gmra.mxu0 %v2720
  %v5305 = vpop.f32.mrf.mxu0
  %v5306 = vadd.f32 %v4383, %v5305
  %v5307 = vpop.f32.mrf.mxu0
  %v5308 = vadd.f32 %v4385, %v5307
  %5309 = vmatmul.bf16.gmra.mxu0 %v2723
  %v5310 = vpop.f32.mrf.mxu0
  %v5311 = vadd.f32 %v4388, %v5310
  %v5312 = vpop.f32.mrf.mxu0
  %v5313 = vadd.f32 %v4390, %v5312
  %5314 = vmatmul.bf16.gmra.mxu0 %v2726
  %v5315 = vpop.f32.mrf.mxu0
  %v5316 = vadd.f32 %v4393, %v5315
  %v5317 = vpop.f32.mrf.mxu0
  %v5318 = vadd.f32 %v4395, %v5317
  %5319 = vmatmul.bf16.gmra.mxu0 %v2729
  %v5320 = vpop.f32.mrf.mxu0
  %v5321 = vadd.f32 %v4398, %v5320
  %v5322 = vpop.f32.mrf.mxu0
  %v5323 = vadd.f32 %v4400, %v5322
  %5324 = vmatmul.bf16.gmra.mxu0 %v2732
  %v5325 = vpop.f32.mrf.mxu0
  %v5326 = vadd.f32 %v4403, %v5325
  %v5327 = vpop.f32.mrf.mxu0
  %v5328 = vadd.f32 %v4405, %v5327
  %5329 = vmatmul.bf16.gmra.mxu0 %v2735
  %v5330 = vpop.f32.mrf.mxu0
  %v5331 = vadd.f32 %v4408, %v5330
  %v5332 = vpop.f32.mrf.mxu0
  %v5333 = vadd.f32 %v4410, %v5332
  %5334 = vmatmul.bf16.gmra.mxu0 %v2738
  %v5335 = vpop.f32.mrf.mxu0
  %v5336 = vadd.f32 %v4413, %v5335
  %v5337 = vpop.f32.mrf.mxu0
  %v5338 = vadd.f32 %v4415, %v5337
  %5339 = vmatmul.bf16.gmra.mxu0 %v2741
  %v5340 = vpop.f32.mrf.mxu0
  %v5341 = vadd.f32 %v4418, %v5340
  %v5342 = vpop.f32.mrf.mxu0
  %v5343 = vadd.f32 %v4420, %v5342
  %5344 = vmatmul.bf16.gmra.mxu0 %v2744
  %v5345 = vpop.f32.mrf.mxu0
  %v5346 = vadd.f32 %v4423, %v5345
  %v5347 = vpop.f32.mrf.mxu0
  %v5348 = vadd.f32 %v4425, %v5347
  %5349 = vmatmul.bf16.gmra.mxu0 %v2747
  %v5350 = vpop.f32.mrf.mxu0
  %v5351 = vadd.f32 %v4428, %v5350
  %v5352 = vpop.f32.mrf.mxu0
  %v5353 = vadd.f32 %v4430, %v5352
  %5354 = vmatmul.bf16.gmra.mxu0 %v2750
  %v5355 = vpop.f32.mrf.mxu0
  %v5356 = vadd.f32 %v4433, %v5355
  %v5357 = vpop.f32.mrf.mxu0
  %v5358 = vadd.f32 %v4435, %v5357
  %5359 = vmatmul.bf16.gmra.mxu0 %v2753
  %v5360 = vpop.f32.mrf.mxu0
  %v5361 = vadd.f32 %v4438, %v5360
  %v5362 = vpop.f32.mrf.mxu0
  %v5363 = vadd.f32 %v4440, %v5362
  %5364 = vmatmul.bf16.gmra.mxu0 %v2756
  %v5365 = vpop.f32.mrf.mxu0
  %v5366 = vadd.f32 %v4443, %v5365
  %v5367 = vpop.f32.mrf.mxu0
  %v5368 = vadd.f32 %v4445, %v5367
  %5369 = vmatmul.bf16.gmra.mxu0 %v2759
  %v5370 = vpop.f32.mrf.mxu0
  %v5371 = vadd.f32 %v4448, %v5370
  %v5372 = vpop.f32.mrf.mxu0
  %v5373 = vadd.f32 %v4450, %v5372
  %5374 = vmatmul.bf16.gmra.mxu0 %v2762
  %v5375 = vpop.f32.mrf.mxu0
  %v5376 = vadd.f32 %v4453, %v5375
  %v5377 = vpop.f32.mrf.mxu0
  %v5378 = vadd.f32 %v4455, %v5377
  %5379 = vmatmul.bf16.gmra.mxu0 %v2765
  %v5380 = vpop.f32.mrf.mxu0
  %v5381 = vadd.f32 %v4458, %v5380
  %v5382 = vpop.f32.mrf.mxu0
  %v5383 = vadd.f32 %v4460, %v5382
  %5384 = vmatmul.bf16.gmra.mxu0 %v2768
  %v5385 = vpop.f32.mrf.mxu0
  %v5386 = vadd.f32 %v4463, %v5385
  %v5387 = vpop.f32.mrf.mxu0
  %v5388 = vadd.f32 %v4465, %v5387
  %5389 = vmatmul.bf16.gmra.mxu0 %v2771
  %v5390 = vpop.f32.mrf.mxu0
  %v5391 = vadd.f32 %v4468, %v5390
  %v5392 = vpop.f32.mrf.mxu0
  %v5393 = vadd.f32 %v4470, %v5392
  %5394 = vmatmul.bf16.gmra.mxu0 %v2774
  %v5395 = vpop.f32.mrf.mxu0
  %v5396 = vadd.f32 %v4473, %v5395
  %v5397 = vpop.f32.mrf.mxu0
  %v5398 = vadd.f32 %v4475, %v5397
  %5399 = vmatmul.bf16.gmra.mxu0 %v2777
  %v5400 = vpop.f32.mrf.mxu0
  %v5401 = vadd.f32 %v4478, %v5400
  %v5402 = vpop.f32.mrf.mxu0
  %v5403 = vadd.f32 %v4480, %v5402
  %5404 = vmatmul.bf16.gmra.mxu0 %v2780
  %v5405 = vpop.f32.mrf.mxu0
  %v5406 = vadd.f32 %v4483, %v5405
  %v5407 = vpop.f32.mrf.mxu0
  %v5408 = vadd.f32 %v4485, %v5407
  %5409 = vmatmul.bf16.gmra.mxu0 %v2783
  %v5410 = vpop.f32.mrf.mxu0
  %v5411 = vadd.f32 %v4488, %v5410
  %v5412 = vpop.f32.mrf.mxu0
  %v5413 = vadd.f32 %v4490, %v5412
  %5414 = vmatmul.bf16.gmra.mxu0 %v2786
  %v5415 = vpop.f32.mrf.mxu0
  %v5416 = vadd.f32 %v4493, %v5415
  %v5417 = vpop.f32.mrf.mxu0
  %v5418 = vadd.f32 %v4495, %v5417
  %5419 = vmatmul.bf16.gmra.mxu0 %v2789
  %v5420 = vpop.f32.mrf.mxu0
  %v5421 = vadd.f32 %v4498, %v5420
  %v5422 = vpop.f32.mrf.mxu0
  %v5423 = vadd.f32 %v4500, %v5422
  %5424 = vmatmul.bf16.gmra.mxu0 %v2792
  %v5425 = vpop.f32.mrf.mxu0
  %v5426 = vadd.f32 %v4503, %v5425
  %v5427 = vpop.f32.mrf.mxu0
  %v5428 = vadd.f32 %v4505, %v5427
  %5429 = vmatmul.bf16.gmra.mxu0 %v2795
  %v5430 = vpop.f32.mrf.mxu0
  %v5431 = vadd.f32 %v4508, %v5430
  %v5432 = vpop.f32.mrf.mxu0
  %v5433 = vadd.f32 %v4510, %v5432
  %5434 = vmatmul.bf16.gmra.mxu0 %v2798
  %v5435 = vpop.f32.mrf.mxu0
  %v5436 = vadd.f32 %v4513, %v5435
  %v5437 = vpop.f32.mrf.mxu0
  %v5438 = vadd.f32 %v4515, %v5437
  %5439 = vmatmul.bf16.gmra.mxu0 %v2801
  %v5440 = vpop.f32.mrf.mxu0
  %v5441 = vadd.f32 %v4518, %v5440
  %v5442 = vpop.f32.mrf.mxu0
  %v5443 = vadd.f32 %v4520, %v5442
  %5444 = vmatmul.bf16.gmra.mxu0 %v2804
  %v5445 = vpop.f32.mrf.mxu0
  %v5446 = vadd.f32 %v4523, %v5445
  %v5447 = vpop.f32.mrf.mxu0
  %v5448 = vadd.f32 %v4525, %v5447
  %5449 = vmatmul.bf16.gmra.mxu0 %v2807
  %v5450 = vpop.f32.mrf.mxu0
  %v5451 = vadd.f32 %v4528, %v5450
  %v5452 = vpop.f32.mrf.mxu0
  %v5453 = vadd.f32 %v4530, %v5452
  %5454 = vmatmul.bf16.gmra.mxu0 %v2810
  %v5455 = vpop.f32.mrf.mxu0
  %v5456 = vadd.f32 %v4533, %v5455
  %v5457 = vpop.f32.mrf.mxu0
  %v5458 = vadd.f32 %v4535, %v5457
  %5459 = vmatmul.bf16.gmra.mxu0 %v2813
  %v5460 = vpop.f32.mrf.mxu0
  %v5461 = vadd.f32 %v4538, %v5460
  %v5462 = vpop.f32.mrf.mxu0
  %v5463 = vadd.f32 %v4540, %v5462
  %5464 = vmatmul.bf16.gmra.mxu0 %v2816
  %v5465 = vpop.f32.mrf.mxu0
  %v5466 = vadd.f32 %v4543, %v5465
  %v5467 = vpop.f32.mrf.mxu0
  %v5468 = vadd.f32 %v4545, %v5467
  %5469 = vmatmul.bf16.gmra.mxu0 %v2819
  %v5470 = vpop.f32.mrf.mxu0
  %v5471 = vadd.f32 %v4548, %v5470
  %v5472 = vpop.f32.mrf.mxu0
  %v5473 = vadd.f32 %v4550, %v5472
  %5474 = vmatmul.bf16.gmra.mxu0 %v2822
  %v5475 = vpop.f32.mrf.mxu0
  %v5476 = vadd.f32 %v4553, %v5475
  %v5477 = vpop.f32.mrf.mxu0
  %v5478 = vadd.f32 %v4555, %v5477
  %5479 = vmatmul.bf16.gmra.mxu0 %v2825
  %v5480 = vpop.f32.mrf.mxu0
  %v5481 = vadd.f32 %v4558, %v5480
  %v5482 = vpop.f32.mrf.mxu0
  %v5483 = vadd.f32 %v4560, %v5482
  %5484 = vmatmul.bf16.gmra.mxu0 %v2828
  %v5485 = vpop.f32.mrf.mxu0
  %v5486 = vadd.f32 %v4563, %v5485
  %v5487 = vpop.f32.mrf.mxu0
  %v5488 = vadd.f32 %v4565, %v5487
  %5489 = vmatmul.bf16.gmra.mxu0 %v2831
  %v5490 = vpop.f32.mrf.mxu0
  %v5491 = vadd.f32 %v4568, %v5490
  %v5492 = vpop.f32.mrf.mxu0
  %v5493 = vadd.f32 %v4570, %v5492
  %5494 = vmatmul.bf16.gmra.mxu0 %v2834
  %v5495 = vpop.f32.mrf.mxu0
  %v5496 = vadd.f32 %v4573, %v5495
  %v5497 = vpop.f32.mrf.mxu0
  %v5498 = vadd.f32 %v4575, %v5497
  %5499 = vmatmul.bf16.gmra.mxu0 %v2837
  %v5500 = vpop.f32.mrf.mxu0
  %v5501 = vadd.f32 %v4578, %v5500
  %v5502 = vpop.f32.mrf.mxu0
  %v5503 = vadd.f32 %v4580, %v5502
  %5504 = vmatmul.bf16.gmra.mxu0 %v2840
  %v5505 = vpop.f32.mrf.mxu0
  %v5506 = vadd.f32 %v4583, %v5505
  %v5507 = vpop.f32.mrf.mxu0
  %v5508 = vadd.f32 %v4585, %v5507
  %5509 = vmatmul.bf16.gmra.mxu0 %v2843
  %v5510 = vpop.f32.mrf.mxu0
  %v5511 = vadd.f32 %v4588, %v5510
  %v5512 = vpop.f32.mrf.mxu0
  %v5513 = vadd.f32 %v4590, %v5512
  %5514 = vmatmul.bf16.gmra.mxu0 %v2846
  %v5515 = vpop.f32.mrf.mxu0
  %v5516 = vadd.f32 %v4593, %v5515
  %v5517 = vpop.f32.mrf.mxu0
  %v5518 = vadd.f32 %v4595, %v5517
  %5519 = vmatmul.bf16.gmra.mxu0 %v2849
  %v5520 = vpop.f32.mrf.mxu0
  %v5521 = vadd.f32 %v4598, %v5520
  %v5522 = vpop.f32.mrf.mxu0
  %v5523 = vadd.f32 %v4600, %v5522
  %5524 = vmatmul.bf16.gmra.mxu0 %v2852
  %v5525 = vpop.f32.mrf.mxu0
  %v5526 = vadd.f32 %v4603, %v5525
  %v5527 = vpop.f32.mrf.mxu0
  %v5528 = vadd.f32 %v4605, %v5527
  %5529 = vmatmul.bf16.gmra.mxu0 %v2855
  %v5530 = vpop.f32.mrf.mxu0
  %v5531 = vadd.f32 %v4608, %v5530
  %v5532 = vpop.f32.mrf.mxu0
  %v5533 = vadd.f32 %v4610, %v5532
  %5534 = vmatmul.bf16.gmra.mxu0 %v2858
  %v5535 = vpop.f32.mrf.mxu0
  %v5536 = vadd.f32 %v4613, %v5535
  %v5537 = vpop.f32.mrf.mxu0
  %v5538 = vadd.f32 %v4615, %v5537
  %5539 = vmatmul.bf16.gmra.mxu0 %v2861
  %v5540 = vpop.f32.mrf.mxu0
  %v5541 = vadd.f32 %v4618, %v5540
  %v5542 = vpop.f32.mrf.mxu0
  %v5543 = vadd.f32 %v4620, %v5542
  %5544 = vmatmul.bf16.gmra.mxu0 %v2864
  %v5545 = vpop.f32.mrf.mxu0
  %v5546 = vadd.f32 %v4623, %v5545
  %v5547 = vpop.f32.mrf.mxu0
  %v5548 = vadd.f32 %v4625, %v5547
  %5549 = vmatmul.bf16.gmra.mxu0 %v2867
  %v5550 = vpop.f32.mrf.mxu0
  %v5551 = vadd.f32 %v4628, %v5550
  %v5552 = vpop.f32.mrf.mxu0
  %v5553 = vadd.f32 %v4630, %v5552
  %5554 = vmatmul.bf16.gmra.mxu0 %v2870
  %v5555 = vpop.f32.mrf.mxu0
  %v5556 = vadd.f32 %v4633, %v5555
  %v5557 = vpop.f32.mrf.mxu0
  %v5558 = vadd.f32 %v4635, %v5557
  %5559 = vmatmul.bf16.gmra.mxu0 %v2873
  %v5560 = vpop.f32.mrf.mxu0
  %v5561 = vadd.f32 %v4638, %v5560
  %v5562 = vpop.f32.mrf.mxu0
  %v5563 = vadd.f32 %v4640, %v5562
  %5564 = vmatmul.bf16.gmra.mxu0 %v2876
  %v5565 = vpop.f32.mrf.mxu0
  %v5566 = vadd.f32 %v4643, %v5565
  %v5567 = vpop.f32.mrf.mxu0
  %v5568 = vadd.f32 %v4645, %v5567
  %5569 = vmatmul.bf16.gmra.mxu0 %v2879
  %v5570 = vpop.f32.mrf.mxu0
  %v5571 = vadd.f32 %v4648, %v5570
  %v5572 = vpop.f32.mrf.mxu0
  %v5573 = vadd.f32 %v4650, %v5572
  %5574 = vmatmul.bf16.gmra.mxu0 %v2882
  %v5575 = vpop.f32.mrf.mxu0
  %v5576 = vadd.f32 %v4653, %v5575
  %v5577 = vpop.f32.mrf.mxu0
  %v5578 = vadd.f32 %v4655, %v5577
  %5579 = vmatmul.bf16.gmra.mxu0 %v2885
  %v5580 = vpop.f32.mrf.mxu0
  %v5581 = vadd.f32 %v4658, %v5580
  %v5582 = vpop.f32.mrf.mxu0
  %v5583 = vadd.f32 %v4660, %v5582
  %5584 = vmatmul.bf16.gmra.mxu0 %v2888
  %v5585 = vpop.f32.mrf.mxu0
  %v5586 = vadd.f32 %v4663, %v5585
  %v5587 = vpop.f32.mrf.mxu0
  %v5588 = vadd.f32 %v4665, %v5587
  %5589 = vmatmul.bf16.gmra.mxu0 %v2891
  %v5590 = vpop.f32.mrf.mxu0
  %v5591 = vadd.f32 %v4668, %v5590
  %v5592 = vpop.f32.mrf.mxu0
  %v5593 = vadd.f32 %v4670, %v5592
  %5594 = vmatmul.bf16.gmra.mxu0 %v2894
  %v5595 = vpop.f32.mrf.mxu0
  %v5596 = vadd.f32 %v4673, %v5595
  %v5597 = vpop.f32.mrf.mxu0
  %v5598 = vadd.f32 %v4675, %v5597
  %5599 = vmatmul.bf16.gmra.mxu0 %v2897
  %v5600 = vpop.f32.mrf.mxu0
  %v5601 = vadd.f32 %v4678, %v5600
  %v5602 = vpop.f32.mrf.mxu0
  %v5603 = vadd.f32 %v4680, %v5602
  %5604 = vmatmul.bf16.gmra.mxu0 %v2900
  %v5605 = vpop.f32.mrf.mxu0
  %v5606 = vadd.f32 %v4683, %v5605
  %v5607 = vpop.f32.mrf.mxu0
  %v5608 = vadd.f32 %v4685, %v5607
  %5609 = vmatmul.bf16.gmra.mxu0 %v2903
  %v5610 = vpop.f32.mrf.mxu0
  %v5611 = vadd.f32 %v4688, %v5610
  %v5612 = vpop.f32.mrf.mxu0
  %v5613 = vadd.f32 %v4690, %v5612
  %5614 = vmatmul.bf16.gmra.mxu0 %v2906
  %v5615 = vpop.f32.mrf.mxu0
  %v5616 = vadd.f32 %v4693, %v5615
  %v5617 = vpop.f32.mrf.mxu0
  %v5618 = vadd.f32 %v4695, %v5617
  %5619 = vmatmul.bf16.gmra.mxu0 %v2909
  %v5620 = vpop.f32.mrf.mxu0
  %v5621 = vadd.f32 %v4698, %v5620
  %v5622 = vpop.f32.mrf.mxu0
  %v5623 = vadd.f32 %v4700, %v5622
  %5624 = vmatmul.bf16.gmra.mxu0 %v2912
  %v5625 = vpop.f32.mrf.mxu0
  %v5626 = vadd.f32 %v4703, %v5625
  %v5627 = vpop.f32.mrf.mxu0
  %v5628 = vadd.f32 %v4705, %v5627
  %5629 = vmatmul.bf16.gmra.mxu0 %v2915
  %v5630 = vpop.f32.mrf.mxu0
  %v5631 = vadd.f32 %v4708, %v5630
  %v5632 = vpop.f32.mrf.mxu0
  %v5633 = vadd.f32 %v4710, %v5632
  %5634 = vmatmul.bf16.gmra.mxu0 %v2918
  %v5635 = vpop.f32.mrf.mxu0
  %v5636 = vadd.f32 %v4713, %v5635
  %v5637 = vpop.f32.mrf.mxu0
  %v5638 = vadd.f32 %v4715, %v5637
  %5639 = vmatmul.bf16.gmra.mxu0 %v2921
  %v5640 = vpop.f32.mrf.mxu0
  %v5641 = vadd.f32 %v4718, %v5640
  %v5642 = vpop.f32.mrf.mxu0
  %v5643 = vadd.f32 %v4720, %v5642
  %5644 = vmatmul.bf16.gmra.mxu0 %v2924
  %v5645 = vpop.f32.mrf.mxu0
  %v5646 = vadd.f32 %v4723, %v5645
  %v5647 = vpop.f32.mrf.mxu0
  %v5648 = vadd.f32 %v4725, %v5647
  %5649 = vmatmul.bf16.gmra.mxu0 %v2927
  %v5650 = vpop.f32.mrf.mxu0
  %v5651 = vadd.f32 %v4728, %v5650
  %v5652 = vpop.f32.mrf.mxu0
  %v5653 = vadd.f32 %v4730, %v5652
  %5654 = vmatmul.bf16.gmra.mxu0 %v2930
  %v5655 = vpop.f32.mrf.mxu0
  %v5656 = vadd.f32 %v4733, %v5655
  %v5657 = vpop.f32.mrf.mxu0
  %v5658 = vadd.f32 %v4735, %v5657
  %5659 = vmatmul.bf16.gmra.mxu0 %v2933
  %v5660 = vpop.f32.mrf.mxu0
  %v5661 = vadd.f32 %v4738, %v5660
  %v5662 = vpop.f32.mrf.mxu0
  %v5663 = vadd.f32 %v4740, %v5662
  %5664 = vmatmul.bf16.gmra.mxu0 %v2936
  %v5665 = vpop.f32.mrf.mxu0
  %v5666 = vadd.f32 %v4743, %v5665
  %v5667 = vpop.f32.mrf.mxu0
  %v5668 = vadd.f32 %v4745, %v5667
  %5669 = vmatmul.bf16.gmra.mxu0 %v2939
  %v5670 = vpop.f32.mrf.mxu0
  %v5671 = vadd.f32 %v4748, %v5670
  %v5672 = vpop.f32.mrf.mxu0
  %v5673 = vadd.f32 %v4750, %v5672
  %5674 = vmatmul.bf16.gmra.mxu0 %v2942
  %v5675 = vpop.f32.mrf.mxu0
  %v5676 = vadd.f32 %v4753, %v5675
  %v5677 = vpop.f32.mrf.mxu0
  %v5678 = vadd.f32 %v4755, %v5677
  %5679 = vmatmul.bf16.gmra.mxu0 %v2945
  %v5680 = vpop.f32.mrf.mxu0
  %v5681 = vadd.f32 %v4758, %v5680
  %v5682 = vpop.f32.mrf.mxu0
  %v5683 = vadd.f32 %v4760, %v5682
  %5684 = vmatmul.bf16.gmra.mxu0 %v2948
  %v5685 = vpop.f32.mrf.mxu0
  %v5686 = vadd.f32 %v4763, %v5685
  %v5687 = vpop.f32.mrf.mxu0
  %v5688 = vadd.f32 %v4765, %v5687
  %5689 = vmatmul.bf16.gmra.mxu0 %v2951
  %v5690 = vpop.f32.mrf.mxu0
  %v5691 = vadd.f32 %v4768, %v5690
  %v5692 = vpop.f32.mrf.mxu0
  %v5693 = vadd.f32 %v4770, %v5692
  %5694 = vmatmul.bf16.gmra.mxu0 %v2954
  %v5695 = vpop.f32.mrf.mxu0
  %v5696 = vadd.f32 %v4773, %v5695
  %v5697 = vpop.f32.mrf.mxu0
  %v5698 = vadd.f32 %v4775, %v5697
  %5699 = vmatmul.bf16.gmra.mxu0 %v2957
  %v5700 = vpop.f32.mrf.mxu0
  %v5701 = vadd.f32 %v4778, %v5700
  %v5702 = vpop.f32.mrf.mxu0
  %v5703 = vadd.f32 %v4780, %v5702
  %5704 = vmatmul.bf16.gmra.mxu0 %v2960
  %v5705 = vpop.f32.mrf.mxu0
  %v5706 = vadd.f32 %v4783, %v5705
  %v5707 = vpop.f32.mrf.mxu0
  %v5708 = vadd.f32 %v4785, %v5707
  %5709 = vmatmul.bf16.gmra.mxu0 %v2963
  %v5710 = vpop.f32.mrf.mxu0
  %v5711 = vadd.f32 %v4788, %v5710
  %v5712 = vpop.f32.mrf.mxu0
  %v5713 = vadd.f32 %v4790, %v5712
  %5714 = vmatmul.bf16.gmra.mxu0 %v2966
  %v5715 = vpop.f32.mrf.mxu0
  %v5716 = vadd.f32 %v4793, %v5715
  %v5717 = vpop.f32.mrf.mxu0
  %v5718 = vadd.f32 %v4795, %v5717
  %5719 = vmatmul.bf16.gmra.mxu0 %v2969
  %v5720 = vpop.f32.mrf.mxu0
  %v5721 = vadd.f32 %v4798, %v5720
  %v5722 = vpop.f32.mrf.mxu0
  %v5723 = vadd.f32 %v4800, %v5722
  %5724 = vmatmul.bf16.gmra.mxu0 %v2972
  %v5725 = vpop.f32.mrf.mxu0
  %v5726 = vadd.f32 %v4803, %v5725
  %v5727 = vpop.f32.mrf.mxu0
  %v5728 = vadd.f32 %v4805, %v5727
  %5729 = vmatmul.bf16.gmra.mxu0 %v2975
  %v5730 = vpop.f32.mrf.mxu0
  %v5731 = vadd.f32 %v4808, %v5730
  %v5732 = vpop.f32.mrf.mxu0
  %v5733 = vadd.f32 %v4810, %v5732
  %5734 = vmatmul.bf16.gmra.mxu0 %v2978
  %v5735 = vpop.f32.mrf.mxu0
  %v5736 = vadd.f32 %v4813, %v5735
  %v5737 = vpop.f32.mrf.mxu0
  %v5738 = vadd.f32 %v4815, %v5737
  %5739 = vmatmul.bf16.gmra.mxu0 %v2981
  %v5740 = vpop.f32.mrf.mxu0
  %v5741 = vadd.f32 %v4818, %v5740
  %v5742 = vpop.f32.mrf.mxu0
  %v5743 = vadd.f32 %v4820, %v5742
  %5744 = vmatmul.bf16.gmra.mxu0 %v2984
  %v5745 = vpop.f32.mrf.mxu0
  %v5746 = vadd.f32 %v4823, %v5745
  %v5747 = vpop.f32.mrf.mxu0
  %v5748 = vadd.f32 %v4825, %v5747
  %5749 = vmatmul.bf16.gmra.mxu0 %v2987
  %v5750 = vpop.f32.mrf.mxu0
  %v5751 = vadd.f32 %v4828, %v5750
  %v5752 = vpop.f32.mrf.mxu0
  %v5753 = vadd.f32 %v4830, %v5752
  %5754 = vmatmul.bf16.gmra.mxu0 %v2990
  %v5755 = vpop.f32.mrf.mxu0
  %v5756 = vadd.f32 %v4833, %v5755
  %v5757 = vpop.f32.mrf.mxu0
  %v5758 = vadd.f32 %v4835, %v5757
  %5759 = vmatmul.bf16.gmra.mxu0 %v2993
  %v5760 = vpop.f32.mrf.mxu0
  %v5761 = vadd.f32 %v4838, %v5760
  %v5762 = vpop.f32.mrf.mxu0
  %v5763 = vadd.f32 %v4840, %v5762
  %5764 = vmatmul.bf16.gmra.mxu0 %v2996
  %v5765 = vpop.f32.mrf.mxu0
  %v5766 = vadd.f32 %v4843, %v5765
  %v5767 = vpop.f32.mrf.mxu0
  %v5768 = vadd.f32 %v4845, %v5767
  %5769 = vmatmul.bf16.gmra.mxu0 %v2999
  %v5770 = vpop.f32.mrf.mxu0
  %v5771 = vadd.f32 %v4848, %v5770
  %v5772 = vpop.f32.mrf.mxu0
  %v5773 = vadd.f32 %v4850, %v5772
  %5774 = vmatmul.bf16.gmra.mxu0 %v3002
  %v5775 = vpop.f32.mrf.mxu0
  %v5776 = vadd.f32 %v4853, %v5775
  %v5777 = vpop.f32.mrf.mxu0
  %v5778 = vadd.f32 %v4855, %v5777
  %5779 = vmatmul.bf16.gmra.mxu0 %v3005
  %v5780 = vpop.f32.mrf.mxu0
  %v5781 = vadd.f32 %v4858, %v5780
  %v5782 = vpop.f32.mrf.mxu0
  %v5783 = vadd.f32 %v4860, %v5782
  %5784 = vmatmul.bf16.gmra.mxu0 %v3008
  %v5785 = vpop.f32.mrf.mxu0
  %v5786 = vadd.f32 %v4863, %v5785
  %v5787 = vpop.f32.mrf.mxu0
  %v5788 = vadd.f32 %v4865, %v5787
  %5789 = vmatmul.bf16.gmra.mxu0 %v3011
  %v5790 = vpop.f32.mrf.mxu0
  %v5791 = vadd.f32 %v4868, %v5790
  %v5792 = vpop.f32.mrf.mxu0
  %v5793 = vadd.f32 %v4870, %v5792
  %5794 = vmatmul.bf16.gmra.mxu0 %v3014
  %v5795 = vpop.f32.mrf.mxu0
  %v5796 = vadd.f32 %v4873, %v5795
  %v5797 = vpop.f32.mrf.mxu0
  %v5798 = vadd.f32 %v4875, %v5797
  %5799 = vmatmul.bf16.gmra.mxu0 %v3017
  %v5800 = vpop.f32.mrf.mxu0
  %v5801 = vadd.f32 %v4878, %v5800
  %v5802 = vpop.f32.mrf.mxu0
  %v5803 = vadd.f32 %v4880, %v5802
  %5804 = vmatmul.bf16.gmra.mxu0 %v3020
  %v5805 = vpop.f32.mrf.mxu0
  %v5806 = vadd.f32 %v4883, %v5805
  %v5807 = vpop.f32.mrf.mxu0
  %v5808 = vadd.f32 %v4885, %v5807
  %5809 = vmatmul.bf16.gmra.mxu0 %v3023
  %v5810 = vpop.f32.mrf.mxu0
  %v5811 = vadd.f32 %v4888, %v5810
  %v5812 = vpop.f32.mrf.mxu0
  %v5813 = vadd.f32 %v4890, %v5812
  %5814 = vmatmul.bf16.gmra.mxu0 %v3026
  %v5815 = vpop.f32.mrf.mxu0
  %v5816 = vadd.f32 %v4893, %v5815
  %v5817 = vpop.f32.mrf.mxu0
  %v5818 = vadd.f32 %v4895, %v5817
  %5819 = vmatmul.bf16.gmra.mxu0 %v3029
  %v5820 = vpop.f32.mrf.mxu0
  %v5821 = vadd.f32 %v4898, %v5820
  %v5822 = vpop.f32.mrf.mxu0
  %v5823 = vadd.f32 %v4900, %v5822
  %5824 = vmatmul.bf16.gmra.mxu0 %v3032
  %v5825 = vpop.f32.mrf.mxu0
  %v5826 = vadd.f32 %v4903, %v5825
  %v5827 = vpop.f32.mrf.mxu0
  %v5828 = vadd.f32 %v4905, %v5827
  %5829 = vmatmul.bf16.gmra.mxu0 %v3035
  %v5830 = vpop.f32.mrf.mxu0
  %v5831 = vadd.f32 %v4908, %v5830
  %v5832 = vpop.f32.mrf.mxu0
  %v5833 = vadd.f32 %v4910, %v5832
  %5834 = vmatmul.bf16.gmra.mxu0 %v3038
  %v5835 = vpop.f32.mrf.mxu0
  %v5836 = vadd.f32 %v4913, %v5835
  %v5837 = vpop.f32.mrf.mxu0
  %v5838 = vadd.f32 %v4915, %v5837
  %5839 = vmatmul.bf16.gmra.mxu0 %v3041
  %v5840 = vpop.f32.mrf.mxu0
  %v5841 = vadd.f32 %v4918, %v5840
  %v5842 = vpop.f32.mrf.mxu0
  %v5843 = vadd.f32 %v4920, %v5842
  %5844 = vmatmul.bf16.gmra.mxu0 %v3044
  %v5845 = vpop.f32.mrf.mxu0
  %v5846 = vadd.f32 %v4923, %v5845
  %v5847 = vpop.f32.mrf.mxu0
  %v5848 = vadd.f32 %v4925, %v5847
  %5849 = vmatmul.bf16.gmra.mxu0 %v3047
  %v5850 = vpop.f32.mrf.mxu0
  %v5851 = vadd.f32 %v4928, %v5850
  %v5852 = vpop.f32.mrf.mxu0
  %v5853 = vadd.f32 %v4930, %v5852
  %5854 = vmatmul.bf16.gmra.mxu0 %v3050
  %v5855 = vpop.f32.mrf.mxu0
  %v5856 = vadd.f32 %v4933, %v5855
  %v5857 = vpop.f32.mrf.mxu0
  %v5858 = vadd.f32 %v4935, %v5857
  %5859 = vmatmul.bf16.gmra.mxu0 %v3053
  %v5860 = vpop.f32.mrf.mxu0
  %v5861 = vadd.f32 %v4938, %v5860
  %v5862 = vpop.f32.mrf.mxu0
  %v5863 = vadd.f32 %v4940, %v5862
  %5864 = vmatmul.bf16.gmra.mxu0 %v3056
  %v5865 = vpop.f32.mrf.mxu0
  %v5866 = vadd.f32 %v4943, %v5865
  %v5867 = vpop.f32.mrf.mxu0
  %v5868 = vadd.f32 %v4945, %v5867
  %5869 = vmatmul.bf16.gmra.mxu0 %v3059
  %v5870 = vpop.f32.mrf.mxu0
  %v5871 = vadd.f32 %v4948, %v5870
  %v5872 = vpop.f32.mrf.mxu0
  %v5873 = vadd.f32 %v4950, %v5872
  %5874 = vmatmul.bf16.gmra.mxu0 %v3062
  %v5875 = vpop.f32.mrf.mxu0
  %v5876 = vadd.f32 %v4953, %v5875
  %v5877 = vpop.f32.mrf.mxu0
  %v5878 = vadd.f32 %v4955, %v5877
  %5879 = vmatmul.bf16.gmra.mxu0 %v3065
  %v5880 = vpop.f32.mrf.mxu0
  %v5881 = vadd.f32 %v4958, %v5880
  %v5882 = vpop.f32.mrf.mxu0
  %v5883 = vadd.f32 %v4960, %v5882
  %5884 = vmatmul.bf16.gmra.mxu0 %v3068
  %v5885 = vpop.f32.mrf.mxu0
  %v5886 = vadd.f32 %v4963, %v5885
  %v5887 = vpop.f32.mrf.mxu0
  %v5888 = vadd.f32 %v4965, %v5887
  %5889 = vmatmul.bf16.gmra.mxu0 %v3071
  %v5890 = vpop.f32.mrf.mxu0
  %v5891 = vadd.f32 %v4968, %v5890
  %v5892 = vpop.f32.mrf.mxu0
  %v5893 = vadd.f32 %v4970, %v5892
  %5894 = vmatmul.bf16.gmra.mxu0 %v3074
  %v5895 = vpop.f32.mrf.mxu0
  %v5896 = vadd.f32 %v4973, %v5895
  %v5897 = vpop.f32.mrf.mxu0
  %v5898 = vadd.f32 %v4975, %v5897
  %5899 = vmatmul.bf16.gmra.mxu0 %v3077
  %v5900 = vpop.f32.mrf.mxu0
  %v5901 = vadd.f32 %v4978, %v5900
  %v5902 = vpop.f32.mrf.mxu0
  %v5903 = vadd.f32 %v4980, %v5902
  %5904 = vmatmul.bf16.gmra.mxu0 %v3080
  %v5905 = vpop.f32.mrf.mxu0
  %v5906 = vadd.f32 %v4983, %v5905
  %v5907 = vpop.f32.mrf.mxu0
  %v5908 = vadd.f32 %v4985, %v5907
  %5909 = vmatmul.bf16.gmra.mxu0 %v3083
  %v5910 = vpop.f32.mrf.mxu0
  %v5911 = vadd.f32 %v4988, %v5910
  %v5912 = vpop.f32.mrf.mxu0
  %v5913 = vadd.f32 %v4990, %v5912
  %5914 = vmatmul.bf16.gmra.mxu0 %v3086
  %v5915 = vpop.f32.mrf.mxu0
  %v5916 = vadd.f32 %v4993, %v5915
  %v5917 = vpop.f32.mrf.mxu0
  %v5918 = vadd.f32 %v4995, %v5917
  %5919 = vmatmul.bf16.gmra.mxu0 %v3089
  %v5920 = vpop.f32.mrf.mxu0
  %v5921 = vadd.f32 %v4998, %v5920
  %v5922 = vpop.f32.mrf.mxu0
  %v5923 = vadd.f32 %v5000, %v5922
  %5924 = vmatmul.bf16.gmra.mxu0 %v3092
  %v5925 = vpop.f32.mrf.mxu0
  %v5926 = vadd.f32 %v5003, %v5925
  %v5927 = vpop.f32.mrf.mxu0
  %v5928 = vadd.f32 %v5005, %v5927
  %5929 = vmatmul.bf16.gmra.mxu0 %v3095
  %v5930 = vpop.f32.mrf.mxu0
  %v5931 = vadd.f32 %v5008, %v5930
  %v5932 = vpop.f32.mrf.mxu0
  %v5933 = vadd.f32 %v5010, %v5932
  %5934 = vmatmul.bf16.gmra.mxu0 %v3098
  %v5935 = vpop.f32.mrf.mxu0
  %v5936 = vadd.f32 %v5013, %v5935
  %v5937 = vpop.f32.mrf.mxu0
  %v5938 = vadd.f32 %v5015, %v5937
  %5939 = vmatmul.bf16.gmra.mxu0 %v3101
  %v5940 = vpop.f32.mrf.mxu0
  %v5941 = vadd.f32 %v5018, %v5940
  %v5942 = vpop.f32.mrf.mxu0
  %v5943 = vadd.f32 %v5020, %v5942
  %5944 = vmatmul.bf16.gmra.mxu0 %v3104
  %v5945 = vpop.f32.mrf.mxu0
  %v5946 = vadd.f32 %v5023, %v5945
  %v5947 = vpop.f32.mrf.mxu0
  %v5948 = vadd.f32 %v5025, %v5947
  %5949 = vmatmul.bf16.gmra.mxu0 %v3107
  %v5950 = vpop.f32.mrf.mxu0
  %v5951 = vadd.f32 %v5028, %v5950
  %v5952 = vpop.f32.mrf.mxu0
  %v5953 = vadd.f32 %v5030, %v5952
  %5954 = vmatmul.bf16.gmra.mxu0 %v3110
  %v5955 = vpop.f32.mrf.mxu0
  %v5956 = vadd.f32 %v5033, %v5955
  %v5957 = vpop.f32.mrf.mxu0
  %v5958 = vadd.f32 %v5035, %v5957
  %5959 = vmatmul.bf16.gmra.mxu0 %v3113
  %v5960 = vpop.f32.mrf.mxu0
  %v5961 = vadd.f32 %v5038, %v5960
  %v5962 = vpop.f32.mrf.mxu0
  %v5963 = vadd.f32 %v5040, %v5962
  %5964 = vmatmul.bf16.gmra.mxu0 %v3116
  %v5965 = vpop.f32.mrf.mxu0
  %v5966 = vadd.f32 %v5043, %v5965
  %v5967 = vpop.f32.mrf.mxu0
  %v5968 = vadd.f32 %v5045, %v5967
  %5969 = vmatmul.bf16.gmra.mxu0 %v3119
  %v5970 = vpop.f32.mrf.mxu0
  %v5971 = vadd.f32 %v5048, %v5970
  %v5972 = vpop.f32.mrf.mxu0
  %v5973 = vadd.f32 %v5050, %v5972
  %5974 = vmatmul.bf16.gmra.mxu0 %v3122
  %v5975 = vpop.f32.mrf.mxu0
  %v5976 = vadd.f32 %v5053, %v5975
  %v5977 = vpop.f32.mrf.mxu0
  %v5978 = vadd.f32 %v5055, %v5977
  %5979 = vmatmul.bf16.gmra.mxu0 %v3125
  %v5980 = vpop.f32.mrf.mxu0
  %v5981 = vadd.f32 %v5058, %v5980
  %v5982 = vpop.f32.mrf.mxu0
  %v5983 = vadd.f32 %v5060, %v5982
  %5984 = vmatmul.bf16.gmra.mxu0 %v3128
  %v5985 = vpop.f32.mrf.mxu0
  %v5986 = vadd.f32 %v5063, %v5985
  %v5987 = vpop.f32.mrf.mxu0
  %v5988 = vadd.f32 %v5065, %v5987
  %5989 = vmatmul.bf16.gmra.mxu0 %v3131
  %v5990 = vpop.f32.mrf.mxu0
  %v5991 = vadd.f32 %v5068, %v5990
  %v5992 = vpop.f32.mrf.mxu0
  %v5993 = vadd.f32 %v5070, %v5992
  %5994 = vmatmul.bf16.gmra.mxu0 %v3134
  %v5995 = vpop.f32.mrf.mxu0
  %v5996 = vadd.f32 %v5073, %v5995
  %v5997 = vpop.f32.mrf.mxu0
  %v5998 = vadd.f32 %v5075, %v5997
  %5999 = vmatmul.bf16.gmra.mxu0 %v3137
  %v6000 = vpop.f32.mrf.mxu0
  %v6001 = vadd.f32 %v5078, %v6000
  %v6002 = vpop.f32.mrf.mxu0
  %v6003 = vadd.f32 %v5080, %v6002
  %6004 = vmatmul.bf16.gmra.mxu0 %v3140
  %v6005 = vpop.f32.mrf.mxu0
  %v6006 = vadd.f32 %v5083, %v6005
  %v6007 = vpop.f32.mrf.mxu0
  %v6008 = vadd.f32 %v5085, %v6007
  %6009 = vmatmul.bf16.gmra.mxu0 %v3143
  %v6010 = vpop.f32.mrf.mxu0
  %v6011 = vadd.f32 %v5088, %v6010
  %v6012 = vpop.f32.mrf.mxu0
  %v6013 = vadd.f32 %v5090, %v6012
  %6014 = vmatmul.bf16.gmra.mxu0 %v3146
  %v6015 = vpop.f32.mrf.mxu0
  %v6016 = vadd.f32 %v5093, %v6015
  %v6017 = vpop.f32.mrf.mxu0
  %v6018 = vadd.f32 %v5095, %v6017
  %6019 = vmatmul.bf16.gmra.mxu0 %v3149
  %v6020 = vpop.f32.mrf.mxu0
  %v6021 = vadd.f32 %v5098, %v6020
  %v6022 = vpop.f32.mrf.mxu0
  %v6023 = vadd.f32 %v5100, %v6022
  %6024 = vmatmul.bf16.gmra.mxu0 %v3152
  %v6025 = vpop.f32.mrf.mxu0
  %v6026 = vadd.f32 %v5103, %v6025
  %v6027 = vpop.f32.mrf.mxu0
  %v6028 = vadd.f32 %v5105, %v6027
  %6029 = vmatmul.bf16.gmra.mxu0 %v3155
  %v6030 = vpop.f32.mrf.mxu0
  %v6031 = vadd.f32 %v5108, %v6030
  %v6032 = vpop.f32.mrf.mxu0
  %v6033 = vadd.f32 %v5110, %v6032
  %6034 = vmatmul.bf16.gmra.mxu0 %v3158
  %v6035 = vpop.f32.mrf.mxu0
  %v6036 = vadd.f32 %v5113, %v6035
  %v6037 = vpop.f32.mrf.mxu0
  %6038 = vdwg.mxu0
  %6039 = vmatpush.bf16.msra.mxu0 0
  %6040 = vmatpush.bf16.msra.mxu0 0
  %6041 = vmatpush.bf16.msra.mxu0 0
  %6042 = vmatpush.bf16.msra.mxu0 0
  %6043 = vmatpush.bf16.msra.mxu0 0
  %6044 = vmatpush.bf16.msra.mxu0 %v4191
  %6045 = vmatpush.bf16.msra.mxu0 %v3617
  %6046 = vmatpush.bf16.msra.mxu0 %v3616
  %6047 = vmatmul.bf16.gmra.mxu0 %v3639
  %v6048 = vpop.f32.mrf.mxu0
  %v6049 = vadd.f32 %v5126, %v6048
  %v6050 = vpop.f32.mrf.mxu0
  %v6051 = vadd.f32 %v5128, %v6050
  %6052 = vmatmul.bf16.gmra.mxu0 %v3642
  %v6053 = vpop.f32.mrf.mxu0
  %v6054 = vadd.f32 %v5131, %v6053
  %v6055 = vpop.f32.mrf.mxu0
  %v6056 = vadd.f32 %v5133, %v6055
  %6057 = vmatmul.bf16.gmra.mxu0 %v3645
  %v6058 = vpop.f32.mrf.mxu0
  %v6059 = vadd.f32 %v5136, %v6058
  %v6060 = vpop.f32.mrf.mxu0
  %v6061 = vadd.f32 %v5138, %v6060
  %6062 = vmatmul.bf16.gmra.mxu0 %v3648
  %v6063 = vpop.f32.mrf.mxu0
  %v6064 = vadd.f32 %v5141, %v6063
  %v6065 = vpop.f32.mrf.mxu0
  %v6066 = vadd.f32 %v5143, %v6065
  %6067 = vmatmul.bf16.gmra.mxu0 %v3651
  %v6068 = vpop.f32.mrf.mxu0
  %v6069 = vadd.f32 %v5146, %v6068
  %v6070 = vpop.f32.mrf.mxu0
  %v6071 = vadd.f32 %v5148, %v6070
  %6072 = vmatmul.bf16.gmra.mxu0 %v3654
  %v6073 = vpop.f32.mrf.mxu0
  %v6074 = vadd.f32 %v5151, %v6073
  %v6075 = vpop.f32.mrf.mxu0
  %v6076 = vadd.f32 %v5153, %v6075
  %6077 = vmatmul.bf16.gmra.mxu0 %v3657
  %v6078 = vpop.f32.mrf.mxu0
  %v6079 = vadd.f32 %v5156, %v6078
  %v6080 = vpop.f32.mrf.mxu0
  %v6081 = vadd.f32 %v5158, %v6080
  %6082 = vmatmul.bf16.gmra.mxu0 %v3660
  %v6083 = vpop.f32.mrf.mxu0
  %v6084 = vadd.f32 %v5161, %v6083
  %v6085 = vpop.f32.mrf.mxu0
  %v6086 = vadd.f32 %v5163, %v6085
  %6087 = vmatmul.bf16.gmra.mxu0 %v3663
  %v6088 = vpop.f32.mrf.mxu0
  %v6089 = vadd.f32 %v5166, %v6088
  %v6090 = vpop.f32.mrf.mxu0
  %v6091 = vadd.f32 %v5168, %v6090
  %6092 = vmatmul.bf16.gmra.mxu0 %v3666
  %v6093 = vpop.f32.mrf.mxu0
  %v6094 = vadd.f32 %v5171, %v6093
  %v6095 = vpop.f32.mrf.mxu0
  %v6096 = vadd.f32 %v5173, %v6095
  %6097 = vmatmul.bf16.gmra.mxu0 %v3669
  %v6098 = vpop.f32.mrf.mxu0
  %v6099 = vadd.f32 %v5176, %v6098
  %v6100 = vpop.f32.mrf.mxu0
  %v6101 = vadd.f32 %v5178, %v6100
  %6102 = vmatmul.bf16.gmra.mxu0 %v3672
  %v6103 = vpop.f32.mrf.mxu0
  %v6104 = vadd.f32 %v5181, %v6103
  %v6105 = vpop.f32.mrf.mxu0
  %v6106 = vadd.f32 %v5183, %v6105
  %6107 = vmatmul.bf16.gmra.mxu0 %v3675
  %v6108 = vpop.f32.mrf.mxu0
  %v6109 = vadd.f32 %v5186, %v6108
  %v6110 = vpop.f32.mrf.mxu0
  %v6111 = vadd.f32 %v5188, %v6110
  %6112 = vmatmul.bf16.gmra.mxu0 %v3678
  %v6113 = vpop.f32.mrf.mxu0
  %v6114 = vadd.f32 %v5191, %v6113
  %v6115 = vpop.f32.mrf.mxu0
  %v6116 = vadd.f32 %v5193, %v6115
  %6117 = vmatmul.bf16.gmra.mxu0 %v3681
  %v6118 = vpop.f32.mrf.mxu0
  %v6119 = vadd.f32 %v5196, %v6118
  %v6120 = vpop.f32.mrf.mxu0
  %v6121 = vadd.f32 %v5198, %v6120
  %6122 = vmatmul.bf16.gmra.mxu0 %v3684
  %v6123 = vpop.f32.mrf.mxu0
  %v6124 = vadd.f32 %v5201, %v6123
  %v6125 = vpop.f32.mrf.mxu0
  %v6126 = vadd.f32 %v5203, %v6125
  %6127 = vmatmul.bf16.gmra.mxu0 %v3687
  %v6128 = vpop.f32.mrf.mxu0
  %v6129 = vadd.f32 %v5206, %v6128
  %v6130 = vpop.f32.mrf.mxu0
  %v6131 = vadd.f32 %v5208, %v6130
  %6132 = vmatmul.bf16.gmra.mxu0 %v3690
  %v6133 = vpop.f32.mrf.mxu0
  %v6134 = vadd.f32 %v5211, %v6133
  %v6135 = vpop.f32.mrf.mxu0
  %v6136 = vadd.f32 %v5213, %v6135
  %6137 = vmatmul.bf16.gmra.mxu0 %v3693
  %v6138 = vpop.f32.mrf.mxu0
  %v6139 = vadd.f32 %v5216, %v6138
  %v6140 = vpop.f32.mrf.mxu0
  %v6141 = vadd.f32 %v5218, %v6140
  %6142 = vmatmul.bf16.gmra.mxu0 %v3696
  %v6143 = vpop.f32.mrf.mxu0
  %v6144 = vadd.f32 %v5221, %v6143
  %v6145 = vpop.f32.mrf.mxu0
  %v6146 = vadd.f32 %v5223, %v6145
  %6147 = vmatmul.bf16.gmra.mxu0 %v3699
  %v6148 = vpop.f32.mrf.mxu0
  %v6149 = vadd.f32 %v5226, %v6148
  %v6150 = vpop.f32.mrf.mxu0
  %v6151 = vadd.f32 %v5228, %v6150
  %6152 = vmatmul.bf16.gmra.mxu0 %v3702
  %v6153 = vpop.f32.mrf.mxu0
  %v6154 = vadd.f32 %v5231, %v6153
  %v6155 = vpop.f32.mrf.mxu0
  %v6156 = vadd.f32 %v5233, %v6155
  %6157 = vmatmul.bf16.gmra.mxu0 %v3705
  %v6158 = vpop.f32.mrf.mxu0
  %v6159 = vadd.f32 %v5236, %v6158
  %v6160 = vpop.f32.mrf.mxu0
  %v6161 = vadd.f32 %v5238, %v6160
  %6162 = vmatmul.bf16.gmra.mxu0 %v3708
  %v6163 = vpop.f32.mrf.mxu0
  %v6164 = vadd.f32 %v5241, %v6163
  %v6165 = vpop.f32.mrf.mxu0
  %v6166 = vadd.f32 %v5243, %v6165
  %6167 = vmatmul.bf16.gmra.mxu0 %v3711
  %v6168 = vpop.f32.mrf.mxu0
  %v6169 = vadd.f32 %v5246, %v6168
  %v6170 = vpop.f32.mrf.mxu0
  %v6171 = vadd.f32 %v5248, %v6170
  %6172 = vmatmul.bf16.gmra.mxu0 %v3714
  %v6173 = vpop.f32.mrf.mxu0
  %v6174 = vadd.f32 %v5251, %v6173
  %v6175 = vpop.f32.mrf.mxu0
  %v6176 = vadd.f32 %v5253, %v6175
  %6177 = vmatmul.bf16.gmra.mxu0 %v3717
  %v6178 = vpop.f32.mrf.mxu0
  %v6179 = vadd.f32 %v5256, %v6178
  %v6180 = vpop.f32.mrf.mxu0
  %v6181 = vadd.f32 %v5258, %v6180
  %6182 = vmatmul.bf16.gmra.mxu0 %v3720
  %v6183 = vpop.f32.mrf.mxu0
  %v6184 = vadd.f32 %v5261, %v6183
  %v6185 = vpop.f32.mrf.mxu0
  %v6186 = vadd.f32 %v5263, %v6185
  %6187 = vmatmul.bf16.gmra.mxu0 %v3723
  %v6188 = vpop.f32.mrf.mxu0
  %v6189 = vadd.f32 %v5266, %v6188
  %v6190 = vpop.f32.mrf.mxu0
  %v6191 = vadd.f32 %v5268, %v6190
  %6192 = vmatmul.bf16.gmra.mxu0 %v3726
  %v6193 = vpop.f32.mrf.mxu0
  %v6194 = vadd.f32 %v5271, %v6193
  %v6195 = vpop.f32.mrf.mxu0
  %v6196 = vadd.f32 %v5273, %v6195
  %6197 = vmatmul.bf16.gmra.mxu0 %v3729
  %v6198 = vpop.f32.mrf.mxu0
  %v6199 = vadd.f32 %v5276, %v6198
  %v6200 = vpop.f32.mrf.mxu0
  %v6201 = vadd.f32 %v5278, %v6200
  %6202 = vmatmul.bf16.gmra.mxu0 %v3732
  %v6203 = vpop.f32.mrf.mxu0
  %v6204 = vadd.f32 %v5281, %v6203
  %v6205 = vpop.f32.mrf.mxu0
  %v6206 = vadd.f32 %v5283, %v6205
  %6207 = vmatmul.bf16.gmra.mxu0 %v3735
  %v6208 = vpop.f32.mrf.mxu0
  %v6209 = vadd.f32 %v5286, %v6208
  %v6210 = vpop.f32.mrf.mxu0
  %v6211 = vadd.f32 %v5288, %v6210
  %6212 = vmatmul.bf16.gmra.mxu0 %v3738
  %v6213 = vpop.f32.mrf.mxu0
  %v6214 = vadd.f32 %v5291, %v6213
  %v6215 = vpop.f32.mrf.mxu0
  %v6216 = vadd.f32 %v5293, %v6215
  %6217 = vmatmul.bf16.gmra.mxu0 %v3741
  %v6218 = vpop.f32.mrf.mxu0
  %v6219 = vadd.f32 %v5296, %v6218
  %v6220 = vpop.f32.mrf.mxu0
  %v6221 = vadd.f32 %v5298, %v6220
  %6222 = vmatmul.bf16.gmra.mxu0 %v3744
  %v6223 = vpop.f32.mrf.mxu0
  %v6224 = vadd.f32 %v5301, %v6223
  %v6225 = vpop.f32.mrf.mxu0
  %v6226 = vadd.f32 %v5303, %v6225
  %6227 = vmatmul.bf16.gmra.mxu0 %v3747
  %v6228 = vpop.f32.mrf.mxu0
  %v6229 = vadd.f32 %v5306, %v6228
  %v6230 = vpop.f32.mrf.mxu0
  %v6231 = vadd.f32 %v5308, %v6230
  %6232 = vmatmul.bf16.gmra.mxu0 %v3750
  %v6233 = vpop.f32.mrf.mxu0
  %v6234 = vadd.f32 %v5311, %v6233
  %v6235 = vpop.f32.mrf.mxu0
  %v6236 = vadd.f32 %v5313, %v6235
  %6237 = vmatmul.bf16.gmra.mxu0 %v3753
  %v6238 = vpop.f32.mrf.mxu0
  %v6239 = vadd.f32 %v5316, %v6238
  %v6240 = vpop.f32.mrf.mxu0
  %v6241 = vadd.f32 %v5318, %v6240
  %6242 = vmatmul.bf16.gmra.mxu0 %v3756
  %v6243 = vpop.f32.mrf.mxu0
  %v6244 = vadd.f32 %v5321, %v6243
  %v6245 = vpop.f32.mrf.mxu0
  %v6246 = vadd.f32 %v5323, %v6245
  %6247 = vmatmul.bf16.gmra.mxu0 %v3759
  %v6248 = vpop.f32.mrf.mxu0
  %v6249 = vadd.f32 %v5326, %v6248
  %v6250 = vpop.f32.mrf.mxu0
  %v6251 = vadd.f32 %v5328, %v6250
  %6252 = vmatmul.bf16.gmra.mxu0 %v3762
  %v6253 = vpop.f32.mrf.mxu0
  %v6254 = vadd.f32 %v5331, %v6253
  %v6255 = vpop.f32.mrf.mxu0
  %v6256 = vadd.f32 %v5333, %v6255
  %6257 = vmatmul.bf16.gmra.mxu0 %v3765
  %v6258 = vpop.f32.mrf.mxu0
  %v6259 = vadd.f32 %v5336, %v6258
  %v6260 = vpop.f32.mrf.mxu0
  %v6261 = vadd.f32 %v5338, %v6260
  %6262 = vmatmul.bf16.gmra.mxu0 %v3768
  %v6263 = vpop.f32.mrf.mxu0
  %v6264 = vadd.f32 %v5341, %v6263
  %v6265 = vpop.f32.mrf.mxu0
  %v6266 = vadd.f32 %v5343, %v6265
  %6267 = vmatmul.bf16.gmra.mxu0 %v3771
  %v6268 = vpop.f32.mrf.mxu0
  %v6269 = vadd.f32 %v5346, %v6268
  %v6270 = vpop.f32.mrf.mxu0
  %v6271 = vadd.f32 %v5348, %v6270
  %6272 = vmatmul.bf16.gmra.mxu0 %v3774
  %v6273 = vpop.f32.mrf.mxu0
  %v6274 = vadd.f32 %v5351, %v6273
  %v6275 = vpop.f32.mrf.mxu0
  %v6276 = vadd.f32 %v5353, %v6275
  %6277 = vmatmul.bf16.gmra.mxu0 %v3777
  %v6278 = vpop.f32.mrf.mxu0
  %v6279 = vadd.f32 %v5356, %v6278
  %v6280 = vpop.f32.mrf.mxu0
  %v6281 = vadd.f32 %v5358, %v6280
  %6282 = vmatmul.bf16.gmra.mxu0 %v3780
  %v6283 = vpop.f32.mrf.mxu0
  %v6284 = vadd.f32 %v5361, %v6283
  %v6285 = vpop.f32.mrf.mxu0
  %v6286 = vadd.f32 %v5363, %v6285
  %6287 = vmatmul.bf16.gmra.mxu0 %v3783
  %v6288 = vpop.f32.mrf.mxu0
  %v6289 = vadd.f32 %v5366, %v6288
  %v6290 = vpop.f32.mrf.mxu0
  %v6291 = vadd.f32 %v5368, %v6290
  %6292 = vmatmul.bf16.gmra.mxu0 %v3786
  %v6293 = vpop.f32.mrf.mxu0
  %v6294 = vadd.f32 %v5371, %v6293
  %v6295 = vpop.f32.mrf.mxu0
  %v6296 = vadd.f32 %v5373, %v6295
  %6297 = vmatmul.bf16.gmra.mxu0 %v3789
  %v6298 = vpop.f32.mrf.mxu0
  %v6299 = vadd.f32 %v5376, %v6298
  %v6300 = vpop.f32.mrf.mxu0
  %v6301 = vadd.f32 %v5378, %v6300
  %6302 = vmatmul.bf16.gmra.mxu0 %v3792
  %v6303 = vpop.f32.mrf.mxu0
  %v6304 = vadd.f32 %v5381, %v6303
  %v6305 = vpop.f32.mrf.mxu0
  %v6306 = vadd.f32 %v5383, %v6305
  %6307 = vmatmul.bf16.gmra.mxu0 %v3795
  %v6308 = vpop.f32.mrf.mxu0
  %v6309 = vadd.f32 %v5386, %v6308
  %v6310 = vpop.f32.mrf.mxu0
  %v6311 = vadd.f32 %v5388, %v6310
  %6312 = vmatmul.bf16.gmra.mxu0 %v3798
  %v6313 = vpop.f32.mrf.mxu0
  %v6314 = vadd.f32 %v5391, %v6313
  %v6315 = vpop.f32.mrf.mxu0
  %v6316 = vadd.f32 %v5393, %v6315
  %6317 = vmatmul.bf16.gmra.mxu0 %v3801
  %v6318 = vpop.f32.mrf.mxu0
  %v6319 = vadd.f32 %v5396, %v6318
  %v6320 = vpop.f32.mrf.mxu0
  %v6321 = vadd.f32 %v5398, %v6320
  %6322 = vmatmul.bf16.gmra.mxu0 %v3804
  %v6323 = vpop.f32.mrf.mxu0
  %v6324 = vadd.f32 %v5401, %v6323
  %v6325 = vpop.f32.mrf.mxu0
  %v6326 = vadd.f32 %v5403, %v6325
  %6327 = vmatmul.bf16.gmra.mxu0 %v3807
  %v6328 = vpop.f32.mrf.mxu0
  %v6329 = vadd.f32 %v5406, %v6328
  %v6330 = vpop.f32.mrf.mxu0
  %v6331 = vadd.f32 %v5408, %v6330
  %6332 = vmatmul.bf16.gmra.mxu0 %v3810
  %v6333 = vpop.f32.mrf.mxu0
  %v6334 = vadd.f32 %v5411, %v6333
  %v6335 = vpop.f32.mrf.mxu0
  %v6336 = vadd.f32 %v5413, %v6335
  %6337 = vmatmul.bf16.gmra.mxu0 %v3813
  %v6338 = vpop.f32.mrf.mxu0
  %v6339 = vadd.f32 %v5416, %v6338
  %v6340 = vpop.f32.mrf.mxu0
  %v6341 = vadd.f32 %v5418, %v6340
  %6342 = vmatmul.bf16.gmra.mxu0 %v3816
  %v6343 = vpop.f32.mrf.mxu0
  %v6344 = vadd.f32 %v5421, %v6343
  %v6345 = vpop.f32.mrf.mxu0
  %v6346 = vadd.f32 %v5423, %v6345
  %6347 = vmatmul.bf16.gmra.mxu0 %v3819
  %v6348 = vpop.f32.mrf.mxu0
  %v6349 = vadd.f32 %v5426, %v6348
  %v6350 = vpop.f32.mrf.mxu0
  %v6351 = vadd.f32 %v5428, %v6350
  %6352 = vmatmul.bf16.gmra.mxu0 %v3822
  %v6353 = vpop.f32.mrf.mxu0
  %v6354 = vadd.f32 %v5431, %v6353
  %v6355 = vpop.f32.mrf.mxu0
  %v6356 = vadd.f32 %v5433, %v6355
  %6357 = vmatmul.bf16.gmra.mxu0 %v3825
  %v6358 = vpop.f32.mrf.mxu0
  %v6359 = vadd.f32 %v5436, %v6358
  %v6360 = vpop.f32.mrf.mxu0
  %v6361 = vadd.f32 %v5438, %v6360
  %6362 = vmatmul.bf16.gmra.mxu0 %v3828
  %v6363 = vpop.f32.mrf.mxu0
  %v6364 = vadd.f32 %v5441, %v6363
  %v6365 = vpop.f32.mrf.mxu0
  %v6366 = vadd.f32 %v5443, %v6365
  %6367 = vmatmul.bf16.gmra.mxu0 %v3831
  %v6368 = vpop.f32.mrf.mxu0
  %v6369 = vadd.f32 %v5446, %v6368
  %v6370 = vpop.f32.mrf.mxu0
  %v6371 = vadd.f32 %v5448, %v6370
  %6372 = vmatmul.bf16.gmra.mxu0 %v3834
  %v6373 = vpop.f32.mrf.mxu0
  %v6374 = vadd.f32 %v5451, %v6373
  %v6375 = vpop.f32.mrf.mxu0
  %v6376 = vadd.f32 %v5453, %v6375
  %6377 = vmatmul.bf16.gmra.mxu0 %v3837
  %v6378 = vpop.f32.mrf.mxu0
  %v6379 = vadd.f32 %v5456, %v6378
  %v6380 = vpop.f32.mrf.mxu0
  %v6381 = vadd.f32 %v5458, %v6380
  %6382 = vmatmul.bf16.gmra.mxu0 %v3840
  %v6383 = vpop.f32.mrf.mxu0
  %v6384 = vadd.f32 %v5461, %v6383
  %v6385 = vpop.f32.mrf.mxu0
  %v6386 = vadd.f32 %v5463, %v6385
  %6387 = vmatmul.bf16.gmra.mxu0 %v3843
  %v6388 = vpop.f32.mrf.mxu0
  %v6389 = vadd.f32 %v5466, %v6388
  %v6390 = vpop.f32.mrf.mxu0
  %v6391 = vadd.f32 %v5468, %v6390
  %6392 = vmatmul.bf16.gmra.mxu0 %v3846
  %v6393 = vpop.f32.mrf.mxu0
  %v6394 = vadd.f32 %v5471, %v6393
  %v6395 = vpop.f32.mrf.mxu0
  %v6396 = vadd.f32 %v5473, %v6395
  %6397 = vmatmul.bf16.gmra.mxu0 %v3849
  %v6398 = vpop.f32.mrf.mxu0
  %v6399 = vadd.f32 %v5476, %v6398
  %v6400 = vpop.f32.mrf.mxu0
  %v6401 = vadd.f32 %v5478, %v6400
  %6402 = vmatmul.bf16.gmra.mxu0 %v3852
  %v6403 = vpop.f32.mrf.mxu0
  %v6404 = vadd.f32 %v5481, %v6403
  %v6405 = vpop.f32.mrf.mxu0
  %v6406 = vadd.f32 %v5483, %v6405
  %6407 = vmatmul.bf16.gmra.mxu0 %v3855
  %v6408 = vpop.f32.mrf.mxu0
  %v6409 = vadd.f32 %v5486, %v6408
  %v6410 = vpop.f32.mrf.mxu0
  %v6411 = vadd.f32 %v5488, %v6410
  %6412 = vmatmul.bf16.gmra.mxu0 %v3858
  %v6413 = vpop.f32.mrf.mxu0
  %v6414 = vadd.f32 %v5491, %v6413
  %v6415 = vpop.f32.mrf.mxu0
  %v6416 = vadd.f32 %v5493, %v6415
  %6417 = vmatmul.bf16.gmra.mxu0 %v3861
  %v6418 = vpop.f32.mrf.mxu0
  %v6419 = vadd.f32 %v5496, %v6418
  %v6420 = vpop.f32.mrf.mxu0
  %v6421 = vadd.f32 %v5498, %v6420
  %6422 = vmatmul.bf16.gmra.mxu0 %v3864
  %v6423 = vpop.f32.mrf.mxu0
  %v6424 = vadd.f32 %v5501, %v6423
  %v6425 = vpop.f32.mrf.mxu0
  %v6426 = vadd.f32 %v5503, %v6425
  %6427 = vmatmul.bf16.gmra.mxu0 %v3867
  %v6428 = vpop.f32.mrf.mxu0
  %v6429 = vadd.f32 %v5506, %v6428
  %v6430 = vpop.f32.mrf.mxu0
  %v6431 = vadd.f32 %v5508, %v6430
  %6432 = vmatmul.bf16.gmra.mxu0 %v3870
  %v6433 = vpop.f32.mrf.mxu0
  %v6434 = vadd.f32 %v5511, %v6433
  %v6435 = vpop.f32.mrf.mxu0
  %v6436 = vadd.f32 %v5513, %v6435
  %6437 = vmatmul.bf16.gmra.mxu0 %v3873
  %v6438 = vpop.f32.mrf.mxu0
  %v6439 = vadd.f32 %v5516, %v6438
  %v6440 = vpop.f32.mrf.mxu0
  %v6441 = vadd.f32 %v5518, %v6440
  %6442 = vmatmul.bf16.gmra.mxu0 %v3876
  %v6443 = vpop.f32.mrf.mxu0
  %v6444 = vadd.f32 %v5521, %v6443
  %v6445 = vpop.f32.mrf.mxu0
  %v6446 = vadd.f32 %v5523, %v6445
  %6447 = vmatmul.bf16.gmra.mxu0 %v3879
  %v6448 = vpop.f32.mrf.mxu0
  %v6449 = vadd.f32 %v5526, %v6448
  %v6450 = vpop.f32.mrf.mxu0
  %v6451 = vadd.f32 %v5528, %v6450
  %6452 = vmatmul.bf16.gmra.mxu0 %v3882
  %v6453 = vpop.f32.mrf.mxu0
  %v6454 = vadd.f32 %v5531, %v6453
  %v6455 = vpop.f32.mrf.mxu0
  %v6456 = vadd.f32 %v5533, %v6455
  %6457 = vmatmul.bf16.gmra.mxu0 %v3885
  %v6458 = vpop.f32.mrf.mxu0
  %v6459 = vadd.f32 %v5536, %v6458
  %v6460 = vpop.f32.mrf.mxu0
  %v6461 = vadd.f32 %v5538, %v6460
  %6462 = vmatmul.bf16.gmra.mxu0 %v3888
  %v6463 = vpop.f32.mrf.mxu0
  %v6464 = vadd.f32 %v5541, %v6463
  %v6465 = vpop.f32.mrf.mxu0
  %v6466 = vadd.f32 %v5543, %v6465
  %6467 = vmatmul.bf16.gmra.mxu0 %v3891
  %v6468 = vpop.f32.mrf.mxu0
  %v6469 = vadd.f32 %v5546, %v6468
  %v6470 = vpop.f32.mrf.mxu0
  %v6471 = vadd.f32 %v5548, %v6470
  %6472 = vmatmul.bf16.gmra.mxu0 %v3894
  %v6473 = vpop.f32.mrf.mxu0
  %v6474 = vadd.f32 %v5551, %v6473
  %v6475 = vpop.f32.mrf.mxu0
  %v6476 = vadd.f32 %v5553, %v6475
  %6477 = vmatmul.bf16.gmra.mxu0 %v3897
  %v6478 = vpop.f32.mrf.mxu0
  %v6479 = vadd.f32 %v5556, %v6478
  %v6480 = vpop.f32.mrf.mxu0
  %v6481 = vadd.f32 %v5558, %v6480
  %6482 = vmatmul.bf16.gmra.mxu0 %v3900
  %v6483 = vpop.f32.mrf.mxu0
  %v6484 = vadd.f32 %v5561, %v6483
  %v6485 = vpop.f32.mrf.mxu0
  %v6486 = vadd.f32 %v5563, %v6485
  %6487 = vmatmul.bf16.gmra.mxu0 %v3903
  %v6488 = vpop.f32.mrf.mxu0
  %v6489 = vadd.f32 %v5566, %v6488
  %v6490 = vpop.f32.mrf.mxu0
  %v6491 = vadd.f32 %v5568, %v6490
  %6492 = vmatmul.bf16.gmra.mxu0 %v3906
  %v6493 = vpop.f32.mrf.mxu0
  %v6494 = vadd.f32 %v5571, %v6493
  %v6495 = vpop.f32.mrf.mxu0
  %v6496 = vadd.f32 %v5573, %v6495
  %6497 = vmatmul.bf16.gmra.mxu0 %v3909
  %v6498 = vpop.f32.mrf.mxu0
  %v6499 = vadd.f32 %v5576, %v6498
  %v6500 = vpop.f32.mrf.mxu0
  %v6501 = vadd.f32 %v5578, %v6500
  %6502 = vmatmul.bf16.gmra.mxu0 %v3912
  %v6503 = vpop.f32.mrf.mxu0
  %v6504 = vadd.f32 %v5581, %v6503
  %v6505 = vpop.f32.mrf.mxu0
  %v6506 = vadd.f32 %v5583, %v6505
  %6507 = vmatmul.bf16.gmra.mxu0 %v3915
  %v6508 = vpop.f32.mrf.mxu0
  %v6509 = vadd.f32 %v5586, %v6508
  %v6510 = vpop.f32.mrf.mxu0
  %v6511 = vadd.f32 %v5588, %v6510
  %6512 = vmatmul.bf16.gmra.mxu0 %v3918
  %v6513 = vpop.f32.mrf.mxu0
  %v6514 = vadd.f32 %v5591, %v6513
  %v6515 = vpop.f32.mrf.mxu0
  %v6516 = vadd.f32 %v5593, %v6515
  %6517 = vmatmul.bf16.gmra.mxu0 %v3921
  %v6518 = vpop.f32.mrf.mxu0
  %v6519 = vadd.f32 %v5596, %v6518
  %v6520 = vpop.f32.mrf.mxu0
  %v6521 = vadd.f32 %v5598, %v6520
  %6522 = vmatmul.bf16.gmra.mxu0 %v3924
  %v6523 = vpop.f32.mrf.mxu0
  %v6524 = vadd.f32 %v5601, %v6523
  %v6525 = vpop.f32.mrf.mxu0
  %v6526 = vadd.f32 %v5603, %v6525
  %6527 = vmatmul.bf16.gmra.mxu0 %v3927
  %v6528 = vpop.f32.mrf.mxu0
  %v6529 = vadd.f32 %v5606, %v6528
  %v6530 = vpop.f32.mrf.mxu0
  %v6531 = vadd.f32 %v5608, %v6530
  %6532 = vmatmul.bf16.gmra.mxu0 %v3930
  %v6533 = vpop.f32.mrf.mxu0
  %v6534 = vadd.f32 %v5611, %v6533
  %v6535 = vpop.f32.mrf.mxu0
  %v6536 = vadd.f32 %v5613, %v6535
  %6537 = vmatmul.bf16.gmra.mxu0 %v3933
  %v6538 = vpop.f32.mrf.mxu0
  %v6539 = vadd.f32 %v5616, %v6538
  %v6540 = vpop.f32.mrf.mxu0
  %v6541 = vadd.f32 %v5618, %v6540
  %6542 = vmatmul.bf16.gmra.mxu0 %v3936
  %v6543 = vpop.f32.mrf.mxu0
  %v6544 = vadd.f32 %v5621, %v6543
  %v6545 = vpop.f32.mrf.mxu0
  %v6546 = vadd.f32 %v5623, %v6545
  %6547 = vmatmul.bf16.gmra.mxu0 %v3939
  %v6548 = vpop.f32.mrf.mxu0
  %v6549 = vadd.f32 %v5626, %v6548
  %v6550 = vpop.f32.mrf.mxu0
  %v6551 = vadd.f32 %v5628, %v6550
  %6552 = vmatmul.bf16.gmra.mxu0 %v3942
  %v6553 = vpop.f32.mrf.mxu0
  %v6554 = vadd.f32 %v5631, %v6553
  %v6555 = vpop.f32.mrf.mxu0
  %v6556 = vadd.f32 %v5633, %v6555
  %6557 = vmatmul.bf16.gmra.mxu0 %v3945
  %v6558 = vpop.f32.mrf.mxu0
  %v6559 = vadd.f32 %v5636, %v6558
  %v6560 = vpop.f32.mrf.mxu0
  %v6561 = vadd.f32 %v5638, %v6560
  %6562 = vmatmul.bf16.gmra.mxu0 %v3948
  %v6563 = vpop.f32.mrf.mxu0
  %v6564 = vadd.f32 %v5641, %v6563
  %v6565 = vpop.f32.mrf.mxu0
  %v6566 = vadd.f32 %v5643, %v6565
  %6567 = vmatmul.bf16.gmra.mxu0 %v3951
  %v6568 = vpop.f32.mrf.mxu0
  %v6569 = vadd.f32 %v5646, %v6568
  %v6570 = vpop.f32.mrf.mxu0
  %v6571 = vadd.f32 %v5648, %v6570
  %6572 = vmatmul.bf16.gmra.mxu0 %v3954
  %v6573 = vpop.f32.mrf.mxu0
  %v6574 = vadd.f32 %v5651, %v6573
  %v6575 = vpop.f32.mrf.mxu0
  %v6576 = vadd.f32 %v5653, %v6575
  %6577 = vmatmul.bf16.gmra.mxu0 %v3957
  %v6578 = vpop.f32.mrf.mxu0
  %v6579 = vadd.f32 %v5656, %v6578
  %v6580 = vpop.f32.mrf.mxu0
  %v6581 = vadd.f32 %v5658, %v6580
  %6582 = vmatmul.bf16.gmra.mxu0 %v3960
  %v6583 = vpop.f32.mrf.mxu0
  %v6584 = vadd.f32 %v5661, %v6583
  %v6585 = vpop.f32.mrf.mxu0
  %v6586 = vadd.f32 %v5663, %v6585
  %6587 = vmatmul.bf16.gmra.mxu0 %v3963
  %v6588 = vpop.f32.mrf.mxu0
  %v6589 = vadd.f32 %v5666, %v6588
  %v6590 = vpop.f32.mrf.mxu0
  %v6591 = vadd.f32 %v5668, %v6590
  %6592 = vmatmul.bf16.gmra.mxu0 %v3966
  %v6593 = vpop.f32.mrf.mxu0
  %v6594 = vadd.f32 %v5671, %v6593
  %v6595 = vpop.f32.mrf.mxu0
  %v6596 = vadd.f32 %v5673, %v6595
  %6597 = vmatmul.bf16.gmra.mxu0 %v3969
  %v6598 = vpop.f32.mrf.mxu0
  %v6599 = vadd.f32 %v5676, %v6598
  %v6600 = vpop.f32.mrf.mxu0
  %v6601 = vadd.f32 %v5678, %v6600
  %6602 = vmatmul.bf16.gmra.mxu0 %v3972
  %v6603 = vpop.f32.mrf.mxu0
  %v6604 = vadd.f32 %v5681, %v6603
  %v6605 = vpop.f32.mrf.mxu0
  %v6606 = vadd.f32 %v5683, %v6605
  %6607 = vmatmul.bf16.gmra.mxu0 %v3975
  %v6608 = vpop.f32.mrf.mxu0
  %v6609 = vadd.f32 %v5686, %v6608
  %v6610 = vpop.f32.mrf.mxu0
  %v6611 = vadd.f32 %v5688, %v6610
  %6612 = vmatmul.bf16.gmra.mxu0 %v3978
  %v6613 = vpop.f32.mrf.mxu0
  %v6614 = vadd.f32 %v5691, %v6613
  %v6615 = vpop.f32.mrf.mxu0
  %v6616 = vadd.f32 %v5693, %v6615
  %6617 = vmatmul.bf16.gmra.mxu0 %v3981
  %v6618 = vpop.f32.mrf.mxu0
  %v6619 = vadd.f32 %v5696, %v6618
  %v6620 = vpop.f32.mrf.mxu0
  %v6621 = vadd.f32 %v5698, %v6620
  %6622 = vmatmul.bf16.gmra.mxu0 %v3984
  %v6623 = vpop.f32.mrf.mxu0
  %v6624 = vadd.f32 %v5701, %v6623
  %v6625 = vpop.f32.mrf.mxu0
  %v6626 = vadd.f32 %v5703, %v6625
  %6627 = vmatmul.bf16.gmra.mxu0 %v3987
  %v6628 = vpop.f32.mrf.mxu0
  %v6629 = vadd.f32 %v5706, %v6628
  %v6630 = vpop.f32.mrf.mxu0
  %v6631 = vadd.f32 %v5708, %v6630
  %6632 = vmatmul.bf16.gmra.mxu0 %v3990
  %v6633 = vpop.f32.mrf.mxu0
  %v6634 = vadd.f32 %v5711, %v6633
  %v6635 = vpop.f32.mrf.mxu0
  %v6636 = vadd.f32 %v5713, %v6635
  %6637 = vmatmul.bf16.gmra.mxu0 %v3993
  %v6638 = vpop.f32.mrf.mxu0
  %v6639 = vadd.f32 %v5716, %v6638
  %v6640 = vpop.f32.mrf.mxu0
  %v6641 = vadd.f32 %v5718, %v6640
  %6642 = vmatmul.bf16.gmra.mxu0 %v3996
  %v6643 = vpop.f32.mrf.mxu0
  %v6644 = vadd.f32 %v5721, %v6643
  %v6645 = vpop.f32.mrf.mxu0
  %v6646 = vadd.f32 %v5723, %v6645
  %6647 = vmatmul.bf16.gmra.mxu0 %v3999
  %v6648 = vpop.f32.mrf.mxu0
  %v6649 = vadd.f32 %v5726, %v6648
  %v6650 = vpop.f32.mrf.mxu0
  %v6651 = vadd.f32 %v5728, %v6650
  %6652 = vmatmul.bf16.gmra.mxu0 %v4002
  %v6653 = vpop.f32.mrf.mxu0
  %v6654 = vadd.f32 %v5731, %v6653
  %v6655 = vpop.f32.mrf.mxu0
  %v6656 = vadd.f32 %v5733, %v6655
  %6657 = vmatmul.bf16.gmra.mxu0 %v4005
  %v6658 = vpop.f32.mrf.mxu0
  %v6659 = vadd.f32 %v5736, %v6658
  %v6660 = vpop.f32.mrf.mxu0
  %v6661 = vadd.f32 %v5738, %v6660
  %6662 = vmatmul.bf16.gmra.mxu0 %v4008
  %v6663 = vpop.f32.mrf.mxu0
  %v6664 = vadd.f32 %v5741, %v6663
  %v6665 = vpop.f32.mrf.mxu0
  %v6666 = vadd.f32 %v5743, %v6665
  %6667 = vmatmul.bf16.gmra.mxu0 %v4011
  %v6668 = vpop.f32.mrf.mxu0
  %v6669 = vadd.f32 %v5746, %v6668
  %v6670 = vpop.f32.mrf.mxu0
  %v6671 = vadd.f32 %v5748, %v6670
  %6672 = vmatmul.bf16.gmra.mxu0 %v4014
  %v6673 = vpop.f32.mrf.mxu0
  %v6674 = vadd.f32 %v5751, %v6673
  %v6675 = vpop.f32.mrf.mxu0
  %v6676 = vadd.f32 %v5753, %v6675
  %6677 = vmatmul.bf16.gmra.mxu0 %v4017
  %v6678 = vpop.f32.mrf.mxu0
  %v6679 = vadd.f32 %v5756, %v6678
  %v6680 = vpop.f32.mrf.mxu0
  %v6681 = vadd.f32 %v5758, %v6680
  %6682 = vmatmul.bf16.gmra.mxu0 %v4020
  %v6683 = vpop.f32.mrf.mxu0
  %v6684 = vadd.f32 %v5761, %v6683
  %v6685 = vpop.f32.mrf.mxu0
  %v6686 = vadd.f32 %v5763, %v6685
  %6687 = vmatmul.bf16.gmra.mxu0 %v4023
  %v6688 = vpop.f32.mrf.mxu0
  %v6689 = vadd.f32 %v5766, %v6688
  %v6690 = vpop.f32.mrf.mxu0
  %v6691 = vadd.f32 %v5768, %v6690
  %6692 = vmatmul.bf16.gmra.mxu0 %v4026
  %v6693 = vpop.f32.mrf.mxu0
  %v6694 = vadd.f32 %v5771, %v6693
  %v6695 = vpop.f32.mrf.mxu0
  %v6696 = vadd.f32 %v5773, %v6695
  %6697 = vmatmul.bf16.gmra.mxu0 %v4029
  %v6698 = vpop.f32.mrf.mxu0
  %v6699 = vadd.f32 %v5776, %v6698
  %v6700 = vpop.f32.mrf.mxu0
  %v6701 = vadd.f32 %v5778, %v6700
  %6702 = vmatmul.bf16.gmra.mxu0 %v4032
  %v6703 = vpop.f32.mrf.mxu0
  %v6704 = vadd.f32 %v5781, %v6703
  %v6705 = vpop.f32.mrf.mxu0
  %v6706 = vadd.f32 %v5783, %v6705
  %6707 = vmatmul.bf16.gmra.mxu0 %v4035
  %v6708 = vpop.f32.mrf.mxu0
  %v6709 = vadd.f32 %v5786, %v6708
  %v6710 = vpop.f32.mrf.mxu0
  %v6711 = vadd.f32 %v5788, %v6710
  %6712 = vmatmul.bf16.gmra.mxu0 %v4038
  %v6713 = vpop.f32.mrf.mxu0
  %v6714 = vadd.f32 %v5791, %v6713
  %v6715 = vpop.f32.mrf.mxu0
  %v6716 = vadd.f32 %v5793, %v6715
  %6717 = vmatmul.bf16.gmra.mxu0 %v4041
  %v6718 = vpop.f32.mrf.mxu0
  %v6719 = vadd.f32 %v5796, %v6718
  %v6720 = vpop.f32.mrf.mxu0
  %v6721 = vadd.f32 %v5798, %v6720
  %6722 = vmatmul.bf16.gmra.mxu0 %v4044
  %v6723 = vpop.f32.mrf.mxu0
  %v6724 = vadd.f32 %v5801, %v6723
  %v6725 = vpop.f32.mrf.mxu0
  %v6726 = vadd.f32 %v5803, %v6725
  %6727 = vmatmul.bf16.gmra.mxu0 %v4047
  %v6728 = vpop.f32.mrf.mxu0
  %v6729 = vadd.f32 %v5806, %v6728
  %v6730 = vpop.f32.mrf.mxu0
  %v6731 = vadd.f32 %v5808, %v6730
  %6732 = vmatmul.bf16.gmra.mxu0 %v4050
  %v6733 = vpop.f32.mrf.mxu0
  %v6734 = vadd.f32 %v5811, %v6733
  %v6735 = vpop.f32.mrf.mxu0
  %v6736 = vadd.f32 %v5813, %v6735
  %6737 = vmatmul.bf16.gmra.mxu0 %v4053
  %v6738 = vpop.f32.mrf.mxu0
  %v6739 = vadd.f32 %v5816, %v6738
  %v6740 = vpop.f32.mrf.mxu0
  %v6741 = vadd.f32 %v5818, %v6740
  %6742 = vmatmul.bf16.gmra.mxu0 %v4056
  %v6743 = vpop.f32.mrf.mxu0
  %v6744 = vadd.f32 %v5821, %v6743
  %v6745 = vpop.f32.mrf.mxu0
  %v6746 = vadd.f32 %v5823, %v6745
  %6747 = vmatmul.bf16.gmra.mxu0 %v4059
  %v6748 = vpop.f32.mrf.mxu0
  %v6749 = vadd.f32 %v5826, %v6748
  %v6750 = vpop.f32.mrf.mxu0
  %v6751 = vadd.f32 %v5828, %v6750
  %6752 = vmatmul.bf16.gmra.mxu0 %v4062
  %v6753 = vpop.f32.mrf.mxu0
  %v6754 = vadd.f32 %v5831, %v6753
  %v6755 = vpop.f32.mrf.mxu0
  %v6756 = vadd.f32 %v5833, %v6755
  %6757 = vmatmul.bf16.gmra.mxu0 %v4065
  %v6758 = vpop.f32.mrf.mxu0
  %v6759 = vadd.f32 %v5836, %v6758
  %v6760 = vpop.f32.mrf.mxu0
  %v6761 = vadd.f32 %v5838, %v6760
  %6762 = vmatmul.bf16.gmra.mxu0 %v4068
  %v6763 = vpop.f32.mrf.mxu0
  %v6764 = vadd.f32 %v5841, %v6763
  %v6765 = vpop.f32.mrf.mxu0
  %v6766 = vadd.f32 %v5843, %v6765
  %6767 = vmatmul.bf16.gmra.mxu0 %v4071
  %v6768 = vpop.f32.mrf.mxu0
  %v6769 = vadd.f32 %v5846, %v6768
  %v6770 = vpop.f32.mrf.mxu0
  %v6771 = vadd.f32 %v5848, %v6770
  %6772 = vmatmul.bf16.gmra.mxu0 %v4074
  %v6773 = vpop.f32.mrf.mxu0
  %v6774 = vadd.f32 %v5851, %v6773
  %v6775 = vpop.f32.mrf.mxu0
  %v6776 = vadd.f32 %v5853, %v6775
  %6777 = vmatmul.bf16.gmra.mxu0 %v4077
  %v6778 = vpop.f32.mrf.mxu0
  %v6779 = vadd.f32 %v5856, %v6778
  %v6780 = vpop.f32.mrf.mxu0
  %v6781 = vadd.f32 %v5858, %v6780
  %6782 = vmatmul.bf16.gmra.mxu0 %v4080
  %v6783 = vpop.f32.mrf.mxu0
  %v6784 = vadd.f32 %v5861, %v6783
  %v6785 = vpop.f32.mrf.mxu0
  %v6786 = vadd.f32 %v5863, %v6785
  %6787 = vmatmul.bf16.gmra.mxu0 %v4083
  %v6788 = vpop.f32.mrf.mxu0
  %v6789 = vadd.f32 %v5866, %v6788
  %v6790 = vpop.f32.mrf.mxu0
  %v6791 = vadd.f32 %v5868, %v6790
  %6792 = vmatmul.bf16.gmra.mxu0 %v4086
  %v6793 = vpop.f32.mrf.mxu0
  %v6794 = vadd.f32 %v5871, %v6793
  %v6795 = vpop.f32.mrf.mxu0
  %v6796 = vadd.f32 %v5873, %v6795
  %6797 = vmatmul.bf16.gmra.mxu0 %v4089
  %v6798 = vpop.f32.mrf.mxu0
  %v6799 = vadd.f32 %v5876, %v6798
  %v6800 = vpop.f32.mrf.mxu0
  %v6801 = vadd.f32 %v5878, %v6800
  %6802 = vmatmul.bf16.gmra.mxu0 %v4092
  %v6803 = vpop.f32.mrf.mxu0
  %v6804 = vadd.f32 %v5881, %v6803
  %v6805 = vpop.f32.mrf.mxu0
  %v6806 = vadd.f32 %v5883, %v6805
  %6807 = vmatmul.bf16.gmra.mxu0 %v4095
  %v6808 = vpop.f32.mrf.mxu0
  %v6809 = vadd.f32 %v5886, %v6808
  %v6810 = vpop.f32.mrf.mxu0
  %v6811 = vadd.f32 %v5888, %v6810
  %6812 = vmatmul.bf16.gmra.mxu0 %v4098
  %v6813 = vpop.f32.mrf.mxu0
  %v6814 = vadd.f32 %v5891, %v6813
  %v6815 = vpop.f32.mrf.mxu0
  %v6816 = vadd.f32 %v5893, %v6815
  %6817 = vmatmul.bf16.gmra.mxu0 %v4101
  %v6818 = vpop.f32.mrf.mxu0
  %v6819 = vadd.f32 %v5896, %v6818
  %v6820 = vpop.f32.mrf.mxu0
  %v6821 = vadd.f32 %v5898, %v6820
  %6822 = vmatmul.bf16.gmra.mxu0 %v4104
  %v6823 = vpop.f32.mrf.mxu0
  %v6824 = vadd.f32 %v5901, %v6823
  %v6825 = vpop.f32.mrf.mxu0
  %v6826 = vadd.f32 %v5903, %v6825
  %6827 = vmatmul.bf16.gmra.mxu0 %v4107
  %v6828 = vpop.f32.mrf.mxu0
  %v6829 = vadd.f32 %v5906, %v6828
  %v6830 = vpop.f32.mrf.mxu0
  %v6831 = vadd.f32 %v5908, %v6830
  %6832 = vmatmul.bf16.gmra.mxu0 %v4110
  %v6833 = vpop.f32.mrf.mxu0
  %v6834 = vadd.f32 %v5911, %v6833
  %v6835 = vpop.f32.mrf.mxu0
  %v6836 = vadd.f32 %v5913, %v6835
  %6837 = vmatmul.bf16.gmra.mxu0 %v4113
  %v6838 = vpop.f32.mrf.mxu0
  %v6839 = vadd.f32 %v5916, %v6838
  %v6840 = vpop.f32.mrf.mxu0
  %v6841 = vadd.f32 %v5918, %v6840
  %6842 = vmatmul.bf16.gmra.mxu0 %v4116
  %v6843 = vpop.f32.mrf.mxu0
  %v6844 = vadd.f32 %v5921, %v6843
  %v6845 = vpop.f32.mrf.mxu0
  %v6846 = vadd.f32 %v5923, %v6845
  %6847 = vmatmul.bf16.gmra.mxu0 %v4119
  %v6848 = vpop.f32.mrf.mxu0
  %v6849 = vadd.f32 %v5926, %v6848
  %v6850 = vpop.f32.mrf.mxu0
  %v6851 = vadd.f32 %v5928, %v6850
  %6852 = vmatmul.bf16.gmra.mxu0 %v4122
  %v6853 = vpop.f32.mrf.mxu0
  %v6854 = vadd.f32 %v5931, %v6853
  %v6855 = vpop.f32.mrf.mxu0
  %v6856 = vadd.f32 %v5933, %v6855
  %6857 = vmatmul.bf16.gmra.mxu0 %v4125
  %v6858 = vpop.f32.mrf.mxu0
  %v6859 = vadd.f32 %v5936, %v6858
  %v6860 = vpop.f32.mrf.mxu0
  %v6861 = vadd.f32 %v5938, %v6860
  %6862 = vmatmul.bf16.gmra.mxu0 %v4128
  %v6863 = vpop.f32.mrf.mxu0
  %v6864 = vadd.f32 %v5941, %v6863
  %v6865 = vpop.f32.mrf.mxu0
  %v6866 = vadd.f32 %v5943, %v6865
  %6867 = vmatmul.bf16.gmra.mxu0 %v4131
  %v6868 = vpop.f32.mrf.mxu0
  %v6869 = vadd.f32 %v5946, %v6868
  %v6870 = vpop.f32.mrf.mxu0
  %v6871 = vadd.f32 %v5948, %v6870
  %6872 = vmatmul.bf16.gmra.mxu0 %v4134
  %v6873 = vpop.f32.mrf.mxu0
  %v6874 = vadd.f32 %v5951, %v6873
  %v6875 = vpop.f32.mrf.mxu0
  %v6876 = vadd.f32 %v5953, %v6875
  %6877 = vmatmul.bf16.gmra.mxu0 %v4137
  %v6878 = vpop.f32.mrf.mxu0
  %v6879 = vadd.f32 %v5956, %v6878
  %v6880 = vpop.f32.mrf.mxu0
  %v6881 = vadd.f32 %v5958, %v6880
  %6882 = vmatmul.bf16.gmra.mxu0 %v4140
  %v6883 = vpop.f32.mrf.mxu0
  %v6884 = vadd.f32 %v5961, %v6883
  %v6885 = vpop.f32.mrf.mxu0
  %v6886 = vadd.f32 %v5963, %v6885
  %6887 = vmatmul.bf16.gmra.mxu0 %v4143
  %v6888 = vpop.f32.mrf.mxu0
  %v6889 = vadd.f32 %v5966, %v6888
  %v6890 = vpop.f32.mrf.mxu0
  %v6891 = vadd.f32 %v5968, %v6890
  %6892 = vmatmul.bf16.gmra.mxu0 %v4146
  %v6893 = vpop.f32.mrf.mxu0
  %v6894 = vadd.f32 %v5971, %v6893
  %v6895 = vpop.f32.mrf.mxu0
  %v6896 = vadd.f32 %v5973, %v6895
  %6897 = vmatmul.bf16.gmra.mxu0 %v4149
  %v6898 = vpop.f32.mrf.mxu0
  %v6899 = vadd.f32 %v5976, %v6898
  %v6900 = vpop.f32.mrf.mxu0
  %v6901 = vadd.f32 %v5978, %v6900
  %6902 = vmatmul.bf16.gmra.mxu0 %v4152
  %v6903 = vpop.f32.mrf.mxu0
  %v6904 = vadd.f32 %v5981, %v6903
  %v6905 = vpop.f32.mrf.mxu0
  %v6906 = vadd.f32 %v5983, %v6905
  %6907 = vmatmul.bf16.gmra.mxu0 %v4155
  %v6908 = vpop.f32.mrf.mxu0
  %v6909 = vadd.f32 %v5986, %v6908
  %v6910 = vpop.f32.mrf.mxu0
  %v6911 = vadd.f32 %v5988, %v6910
  %6912 = vmatmul.bf16.gmra.mxu0 %v4158
  %v6913 = vpop.f32.mrf.mxu0
  %v6914 = vadd.f32 %v5991, %v6913
  %v6915 = vpop.f32.mrf.mxu0
  %v6916 = vadd.f32 %v5993, %v6915
  %6917 = vmatmul.bf16.gmra.mxu0 %v4161
  %v6918 = vpop.f32.mrf.mxu0
  %v6919 = vadd.f32 %v5996, %v6918
  %v6920 = vpop.f32.mrf.mxu0
  %v6921 = vadd.f32 %v5998, %v6920
  %6922 = vmatmul.bf16.gmra.mxu0 %v4164
  %v6923 = vpop.f32.mrf.mxu0
  %v6924 = vadd.f32 %v6001, %v6923
  %v6925 = vpop.f32.mrf.mxu0
  %v6926 = vadd.f32 %v6003, %v6925
  %6927 = vmatmul.bf16.gmra.mxu0 %v4167
  %v6928 = vpop.f32.mrf.mxu0
  %v6929 = vadd.f32 %v6006, %v6928
  %v6930 = vpop.f32.mrf.mxu0
  %v6931 = vadd.f32 %v6008, %v6930
  %6932 = vmatmul.bf16.gmra.mxu0 %v4170
  %v6933 = vpop.f32.mrf.mxu0
  %v6934 = vadd.f32 %v6011, %v6933
  %v6935 = vpop.f32.mrf.mxu0
  %v6936 = vadd.f32 %v6013, %v6935
  %6937 = vmatmul.bf16.gmra.mxu0 %v4173
  %v6938 = vpop.f32.mrf.mxu0
  %v6939 = vadd.f32 %v6016, %v6938
  %v6940 = vpop.f32.mrf.mxu0
  %v6941 = vadd.f32 %v6018, %v6940
  %6942 = vmatmul.bf16.gmra.mxu0 %v4176
  %v6943 = vpop.f32.mrf.mxu0
  %v6944 = vadd.f32 %v6021, %v6943
  %v6945 = vpop.f32.mrf.mxu0
  %v6946 = vadd.f32 %v6023, %v6945
  %6947 = vmatmul.bf16.gmra.mxu0 %v4179
  %v6948 = vpop.f32.mrf.mxu0
  %v6949 = vadd.f32 %v6026, %v6948
  %v6950 = vpop.f32.mrf.mxu0
  %v6951 = vadd.f32 %v6028, %v6950
  %6952 = vmatmul.bf16.gmra.mxu0 %v4182
  %v6953 = vpop.f32.mrf.mxu0
  %v6954 = vadd.f32 %v6031, %v6953
  %v6955 = vpop.f32.mrf.mxu0
  %v6956 = vadd.f32 %v6033, %v6955
  %6957 = vmatmul.bf16.gmra.mxu0 %v4185
  %v6958 = vpop.f32.mrf.mxu0
  %v6959 = vadd.f32 %v6036, %v6958
  %v6960 = vpop.f32.mrf.mxu0
  %6961 = vdwg.mxu0
  %vm6962 = vcmask 31744
  %6963 = vst.msk [vmem:[%s3] sm:$0xff] %vm6962, %v6049
  %6964 = vst.msk [vmem:[%s3 + $0x8] sm:$0xff] %vm6962, %v6051
  %6965 = vst.msk [vmem:[%s3 + $0x10] sm:$0xff] %vm6962, %v6054
  %6966 = vst.msk [vmem:[%s3 + $0x18] sm:$0xff] %vm6962, %v6056
  %6967 = vst.msk [vmem:[%s3 + $0x20] sm:$0xff] %vm6962, %v6059
  %6968 = vst.msk [vmem:[%s3 + $0x28] sm:$0xff] %vm6962, %v6061
  %6969 = vst.msk [vmem:[%s3 + $0x30] sm:$0xff] %vm6962, %v6064
  %6970 = vst.msk [vmem:[%s3 + $0x38] sm:$0xff] %vm6962, %v6066
  %6971 = vst.msk [vmem:[%s3 + $0x40] sm:$0xff] %vm6962, %v6069
  %6972 = vst.msk [vmem:[%s3 + $0x48] sm:$0xff] %vm6962, %v6071
  %6973 = vst.msk [vmem:[%s3 + $0x50] sm:$0xff] %vm6962, %v6074
  %6974 = vst.msk [vmem:[%s3 + $0x58] sm:$0xff] %vm6962, %v6076
  %6975 = vst.msk [vmem:[%s3 + $0x60] sm:$0xff] %vm6962, %v6079
  %6976 = vst.msk [vmem:[%s3 + $0x68] sm:$0xff] %vm6962, %v6081
  %6977 = vst.msk [vmem:[%s3 + $0x70] sm:$0xff] %vm6962, %v6084
  %6978 = vst.msk [vmem:[%s3 + $0x78] sm:$0xff] %vm6962, %v6086
  %6979 = vst.msk [vmem:[%s3 + $0x80] sm:$0xff] %vm6962, %v6089
  %6980 = vst.msk [vmem:[%s3 + $0x88] sm:$0xff] %vm6962, %v6091
  %6981 = vst.msk [vmem:[%s3 + $0x90] sm:$0xff] %vm6962, %v6094
  %6982 = vst.msk [vmem:[%s3 + $0x98] sm:$0xff] %vm6962, %v6096
  %6983 = vst.msk [vmem:[%s3 + $0xa0] sm:$0xff] %vm6962, %v6099
  %6984 = vst.msk [vmem:[%s3 + $0xa8] sm:$0xff] %vm6962, %v6101
  %6985 = vst.msk [vmem:[%s3 + $0xb0] sm:$0xff] %vm6962, %v6104
  %6986 = vst.msk [vmem:[%s3 + $0xb8] sm:$0xff] %vm6962, %v6106
  %6987 = vst.msk [vmem:[%s3 + $0xc0] sm:$0xff] %vm6962, %v6109
  %6988 = vst.msk [vmem:[%s3 + $0xc8] sm:$0xff] %vm6962, %v6111
  %6989 = vst.msk [vmem:[%s3 + $0xd0] sm:$0xff] %vm6962, %v6114
  %6990 = vst.msk [vmem:[%s3 + $0xd8] sm:$0xff] %vm6962, %v6116
  %6991 = vst.msk [vmem:[%s3 + $0xe0] sm:$0xff] %vm6962, %v6119
  %6992 = vst.msk [vmem:[%s3 + $0xe8] sm:$0xff] %vm6962, %v6121
  %6993 = vst.msk [vmem:[%s3 + $0xf0] sm:$0xff] %vm6962, %v6124
  %6994 = vst.msk [vmem:[%s3 + $0xf8] sm:$0xff] %vm6962, %v6126
  %6995 = vst.msk [vmem:[%s3 + $0x100] sm:$0xff] %vm6962, %v6129
  %6996 = vst.msk [vmem:[%s3 + $0x108] sm:$0xff] %vm6962, %v6131
  %6997 = vst.msk [vmem:[%s3 + $0x110] sm:$0xff] %vm6962, %v6134
  %6998 = vst.msk [vmem:[%s3 + $0x118] sm:$0xff] %vm6962, %v6136
  %6999 = vst.msk [vmem:[%s3 + $0x120] sm:$0xff] %vm6962, %v6139
  %7000 = vst.msk [vmem:[%s3 + $0x128] sm:$0xff] %vm6962, %v6141
  %7001 = vst.msk [vmem:[%s3 + $0x130] sm:$0xff] %vm6962, %v6144
  %7002 = vst.msk [vmem:[%s3 + $0x138] sm:$0xff] %vm6962, %v6146
  %7003 = vst.msk [vmem:[%s3 + $0x140] sm:$0xff] %vm6962, %v6149
  %7004 = vst.msk [vmem:[%s3 + $0x148] sm:$0xff] %vm6962, %v6151
  %7005 = vst.msk [vmem:[%s3 + $0x150] sm:$0xff] %vm6962, %v6154
  %7006 = vst.msk [vmem:[%s3 + $0x158] sm:$0xff] %vm6962, %v6156
  %7007 = vst.msk [vmem:[%s3 + $0x160] sm:$0xff] %vm6962, %v6159
  %7008 = vst.msk [vmem:[%s3 + $0x168] sm:$0xff] %vm6962, %v6161
  %7009 = vst.msk [vmem:[%s3 + $0x170] sm:$0xff] %vm6962, %v6164
  %7010 = vst.msk [vmem:[%s3 + $0x178] sm:$0xff] %vm6962, %v6166
  %7011 = vst.msk [vmem:[%s3 + $0x180] sm:$0xff] %vm6962, %v6169
  %7012 = vst.msk [vmem:[%s3 + $0x188] sm:$0xff] %vm6962, %v6171
  %7013 = vst.msk [vmem:[%s3 + $0x190] sm:$0xff] %vm6962, %v6174
  %7014 = vst.msk [vmem:[%s3 + $0x198] sm:$0xff] %vm6962, %v6176
  %7015 = vst.msk [vmem:[%s3 + $0x1a0] sm:$0xff] %vm6962, %v6179
  %7016 = vst.msk [vmem:[%s3 + $0x1a8] sm:$0xff] %vm6962, %v6181
  %7017 = vst.msk [vmem:[%s3 + $0x1b0] sm:$0xff] %vm6962, %v6184
  %7018 = vst.msk [vmem:[%s3 + $0x1b8] sm:$0xff] %vm6962, %v6186
  %7019 = vst.msk [vmem:[%s3 + $0x1c0] sm:$0xff] %vm6962, %v6189
  %7020 = vst.msk [vmem:[%s3 + $0x1c8] sm:$0xff] %vm6962, %v6191
  %7021 = vst.msk [vmem:[%s3 + $0x1d0] sm:$0xff] %vm6962, %v6194
  %7022 = vst.msk [vmem:[%s3 + $0x1d8] sm:$0xff] %vm6962, %v6196
  %7023 = vst.msk [vmem:[%s3 + $0x1e0] sm:$0xff] %vm6962, %v6199
  %7024 = vst.msk [vmem:[%s3 + $0x1e8] sm:$0xff] %vm6962, %v6201
  %7025 = vst.msk [vmem:[%s3 + $0x1f0] sm:$0xff] %vm6962, %v6204
  %7026 = vst.msk [vmem:[%s3 + $0x1f8] sm:$0xff] %vm6962, %v6206
  %7027 = vst.msk [vmem:[%s3 + $0x200] sm:$0xff] %vm6962, %v6209
  %7028 = vst.msk [vmem:[%s3 + $0x208] sm:$0xff] %vm6962, %v6211
  %7029 = vst.msk [vmem:[%s3 + $0x210] sm:$0xff] %vm6962, %v6214
  %7030 = vst.msk [vmem:[%s3 + $0x218] sm:$0xff] %vm6962, %v6216
  %7031 = vst.msk [vmem:[%s3 + $0x220] sm:$0xff] %vm6962, %v6219
  %7032 = vst.msk [vmem:[%s3 + $0x228] sm:$0xff] %vm6962, %v6221
  %7033 = vst.msk [vmem:[%s3 + $0x230] sm:$0xff] %vm6962, %v6224
  %7034 = vst.msk [vmem:[%s3 + $0x238] sm:$0xff] %vm6962, %v6226
  %7035 = vst.msk [vmem:[%s3 + $0x240] sm:$0xff] %vm6962, %v6229
  %7036 = vst.msk [vmem:[%s3 + $0x248] sm:$0xff] %vm6962, %v6231
  %7037 = vst.msk [vmem:[%s3 + $0x250] sm:$0xff] %vm6962, %v6234
  %7038 = vst.msk [vmem:[%s3 + $0x258] sm:$0xff] %vm6962, %v6236
  %7039 = vst.msk [vmem:[%s3 + $0x260] sm:$0xff] %vm6962, %v6239
  %7040 = vst.msk [vmem:[%s3 + $0x268] sm:$0xff] %vm6962, %v6241
  %7041 = vst.msk [vmem:[%s3 + $0x270] sm:$0xff] %vm6962, %v6244
  %7042 = vst.msk [vmem:[%s3 + $0x278] sm:$0xff] %vm6962, %v6246
  %7043 = vst.msk [vmem:[%s3 + $0x280] sm:$0xff] %vm6962, %v6249
  %7044 = vst.msk [vmem:[%s3 + $0x288] sm:$0xff] %vm6962, %v6251
  %7045 = vst.msk [vmem:[%s3 + $0x290] sm:$0xff] %vm6962, %v6254
  %7046 = vst.msk [vmem:[%s3 + $0x298] sm:$0xff] %vm6962, %v6256
  %7047 = vst.msk [vmem:[%s3 + $0x2a0] sm:$0xff] %vm6962, %v6259
  %7048 = vst.msk [vmem:[%s3 + $0x2a8] sm:$0xff] %vm6962, %v6261
  %7049 = vst.msk [vmem:[%s3 + $0x2b0] sm:$0xff] %vm6962, %v6264
  %7050 = vst.msk [vmem:[%s3 + $0x2b8] sm:$0xff] %vm6962, %v6266
  %7051 = vst.msk [vmem:[%s3 + $0x2c0] sm:$0xff] %vm6962, %v6269
  %7052 = vst.msk [vmem:[%s3 + $0x2c8] sm:$0xff] %vm6962, %v6271
  %7053 = vst.msk [vmem:[%s3 + $0x2d0] sm:$0xff] %vm6962, %v6274
  %7054 = vst.msk [vmem:[%s3 + $0x2d8] sm:$0xff] %vm6962, %v6276
  %7055 = vst.msk [vmem:[%s3 + $0x2e0] sm:$0xff] %vm6962, %v6279
  %7056 = vst.msk [vmem:[%s3 + $0x2e8] sm:$0xff] %vm6962, %v6281
  %7057 = vst.msk [vmem:[%s3 + $0x2f0] sm:$0xff] %vm6962, %v6284
  %7058 = vst.msk [vmem:[%s3 + $0x2f8] sm:$0xff] %vm6962, %v6286
  %7059 = vst.msk [vmem:[%s3 + $0x300] sm:$0xff] %vm6962, %v6289
  %7060 = vst.msk [vmem:[%s3 + $0x308] sm:$0xff] %vm6962, %v6291
  %7061 = vst.msk [vmem:[%s3 + $0x310] sm:$0xff] %vm6962, %v6294
  %7062 = vst.msk [vmem:[%s3 + $0x318] sm:$0xff] %vm6962, %v6296
  %7063 = vst.msk [vmem:[%s3 + $0x320] sm:$0xff] %vm6962, %v6299
  %7064 = vst.msk [vmem:[%s3 + $0x328] sm:$0xff] %vm6962, %v6301
  %7065 = vst.msk [vmem:[%s3 + $0x330] sm:$0xff] %vm6962, %v6304
  %7066 = vst.msk [vmem:[%s3 + $0x338] sm:$0xff] %vm6962, %v6306
  %7067 = vst.msk [vmem:[%s3 + $0x340] sm:$0xff] %vm6962, %v6309
  %7068 = vst.msk [vmem:[%s3 + $0x348] sm:$0xff] %vm6962, %v6311
  %7069 = vst.msk [vmem:[%s3 + $0x350] sm:$0xff] %vm6962, %v6314
  %7070 = vst.msk [vmem:[%s3 + $0x358] sm:$0xff] %vm6962, %v6316
  %7071 = vst.msk [vmem:[%s3 + $0x360] sm:$0xff] %vm6962, %v6319
  %7072 = vst.msk [vmem:[%s3 + $0x368] sm:$0xff] %vm6962, %v6321
  %7073 = vst.msk [vmem:[%s3 + $0x370] sm:$0xff] %vm6962, %v6324
  %7074 = vst.msk [vmem:[%s3 + $0x378] sm:$0xff] %vm6962, %v6326
  %7075 = vst.msk [vmem:[%s3 + $0x380] sm:$0xff] %vm6962, %v6329
  %7076 = vst.msk [vmem:[%s3 + $0x388] sm:$0xff] %vm6962, %v6331
  %7077 = vst.msk [vmem:[%s3 + $0x390] sm:$0xff] %vm6962, %v6334
  %7078 = vst.msk [vmem:[%s3 + $0x398] sm:$0xff] %vm6962, %v6336
  %7079 = vst.msk [vmem:[%s3 + $0x3a0] sm:$0xff] %vm6962, %v6339
  %7080 = vst.msk [vmem:[%s3 + $0x3a8] sm:$0xff] %vm6962, %v6341
  %7081 = vst.msk [vmem:[%s3 + $0x3b0] sm:$0xff] %vm6962, %v6344
  %7082 = vst.msk [vmem:[%s3 + $0x3b8] sm:$0xff] %vm6962, %v6346
  %7083 = vst.msk [vmem:[%s3 + $0x3c0] sm:$0xff] %vm6962, %v6349
  %7084 = vst.msk [vmem:[%s3 + $0x3c8] sm:$0xff] %vm6962, %v6351
  %7085 = vst.msk [vmem:[%s3 + $0x3d0] sm:$0xff] %vm6962, %v6354
  %7086 = vst.msk [vmem:[%s3 + $0x3d8] sm:$0xff] %vm6962, %v6356
  %7087 = vst.msk [vmem:[%s3 + $0x3e0] sm:$0xff] %vm6962, %v6359
  %7088 = vst.msk [vmem:[%s3 + $0x3e8] sm:$0xff] %vm6962, %v6361
  %7089 = vst.msk [vmem:[%s3 + $0x3f0] sm:$0xff] %vm6962, %v6364
  %7090 = vst.msk [vmem:[%s3 + $0x3f8] sm:$0xff] %vm6962, %v6366
  %7091 = vst.msk [vmem:[%s3 + $0x400] sm:$0xff] %vm6962, %v6369
  %7092 = vst.msk [vmem:[%s3 + $0x408] sm:$0xff] %vm6962, %v6371
  %7093 = vst.msk [vmem:[%s3 + $0x410] sm:$0xff] %vm6962, %v6374
  %7094 = vst.msk [vmem:[%s3 + $0x418] sm:$0xff] %vm6962, %v6376
  %7095 = vst.msk [vmem:[%s3 + $0x420] sm:$0xff] %vm6962, %v6379
  %7096 = vst.msk [vmem:[%s3 + $0x428] sm:$0xff] %vm6962, %v6381
  %7097 = vst.msk [vmem:[%s3 + $0x430] sm:$0xff] %vm6962, %v6384
  %7098 = vst.msk [vmem:[%s3 + $0x438] sm:$0xff] %vm6962, %v6386
  %7099 = vst.msk [vmem:[%s3 + $0x440] sm:$0xff] %vm6962, %v6389
  %7100 = vst.msk [vmem:[%s3 + $0x448] sm:$0xff] %vm6962, %v6391
  %7101 = vst.msk [vmem:[%s3 + $0x450] sm:$0xff] %vm6962, %v6394
  %7102 = vst.msk [vmem:[%s3 + $0x458] sm:$0xff] %vm6962, %v6396
  %7103 = vst.msk [vmem:[%s3 + $0x460] sm:$0xff] %vm6962, %v6399
  %7104 = vst.msk [vmem:[%s3 + $0x468] sm:$0xff] %vm6962, %v6401
  %7105 = vst.msk [vmem:[%s3 + $0x470] sm:$0xff] %vm6962, %v6404
  %7106 = vst.msk [vmem:[%s3 + $0x478] sm:$0xff] %vm6962, %v6406
  %7107 = vst.msk [vmem:[%s3 + $0x480] sm:$0xff] %vm6962, %v6409
  %7108 = vst.msk [vmem:[%s3 + $0x488] sm:$0xff] %vm6962, %v6411
  %7109 = vst.msk [vmem:[%s3 + $0x490] sm:$0xff] %vm6962, %v6414
  %7110 = vst.msk [vmem:[%s3 + $0x498] sm:$0xff] %vm6962, %v6416
  %7111 = vst.msk [vmem:[%s3 + $0x4a0] sm:$0xff] %vm6962, %v6419
  %7112 = vst.msk [vmem:[%s3 + $0x4a8] sm:$0xff] %vm6962, %v6421
  %7113 = vst.msk [vmem:[%s3 + $0x4b0] sm:$0xff] %vm6962, %v6424
  %7114 = vst.msk [vmem:[%s3 + $0x4b8] sm:$0xff] %vm6962, %v6426
  %7115 = vst.msk [vmem:[%s3 + $0x4c0] sm:$0xff] %vm6962, %v6429
  %7116 = vst.msk [vmem:[%s3 + $0x4c8] sm:$0xff] %vm6962, %v6431
  %7117 = vst.msk [vmem:[%s3 + $0x4d0] sm:$0xff] %vm6962, %v6434
  %7118 = vst.msk [vmem:[%s3 + $0x4d8] sm:$0xff] %vm6962, %v6436
  %7119 = vst.msk [vmem:[%s3 + $0x4e0] sm:$0xff] %vm6962, %v6439
  %7120 = vst.msk [vmem:[%s3 + $0x4e8] sm:$0xff] %vm6962, %v6441
  %7121 = vst.msk [vmem:[%s3 + $0x4f0] sm:$0xff] %vm6962, %v6444
  %7122 = vst.msk [vmem:[%s3 + $0x4f8] sm:$0xff] %vm6962, %v6446
  %7123 = vst.msk [vmem:[%s3 + $0x500] sm:$0xff] %vm6962, %v6449
  %7124 = vst.msk [vmem:[%s3 + $0x508] sm:$0xff] %vm6962, %v6451
  %7125 = vst.msk [vmem:[%s3 + $0x510] sm:$0xff] %vm6962, %v6454
  %7126 = vst.msk [vmem:[%s3 + $0x518] sm:$0xff] %vm6962, %v6456
  %7127 = vst.msk [vmem:[%s3 + $0x520] sm:$0xff] %vm6962, %v6459
  %7128 = vst.msk [vmem:[%s3 + $0x528] sm:$0xff] %vm6962, %v6461
  %7129 = vst.msk [vmem:[%s3 + $0x530] sm:$0xff] %vm6962, %v6464
  %7130 = vst.msk [vmem:[%s3 + $0x538] sm:$0xff] %vm6962, %v6466
  %7131 = vst.msk [vmem:[%s3 + $0x540] sm:$0xff] %vm6962, %v6469
  %7132 = vst.msk [vmem:[%s3 + $0x548] sm:$0xff] %vm6962, %v6471
  %7133 = vst.msk [vmem:[%s3 + $0x550] sm:$0xff] %vm6962, %v6474
  %7134 = vst.msk [vmem:[%s3 + $0x558] sm:$0xff] %vm6962, %v6476
  %7135 = vst.msk [vmem:[%s3 + $0x560] sm:$0xff] %vm6962, %v6479
  %7136 = vst.msk [vmem:[%s3 + $0x568] sm:$0xff] %vm6962, %v6481
  %7137 = vst.msk [vmem:[%s3 + $0x570] sm:$0xff] %vm6962, %v6484
  %7138 = vst.msk [vmem:[%s3 + $0x578] sm:$0xff] %vm6962, %v6486
  %7139 = vst.msk [vmem:[%s3 + $0x580] sm:$0xff] %vm6962, %v6489
  %7140 = vst.msk [vmem:[%s3 + $0x588] sm:$0xff] %vm6962, %v6491
  %7141 = vst.msk [vmem:[%s3 + $0x590] sm:$0xff] %vm6962, %v6494
  %7142 = vst.msk [vmem:[%s3 + $0x598] sm:$0xff] %vm6962, %v6496
  %7143 = vst.msk [vmem:[%s3 + $0x5a0] sm:$0xff] %vm6962, %v6499
  %7144 = vst.msk [vmem:[%s3 + $0x5a8] sm:$0xff] %vm6962, %v6501
  %7145 = vst.msk [vmem:[%s3 + $0x5b0] sm:$0xff] %vm6962, %v6504
  %7146 = vst.msk [vmem:[%s3 + $0x5b8] sm:$0xff] %vm6962, %v6506
  %7147 = vst.msk [vmem:[%s3 + $0x5c0] sm:$0xff] %vm6962, %v6509
  %7148 = vst.msk [vmem:[%s3 + $0x5c8] sm:$0xff] %vm6962, %v6511
  %7149 = vst.msk [vmem:[%s3 + $0x5d0] sm:$0xff] %vm6962, %v6514
  %7150 = vst.msk [vmem:[%s3 + $0x5d8] sm:$0xff] %vm6962, %v6516
  %7151 = vst.msk [vmem:[%s3 + $0x5e0] sm:$0xff] %vm6962, %v6519
  %7152 = vst.msk [vmem:[%s3 + $0x5e8] sm:$0xff] %vm6962, %v6521
  %7153 = vst.msk [vmem:[%s3 + $0x5f0] sm:$0xff] %vm6962, %v6524
  %7154 = vst.msk [vmem:[%s3 + $0x5f8] sm:$0xff] %vm6962, %v6526
  %7155 = vst.msk [vmem:[%s3 + $0x600] sm:$0xff] %vm6962, %v6529
  %7156 = vst.msk [vmem:[%s3 + $0x608] sm:$0xff] %vm6962, %v6531
  %7157 = vst.msk [vmem:[%s3 + $0x610] sm:$0xff] %vm6962, %v6534
  %7158 = vst.msk [vmem:[%s3 + $0x618] sm:$0xff] %vm6962, %v6536
  %7159 = vst.msk [vmem:[%s3 + $0x620] sm:$0xff] %vm6962, %v6539
  %7160 = vst.msk [vmem:[%s3 + $0x628] sm:$0xff] %vm6962, %v6541
  %7161 = vst.msk [vmem:[%s3 + $0x630] sm:$0xff] %vm6962, %v6544
  %7162 = vst.msk [vmem:[%s3 + $0x638] sm:$0xff] %vm6962, %v6546
  %7163 = vst.msk [vmem:[%s3 + $0x640] sm:$0xff] %vm6962, %v6549
  %7164 = vst.msk [vmem:[%s3 + $0x648] sm:$0xff] %vm6962, %v6551
  %7165 = vst.msk [vmem:[%s3 + $0x650] sm:$0xff] %vm6962, %v6554
  %7166 = vst.msk [vmem:[%s3 + $0x658] sm:$0xff] %vm6962, %v6556
  %7167 = vst.msk [vmem:[%s3 + $0x660] sm:$0xff] %vm6962, %v6559
  %7168 = vst.msk [vmem:[%s3 + $0x668] sm:$0xff] %vm6962, %v6561
  %7169 = vst.msk [vmem:[%s3 + $0x670] sm:$0xff] %vm6962, %v6564
  %7170 = vst.msk [vmem:[%s3 + $0x678] sm:$0xff] %vm6962, %v6566
  %7171 = vst.msk [vmem:[%s3 + $0x680] sm:$0xff] %vm6962, %v6569
  %7172 = vst.msk [vmem:[%s3 + $0x688] sm:$0xff] %vm6962, %v6571
  %7173 = vst.msk [vmem:[%s3 + $0x690] sm:$0xff] %vm6962, %v6574
  %7174 = vst.msk [vmem:[%s3 + $0x698] sm:$0xff] %vm6962, %v6576
  %7175 = vst.msk [vmem:[%s3 + $0x6a0] sm:$0xff] %vm6962, %v6579
  %7176 = vst.msk [vmem:[%s3 + $0x6a8] sm:$0xff] %vm6962, %v6581
  %7177 = vst.msk [vmem:[%s3 + $0x6b0] sm:$0xff] %vm6962, %v6584
  %7178 = vst.msk [vmem:[%s3 + $0x6b8] sm:$0xff] %vm6962, %v6586
  %7179 = vst.msk [vmem:[%s3 + $0x6c0] sm:$0xff] %vm6962, %v6589
  %7180 = vst.msk [vmem:[%s3 + $0x6c8] sm:$0xff] %vm6962, %v6591
  %7181 = vst.msk [vmem:[%s3 + $0x6d0] sm:$0xff] %vm6962, %v6594
  %7182 = vst.msk [vmem:[%s3 + $0x6d8] sm:$0xff] %vm6962, %v6596
  %7183 = vst.msk [vmem:[%s3 + $0x6e0] sm:$0xff] %vm6962, %v6599
  %7184 = vst.msk [vmem:[%s3 + $0x6e8] sm:$0xff] %vm6962, %v6601
  %7185 = vst.msk [vmem:[%s3 + $0x6f0] sm:$0xff] %vm6962, %v6604
  %7186 = vst.msk [vmem:[%s3 + $0x6f8] sm:$0xff] %vm6962, %v6606
  %7187 = vst.msk [vmem:[%s3 + $0x700] sm:$0xff] %vm6962, %v6609
  %7188 = vst.msk [vmem:[%s3 + $0x708] sm:$0xff] %vm6962, %v6611
  %7189 = vst.msk [vmem:[%s3 + $0x710] sm:$0xff] %vm6962, %v6614
  %7190 = vst.msk [vmem:[%s3 + $0x718] sm:$0xff] %vm6962, %v6616
  %7191 = vst.msk [vmem:[%s3 + $0x720] sm:$0xff] %vm6962, %v6619
  %7192 = vst.msk [vmem:[%s3 + $0x728] sm:$0xff] %vm6962, %v6621
  %7193 = vst.msk [vmem:[%s3 + $0x730] sm:$0xff] %vm6962, %v6624
  %7194 = vst.msk [vmem:[%s3 + $0x738] sm:$0xff] %vm6962, %v6626
  %7195 = vst.msk [vmem:[%s3 + $0x740] sm:$0xff] %vm6962, %v6629
  %7196 = vst.msk [vmem:[%s3 + $0x748] sm:$0xff] %vm6962, %v6631
  %7197 = vst.msk [vmem:[%s3 + $0x750] sm:$0xff] %vm6962, %v6634
  %7198 = vst.msk [vmem:[%s3 + $0x758] sm:$0xff] %vm6962, %v6636
  %7199 = vst.msk [vmem:[%s3 + $0x760] sm:$0xff] %vm6962, %v6639
  %7200 = vst.msk [vmem:[%s3 + $0x768] sm:$0xff] %vm6962, %v6641
  %7201 = vst.msk [vmem:[%s3 + $0x770] sm:$0xff] %vm6962, %v6644
  %7202 = vst.msk [vmem:[%s3 + $0x778] sm:$0xff] %vm6962, %v6646
  %7203 = vst.msk [vmem:[%s3 + $0x780] sm:$0xff] %vm6962, %v6649
  %7204 = vst.msk [vmem:[%s3 + $0x788] sm:$0xff] %vm6962, %v6651
  %7205 = vst.msk [vmem:[%s3 + $0x790] sm:$0xff] %vm6962, %v6654
  %7206 = vst.msk [vmem:[%s3 + $0x798] sm:$0xff] %vm6962, %v6656
  %7207 = vst.msk [vmem:[%s3 + $0x7a0] sm:$0xff] %vm6962, %v6659
  %7208 = vst.msk [vmem:[%s3 + $0x7a8] sm:$0xff] %vm6962, %v6661
  %7209 = vst.msk [vmem:[%s3 + $0x7b0] sm:$0xff] %vm6962, %v6664
  %7210 = vst.msk [vmem:[%s3 + $0x7b8] sm:$0xff] %vm6962, %v6666
  %7211 = vst.msk [vmem:[%s3 + $0x7c0] sm:$0xff] %vm6962, %v6669
  %7212 = vst.msk [vmem:[%s3 + $0x7c8] sm:$0xff] %vm6962, %v6671
  %7213 = vst.msk [vmem:[%s3 + $0x7d0] sm:$0xff] %vm6962, %v6674
  %7214 = vst.msk [vmem:[%s3 + $0x7d8] sm:$0xff] %vm6962, %v6676
  %7215 = vst.msk [vmem:[%s3 + $0x7e0] sm:$0xff] %vm6962, %v6679
  %7216 = vst.msk [vmem:[%s3 + $0x7e8] sm:$0xff] %vm6962, %v6681
  %7217 = vst.msk [vmem:[%s3 + $0x7f0] sm:$0xff] %vm6962, %v6684
  %7218 = vst.msk [vmem:[%s3 + $0x7f8] sm:$0xff] %vm6962, %v6686
  %7219 = vst.msk [vmem:[%s3 + $0x800] sm:$0xff] %vm6962, %v6689
  %7220 = vst.msk [vmem:[%s3 + $0x808] sm:$0xff] %vm6962, %v6691
  %7221 = vst.msk [vmem:[%s3 + $0x810] sm:$0xff] %vm6962, %v6694
  %7222 = vst.msk [vmem:[%s3 + $0x818] sm:$0xff] %vm6962, %v6696
  %7223 = vst.msk [vmem:[%s3 + $0x820] sm:$0xff] %vm6962, %v6699
  %7224 = vst.msk [vmem:[%s3 + $0x828] sm:$0xff] %vm6962, %v6701
  %7225 = vst.msk [vmem:[%s3 + $0x830] sm:$0xff] %vm6962, %v6704
  %7226 = vst.msk [vmem:[%s3 + $0x838] sm:$0xff] %vm6962, %v6706
  %7227 = vst.msk [vmem:[%s3 + $0x840] sm:$0xff] %vm6962, %v6709
  %7228 = vst.msk [vmem:[%s3 + $0x848] sm:$0xff] %vm6962, %v6711
  %7229 = vst.msk [vmem:[%s3 + $0x850] sm:$0xff] %vm6962, %v6714
  %7230 = vst.msk [vmem:[%s3 + $0x858] sm:$0xff] %vm6962, %v6716
  %7231 = vst.msk [vmem:[%s3 + $0x860] sm:$0xff] %vm6962, %v6719
  %7232 = vst.msk [vmem:[%s3 + $0x868] sm:$0xff] %vm6962, %v6721
  %7233 = vst.msk [vmem:[%s3 + $0x870] sm:$0xff] %vm6962, %v6724
  %7234 = vst.msk [vmem:[%s3 + $0x878] sm:$0xff] %vm6962, %v6726
  %7235 = vst.msk [vmem:[%s3 + $0x880] sm:$0xff] %vm6962, %v6729
  %7236 = vst.msk [vmem:[%s3 + $0x888] sm:$0xff] %vm6962, %v6731
  %7237 = vst.msk [vmem:[%s3 + $0x890] sm:$0xff] %vm6962, %v6734
  %7238 = vst.msk [vmem:[%s3 + $0x898] sm:$0xff] %vm6962, %v6736
  %7239 = vst.msk [vmem:[%s3 + $0x8a0] sm:$0xff] %vm6962, %v6739
  %7240 = vst.msk [vmem:[%s3 + $0x8a8] sm:$0xff] %vm6962, %v6741
  %7241 = vst.msk [vmem:[%s3 + $0x8b0] sm:$0xff] %vm6962, %v6744
  %7242 = vst.msk [vmem:[%s3 + $0x8b8] sm:$0xff] %vm6962, %v6746
  %7243 = vst.msk [vmem:[%s3 + $0x8c0] sm:$0xff] %vm6962, %v6749
  %7244 = vst.msk [vmem:[%s3 + $0x8c8] sm:$0xff] %vm6962, %v6751
  %7245 = vst.msk [vmem:[%s3 + $0x8d0] sm:$0xff] %vm6962, %v6754
  %7246 = vst.msk [vmem:[%s3 + $0x8d8] sm:$0xff] %vm6962, %v6756
  %7247 = vst.msk [vmem:[%s3 + $0x8e0] sm:$0xff] %vm6962, %v6759
  %7248 = vst.msk [vmem:[%s3 + $0x8e8] sm:$0xff] %vm6962, %v6761
  %7249 = vst.msk [vmem:[%s3 + $0x8f0] sm:$0xff] %vm6962, %v6764
  %7250 = vst.msk [vmem:[%s3 + $0x8f8] sm:$0xff] %vm6962, %v6766
  %7251 = vst.msk [vmem:[%s3 + $0x900] sm:$0xff] %vm6962, %v6769
  %7252 = vst.msk [vmem:[%s3 + $0x908] sm:$0xff] %vm6962, %v6771
  %7253 = vst.msk [vmem:[%s3 + $0x910] sm:$0xff] %vm6962, %v6774
  %7254 = vst.msk [vmem:[%s3 + $0x918] sm:$0xff] %vm6962, %v6776
  %7255 = vst.msk [vmem:[%s3 + $0x920] sm:$0xff] %vm6962, %v6779
  %7256 = vst.msk [vmem:[%s3 + $0x928] sm:$0xff] %vm6962, %v6781
  %7257 = vst.msk [vmem:[%s3 + $0x930] sm:$0xff] %vm6962, %v6784
  %7258 = vst.msk [vmem:[%s3 + $0x938] sm:$0xff] %vm6962, %v6786
  %7259 = vst.msk [vmem:[%s3 + $0x940] sm:$0xff] %vm6962, %v6789
  %7260 = vst.msk [vmem:[%s3 + $0x948] sm:$0xff] %vm6962, %v6791
  %7261 = vst.msk [vmem:[%s3 + $0x950] sm:$0xff] %vm6962, %v6794
  %7262 = vst.msk [vmem:[%s3 + $0x958] sm:$0xff] %vm6962, %v6796
  %7263 = vst.msk [vmem:[%s3 + $0x960] sm:$0xff] %vm6962, %v6799
  %7264 = vst.msk [vmem:[%s3 + $0x968] sm:$0xff] %vm6962, %v6801
  %7265 = vst.msk [vmem:[%s3 + $0x970] sm:$0xff] %vm6962, %v6804
  %7266 = vst.msk [vmem:[%s3 + $0x978] sm:$0xff] %vm6962, %v6806
  %7267 = vst.msk [vmem:[%s3 + $0x980] sm:$0xff] %vm6962, %v6809
  %7268 = vst.msk [vmem:[%s3 + $0x988] sm:$0xff] %vm6962, %v6811
  %7269 = vst.msk [vmem:[%s3 + $0x990] sm:$0xff] %vm6962, %v6814
  %7270 = vst.msk [vmem:[%s3 + $0x998] sm:$0xff] %vm6962, %v6816
  %7271 = vst.msk [vmem:[%s3 + $0x9a0] sm:$0xff] %vm6962, %v6819
  %7272 = vst.msk [vmem:[%s3 + $0x9a8] sm:$0xff] %vm6962, %v6821
  %7273 = vst.msk [vmem:[%s3 + $0x9b0] sm:$0xff] %vm6962, %v6824
  %7274 = vst.msk [vmem:[%s3 + $0x9b8] sm:$0xff] %vm6962, %v6826
  %7275 = vst.msk [vmem:[%s3 + $0x9c0] sm:$0xff] %vm6962, %v6829
  %7276 = vst.msk [vmem:[%s3 + $0x9c8] sm:$0xff] %vm6962, %v6831
  %7277 = vst.msk [vmem:[%s3 + $0x9d0] sm:$0xff] %vm6962, %v6834
  %7278 = vst.msk [vmem:[%s3 + $0x9d8] sm:$0xff] %vm6962, %v6836
  %7279 = vst.msk [vmem:[%s3 + $0x9e0] sm:$0xff] %vm6962, %v6839
  %7280 = vst.msk [vmem:[%s3 + $0x9e8] sm:$0xff] %vm6962, %v6841
  %7281 = vst.msk [vmem:[%s3 + $0x9f0] sm:$0xff] %vm6962, %v6844
  %7282 = vst.msk [vmem:[%s3 + $0x9f8] sm:$0xff] %vm6962, %v6846
  %7283 = vst.msk [vmem:[%s3 + $0xa00] sm:$0xff] %vm6962, %v6849
  %7284 = vst.msk [vmem:[%s3 + $0xa08] sm:$0xff] %vm6962, %v6851
  %7285 = vst.msk [vmem:[%s3 + $0xa10] sm:$0xff] %vm6962, %v6854
  %7286 = vst.msk [vmem:[%s3 + $0xa18] sm:$0xff] %vm6962, %v6856
  %7287 = vst.msk [vmem:[%s3 + $0xa20] sm:$0xff] %vm6962, %v6859
  %7288 = vst.msk [vmem:[%s3 + $0xa28] sm:$0xff] %vm6962, %v6861
  %7289 = vst.msk [vmem:[%s3 + $0xa30] sm:$0xff] %vm6962, %v6864
  %7290 = vst.msk [vmem:[%s3 + $0xa38] sm:$0xff] %vm6962, %v6866
  %7291 = vst.msk [vmem:[%s3 + $0xa40] sm:$0xff] %vm6962, %v6869
  %7292 = vst.msk [vmem:[%s3 + $0xa48] sm:$0xff] %vm6962, %v6871
  %7293 = vst.msk [vmem:[%s3 + $0xa50] sm:$0xff] %vm6962, %v6874
  %7294 = vst.msk [vmem:[%s3 + $0xa58] sm:$0xff] %vm6962, %v6876
  %7295 = vst.msk [vmem:[%s3 + $0xa60] sm:$0xff] %vm6962, %v6879
  %7296 = vst.msk [vmem:[%s3 + $0xa68] sm:$0xff] %vm6962, %v6881
  %7297 = vst.msk [vmem:[%s3 + $0xa70] sm:$0xff] %vm6962, %v6884
  %7298 = vst.msk [vmem:[%s3 + $0xa78] sm:$0xff] %vm6962, %v6886
  %7299 = vst.msk [vmem:[%s3 + $0xa80] sm:$0xff] %vm6962, %v6889
  %7300 = vst.msk [vmem:[%s3 + $0xa88] sm:$0xff] %vm6962, %v6891
  %7301 = vst.msk [vmem:[%s3 + $0xa90] sm:$0xff] %vm6962, %v6894
  %7302 = vst.msk [vmem:[%s3 + $0xa98] sm:$0xff] %vm6962, %v6896
  %7303 = vst.msk [vmem:[%s3 + $0xaa0] sm:$0xff] %vm6962, %v6899
  %7304 = vst.msk [vmem:[%s3 + $0xaa8] sm:$0xff] %vm6962, %v6901
  %7305 = vst.msk [vmem:[%s3 + $0xab0] sm:$0xff] %vm6962, %v6904
  %7306 = vst.msk [vmem:[%s3 + $0xab8] sm:$0xff] %vm6962, %v6906
  %7307 = vst.msk [vmem:[%s3 + $0xac0] sm:$0xff] %vm6962, %v6909
  %7308 = vst.msk [vmem:[%s3 + $0xac8] sm:$0xff] %vm6962, %v6911
  %7309 = vst.msk [vmem:[%s3 + $0xad0] sm:$0xff] %vm6962, %v6914
  %7310 = vst.msk [vmem:[%s3 + $0xad8] sm:$0xff] %vm6962, %v6916
  %7311 = vst.msk [vmem:[%s3 + $0xae0] sm:$0xff] %vm6962, %v6919
  %7312 = vst.msk [vmem:[%s3 + $0xae8] sm:$0xff] %vm6962, %v6921
  %7313 = vst.msk [vmem:[%s3 + $0xaf0] sm:$0xff] %vm6962, %v6924
  %7314 = vst.msk [vmem:[%s3 + $0xaf8] sm:$0xff] %vm6962, %v6926
  %7315 = vst.msk [vmem:[%s3 + $0xb00] sm:$0xff] %vm6962, %v6929
  %7316 = vst.msk [vmem:[%s3 + $0xb08] sm:$0xff] %vm6962, %v6931
  %7317 = vst.msk [vmem:[%s3 + $0xb10] sm:$0xff] %vm6962, %v6934
  %7318 = vst.msk [vmem:[%s3 + $0xb18] sm:$0xff] %vm6962, %v6936
  %7319 = vst.msk [vmem:[%s3 + $0xb20] sm:$0xff] %vm6962, %v6939
  %7320 = vst.msk [vmem:[%s3 + $0xb28] sm:$0xff] %vm6962, %v6941
  %7321 = vst.msk [vmem:[%s3 + $0xb30] sm:$0xff] %vm6962, %v6944
  %7322 = vst.msk [vmem:[%s3 + $0xb38] sm:$0xff] %vm6962, %v6946
  %7323 = vst.msk [vmem:[%s3 + $0xb40] sm:$0xff] %vm6962, %v6949
  %7324 = vst.msk [vmem:[%s3 + $0xb48] sm:$0xff] %vm6962, %v6951
  %7325 = vst.msk [vmem:[%s3 + $0xb50] sm:$0xff] %vm6962, %v6954
  %7326 = vst.msk [vmem:[%s3 + $0xb58] sm:$0xff] %vm6962, %v6956
  %vm7327 = vcmask 25600
  %7328 = vst.msk [vmem:[%s3 + $0xb60] sm:$0x3] %vm7327, %v6959
  // Predicated region
  $region14: #{coughnet_nano_forward.5} parent=0 // pred_check
    _
  $region15: #{coughnet_nano_forward.5} parent=0 // pred_check_branch
    %7330 = sbr.rel (0) target = $region17
  $region16: #{coughnet_nano_forward.5} parent=0 // pred_region
    _
  $region17: #{coughnet_nano_forward.5} parent=0 // pred_fallthru
    _
  // Predicated region
  $region18: #{coughnet_nano_forward.5} parent=0 // pred_check
    _
  $region19: #{coughnet_nano_forward.5} parent=0 // pred_check_branch
    %7332 = sbr.rel (0) target = $region21
  $region20: #{coughnet_nano_forward.5} parent=0 // pred_region
    _
  $region21: #{coughnet_nano_forward.5} parent=0 // pred_fallthru
    _

// kernel: coughnet_nano_forward.7
$region0: #{coughnet_nano_forward.7}
  #allocation0 [shape = 'u32[]', space=smem, size = 0x4, offset = 0x4, fixed_abs, tag = 'smem constant byte address 0x4 - core index']
  #allocation1 [shape = 'u32[72,128]{1,0:T(1,128)}', space=vmem, size = 0x9000, scoped, tag = 'internal scratch']
  %s0 = inlined_call_operand.vmem [shape: bf16[546,484], index: 0, kind: input, shape index: {}]
  %s1 = inlined_call_operand.vmem [shape: bf16[484,8], index: 1, kind: input, shape index: {}]
  %s2 = inlined_call_operand.vmem [shape: f32[1,8], index: 2, kind: input, shape index: {}]
  %s3 = inlined_call_operand.vmem [shape: f32[546,8], index: 3, kind: output, shape index: {}]
  %s4 = sld [smem:[#allocation0]]
  $region22: #{coughnet_nano_forward.7} parent=0
    _
  %s6 = ssub.s32 1, %s4
  %s7 = scalar_select 0, %s6, %s4
  // Predicated region
  $region2: #{coughnet_nano_forward.7} parent=0 // pred_check
    _
  $region3: #{coughnet_nano_forward.7} parent=0 // pred_check_branch
    %9 = sbr.rel (0) target = $region5
  $region4: #{coughnet_nano_forward.7} parent=0 // pred_region
    _
  $region5: #{coughnet_nano_forward.7} parent=0 // pred_fallthru
    _
  // Predicated region
  $region6: #{coughnet_nano_forward.7} parent=0 // pred_check
    _
  $region7: #{coughnet_nano_forward.7} parent=0 // pred_check_branch
    %11 = sbr.rel (0) target = $region9
  $region8: #{coughnet_nano_forward.7} parent=0 // pred_region
    _
  $region9: #{coughnet_nano_forward.7} parent=0 // pred_fallthru
    _
  // Predicated region
  $region10: #{coughnet_nano_forward.7} parent=0 // pred_check
    _
  $region11: #{coughnet_nano_forward.7} parent=0 // pred_check_branch
    %13 = sbr.rel (0) target = $region13
  $region12: #{coughnet_nano_forward.7} parent=0 // pred_region
    _
  $region13: #{coughnet_nano_forward.7} parent=0 // pred_fallthru
    _
  %v15 = vld [vmem:[%s0] sm:$0xff]
  %v16 = vld [vmem:[%s0 + $0x8] sm:$0xff]
  %v17 = vld [vmem:[%s0 + $0x10] sm:$0xff]
  %v18 = vld [vmem:[%s0 + $0x18] sm:$0xff]
  %v19 = vld [vmem:[%s0 + $0x20] sm:$0xff]
  %v20 = vld [vmem:[%s0 + $0x28] sm:$0xff]
  %v21 = vld [vmem:[%s0 + $0x30] sm:$0xff]
  %v22 = vld [vmem:[%s0 + $0x38] sm:$0xff]
  %v23 = vld [vmem:[%s0 + $0x40] sm:$0xff]
  %v24 = vld [vmem:[%s0 + $0x48] sm:$0xff]
  %v25 = vld [vmem:[%s0 + $0x50] sm:$0xff]
  %v26 = vld [vmem:[%s0 + $0x58] sm:$0xff]
  %v27 = vld [vmem:[%s0 + $0x60] sm:$0xff]
  %v28 = vld [vmem:[%s0 + $0x68] sm:$0xff]
  %v29 = vld [vmem:[%s0 + $0x70] sm:$0xff]
  %v30 = vld [vmem:[%s0 + $0x78] sm:$0xff]
  %v31 = vld [vmem:[%s0 + $0x80] sm:$0xff]
  %v32 = vld [vmem:[%s0 + $0x88] sm:$0xff]
  %v33 = vld [vmem:[%s0 + $0x90] sm:$0xff]
  %v34 = vld [vmem:[%s0 + $0x98] sm:$0xff]
  %v35 = vld [vmem:[%s0 + $0xa0] sm:$0xff]
  %v36 = vld [vmem:[%s0 + $0xa8] sm:$0xff]
  %v37 = vld [vmem:[%s0 + $0xb0] sm:$0xff]
  %v38 = vld [vmem:[%s0 + $0xb8] sm:$0xff]
  %v39 = vld [vmem:[%s0 + $0xc0] sm:$0xff]
  %v40 = vld [vmem:[%s0 + $0xc8] sm:$0xff]
  %v41 = vld [vmem:[%s0 + $0xd0] sm:$0xff]
  %v42 = vld [vmem:[%s0 + $0xd8] sm:$0xff]
  %v43 = vld [vmem:[%s0 + $0xe0] sm:$0xff]
  %v44 = vld [vmem:[%s0 + $0xe8] sm:$0xff]
  %v45 = vld [vmem:[%s0 + $0xf0] sm:$0xff]
  %v46 = vld [vmem:[%s0 + $0xf8] sm:$0xff]
  %v47 = vld [vmem:[%s0 + $0x100] sm:$0xff]
  %v48 = vld [vmem:[%s0 + $0x108] sm:$0xff]
  %v49 = vld [vmem:[%s0 + $0x110] sm:$0xff]
  %v50 = vld [vmem:[%s0 + $0x118] sm:$0xff]
  %v51 = vld [vmem:[%s0 + $0x120] sm:$0xff]
  %v52 = vld [vmem:[%s0 + $0x128] sm:$0xff]
  %v53 = vld [vmem:[%s0 + $0x130] sm:$0xff]
  %v54 = vld [vmem:[%s0 + $0x138] sm:$0xff]
  %v55 = vld [vmem:[%s0 + $0x140] sm:$0xff]
  %v56 = vld [vmem:[%s0 + $0x148] sm:$0xff]
  %v57 = vld [vmem:[%s0 + $0x150] sm:$0xff]
  %v58 = vld [vmem:[%s0 + $0x158] sm:$0xff]
  %v59 = vld [vmem:[%s0 + $0x160] sm:$0xff]
  %v60 = vld [vmem:[%s0 + $0x168] sm:$0xff]
  %v61 = vld [vmem:[%s0 + $0x170] sm:$0xff]
  %v62 = vld [vmem:[%s0 + $0x178] sm:$0xff]
  %v63 = vld [vmem:[%s0 + $0x180] sm:$0xff]
  %v64 = vld [vmem:[%s0 + $0x188] sm:$0xff]
  %v65 = vld [vmem:[%s0 + $0x190] sm:$0xff]
  %v66 = vld [vmem:[%s0 + $0x198] sm:$0xff]
  %v67 = vld [vmem:[%s0 + $0x1a0] sm:$0xff]
  %v68 = vld [vmem:[%s0 + $0x1a8] sm:$0xff]
  %v69 = vld [vmem:[%s0 + $0x1b0] sm:$0xff]
  %v70 = vld [vmem:[%s0 + $0x1b8] sm:$0xff]
  %v71 = vld [vmem:[%s0 + $0x1c0] sm:$0xff]
  %v72 = vld [vmem:[%s0 + $0x1c8] sm:$0xff]
  %v73 = vld [vmem:[%s0 + $0x1d0] sm:$0xff]
  %v74 = vld [vmem:[%s0 + $0x1d8] sm:$0xff]
  %v75 = vld [vmem:[%s0 + $0x1e0] sm:$0xff]
  %v76 = vld [vmem:[%s0 + $0x1e8] sm:$0xff]
  %v77 = vld [vmem:[%s0 + $0x1f0] sm:$0xff]
  %v78 = vld [vmem:[%s0 + $0x1f8] sm:$0xff]
  %v79 = vld [vmem:[%s0 + $0x200] sm:$0xff]
  %v80 = vld [vmem:[%s0 + $0x208] sm:$0xff]
  %v81 = vld [vmem:[%s0 + $0x210] sm:$0xff]
  %v82 = vld [vmem:[%s0 + $0x218] sm:$0xff]
  %v83 = vld [vmem:[%s0 + $0x220] sm:$0xff]
  %v84 = vld [vmem:[%s0 + $0x228] sm:$0xff]
  %v85 = vld [vmem:[%s0 + $0x230] sm:$0xff]
  %v86 = vld [vmem:[%s0 + $0x238] sm:$0xff]
  %v87 = vld [vmem:[%s0 + $0x240] sm:$0xff]
  %v88 = vld [vmem:[%s0 + $0x248] sm:$0xff]
  %v89 = vld [vmem:[%s0 + $0x250] sm:$0xff]
  %v90 = vld [vmem:[%s0 + $0x258] sm:$0xff]
  %v91 = vld [vmem:[%s0 + $0x260] sm:$0xff]
  %v92 = vld [vmem:[%s0 + $0x268] sm:$0xff]
  %v93 = vld [vmem:[%s0 + $0x270] sm:$0xff]
  %v94 = vld [vmem:[%s0 + $0x278] sm:$0xff]
  %v95 = vld [vmem:[%s0 + $0x280] sm:$0xff]
  %v96 = vld [vmem:[%s0 + $0x288] sm:$0xff]
  %v97 = vld [vmem:[%s0 + $0x290] sm:$0xff]
  %v98 = vld [vmem:[%s0 + $0x298] sm:$0xff]
  %v99 = vld [vmem:[%s0 + $0x2a0] sm:$0xff]
  %v100 = vld [vmem:[%s0 + $0x2a8] sm:$0xff]
  %v101 = vld [vmem:[%s0 + $0x2b0] sm:$0xff]
  %v102 = vld [vmem:[%s0 + $0x2b8] sm:$0xff]
  %v103 = vld [vmem:[%s0 + $0x2c0] sm:$0xff]
  %v104 = vld [vmem:[%s0 + $0x2c8] sm:$0xff]
  %v105 = vld [vmem:[%s0 + $0x2d0] sm:$0xff]
  %v106 = vld [vmem:[%s0 + $0x2d8] sm:$0xff]
  %v107 = vld [vmem:[%s0 + $0x2e0] sm:$0xff]
  %v108 = vld [vmem:[%s0 + $0x2e8] sm:$0xff]
  %v109 = vld [vmem:[%s0 + $0x2f0] sm:$0xff]
  %v110 = vld [vmem:[%s0 + $0x2f8] sm:$0xff]
  %v111 = vld [vmem:[%s0 + $0x300] sm:$0xff]
  %v112 = vld [vmem:[%s0 + $0x308] sm:$0xff]
  %v113 = vld [vmem:[%s0 + $0x310] sm:$0xff]
  %v114 = vld [vmem:[%s0 + $0x318] sm:$0xff]
  %v115 = vld [vmem:[%s0 + $0x320] sm:$0xff]
  %v116 = vld [vmem:[%s0 + $0x328] sm:$0xff]
  %v117 = vld [vmem:[%s0 + $0x330] sm:$0xff]
  %v118 = vld [vmem:[%s0 + $0x338] sm:$0xff]
  %v119 = vld [vmem:[%s0 + $0x340] sm:$0xff]
  %v120 = vld [vmem:[%s0 + $0x348] sm:$0xff]
  %v121 = vld [vmem:[%s0 + $0x350] sm:$0xff]
  %v122 = vld [vmem:[%s0 + $0x358] sm:$0xff]
  %v123 = vld [vmem:[%s0 + $0x360] sm:$0xff]
  %v124 = vld [vmem:[%s0 + $0x368] sm:$0xff]
  %v125 = vld [vmem:[%s0 + $0x370] sm:$0xff]
  %v126 = vld [vmem:[%s0 + $0x378] sm:$0xff]
  %v127 = vld [vmem:[%s0 + $0x380] sm:$0xff]
  %v128 = vld [vmem:[%s0 + $0x388] sm:$0xff]
  %v129 = vld [vmem:[%s0 + $0x390] sm:$0xff]
  %v130 = vld [vmem:[%s0 + $0x398] sm:$0xff]
  %v131 = vld [vmem:[%s0 + $0x3a0] sm:$0xff]
  %v132 = vld [vmem:[%s0 + $0x3a8] sm:$0xff]
  %v133 = vld [vmem:[%s0 + $0x3b0] sm:$0xff]
  %v134 = vld [vmem:[%s0 + $0x3b8] sm:$0xff]
  %v135 = vld [vmem:[%s0 + $0x3c0] sm:$0xff]
  %v136 = vld [vmem:[%s0 + $0x3c8] sm:$0xff]
  %v137 = vld [vmem:[%s0 + $0x3d0] sm:$0xff]
  %v138 = vld [vmem:[%s0 + $0x3d8] sm:$0xff]
  %v139 = vld [vmem:[%s0 + $0x3e0] sm:$0xff]
  %v140 = vld [vmem:[%s0 + $0x3e8] sm:$0xff]
  %v141 = vld [vmem:[%s0 + $0x3f0] sm:$0xff]
  %v142 = vld [vmem:[%s0 + $0x3f8] sm:$0xff]
  %v143 = vld [vmem:[%s0 + $0x400] sm:$0xff]
  %v144 = vld [vmem:[%s0 + $0x408] sm:$0xff]
  %v145 = vld [vmem:[%s0 + $0x410] sm:$0xff]
  %v146 = vld [vmem:[%s0 + $0x418] sm:$0xff]
  %v147 = vld [vmem:[%s0 + $0x420] sm:$0xff]
  %v148 = vld [vmem:[%s0 + $0x428] sm:$0xff]
  %v149 = vld [vmem:[%s0 + $0x430] sm:$0xff]
  %v150 = vld [vmem:[%s0 + $0x438] sm:$0xff]
  %v151 = vld [vmem:[%s0 + $0x440] sm:$0x11]
  %v152 = vld [vmem:[%s0 + $0x448] sm:$0x11]
  %v153 = vld [vmem:[%s1] sm:$0xf]
  %v154 = vld [vmem:[%s1 + $0x4] sm:$0xf]
  %v155 = vld [vmem:[%s1 + $0x8] sm:$0xf]
  %v156 = vld [vmem:[%s1 + $0xc] sm:$0xf]
  %v157 = vld [vmem:[%s1 + $0x10] sm:$0xf]
  %v158 = vld [vmem:[%s1 + $0x14] sm:$0xf]
  %v159 = vld [vmem:[%s1 + $0x18] sm:$0xf]
  %v160 = vld [vmem:[%s1 + $0x1c] sm:$0xf]
  %v161 = vld [vmem:[%s1 + $0x20] sm:$0xf]
  %v162 = vld [vmem:[%s1 + $0x24] sm:$0xf]
  %v163 = vld [vmem:[%s1 + $0x28] sm:$0xf]
  %v164 = vld [vmem:[%s1 + $0x2c] sm:$0xf]
  %v165 = vld [vmem:[%s1 + $0x30] sm:$0xf]
  %v166 = vld [vmem:[%s1 + $0x34] sm:$0xf]
  %v167 = vld [vmem:[%s1 + $0x38] sm:$0xf]
  %v168 = vld [vmem:[%s1 + $0x3c] sm:$0xf]
  %v169 = vld [vmem:[%s1 + $0x40] sm:$0xf]
  %v170 = vld [vmem:[%s1 + $0x44] sm:$0xf]
  %v171 = vld [vmem:[%s1 + $0x48] sm:$0xf]
  %v172 = vld [vmem:[%s1 + $0x4c] sm:$0xf]
  %v173 = vld [vmem:[%s1 + $0x50] sm:$0xf]
  %v174 = vld [vmem:[%s1 + $0x54] sm:$0xf]
  %v175 = vld [vmem:[%s1 + $0x58] sm:$0xf]
  %v176 = vld [vmem:[%s1 + $0x5c] sm:$0xf]
  %v177 = vld [vmem:[%s1 + $0x60] sm:$0xf]
  %v178 = vld [vmem:[%s1 + $0x64] sm:$0xf]
  %v179 = vld [vmem:[%s1 + $0x68] sm:$0xf]
  %v180 = vld [vmem:[%s1 + $0x6c] sm:$0xf]
  %v181 = vld [vmem:[%s1 + $0x70] sm:$0xf]
  %v182 = vld [vmem:[%s1 + $0x74] sm:$0xf]
  %v183 = vld [vmem:[%s1 + $0x78] sm:$0xf]
  %v184 = vld [vmem:[%s1 + $0x7c] sm:$0xf]
  %v185 = vld [vmem:[%s1 + $0x80] sm:$0xf]
  %v186 = vld [vmem:[%s1 + $0x84] sm:$0xf]
  %v187 = vld [vmem:[%s1 + $0x88] sm:$0xf]
  %v188 = vld [vmem:[%s1 + $0x8c] sm:$0xf]
  %v189 = vld [vmem:[%s1 + $0x90] sm:$0xf]
  %v190 = vld [vmem:[%s1 + $0x94] sm:$0xf]
  %v191 = vld [vmem:[%s1 + $0x98] sm:$0xf]
  %v192 = vld [vmem:[%s1 + $0x9c] sm:$0xf]
  %v193 = vld [vmem:[%s1 + $0xa0] sm:$0xf]
  %v194 = vld [vmem:[%s1 + $0xa4] sm:$0xf]
  %v195 = vld [vmem:[%s1 + $0xa8] sm:$0xf]
  %v196 = vld [vmem:[%s1 + $0xac] sm:$0xf]
  %v197 = vld [vmem:[%s1 + $0xb0] sm:$0xf]
  %v198 = vld [vmem:[%s1 + $0xb4] sm:$0xf]
  %v199 = vld [vmem:[%s1 + $0xb8] sm:$0xf]
  %v200 = vld [vmem:[%s1 + $0xbc] sm:$0xf]
  %v201 = vld [vmem:[%s1 + $0xc0] sm:$0xf]
  %v202 = vld [vmem:[%s1 + $0xc4] sm:$0xf]
  %v203 = vld [vmem:[%s1 + $0xc8] sm:$0xf]
  %v204 = vld [vmem:[%s1 + $0xcc] sm:$0xf]
  %v205 = vld [vmem:[%s1 + $0xd0] sm:$0xf]
  %v206 = vld [vmem:[%s1 + $0xd4] sm:$0xf]
  %v207 = vld [vmem:[%s1 + $0xd8] sm:$0xf]
  %v208 = vld [vmem:[%s1 + $0xdc] sm:$0xf]
  %v209 = vld [vmem:[%s1 + $0xe0] sm:$0xf]
  %v210 = vld [vmem:[%s1 + $0xe4] sm:$0xf]
  %v211 = vld [vmem:[%s1 + $0xe8] sm:$0xf]
  %v212 = vld [vmem:[%s1 + $0xec] sm:$0xf]
  %v213 = vld [vmem:[%s1 + $0xf0] sm:$0x3]
  %v214 = vld [vmem:[%s2] sm:$0x1]
  %v216 = vperm.slane %v214, 0
  %v356 = vunpack.c.l.b16 %v15
  %v357 = vunpack.c.h.b16 %v15
  %v358 = vunpack.c.l.b16 %v16
  %v359 = vunpack.c.h.b16 %v16
  %v360 = vunpack.c.l.b16 %v17
  %v361 = vunpack.c.h.b16 %v17
  %v362 = vunpack.c.l.b16 %v18
  %v363 = vunpack.c.h.b16 %v18
  %v364 = vunpack.c.l.b16 %v19
  %v365 = vunpack.c.h.b16 %v19
  %v366 = vunpack.c.l.b16 %v20
  %v367 = vunpack.c.h.b16 %v20
  %v368 = vunpack.c.l.b16 %v21
  %v369 = vunpack.c.h.b16 %v21
  %v370 = vunpack.c.l.b16 %v22
  %v371 = vunpack.c.h.b16 %v22
  %v372 = vunpack.c.l.b16 %v23
  %v373 = vunpack.c.h.b16 %v23
  %v374 = vunpack.c.l.b16 %v24
  %v375 = vunpack.c.h.b16 %v24
  %v376 = vunpack.c.l.b16 %v25
  %v377 = vunpack.c.h.b16 %v25
  %v378 = vunpack.c.l.b16 %v26
  %v379 = vunpack.c.h.b16 %v26
  %v380 = vunpack.c.l.b16 %v27
  %v381 = vunpack.c.h.b16 %v27
  %v382 = vunpack.c.l.b16 %v28
  %v383 = vunpack.c.h.b16 %v28
  %v384 = vunpack.c.l.b16 %v29
  %v385 = vunpack.c.h.b16 %v29
  %v386 = vunpack.c.l.b16 %v30
  %v387 = vunpack.c.h.b16 %v30
  %v388 = vunpack.c.l.b16 %v31
  %v389 = vunpack.c.h.b16 %v31
  %v390 = vunpack.c.l.b16 %v32
  %v391 = vunpack.c.h.b16 %v32
  %v392 = vunpack.c.l.b16 %v33
  %v393 = vunpack.c.h.b16 %v33
  %v394 = vunpack.c.l.b16 %v34
  %v395 = vunpack.c.h.b16 %v34
  %v396 = vunpack.c.l.b16 %v35
  %v397 = vunpack.c.h.b16 %v35
  %v398 = vunpack.c.l.b16 %v36
  %v399 = vunpack.c.h.b16 %v36
  %v400 = vunpack.c.l.b16 %v37
  %v401 = vunpack.c.h.b16 %v37
  %v402 = vunpack.c.l.b16 %v38
  %v403 = vunpack.c.h.b16 %v38
  %v404 = vunpack.c.l.b16 %v39
  %v405 = vunpack.c.h.b16 %v39
  %v406 = vunpack.c.l.b16 %v40
  %v407 = vunpack.c.h.b16 %v40
  %v408 = vunpack.c.l.b16 %v41
  %v409 = vunpack.c.h.b16 %v41
  %v410 = vunpack.c.l.b16 %v42
  %v411 = vunpack.c.h.b16 %v42
  %v412 = vunpack.c.l.b16 %v43
  %v413 = vunpack.c.h.b16 %v43
  %v414 = vunpack.c.l.b16 %v44
  %v415 = vunpack.c.h.b16 %v44
  %v416 = vunpack.c.l.b16 %v45
  %v417 = vunpack.c.h.b16 %v45
  %v418 = vunpack.c.l.b16 %v46
  %v419 = vunpack.c.h.b16 %v46
  %v420 = vunpack.c.l.b16 %v47
  %v421 = vunpack.c.h.b16 %v47
  %v422 = vunpack.c.l.b16 %v48
  %v423 = vunpack.c.h.b16 %v48
  %v424 = vunpack.c.l.b16 %v49
  %v425 = vunpack.c.h.b16 %v49
  %v426 = vunpack.c.l.b16 %v50
  %v427 = vunpack.c.h.b16 %v50
  %v428 = vunpack.c.l.b16 %v51
  %v429 = vunpack.c.h.b16 %v51
  %v430 = vunpack.c.l.b16 %v52
  %v431 = vunpack.c.h.b16 %v52
  %v432 = vunpack.c.l.b16 %v53
  %v433 = vunpack.c.h.b16 %v53
  %v434 = vunpack.c.l.b16 %v54
  %v435 = vunpack.c.h.b16 %v54
  %v436 = vunpack.c.l.b16 %v55
  %v437 = vunpack.c.h.b16 %v55
  %v438 = vunpack.c.l.b16 %v56
  %v439 = vunpack.c.h.b16 %v56
  %v440 = vunpack.c.l.b16 %v57
  %v441 = vunpack.c.h.b16 %v57
  %v442 = vunpack.c.l.b16 %v58
  %v443 = vunpack.c.h.b16 %v58
  %v444 = vunpack.c.l.b16 %v59
  %v445 = vunpack.c.h.b16 %v59
  %v446 = vunpack.c.l.b16 %v60
  %v447 = vunpack.c.h.b16 %v60
  %v448 = vunpack.c.l.b16 %v61
  %v449 = vunpack.c.h.b16 %v61
  %v450 = vunpack.c.l.b16 %v62
  %v451 = vunpack.c.h.b16 %v62
  %v452 = vunpack.c.l.b16 %v63
  %v453 = vunpack.c.h.b16 %v63
  %v454 = vunpack.c.l.b16 %v64
  %v455 = vunpack.c.h.b16 %v64
  %v456 = vunpack.c.l.b16 %v65
  %v457 = vunpack.c.h.b16 %v65
  %v458 = vunpack.c.l.b16 %v66
  %v459 = vunpack.c.h.b16 %v66
  %v460 = vunpack.c.l.b16 %v67
  %v461 = vunpack.c.h.b16 %v67
  %v462 = vunpack.c.l.b16 %v68
  %v463 = vunpack.c.h.b16 %v68
  %v464 = vunpack.c.l.b16 %v69
  %v465 = vunpack.c.h.b16 %v69
  %v466 = vunpack.c.l.b16 %v70
  %v467 = vunpack.c.h.b16 %v70
  %v468 = vunpack.c.l.b16 %v71
  %v469 = vunpack.c.h.b16 %v71
  %v470 = vunpack.c.l.b16 %v72
  %v471 = vunpack.c.h.b16 %v72
  %v472 = vunpack.c.l.b16 %v73
  %v473 = vunpack.c.h.b16 %v73
  %v474 = vunpack.c.l.b16 %v74
  %v475 = vunpack.c.h.b16 %v74
  %v476 = vunpack.c.l.b16 %v75
  %v477 = vunpack.c.h.b16 %v75
  %v478 = vunpack.c.l.b16 %v76
  %v479 = vunpack.c.h.b16 %v76
  %v480 = vunpack.c.l.b16 %v77
  %v481 = vunpack.c.h.b16 %v77
  %v482 = vunpack.c.l.b16 %v78
  %v483 = vunpack.c.h.b16 %v78
  %v484 = vunpack.c.l.b16 %v79
  %v485 = vunpack.c.h.b16 %v79
  %v486 = vunpack.c.l.b16 %v80
  %v487 = vunpack.c.h.b16 %v80
  %v488 = vunpack.c.l.b16 %v81
  %v489 = vunpack.c.h.b16 %v81
  %v490 = vunpack.c.l.b16 %v82
  %v491 = vunpack.c.h.b16 %v82
  %v492 = vunpack.c.l.b16 %v83
  %v493 = vunpack.c.h.b16 %v83
  %v494 = vunpack.c.l.b16 %v84
  %v495 = vunpack.c.h.b16 %v84
  %v496 = vunpack.c.l.b16 %v85
  %v497 = vunpack.c.h.b16 %v85
  %v498 = vunpack.c.l.b16 %v86
  %v499 = vunpack.c.h.b16 %v86
  %v500 = vunpack.c.l.b16 %v87
  %v501 = vunpack.c.h.b16 %v87
  %v502 = vunpack.c.l.b16 %v88
  %v503 = vunpack.c.h.b16 %v88
  %v504 = vunpack.c.l.b16 %v89
  %v505 = vunpack.c.h.b16 %v89
  %v506 = vunpack.c.l.b16 %v90
  %v507 = vunpack.c.h.b16 %v90
  %v508 = vunpack.c.l.b16 %v91
  %v509 = vunpack.c.h.b16 %v91
  %v510 = vunpack.c.l.b16 %v92
  %v511 = vunpack.c.h.b16 %v92
  %v512 = vunpack.c.l.b16 %v93
  %v513 = vunpack.c.h.b16 %v93
  %v514 = vunpack.c.l.b16 %v94
  %v515 = vunpack.c.h.b16 %v94
  %v516 = vunpack.c.l.b16 %v95
  %v517 = vunpack.c.h.b16 %v95
  %v518 = vunpack.c.l.b16 %v96
  %v519 = vunpack.c.h.b16 %v96
  %v520 = vunpack.c.l.b16 %v97
  %v521 = vunpack.c.h.b16 %v97
  %v522 = vunpack.c.l.b16 %v98
  %v523 = vunpack.c.h.b16 %v98
  %v524 = vunpack.c.l.b16 %v99
  %v525 = vunpack.c.h.b16 %v99
  %v526 = vunpack.c.l.b16 %v100
  %v527 = vunpack.c.h.b16 %v100
  %v528 = vunpack.c.l.b16 %v101
  %v529 = vunpack.c.h.b16 %v101
  %v530 = vunpack.c.l.b16 %v102
  %v531 = vunpack.c.h.b16 %v102
  %v532 = vunpack.c.l.b16 %v103
  %v533 = vunpack.c.h.b16 %v103
  %v534 = vunpack.c.l.b16 %v104
  %v535 = vunpack.c.h.b16 %v104
  %v536 = vunpack.c.l.b16 %v105
  %v537 = vunpack.c.h.b16 %v105
  %v538 = vunpack.c.l.b16 %v106
  %v539 = vunpack.c.h.b16 %v106
  %v540 = vunpack.c.l.b16 %v107
  %v541 = vunpack.c.h.b16 %v107
  %v542 = vunpack.c.l.b16 %v108
  %v543 = vunpack.c.h.b16 %v108
  %v544 = vunpack.c.l.b16 %v109
  %v545 = vunpack.c.h.b16 %v109
  %v546 = vunpack.c.l.b16 %v110
  %v547 = vunpack.c.h.b16 %v110
  %v548 = vunpack.c.l.b16 %v111
  %v549 = vunpack.c.h.b16 %v111
  %v550 = vunpack.c.l.b16 %v112
  %v551 = vunpack.c.h.b16 %v112
  %v552 = vunpack.c.l.b16 %v113
  %v553 = vunpack.c.h.b16 %v113
  %v554 = vunpack.c.l.b16 %v114
  %v555 = vunpack.c.h.b16 %v114
  %v556 = vunpack.c.l.b16 %v115
  %v557 = vunpack.c.h.b16 %v115
  %v558 = vunpack.c.l.b16 %v116
  %v559 = vunpack.c.h.b16 %v116
  %v560 = vunpack.c.l.b16 %v117
  %v561 = vunpack.c.h.b16 %v117
  %v562 = vunpack.c.l.b16 %v118
  %v563 = vunpack.c.h.b16 %v118
  %v564 = vunpack.c.l.b16 %v119
  %v565 = vunpack.c.h.b16 %v119
  %v566 = vunpack.c.l.b16 %v120
  %v567 = vunpack.c.h.b16 %v120
  %v568 = vunpack.c.l.b16 %v121
  %v569 = vunpack.c.h.b16 %v121
  %v570 = vunpack.c.l.b16 %v122
  %v571 = vunpack.c.h.b16 %v122
  %v572 = vunpack.c.l.b16 %v123
  %v573 = vunpack.c.h.b16 %v123
  %v574 = vunpack.c.l.b16 %v124
  %v575 = vunpack.c.h.b16 %v124
  %v576 = vunpack.c.l.b16 %v125
  %v577 = vunpack.c.h.b16 %v125
  %v578 = vunpack.c.l.b16 %v126
  %v579 = vunpack.c.h.b16 %v126
  %v580 = vunpack.c.l.b16 %v127
  %v581 = vunpack.c.h.b16 %v127
  %v582 = vunpack.c.l.b16 %v128
  %v583 = vunpack.c.h.b16 %v128
  %v584 = vunpack.c.l.b16 %v129
  %v585 = vunpack.c.h.b16 %v129
  %v586 = vunpack.c.l.b16 %v130
  %v587 = vunpack.c.h.b16 %v130
  %v588 = vunpack.c.l.b16 %v131
  %v589 = vunpack.c.h.b16 %v131
  %v590 = vunpack.c.l.b16 %v132
  %v591 = vunpack.c.h.b16 %v132
  %v592 = vunpack.c.l.b16 %v133
  %v593 = vunpack.c.h.b16 %v133
  %v594 = vunpack.c.l.b16 %v134
  %v595 = vunpack.c.h.b16 %v134
  %v596 = vunpack.c.l.b16 %v135
  %v597 = vunpack.c.h.b16 %v135
  %v598 = vunpack.c.l.b16 %v136
  %v599 = vunpack.c.h.b16 %v136
  %v600 = vunpack.c.l.b16 %v137
  %v601 = vunpack.c.h.b16 %v137
  %v602 = vunpack.c.l.b16 %v138
  %v603 = vunpack.c.h.b16 %v138
  %v604 = vunpack.c.l.b16 %v139
  %v605 = vunpack.c.h.b16 %v139
  %v606 = vunpack.c.l.b16 %v140
  %v607 = vunpack.c.h.b16 %v140
  %v608 = vunpack.c.l.b16 %v141
  %v609 = vunpack.c.h.b16 %v141
  %v610 = vunpack.c.l.b16 %v142
  %v611 = vunpack.c.h.b16 %v142
  %v612 = vunpack.c.l.b16 %v143
  %v613 = vunpack.c.h.b16 %v143
  %v614 = vunpack.c.l.b16 %v144
  %v615 = vunpack.c.h.b16 %v144
  %v616 = vunpack.c.l.b16 %v145
  %v617 = vunpack.c.h.b16 %v145
  %v618 = vunpack.c.l.b16 %v146
  %v619 = vunpack.c.h.b16 %v146
  %v620 = vunpack.c.l.b16 %v147
  %v621 = vunpack.c.h.b16 %v147
  %v622 = vunpack.c.l.b16 %v148
  %v623 = vunpack.c.h.b16 %v148
  %v624 = vunpack.c.l.b16 %v149
  %v625 = vunpack.c.h.b16 %v149
  %v626 = vunpack.c.l.b16 %v150
  %v627 = vunpack.c.h.b16 %v150
  %v628 = vunpack.c.l.b16 %v151
  %v629 = vunpack.c.h.b16 %v151
  %v630 = vunpack.c.l.b16 %v152
  %v631 = vunpack.c.h.b16 %v152
  %v632 = vpack.c.b16 %v360, %v356
  %v633 = vpack.c.b16 %v361, %v357
  %v634 = vpack.c.b16 %v362, %v358
  %v635 = vpack.c.b16 %v363, %v359
  %v636 = vpack.c.b16 %v368, %v364
  %v637 = vpack.c.b16 %v369, %v365
  %v638 = vpack.c.b16 %v370, %v366
  %v639 = vpack.c.b16 %v371, %v367
  %v640 = vpack.c.b16 %v376, %v372
  %v641 = vpack.c.b16 %v377, %v373
  %v642 = vpack.c.b16 %v378, %v374
  %v643 = vpack.c.b16 %v379, %v375
  %v644 = vpack.c.b16 %v384, %v380
  %v645 = vpack.c.b16 %v385, %v381
  %v646 = vpack.c.b16 %v386, %v382
  %v647 = vpack.c.b16 %v387, %v383
  %v648 = vpack.c.b16 %v392, %v388
  %v649 = vpack.c.b16 %v393, %v389
  %v650 = vpack.c.b16 %v394, %v390
  %v651 = vpack.c.b16 %v395, %v391
  %v652 = vpack.c.b16 %v400, %v396
  %v653 = vpack.c.b16 %v401, %v397
  %v654 = vpack.c.b16 %v402, %v398
  %v655 = vpack.c.b16 %v403, %v399
  %v656 = vpack.c.b16 %v408, %v404
  %v657 = vpack.c.b16 %v409, %v405
  %v658 = vpack.c.b16 %v410, %v406
  %v659 = vpack.c.b16 %v411, %v407
  %v660 = vpack.c.b16 %v416, %v412
  %v661 = vpack.c.b16 %v417, %v413
  %v662 = vpack.c.b16 %v418, %v414
  %v663 = vpack.c.b16 %v419, %v415
  %v664 = vpack.c.b16 %v424, %v420
  %v665 = vpack.c.b16 %v425, %v421
  %v666 = vpack.c.b16 %v426, %v422
  %v667 = vpack.c.b16 %v427, %v423
  %v668 = vpack.c.b16 %v432, %v428
  %v669 = vpack.c.b16 %v433, %v429
  %v670 = vpack.c.b16 %v434, %v430
  %v671 = vpack.c.b16 %v435, %v431
  %v672 = vpack.c.b16 %v440, %v436
  %v673 = vpack.c.b16 %v441, %v437
  %v674 = vpack.c.b16 %v442, %v438
  %v675 = vpack.c.b16 %v443, %v439
  %v676 = vpack.c.b16 %v448, %v444
  %v677 = vpack.c.b16 %v449, %v445
  %v678 = vpack.c.b16 %v450, %v446
  %v679 = vpack.c.b16 %v451, %v447
  %v680 = vpack.c.b16 %v456, %v452
  %v681 = vpack.c.b16 %v457, %v453
  %v682 = vpack.c.b16 %v458, %v454
  %v683 = vpack.c.b16 %v459, %v455
  %v684 = vpack.c.b16 %v464, %v460
  %v685 = vpack.c.b16 %v465, %v461
  %v686 = vpack.c.b16 %v466, %v462
  %v687 = vpack.c.b16 %v467, %v463
  %v688 = vpack.c.b16 %v472, %v468
  %v689 = vpack.c.b16 %v473, %v469
  %v690 = vpack.c.b16 %v474, %v470
  %v691 = vpack.c.b16 %v475, %v471
  %v692 = vpack.c.b16 %v480, %v476
  %v693 = vpack.c.b16 %v481, %v477
  %v694 = vpack.c.b16 %v482, %v478
  %v695 = vpack.c.b16 %v483, %v479
  %v696 = vpack.c.b16 %v488, %v484
  %v697 = vpack.c.b16 %v489, %v485
  %v698 = vpack.c.b16 %v490, %v486
  %v699 = vpack.c.b16 %v491, %v487
  %v700 = vpack.c.b16 %v496, %v492
  %v701 = vpack.c.b16 %v497, %v493
  %v702 = vpack.c.b16 %v498, %v494
  %v703 = vpack.c.b16 %v499, %v495
  %v704 = vpack.c.b16 %v504, %v500
  %v705 = vpack.c.b16 %v505, %v501
  %v706 = vpack.c.b16 %v506, %v502
  %v707 = vpack.c.b16 %v507, %v503
  %v708 = vpack.c.b16 %v512, %v508
  %v709 = vpack.c.b16 %v513, %v509
  %v710 = vpack.c.b16 %v514, %v510
  %v711 = vpack.c.b16 %v515, %v511
  %v712 = vpack.c.b16 %v520, %v516
  %v713 = vpack.c.b16 %v521, %v517
  %v714 = vpack.c.b16 %v522, %v518
  %v715 = vpack.c.b16 %v523, %v519
  %v716 = vpack.c.b16 %v528, %v524
  %v717 = vpack.c.b16 %v529, %v525
  %v718 = vpack.c.b16 %v530, %v526
  %v719 = vpack.c.b16 %v531, %v527
  %v720 = vpack.c.b16 %v536, %v532
  %v721 = vpack.c.b16 %v537, %v533
  %v722 = vpack.c.b16 %v538, %v534
  %v723 = vpack.c.b16 %v539, %v535
  %v724 = vpack.c.b16 %v544, %v540
  %v725 = vpack.c.b16 %v545, %v541
  %v726 = vpack.c.b16 %v546, %v542
  %v727 = vpack.c.b16 %v547, %v543
  %v728 = vpack.c.b16 %v552, %v548
  %v729 = vpack.c.b16 %v553, %v549
  %v730 = vpack.c.b16 %v554, %v550
  %v731 = vpack.c.b16 %v555, %v551
  %v732 = vpack.c.b16 %v560, %v556
  %v733 = vpack.c.b16 %v561, %v557
  %v734 = vpack.c.b16 %v562, %v558
  %v735 = vpack.c.b16 %v563, %v559
  %v736 = vpack.c.b16 %v568, %v564
  %v737 = vpack.c.b16 %v569, %v565
  %v738 = vpack.c.b16 %v570, %v566
  %v739 = vpack.c.b16 %v571, %v567
  %v740 = vpack.c.b16 %v576, %v572
  %v741 = vpack.c.b16 %v577, %v573
  %v742 = vpack.c.b16 %v578, %v574
  %v743 = vpack.c.b16 %v579, %v575
  %v744 = vpack.c.b16 %v584, %v580
  %v745 = vpack.c.b16 %v585, %v581
  %v746 = vpack.c.b16 %v586, %v582
  %v747 = vpack.c.b16 %v587, %v583
  %v748 = vpack.c.b16 %v592, %v588
  %v749 = vpack.c.b16 %v593, %v589
  %v750 = vpack.c.b16 %v594, %v590
  %v751 = vpack.c.b16 %v595, %v591
  %v752 = vpack.c.b16 %v600, %v596
  %v753 = vpack.c.b16 %v601, %v597
  %v754 = vpack.c.b16 %v602, %v598
  %v755 = vpack.c.b16 %v603, %v599
  %v756 = vpack.c.b16 %v608, %v604
  %v757 = vpack.c.b16 %v609, %v605
  %v758 = vpack.c.b16 %v610, %v606
  %v759 = vpack.c.b16 %v611, %v607
  %v760 = vpack.c.b16 %v616, %v612
  %v761 = vpack.c.b16 %v617, %v613
  %v762 = vpack.c.b16 %v618, %v614
  %v763 = vpack.c.b16 %v619, %v615
  %v764 = vpack.c.b16 %v624, %v620
  %v765 = vpack.c.b16 %v625, %v621
  %v766 = vpack.c.b16 %v626, %v622
  %v767 = vpack.c.b16 %v627, %v623
  %v768 = vpack.c.b16 %v628, %v628
  %v769 = vpack.c.b16 %v629, %v629
  %v770 = vpack.c.b16 %v630, %v630
  %v771 = vpack.c.b16 %v631, %v631
  %v938 = vunpack.c.l.b16 %v153
  %v939 = vunpack.c.l.b16 %v154
  %v940 = vunpack.c.l.b16 %v155
  %v941 = vunpack.c.l.b16 %v156
  %v942 = vunpack.c.l.b16 %v157
  %v943 = vunpack.c.l.b16 %v158
  %v944 = vunpack.c.l.b16 %v159
  %v945 = vunpack.c.l.b16 %v160
  %v946 = vunpack.c.l.b16 %v161
  %v947 = vunpack.c.l.b16 %v162
  %v948 = vunpack.c.l.b16 %v163
  %v949 = vunpack.c.l.b16 %v164
  %v950 = vunpack.c.l.b16 %v165
  %v951 = vunpack.c.l.b16 %v166
  %v952 = vunpack.c.l.b16 %v167
  %v953 = vunpack.c.l.b16 %v168
  %v954 = vunpack.c.l.b16 %v169
  %v955 = vunpack.c.l.b16 %v170
  %v956 = vunpack.c.l.b16 %v171
  %v957 = vunpack.c.l.b16 %v172
  %v958 = vunpack.c.l.b16 %v173
  %v959 = vunpack.c.l.b16 %v174
  %v960 = vunpack.c.l.b16 %v175
  %v961 = vunpack.c.l.b16 %v176
  %v962 = vunpack.c.l.b16 %v177
  %v963 = vunpack.c.l.b16 %v178
  %v964 = vunpack.c.l.b16 %v179
  %v965 = vunpack.c.l.b16 %v180
  %v966 = vunpack.c.l.b16 %v181
  %v967 = vunpack.c.l.b16 %v182
  %v968 = vunpack.c.l.b16 %v183
  %v969 = vunpack.c.l.b16 %v184
  %v970 = vunpack.c.l.b16 %v185
  %v971 = vunpack.c.l.b16 %v186
  %v972 = vunpack.c.l.b16 %v187
  %v973 = vunpack.c.l.b16 %v188
  %v974 = vunpack.c.l.b16 %v189
  %v975 = vunpack.c.l.b16 %v190
  %v976 = vunpack.c.l.b16 %v191
  %v977 = vunpack.c.l.b16 %v192
  %v978 = vunpack.c.l.b16 %v193
  %v979 = vunpack.c.l.b16 %v194
  %v980 = vunpack.c.l.b16 %v195
  %v981 = vunpack.c.l.b16 %v196
  %v982 = vunpack.c.l.b16 %v197
  %v983 = vunpack.c.l.b16 %v198
  %v984 = vunpack.c.l.b16 %v199
  %v985 = vunpack.c.l.b16 %v200
  %v986 = vunpack.c.l.b16 %v201
  %v987 = vunpack.c.l.b16 %v202
  %v988 = vunpack.c.l.b16 %v203
  %v989 = vunpack.c.l.b16 %v204
  %v990 = vunpack.c.l.b16 %v205
  %v991 = vunpack.c.l.b16 %v206
  %v992 = vunpack.c.l.b16 %v207
  %v993 = vunpack.c.l.b16 %v208
  %v994 = vunpack.c.l.b16 %v209
  %v995 = vunpack.c.l.b16 %v210
  %v996 = vunpack.c.l.b16 %v211
  %v997 = vunpack.c.l.b16 %v212
  %v998 = vunpack.c.l.b16 %v213
  %v999 = vpack.c.b16 %v939, %v938
  %v1000 = vpack.c.b16 %v941, %v940
  %v1001 = vpack.c.b16 %v943, %v942
  %v1002 = vpack.c.b16 %v945, %v944
  %v1003 = vpack.c.b16 %v947, %v946
  %v1004 = vpack.c.b16 %v949, %v948
  %v1005 = vpack.c.b16 %v951, %v950
  %v1006 = vpack.c.b16 %v953, %v952
  %v1007 = vpack.c.b16 %v955, %v954
  %v1008 = vpack.c.b16 %v957, %v956
  %v1009 = vpack.c.b16 %v959, %v958
  %v1010 = vpack.c.b16 %v961, %v960
  %v1011 = vpack.c.b16 %v963, %v962
  %v1012 = vpack.c.b16 %v965, %v964
  %v1013 = vpack.c.b16 %v967, %v966
  %v1014 = vpack.c.b16 %v969, %v968
  %v1015 = vpack.c.b16 %v971, %v970
  %v1016 = vpack.c.b16 %v973, %v972
  %v1017 = vpack.c.b16 %v975, %v974
  %v1018 = vpack.c.b16 %v977, %v976
  %v1019 = vpack.c.b16 %v979, %v978
  %v1020 = vpack.c.b16 %v981, %v980
  %v1021 = vpack.c.b16 %v983, %v982
  %v1022 = vpack.c.b16 %v985, %v984
  %v1023 = vpack.c.b16 %v987, %v986
  %v1024 = vpack.c.b16 %v989, %v988
  %v1025 = vpack.c.b16 %v991, %v990
  %v1026 = vpack.c.b16 %v993, %v992
  %v1027 = vpack.c.b16 %v995, %v994
  %v1028 = vpack.c.b16 %v997, %v996
  %v1029 = vpack.c.b16 %v998, %v998
  %vm1060 = vcmask 818176
  %v1062 = vsel %vm1060, %v635, 0
  %v1065 = vsel %vm1060, %v639, 0
  %v1068 = vsel %vm1060, %v643, 0
  %v1071 = vsel %vm1060, %v647, 0
  %v1074 = vsel %vm1060, %v651, 0
  %v1077 = vsel %vm1060, %v655, 0
  %v1080 = vsel %vm1060, %v659, 0
  %v1083 = vsel %vm1060, %v663, 0
  %v1086 = vsel %vm1060, %v667, 0
  %v1089 = vsel %vm1060, %v671, 0
  %v1092 = vsel %vm1060, %v675, 0
  %v1095 = vsel %vm1060, %v679, 0
  %v1098 = vsel %vm1060, %v683, 0
  %v1101 = vsel %vm1060, %v687, 0
  %v1104 = vsel %vm1060, %v691, 0
  %v1107 = vsel %vm1060, %v695, 0
  %v1110 = vsel %vm1060, %v699, 0
  %v1113 = vsel %vm1060, %v703, 0
  %v1116 = vsel %vm1060, %v707, 0
  %v1119 = vsel %vm1060, %v711, 0
  %v1122 = vsel %vm1060, %v715, 0
  %v1125 = vsel %vm1060, %v719, 0
  %v1128 = vsel %vm1060, %v723, 0
  %v1131 = vsel %vm1060, %v727, 0
  %v1134 = vsel %vm1060, %v731, 0
  %v1137 = vsel %vm1060, %v735, 0
  %v1140 = vsel %vm1060, %v739, 0
  %v1143 = vsel %vm1060, %v743, 0
  %v1146 = vsel %vm1060, %v747, 0
  %v1149 = vsel %vm1060, %v751, 0
  %v1152 = vsel %vm1060, %v755, 0
  %v1155 = vsel %vm1060, %v759, 0
  %v1158 = vsel %vm1060, %v763, 0
  %v1161 = vsel %vm1060, %v767, 0
  %v1164 = vsel %vm1060, %v771, 0
  %vm1166 = vcmask 1041408
  %v1168 = vsel %vm1166, %v1029, 0
  %1170 = vmatpush.bf16.msra.mxu0 %v1006
  %1171 = vmatpush.bf16.msra.mxu0 %v1005
  %1172 = vmatpush.bf16.msra.mxu0 %v1004
  %1173 = vmatpush.bf16.msra.mxu0 %v1003
  %1174 = vmatpush.bf16.msra.mxu0 %v1002
  %1175 = vmatpush.bf16.msra.mxu0 %v1001
  %1176 = vmatpush.bf16.msra.mxu0 %v1000
  %1177 = vmatpush.bf16.msra.mxu0 %v999
  %1178 = vmatmul.bf16.gmra.mxu0 %v632
  %v1179 = vpop.f32.mrf.mxu0
  %v1180 = vadd.f32 %v216, %v1179
  %v1181 = vpop.f32.mrf.mxu0
  %v1182 = vadd.f32 %v216, %v1181
  %1183 = vmatmul.bf16.gmra.mxu0 %v636
  %v1184 = vpop.f32.mrf.mxu0
  %v1185 = vadd.f32 %v216, %v1184
  %v1186 = vpop.f32.mrf.mxu0
  %v1187 = vadd.f32 %v216, %v1186
  %1188 = vmatmul.bf16.gmra.mxu0 %v640
  %v1189 = vpop.f32.mrf.mxu0
  %v1190 = vadd.f32 %v216, %v1189
  %v1191 = vpop.f32.mrf.mxu0
  %v1192 = vadd.f32 %v216, %v1191
  %1193 = vmatmul.bf16.gmra.mxu0 %v644
  %v1194 = vpop.f32.mrf.mxu0
  %v1195 = vadd.f32 %v216, %v1194
  %v1196 = vpop.f32.mrf.mxu0
  %v1197 = vadd.f32 %v216, %v1196
  %1198 = vmatmul.bf16.gmra.mxu0 %v648
  %v1199 = vpop.f32.mrf.mxu0
  %v1200 = vadd.f32 %v216, %v1199
  %v1201 = vpop.f32.mrf.mxu0
  %v1202 = vadd.f32 %v216, %v1201
  %1203 = vmatmul.bf16.gmra.mxu0 %v652
  %v1204 = vpop.f32.mrf.mxu0
  %v1205 = vadd.f32 %v216, %v1204
  %v1206 = vpop.f32.mrf.mxu0
  %v1207 = vadd.f32 %v216, %v1206
  %1208 = vmatmul.bf16.gmra.mxu0 %v656
  %v1209 = vpop.f32.mrf.mxu0
  %v1210 = vadd.f32 %v216, %v1209
  %v1211 = vpop.f32.mrf.mxu0
  %v1212 = vadd.f32 %v216, %v1211
  %1213 = vmatmul.bf16.gmra.mxu0 %v660
  %v1214 = vpop.f32.mrf.mxu0
  %v1215 = vadd.f32 %v216, %v1214
  %v1216 = vpop.f32.mrf.mxu0
  %v1217 = vadd.f32 %v216, %v1216
  %1218 = vmatmul.bf16.gmra.mxu0 %v664
  %v1219 = vpop.f32.mrf.mxu0
  %v1220 = vadd.f32 %v216, %v1219
  %v1221 = vpop.f32.mrf.mxu0
  %v1222 = vadd.f32 %v216, %v1221
  %1223 = vmatmul.bf16.gmra.mxu0 %v668
  %v1224 = vpop.f32.mrf.mxu0
  %v1225 = vadd.f32 %v216, %v1224
  %v1226 = vpop.f32.mrf.mxu0
  %v1227 = vadd.f32 %v216, %v1226
  %1228 = vmatmul.bf16.gmra.mxu0 %v672
  %v1229 = vpop.f32.mrf.mxu0
  %v1230 = vadd.f32 %v216, %v1229
  %v1231 = vpop.f32.mrf.mxu0
  %v1232 = vadd.f32 %v216, %v1231
  %1233 = vmatmul.bf16.gmra.mxu0 %v676
  %v1234 = vpop.f32.mrf.mxu0
  %v1235 = vadd.f32 %v216, %v1234
  %v1236 = vpop.f32.mrf.mxu0
  %v1237 = vadd.f32 %v216, %v1236
  %1238 = vmatmul.bf16.gmra.mxu0 %v680
  %v1239 = vpop.f32.mrf.mxu0
  %v1240 = vadd.f32 %v216, %v1239
  %v1241 = vpop.f32.mrf.mxu0
  %v1242 = vadd.f32 %v216, %v1241
  %1243 = vmatmul.bf16.gmra.mxu0 %v684
  %v1244 = vpop.f32.mrf.mxu0
  %v1245 = vadd.f32 %v216, %v1244
  %v1246 = vpop.f32.mrf.mxu0
  %v1247 = vadd.f32 %v216, %v1246
  %1248 = vmatmul.bf16.gmra.mxu0 %v688
  %v1249 = vpop.f32.mrf.mxu0
  %v1250 = vadd.f32 %v216, %v1249
  %v1251 = vpop.f32.mrf.mxu0
  %v1252 = vadd.f32 %v216, %v1251
  %1253 = vmatmul.bf16.gmra.mxu0 %v692
  %v1254 = vpop.f32.mrf.mxu0
  %v1255 = vadd.f32 %v216, %v1254
  %v1256 = vpop.f32.mrf.mxu0
  %v1257 = vadd.f32 %v216, %v1256
  %1258 = vmatmul.bf16.gmra.mxu0 %v696
  %v1259 = vpop.f32.mrf.mxu0
  %v1260 = vadd.f32 %v216, %v1259
  %v1261 = vpop.f32.mrf.mxu0
  %v1262 = vadd.f32 %v216, %v1261
  %1263 = vmatmul.bf16.gmra.mxu0 %v700
  %v1264 = vpop.f32.mrf.mxu0
  %v1265 = vadd.f32 %v216, %v1264
  %v1266 = vpop.f32.mrf.mxu0
  %v1267 = vadd.f32 %v216, %v1266
  %1268 = vmatmul.bf16.gmra.mxu0 %v704
  %v1269 = vpop.f32.mrf.mxu0
  %v1270 = vadd.f32 %v216, %v1269
  %v1271 = vpop.f32.mrf.mxu0
  %v1272 = vadd.f32 %v216, %v1271
  %1273 = vmatmul.bf16.gmra.mxu0 %v708
  %v1274 = vpop.f32.mrf.mxu0
  %v1275 = vadd.f32 %v216, %v1274
  %v1276 = vpop.f32.mrf.mxu0
  %v1277 = vadd.f32 %v216, %v1276
  %1278 = vmatmul.bf16.gmra.mxu0 %v712
  %v1279 = vpop.f32.mrf.mxu0
  %v1280 = vadd.f32 %v216, %v1279
  %v1281 = vpop.f32.mrf.mxu0
  %v1282 = vadd.f32 %v216, %v1281
  %1283 = vmatmul.bf16.gmra.mxu0 %v716
  %v1284 = vpop.f32.mrf.mxu0
  %v1285 = vadd.f32 %v216, %v1284
  %v1286 = vpop.f32.mrf.mxu0
  %v1287 = vadd.f32 %v216, %v1286
  %1288 = vmatmul.bf16.gmra.mxu0 %v720
  %v1289 = vpop.f32.mrf.mxu0
  %v1290 = vadd.f32 %v216, %v1289
  %v1291 = vpop.f32.mrf.mxu0
  %v1292 = vadd.f32 %v216, %v1291
  %1293 = vmatmul.bf16.gmra.mxu0 %v724
  %v1294 = vpop.f32.mrf.mxu0
  %v1295 = vadd.f32 %v216, %v1294
  %v1296 = vpop.f32.mrf.mxu0
  %v1297 = vadd.f32 %v216, %v1296
  %1298 = vmatmul.bf16.gmra.mxu0 %v728
  %v1299 = vpop.f32.mrf.mxu0
  %v1300 = vadd.f32 %v216, %v1299
  %v1301 = vpop.f32.mrf.mxu0
  %v1302 = vadd.f32 %v216, %v1301
  %1303 = vmatmul.bf16.gmra.mxu0 %v732
  %v1304 = vpop.f32.mrf.mxu0
  %v1305 = vadd.f32 %v216, %v1304
  %v1306 = vpop.f32.mrf.mxu0
  %v1307 = vadd.f32 %v216, %v1306
  %1308 = vmatmul.bf16.gmra.mxu0 %v736
  %v1309 = vpop.f32.mrf.mxu0
  %v1310 = vadd.f32 %v216, %v1309
  %v1311 = vpop.f32.mrf.mxu0
  %v1312 = vadd.f32 %v216, %v1311
  %1313 = vmatmul.bf16.gmra.mxu0 %v740
  %v1314 = vpop.f32.mrf.mxu0
  %v1315 = vadd.f32 %v216, %v1314
  %v1316 = vpop.f32.mrf.mxu0
  %v1317 = vadd.f32 %v216, %v1316
  %1318 = vmatmul.bf16.gmra.mxu0 %v744
  %v1319 = vpop.f32.mrf.mxu0
  %v1320 = vadd.f32 %v216, %v1319
  %v1321 = vpop.f32.mrf.mxu0
  %v1322 = vadd.f32 %v216, %v1321
  %1323 = vmatmul.bf16.gmra.mxu0 %v748
  %v1324 = vpop.f32.mrf.mxu0
  %v1325 = vadd.f32 %v216, %v1324
  %v1326 = vpop.f32.mrf.mxu0
  %v1327 = vadd.f32 %v216, %v1326
  %1328 = vmatmul.bf16.gmra.mxu0 %v752
  %v1329 = vpop.f32.mrf.mxu0
  %v1330 = vadd.f32 %v216, %v1329
  %v1331 = vpop.f32.mrf.mxu0
  %v1332 = vadd.f32 %v216, %v1331
  %1333 = vmatmul.bf16.gmra.mxu0 %v756
  %v1334 = vpop.f32.mrf.mxu0
  %v1335 = vadd.f32 %v216, %v1334
  %v1336 = vpop.f32.mrf.mxu0
  %v1337 = vadd.f32 %v216, %v1336
  %1338 = vmatmul.bf16.gmra.mxu0 %v760
  %v1339 = vpop.f32.mrf.mxu0
  %v1340 = vadd.f32 %v216, %v1339
  %v1341 = vpop.f32.mrf.mxu0
  %v1342 = vadd.f32 %v216, %v1341
  %1343 = vmatmul.bf16.gmra.mxu0 %v764
  %v1344 = vpop.f32.mrf.mxu0
  %v1345 = vadd.f32 %v216, %v1344
  %v1346 = vpop.f32.mrf.mxu0
  %v1347 = vadd.f32 %v216, %v1346
  %1348 = vmatmul.bf16.gmra.mxu0 %v768
  %v1349 = vpop.f32.mrf.mxu0
  %v1350 = vadd.f32 %v216, %v1349
  %v1351 = vpop.f32.mrf.mxu0
  %1352 = vdwg.mxu0
  %1353 = vmatpush.bf16.msra.mxu0 %v1014
  %1354 = vmatpush.bf16.msra.mxu0 %v1013
  %1355 = vmatpush.bf16.msra.mxu0 %v1012
  %1356 = vmatpush.bf16.msra.mxu0 %v1011
  %1357 = vmatpush.bf16.msra.mxu0 %v1010
  %1358 = vmatpush.bf16.msra.mxu0 %v1009
  %1359 = vmatpush.bf16.msra.mxu0 %v1008
  %1360 = vmatpush.bf16.msra.mxu0 %v1007
  %1361 = vmatmul.bf16.gmra.mxu0 %v633
  %v1362 = vpop.f32.mrf.mxu0
  %v1363 = vadd.f32 %v1180, %v1362
  %v1364 = vpop.f32.mrf.mxu0
  %v1365 = vadd.f32 %v1182, %v1364
  %1366 = vmatmul.bf16.gmra.mxu0 %v637
  %v1367 = vpop.f32.mrf.mxu0
  %v1368 = vadd.f32 %v1185, %v1367
  %v1369 = vpop.f32.mrf.mxu0
  %v1370 = vadd.f32 %v1187, %v1369
  %1371 = vmatmul.bf16.gmra.mxu0 %v641
  %v1372 = vpop.f32.mrf.mxu0
  %v1373 = vadd.f32 %v1190, %v1372
  %v1374 = vpop.f32.mrf.mxu0
  %v1375 = vadd.f32 %v1192, %v1374
  %1376 = vmatmul.bf16.gmra.mxu0 %v645
  %v1377 = vpop.f32.mrf.mxu0
  %v1378 = vadd.f32 %v1195, %v1377
  %v1379 = vpop.f32.mrf.mxu0
  %v1380 = vadd.f32 %v1197, %v1379
  %1381 = vmatmul.bf16.gmra.mxu0 %v649
  %v1382 = vpop.f32.mrf.mxu0
  %v1383 = vadd.f32 %v1200, %v1382
  %v1384 = vpop.f32.mrf.mxu0
  %v1385 = vadd.f32 %v1202, %v1384
  %1386 = vmatmul.bf16.gmra.mxu0 %v653
  %v1387 = vpop.f32.mrf.mxu0
  %v1388 = vadd.f32 %v1205, %v1387
  %v1389 = vpop.f32.mrf.mxu0
  %v1390 = vadd.f32 %v1207, %v1389
  %1391 = vmatmul.bf16.gmra.mxu0 %v657
  %v1392 = vpop.f32.mrf.mxu0
  %v1393 = vadd.f32 %v1210, %v1392
  %v1394 = vpop.f32.mrf.mxu0
  %v1395 = vadd.f32 %v1212, %v1394
  %1396 = vmatmul.bf16.gmra.mxu0 %v661
  %v1397 = vpop.f32.mrf.mxu0
  %v1398 = vadd.f32 %v1215, %v1397
  %v1399 = vpop.f32.mrf.mxu0
  %v1400 = vadd.f32 %v1217, %v1399
  %1401 = vmatmul.bf16.gmra.mxu0 %v665
  %v1402 = vpop.f32.mrf.mxu0
  %v1403 = vadd.f32 %v1220, %v1402
  %v1404 = vpop.f32.mrf.mxu0
  %v1405 = vadd.f32 %v1222, %v1404
  %1406 = vmatmul.bf16.gmra.mxu0 %v669
  %v1407 = vpop.f32.mrf.mxu0
  %v1408 = vadd.f32 %v1225, %v1407
  %v1409 = vpop.f32.mrf.mxu0
  %v1410 = vadd.f32 %v1227, %v1409
  %1411 = vmatmul.bf16.gmra.mxu0 %v673
  %v1412 = vpop.f32.mrf.mxu0
  %v1413 = vadd.f32 %v1230, %v1412
  %v1414 = vpop.f32.mrf.mxu0
  %v1415 = vadd.f32 %v1232, %v1414
  %1416 = vmatmul.bf16.gmra.mxu0 %v677
  %v1417 = vpop.f32.mrf.mxu0
  %v1418 = vadd.f32 %v1235, %v1417
  %v1419 = vpop.f32.mrf.mxu0
  %v1420 = vadd.f32 %v1237, %v1419
  %1421 = vmatmul.bf16.gmra.mxu0 %v681
  %v1422 = vpop.f32.mrf.mxu0
  %v1423 = vadd.f32 %v1240, %v1422
  %v1424 = vpop.f32.mrf.mxu0
  %v1425 = vadd.f32 %v1242, %v1424
  %1426 = vmatmul.bf16.gmra.mxu0 %v685
  %v1427 = vpop.f32.mrf.mxu0
  %v1428 = vadd.f32 %v1245, %v1427
  %v1429 = vpop.f32.mrf.mxu0
  %v1430 = vadd.f32 %v1247, %v1429
  %1431 = vmatmul.bf16.gmra.mxu0 %v689
  %v1432 = vpop.f32.mrf.mxu0
  %v1433 = vadd.f32 %v1250, %v1432
  %v1434 = vpop.f32.mrf.mxu0
  %v1435 = vadd.f32 %v1252, %v1434
  %1436 = vmatmul.bf16.gmra.mxu0 %v693
  %v1437 = vpop.f32.mrf.mxu0
  %v1438 = vadd.f32 %v1255, %v1437
  %v1439 = vpop.f32.mrf.mxu0
  %v1440 = vadd.f32 %v1257, %v1439
  %1441 = vmatmul.bf16.gmra.mxu0 %v697
  %v1442 = vpop.f32.mrf.mxu0
  %v1443 = vadd.f32 %v1260, %v1442
  %v1444 = vpop.f32.mrf.mxu0
  %v1445 = vadd.f32 %v1262, %v1444
  %1446 = vmatmul.bf16.gmra.mxu0 %v701
  %v1447 = vpop.f32.mrf.mxu0
  %v1448 = vadd.f32 %v1265, %v1447
  %v1449 = vpop.f32.mrf.mxu0
  %v1450 = vadd.f32 %v1267, %v1449
  %1451 = vmatmul.bf16.gmra.mxu0 %v705
  %v1452 = vpop.f32.mrf.mxu0
  %v1453 = vadd.f32 %v1270, %v1452
  %v1454 = vpop.f32.mrf.mxu0
  %v1455 = vadd.f32 %v1272, %v1454
  %1456 = vmatmul.bf16.gmra.mxu0 %v709
  %v1457 = vpop.f32.mrf.mxu0
  %v1458 = vadd.f32 %v1275, %v1457
  %v1459 = vpop.f32.mrf.mxu0
  %v1460 = vadd.f32 %v1277, %v1459
  %1461 = vmatmul.bf16.gmra.mxu0 %v713
  %v1462 = vpop.f32.mrf.mxu0
  %v1463 = vadd.f32 %v1280, %v1462
  %v1464 = vpop.f32.mrf.mxu0
  %v1465 = vadd.f32 %v1282, %v1464
  %1466 = vmatmul.bf16.gmra.mxu0 %v717
  %v1467 = vpop.f32.mrf.mxu0
  %v1468 = vadd.f32 %v1285, %v1467
  %v1469 = vpop.f32.mrf.mxu0
  %v1470 = vadd.f32 %v1287, %v1469
  %1471 = vmatmul.bf16.gmra.mxu0 %v721
  %v1472 = vpop.f32.mrf.mxu0
  %v1473 = vadd.f32 %v1290, %v1472
  %v1474 = vpop.f32.mrf.mxu0
  %v1475 = vadd.f32 %v1292, %v1474
  %1476 = vmatmul.bf16.gmra.mxu0 %v725
  %v1477 = vpop.f32.mrf.mxu0
  %v1478 = vadd.f32 %v1295, %v1477
  %v1479 = vpop.f32.mrf.mxu0
  %v1480 = vadd.f32 %v1297, %v1479
  %1481 = vmatmul.bf16.gmra.mxu0 %v729
  %v1482 = vpop.f32.mrf.mxu0
  %v1483 = vadd.f32 %v1300, %v1482
  %v1484 = vpop.f32.mrf.mxu0
  %v1485 = vadd.f32 %v1302, %v1484
  %1486 = vmatmul.bf16.gmra.mxu0 %v733
  %v1487 = vpop.f32.mrf.mxu0
  %v1488 = vadd.f32 %v1305, %v1487
  %v1489 = vpop.f32.mrf.mxu0
  %v1490 = vadd.f32 %v1307, %v1489
  %1491 = vmatmul.bf16.gmra.mxu0 %v737
  %v1492 = vpop.f32.mrf.mxu0
  %v1493 = vadd.f32 %v1310, %v1492
  %v1494 = vpop.f32.mrf.mxu0
  %v1495 = vadd.f32 %v1312, %v1494
  %1496 = vmatmul.bf16.gmra.mxu0 %v741
  %v1497 = vpop.f32.mrf.mxu0
  %v1498 = vadd.f32 %v1315, %v1497
  %v1499 = vpop.f32.mrf.mxu0
  %v1500 = vadd.f32 %v1317, %v1499
  %1501 = vmatmul.bf16.gmra.mxu0 %v745
  %v1502 = vpop.f32.mrf.mxu0
  %v1503 = vadd.f32 %v1320, %v1502
  %v1504 = vpop.f32.mrf.mxu0
  %v1505 = vadd.f32 %v1322, %v1504
  %1506 = vmatmul.bf16.gmra.mxu0 %v749
  %v1507 = vpop.f32.mrf.mxu0
  %v1508 = vadd.f32 %v1325, %v1507
  %v1509 = vpop.f32.mrf.mxu0
  %v1510 = vadd.f32 %v1327, %v1509
  %1511 = vmatmul.bf16.gmra.mxu0 %v753
  %v1512 = vpop.f32.mrf.mxu0
  %v1513 = vadd.f32 %v1330, %v1512
  %v1514 = vpop.f32.mrf.mxu0
  %v1515 = vadd.f32 %v1332, %v1514
  %1516 = vmatmul.bf16.gmra.mxu0 %v757
  %v1517 = vpop.f32.mrf.mxu0
  %v1518 = vadd.f32 %v1335, %v1517
  %v1519 = vpop.f32.mrf.mxu0
  %v1520 = vadd.f32 %v1337, %v1519
  %1521 = vmatmul.bf16.gmra.mxu0 %v761
  %v1522 = vpop.f32.mrf.mxu0
  %v1523 = vadd.f32 %v1340, %v1522
  %v1524 = vpop.f32.mrf.mxu0
  %v1525 = vadd.f32 %v1342, %v1524
  %1526 = vmatmul.bf16.gmra.mxu0 %v765
  %v1527 = vpop.f32.mrf.mxu0
  %v1528 = vadd.f32 %v1345, %v1527
  %v1529 = vpop.f32.mrf.mxu0
  %v1530 = vadd.f32 %v1347, %v1529
  %1531 = vmatmul.bf16.gmra.mxu0 %v769
  %v1532 = vpop.f32.mrf.mxu0
  %v1533 = vadd.f32 %v1350, %v1532
  %v1534 = vpop.f32.mrf.mxu0
  %1535 = vdwg.mxu0
  %1536 = vmatpush.bf16.msra.mxu0 %v1022
  %1537 = vmatpush.bf16.msra.mxu0 %v1021
  %1538 = vmatpush.bf16.msra.mxu0 %v1020
  %1539 = vmatpush.bf16.msra.mxu0 %v1019
  %1540 = vmatpush.bf16.msra.mxu0 %v1018
  %1541 = vmatpush.bf16.msra.mxu0 %v1017
  %1542 = vmatpush.bf16.msra.mxu0 %v1016
  %1543 = vmatpush.bf16.msra.mxu0 %v1015
  %1544 = vmatmul.bf16.gmra.mxu0 %v634
  %v1545 = vpop.f32.mrf.mxu0
  %v1546 = vadd.f32 %v1363, %v1545
  %v1547 = vpop.f32.mrf.mxu0
  %v1548 = vadd.f32 %v1365, %v1547
  %1549 = vmatmul.bf16.gmra.mxu0 %v638
  %v1550 = vpop.f32.mrf.mxu0
  %v1551 = vadd.f32 %v1368, %v1550
  %v1552 = vpop.f32.mrf.mxu0
  %v1553 = vadd.f32 %v1370, %v1552
  %1554 = vmatmul.bf16.gmra.mxu0 %v642
  %v1555 = vpop.f32.mrf.mxu0
  %v1556 = vadd.f32 %v1373, %v1555
  %v1557 = vpop.f32.mrf.mxu0
  %v1558 = vadd.f32 %v1375, %v1557
  %1559 = vmatmul.bf16.gmra.mxu0 %v646
  %v1560 = vpop.f32.mrf.mxu0
  %v1561 = vadd.f32 %v1378, %v1560
  %v1562 = vpop.f32.mrf.mxu0
  %v1563 = vadd.f32 %v1380, %v1562
  %1564 = vmatmul.bf16.gmra.mxu0 %v650
  %v1565 = vpop.f32.mrf.mxu0
  %v1566 = vadd.f32 %v1383, %v1565
  %v1567 = vpop.f32.mrf.mxu0
  %v1568 = vadd.f32 %v1385, %v1567
  %1569 = vmatmul.bf16.gmra.mxu0 %v654
  %v1570 = vpop.f32.mrf.mxu0
  %v1571 = vadd.f32 %v1388, %v1570
  %v1572 = vpop.f32.mrf.mxu0
  %v1573 = vadd.f32 %v1390, %v1572
  %1574 = vmatmul.bf16.gmra.mxu0 %v658
  %v1575 = vpop.f32.mrf.mxu0
  %v1576 = vadd.f32 %v1393, %v1575
  %v1577 = vpop.f32.mrf.mxu0
  %v1578 = vadd.f32 %v1395, %v1577
  %1579 = vmatmul.bf16.gmra.mxu0 %v662
  %v1580 = vpop.f32.mrf.mxu0
  %v1581 = vadd.f32 %v1398, %v1580
  %v1582 = vpop.f32.mrf.mxu0
  %v1583 = vadd.f32 %v1400, %v1582
  %1584 = vmatmul.bf16.gmra.mxu0 %v666
  %v1585 = vpop.f32.mrf.mxu0
  %v1586 = vadd.f32 %v1403, %v1585
  %v1587 = vpop.f32.mrf.mxu0
  %v1588 = vadd.f32 %v1405, %v1587
  %1589 = vmatmul.bf16.gmra.mxu0 %v670
  %v1590 = vpop.f32.mrf.mxu0
  %v1591 = vadd.f32 %v1408, %v1590
  %v1592 = vpop.f32.mrf.mxu0
  %v1593 = vadd.f32 %v1410, %v1592
  %1594 = vmatmul.bf16.gmra.mxu0 %v674
  %v1595 = vpop.f32.mrf.mxu0
  %v1596 = vadd.f32 %v1413, %v1595
  %v1597 = vpop.f32.mrf.mxu0
  %v1598 = vadd.f32 %v1415, %v1597
  %1599 = vmatmul.bf16.gmra.mxu0 %v678
  %v1600 = vpop.f32.mrf.mxu0
  %v1601 = vadd.f32 %v1418, %v1600
  %v1602 = vpop.f32.mrf.mxu0
  %v1603 = vadd.f32 %v1420, %v1602
  %1604 = vmatmul.bf16.gmra.mxu0 %v682
  %v1605 = vpop.f32.mrf.mxu0
  %v1606 = vadd.f32 %v1423, %v1605
  %v1607 = vpop.f32.mrf.mxu0
  %v1608 = vadd.f32 %v1425, %v1607
  %1609 = vmatmul.bf16.gmra.mxu0 %v686
  %v1610 = vpop.f32.mrf.mxu0
  %v1611 = vadd.f32 %v1428, %v1610
  %v1612 = vpop.f32.mrf.mxu0
  %v1613 = vadd.f32 %v1430, %v1612
  %1614 = vmatmul.bf16.gmra.mxu0 %v690
  %v1615 = vpop.f32.mrf.mxu0
  %v1616 = vadd.f32 %v1433, %v1615
  %v1617 = vpop.f32.mrf.mxu0
  %v1618 = vadd.f32 %v1435, %v1617
  %1619 = vmatmul.bf16.gmra.mxu0 %v694
  %v1620 = vpop.f32.mrf.mxu0
  %v1621 = vadd.f32 %v1438, %v1620
  %v1622 = vpop.f32.mrf.mxu0
  %v1623 = vadd.f32 %v1440, %v1622
  %1624 = vmatmul.bf16.gmra.mxu0 %v698
  %v1625 = vpop.f32.mrf.mxu0
  %v1626 = vadd.f32 %v1443, %v1625
  %v1627 = vpop.f32.mrf.mxu0
  %v1628 = vadd.f32 %v1445, %v1627
  %1629 = vmatmul.bf16.gmra.mxu0 %v702
  %v1630 = vpop.f32.mrf.mxu0
  %v1631 = vadd.f32 %v1448, %v1630
  %v1632 = vpop.f32.mrf.mxu0
  %v1633 = vadd.f32 %v1450, %v1632
  %1634 = vmatmul.bf16.gmra.mxu0 %v706
  %v1635 = vpop.f32.mrf.mxu0
  %v1636 = vadd.f32 %v1453, %v1635
  %v1637 = vpop.f32.mrf.mxu0
  %v1638 = vadd.f32 %v1455, %v1637
  %1639 = vmatmul.bf16.gmra.mxu0 %v710
  %v1640 = vpop.f32.mrf.mxu0
  %v1641 = vadd.f32 %v1458, %v1640
  %v1642 = vpop.f32.mrf.mxu0
  %v1643 = vadd.f32 %v1460, %v1642
  %1644 = vmatmul.bf16.gmra.mxu0 %v714
  %v1645 = vpop.f32.mrf.mxu0
  %v1646 = vadd.f32 %v1463, %v1645
  %v1647 = vpop.f32.mrf.mxu0
  %v1648 = vadd.f32 %v1465, %v1647
  %1649 = vmatmul.bf16.gmra.mxu0 %v718
  %v1650 = vpop.f32.mrf.mxu0
  %v1651 = vadd.f32 %v1468, %v1650
  %v1652 = vpop.f32.mrf.mxu0
  %v1653 = vadd.f32 %v1470, %v1652
  %1654 = vmatmul.bf16.gmra.mxu0 %v722
  %v1655 = vpop.f32.mrf.mxu0
  %v1656 = vadd.f32 %v1473, %v1655
  %v1657 = vpop.f32.mrf.mxu0
  %v1658 = vadd.f32 %v1475, %v1657
  %1659 = vmatmul.bf16.gmra.mxu0 %v726
  %v1660 = vpop.f32.mrf.mxu0
  %v1661 = vadd.f32 %v1478, %v1660
  %v1662 = vpop.f32.mrf.mxu0
  %v1663 = vadd.f32 %v1480, %v1662
  %1664 = vmatmul.bf16.gmra.mxu0 %v730
  %v1665 = vpop.f32.mrf.mxu0
  %v1666 = vadd.f32 %v1483, %v1665
  %v1667 = vpop.f32.mrf.mxu0
  %v1668 = vadd.f32 %v1485, %v1667
  %1669 = vmatmul.bf16.gmra.mxu0 %v734
  %v1670 = vpop.f32.mrf.mxu0
  %v1671 = vadd.f32 %v1488, %v1670
  %v1672 = vpop.f32.mrf.mxu0
  %v1673 = vadd.f32 %v1490, %v1672
  %1674 = vmatmul.bf16.gmra.mxu0 %v738
  %v1675 = vpop.f32.mrf.mxu0
  %v1676 = vadd.f32 %v1493, %v1675
  %v1677 = vpop.f32.mrf.mxu0
  %v1678 = vadd.f32 %v1495, %v1677
  %1679 = vmatmul.bf16.gmra.mxu0 %v742
  %v1680 = vpop.f32.mrf.mxu0
  %v1681 = vadd.f32 %v1498, %v1680
  %v1682 = vpop.f32.mrf.mxu0
  %v1683 = vadd.f32 %v1500, %v1682
  %1684 = vmatmul.bf16.gmra.mxu0 %v746
  %v1685 = vpop.f32.mrf.mxu0
  %v1686 = vadd.f32 %v1503, %v1685
  %v1687 = vpop.f32.mrf.mxu0
  %v1688 = vadd.f32 %v1505, %v1687
  %1689 = vmatmul.bf16.gmra.mxu0 %v750
  %v1690 = vpop.f32.mrf.mxu0
  %v1691 = vadd.f32 %v1508, %v1690
  %v1692 = vpop.f32.mrf.mxu0
  %v1693 = vadd.f32 %v1510, %v1692
  %1694 = vmatmul.bf16.gmra.mxu0 %v754
  %v1695 = vpop.f32.mrf.mxu0
  %v1696 = vadd.f32 %v1513, %v1695
  %v1697 = vpop.f32.mrf.mxu0
  %v1698 = vadd.f32 %v1515, %v1697
  %1699 = vmatmul.bf16.gmra.mxu0 %v758
  %v1700 = vpop.f32.mrf.mxu0
  %v1701 = vadd.f32 %v1518, %v1700
  %v1702 = vpop.f32.mrf.mxu0
  %v1703 = vadd.f32 %v1520, %v1702
  %1704 = vmatmul.bf16.gmra.mxu0 %v762
  %v1705 = vpop.f32.mrf.mxu0
  %v1706 = vadd.f32 %v1523, %v1705
  %v1707 = vpop.f32.mrf.mxu0
  %v1708 = vadd.f32 %v1525, %v1707
  %1709 = vmatmul.bf16.gmra.mxu0 %v766
  %v1710 = vpop.f32.mrf.mxu0
  %v1711 = vadd.f32 %v1528, %v1710
  %v1712 = vpop.f32.mrf.mxu0
  %v1713 = vadd.f32 %v1530, %v1712
  %1714 = vmatmul.bf16.gmra.mxu0 %v770
  %v1715 = vpop.f32.mrf.mxu0
  %v1716 = vadd.f32 %v1533, %v1715
  %v1717 = vpop.f32.mrf.mxu0
  %1718 = vdwg.mxu0
  %1719 = vmatpush.bf16.msra.mxu0 0
  %1720 = vmatpush.bf16.msra.mxu0 %v1168
  %1721 = vmatpush.bf16.msra.mxu0 %v1028
  %1722 = vmatpush.bf16.msra.mxu0 %v1027
  %1723 = vmatpush.bf16.msra.mxu0 %v1026
  %1724 = vmatpush.bf16.msra.mxu0 %v1025
  %1725 = vmatpush.bf16.msra.mxu0 %v1024
  %1726 = vmatpush.bf16.msra.mxu0 %v1023
  %1727 = vmatmul.bf16.gmra.mxu0 %v1062
  %v1728 = vpop.f32.mrf.mxu0
  %v1729 = vadd.f32 %v1546, %v1728
  %v1730 = vpop.f32.mrf.mxu0
  %v1731 = vadd.f32 %v1548, %v1730
  %1732 = vmatmul.bf16.gmra.mxu0 %v1065
  %v1733 = vpop.f32.mrf.mxu0
  %v1734 = vadd.f32 %v1551, %v1733
  %v1735 = vpop.f32.mrf.mxu0
  %v1736 = vadd.f32 %v1553, %v1735
  %1737 = vmatmul.bf16.gmra.mxu0 %v1068
  %v1738 = vpop.f32.mrf.mxu0
  %v1739 = vadd.f32 %v1556, %v1738
  %v1740 = vpop.f32.mrf.mxu0
  %v1741 = vadd.f32 %v1558, %v1740
  %1742 = vmatmul.bf16.gmra.mxu0 %v1071
  %v1743 = vpop.f32.mrf.mxu0
  %v1744 = vadd.f32 %v1561, %v1743
  %v1745 = vpop.f32.mrf.mxu0
  %v1746 = vadd.f32 %v1563, %v1745
  %1747 = vmatmul.bf16.gmra.mxu0 %v1074
  %v1748 = vpop.f32.mrf.mxu0
  %v1749 = vadd.f32 %v1566, %v1748
  %v1750 = vpop.f32.mrf.mxu0
  %v1751 = vadd.f32 %v1568, %v1750
  %1752 = vmatmul.bf16.gmra.mxu0 %v1077
  %v1753 = vpop.f32.mrf.mxu0
  %v1754 = vadd.f32 %v1571, %v1753
  %v1755 = vpop.f32.mrf.mxu0
  %v1756 = vadd.f32 %v1573, %v1755
  %1757 = vmatmul.bf16.gmra.mxu0 %v1080
  %v1758 = vpop.f32.mrf.mxu0
  %v1759 = vadd.f32 %v1576, %v1758
  %v1760 = vpop.f32.mrf.mxu0
  %v1761 = vadd.f32 %v1578, %v1760
  %1762 = vmatmul.bf16.gmra.mxu0 %v1083
  %v1763 = vpop.f32.mrf.mxu0
  %v1764 = vadd.f32 %v1581, %v1763
  %v1765 = vpop.f32.mrf.mxu0
  %v1766 = vadd.f32 %v1583, %v1765
  %1767 = vmatmul.bf16.gmra.mxu0 %v1086
  %v1768 = vpop.f32.mrf.mxu0
  %v1769 = vadd.f32 %v1586, %v1768
  %v1770 = vpop.f32.mrf.mxu0
  %v1771 = vadd.f32 %v1588, %v1770
  %1772 = vmatmul.bf16.gmra.mxu0 %v1089
  %v1773 = vpop.f32.mrf.mxu0
  %v1774 = vadd.f32 %v1591, %v1773
  %v1775 = vpop.f32.mrf.mxu0
  %v1776 = vadd.f32 %v1593, %v1775
  %1777 = vmatmul.bf16.gmra.mxu0 %v1092
  %v1778 = vpop.f32.mrf.mxu0
  %v1779 = vadd.f32 %v1596, %v1778
  %v1780 = vpop.f32.mrf.mxu0
  %v1781 = vadd.f32 %v1598, %v1780
  %1782 = vmatmul.bf16.gmra.mxu0 %v1095
  %v1783 = vpop.f32.mrf.mxu0
  %v1784 = vadd.f32 %v1601, %v1783
  %v1785 = vpop.f32.mrf.mxu0
  %v1786 = vadd.f32 %v1603, %v1785
  %1787 = vmatmul.bf16.gmra.mxu0 %v1098
  %v1788 = vpop.f32.mrf.mxu0
  %v1789 = vadd.f32 %v1606, %v1788
  %v1790 = vpop.f32.mrf.mxu0
  %v1791 = vadd.f32 %v1608, %v1790
  %1792 = vmatmul.bf16.gmra.mxu0 %v1101
  %v1793 = vpop.f32.mrf.mxu0
  %v1794 = vadd.f32 %v1611, %v1793
  %v1795 = vpop.f32.mrf.mxu0
  %v1796 = vadd.f32 %v1613, %v1795
  %1797 = vmatmul.bf16.gmra.mxu0 %v1104
  %v1798 = vpop.f32.mrf.mxu0
  %v1799 = vadd.f32 %v1616, %v1798
  %v1800 = vpop.f32.mrf.mxu0
  %v1801 = vadd.f32 %v1618, %v1800
  %1802 = vmatmul.bf16.gmra.mxu0 %v1107
  %v1803 = vpop.f32.mrf.mxu0
  %v1804 = vadd.f32 %v1621, %v1803
  %v1805 = vpop.f32.mrf.mxu0
  %v1806 = vadd.f32 %v1623, %v1805
  %1807 = vmatmul.bf16.gmra.mxu0 %v1110
  %v1808 = vpop.f32.mrf.mxu0
  %v1809 = vadd.f32 %v1626, %v1808
  %v1810 = vpop.f32.mrf.mxu0
  %v1811 = vadd.f32 %v1628, %v1810
  %1812 = vmatmul.bf16.gmra.mxu0 %v1113
  %v1813 = vpop.f32.mrf.mxu0
  %v1814 = vadd.f32 %v1631, %v1813
  %v1815 = vpop.f32.mrf.mxu0
  %v1816 = vadd.f32 %v1633, %v1815
  %1817 = vmatmul.bf16.gmra.mxu0 %v1116
  %v1818 = vpop.f32.mrf.mxu0
  %v1819 = vadd.f32 %v1636, %v1818
  %v1820 = vpop.f32.mrf.mxu0
  %v1821 = vadd.f32 %v1638, %v1820
  %1822 = vmatmul.bf16.gmra.mxu0 %v1119
  %v1823 = vpop.f32.mrf.mxu0
  %v1824 = vadd.f32 %v1641, %v1823
  %v1825 = vpop.f32.mrf.mxu0
  %v1826 = vadd.f32 %v1643, %v1825
  %1827 = vmatmul.bf16.gmra.mxu0 %v1122
  %v1828 = vpop.f32.mrf.mxu0
  %v1829 = vadd.f32 %v1646, %v1828
  %v1830 = vpop.f32.mrf.mxu0
  %v1831 = vadd.f32 %v1648, %v1830
  %1832 = vmatmul.bf16.gmra.mxu0 %v1125
  %v1833 = vpop.f32.mrf.mxu0
  %v1834 = vadd.f32 %v1651, %v1833
  %v1835 = vpop.f32.mrf.mxu0
  %v1836 = vadd.f32 %v1653, %v1835
  %1837 = vmatmul.bf16.gmra.mxu0 %v1128
  %v1838 = vpop.f32.mrf.mxu0
  %v1839 = vadd.f32 %v1656, %v1838
  %v1840 = vpop.f32.mrf.mxu0
  %v1841 = vadd.f32 %v1658, %v1840
  %1842 = vmatmul.bf16.gmra.mxu0 %v1131
  %v1843 = vpop.f32.mrf.mxu0
  %v1844 = vadd.f32 %v1661, %v1843
  %v1845 = vpop.f32.mrf.mxu0
  %v1846 = vadd.f32 %v1663, %v1845
  %1847 = vmatmul.bf16.gmra.mxu0 %v1134
  %v1848 = vpop.f32.mrf.mxu0
  %v1849 = vadd.f32 %v1666, %v1848
  %v1850 = vpop.f32.mrf.mxu0
  %v1851 = vadd.f32 %v1668, %v1850
  %1852 = vmatmul.bf16.gmra.mxu0 %v1137
  %v1853 = vpop.f32.mrf.mxu0
  %v1854 = vadd.f32 %v1671, %v1853
  %v1855 = vpop.f32.mrf.mxu0
  %v1856 = vadd.f32 %v1673, %v1855
  %1857 = vmatmul.bf16.gmra.mxu0 %v1140
  %v1858 = vpop.f32.mrf.mxu0
  %v1859 = vadd.f32 %v1676, %v1858
  %v1860 = vpop.f32.mrf.mxu0
  %v1861 = vadd.f32 %v1678, %v1860
  %1862 = vmatmul.bf16.gmra.mxu0 %v1143
  %v1863 = vpop.f32.mrf.mxu0
  %v1864 = vadd.f32 %v1681, %v1863
  %v1865 = vpop.f32.mrf.mxu0
  %v1866 = vadd.f32 %v1683, %v1865
  %1867 = vmatmul.bf16.gmra.mxu0 %v1146
  %v1868 = vpop.f32.mrf.mxu0
  %v1869 = vadd.f32 %v1686, %v1868
  %v1870 = vpop.f32.mrf.mxu0
  %v1871 = vadd.f32 %v1688, %v1870
  %1872 = vmatmul.bf16.gmra.mxu0 %v1149
  %v1873 = vpop.f32.mrf.mxu0
  %v1874 = vadd.f32 %v1691, %v1873
  %v1875 = vpop.f32.mrf.mxu0
  %v1876 = vadd.f32 %v1693, %v1875
  %1877 = vmatmul.bf16.gmra.mxu0 %v1152
  %v1878 = vpop.f32.mrf.mxu0
  %v1879 = vadd.f32 %v1696, %v1878
  %v1880 = vpop.f32.mrf.mxu0
  %v1881 = vadd.f32 %v1698, %v1880
  %1882 = vmatmul.bf16.gmra.mxu0 %v1155
  %v1883 = vpop.f32.mrf.mxu0
  %v1884 = vadd.f32 %v1701, %v1883
  %v1885 = vpop.f32.mrf.mxu0
  %v1886 = vadd.f32 %v1703, %v1885
  %1887 = vmatmul.bf16.gmra.mxu0 %v1158
  %v1888 = vpop.f32.mrf.mxu0
  %v1889 = vadd.f32 %v1706, %v1888
  %v1890 = vpop.f32.mrf.mxu0
  %v1891 = vadd.f32 %v1708, %v1890
  %1892 = vmatmul.bf16.gmra.mxu0 %v1161
  %v1893 = vpop.f32.mrf.mxu0
  %v1894 = vadd.f32 %v1711, %v1893
  %v1895 = vpop.f32.mrf.mxu0
  %v1896 = vadd.f32 %v1713, %v1895
  %1897 = vmatmul.bf16.gmra.mxu0 %v1164
  %v1898 = vpop.f32.mrf.mxu0
  %v1899 = vadd.f32 %v1716, %v1898
  %v1900 = vpop.f32.mrf.mxu0
  %1901 = vdwg.mxu0
  %vm1902 = vcmask 64512
  %1903 = vst.msk [vmem:[%s3] sm:$0xff] %vm1902, %v1729
  %1904 = vst.msk [vmem:[%s3 + $0x8] sm:$0xff] %vm1902, %v1731
  %1905 = vst.msk [vmem:[%s3 + $0x10] sm:$0xff] %vm1902, %v1734
  %1906 = vst.msk [vmem:[%s3 + $0x18] sm:$0xff] %vm1902, %v1736
  %1907 = vst.msk [vmem:[%s3 + $0x20] sm:$0xff] %vm1902, %v1739
  %1908 = vst.msk [vmem:[%s3 + $0x28] sm:$0xff] %vm1902, %v1741
  %1909 = vst.msk [vmem:[%s3 + $0x30] sm:$0xff] %vm1902, %v1744
  %1910 = vst.msk [vmem:[%s3 + $0x38] sm:$0xff] %vm1902, %v1746
  %1911 = vst.msk [vmem:[%s3 + $0x40] sm:$0xff] %vm1902, %v1749
  %1912 = vst.msk [vmem:[%s3 + $0x48] sm:$0xff] %vm1902, %v1751
  %1913 = vst.msk [vmem:[%s3 + $0x50] sm:$0xff] %vm1902, %v1754
  %1914 = vst.msk [vmem:[%s3 + $0x58] sm:$0xff] %vm1902, %v1756
  %1915 = vst.msk [vmem:[%s3 + $0x60] sm:$0xff] %vm1902, %v1759
  %1916 = vst.msk [vmem:[%s3 + $0x68] sm:$0xff] %vm1902, %v1761
  %1917 = vst.msk [vmem:[%s3 + $0x70] sm:$0xff] %vm1902, %v1764
  %1918 = vst.msk [vmem:[%s3 + $0x78] sm:$0xff] %vm1902, %v1766
  %1919 = vst.msk [vmem:[%s3 + $0x80] sm:$0xff] %vm1902, %v1769
  %1920 = vst.msk [vmem:[%s3 + $0x88] sm:$0xff] %vm1902, %v1771
  %1921 = vst.msk [vmem:[%s3 + $0x90] sm:$0xff] %vm1902, %v1774
  %1922 = vst.msk [vmem:[%s3 + $0x98] sm:$0xff] %vm1902, %v1776
  %1923 = vst.msk [vmem:[%s3 + $0xa0] sm:$0xff] %vm1902, %v1779
  %1924 = vst.msk [vmem:[%s3 + $0xa8] sm:$0xff] %vm1902, %v1781
  %1925 = vst.msk [vmem:[%s3 + $0xb0] sm:$0xff] %vm1902, %v1784
  %1926 = vst.msk [vmem:[%s3 + $0xb8] sm:$0xff] %vm1902, %v1786
  %1927 = vst.msk [vmem:[%s3 + $0xc0] sm:$0xff] %vm1902, %v1789
  %1928 = vst.msk [vmem:[%s3 + $0xc8] sm:$0xff] %vm1902, %v1791
  %1929 = vst.msk [vmem:[%s3 + $0xd0] sm:$0xff] %vm1902, %v1794
  %1930 = vst.msk [vmem:[%s3 + $0xd8] sm:$0xff] %vm1902, %v1796
  %1931 = vst.msk [vmem:[%s3 + $0xe0] sm:$0xff] %vm1902, %v1799
  %1932 = vst.msk [vmem:[%s3 + $0xe8] sm:$0xff] %vm1902, %v1801
  %1933 = vst.msk [vmem:[%s3 + $0xf0] sm:$0xff] %vm1902, %v1804
  %1934 = vst.msk [vmem:[%s3 + $0xf8] sm:$0xff] %vm1902, %v1806
  %1935 = vst.msk [vmem:[%s3 + $0x100] sm:$0xff] %vm1902, %v1809
  %1936 = vst.msk [vmem:[%s3 + $0x108] sm:$0xff] %vm1902, %v1811
  %1937 = vst.msk [vmem:[%s3 + $0x110] sm:$0xff] %vm1902, %v1814
  %1938 = vst.msk [vmem:[%s3 + $0x118] sm:$0xff] %vm1902, %v1816
  %1939 = vst.msk [vmem:[%s3 + $0x120] sm:$0xff] %vm1902, %v1819
  %1940 = vst.msk [vmem:[%s3 + $0x128] sm:$0xff] %vm1902, %v1821
  %1941 = vst.msk [vmem:[%s3 + $0x130] sm:$0xff] %vm1902, %v1824
  %1942 = vst.msk [vmem:[%s3 + $0x138] sm:$0xff] %vm1902, %v1826
  %1943 = vst.msk [vmem:[%s3 + $0x140] sm:$0xff] %vm1902, %v1829
  %1944 = vst.msk [vmem:[%s3 + $0x148] sm:$0xff] %vm1902, %v1831
  %1945 = vst.msk [vmem:[%s3 + $0x150] sm:$0xff] %vm1902, %v1834
  %1946 = vst.msk [vmem:[%s3 + $0x158] sm:$0xff] %vm1902, %v1836
  %1947 = vst.msk [vmem:[%s3 + $0x160] sm:$0xff] %vm1902, %v1839
  %1948 = vst.msk [vmem:[%s3 + $0x168] sm:$0xff] %vm1902, %v1841
  %1949 = vst.msk [vmem:[%s3 + $0x170] sm:$0xff] %vm1902, %v1844
  %1950 = vst.msk [vmem:[%s3 + $0x178] sm:$0xff] %vm1902, %v1846
  %1951 = vst.msk [vmem:[%s3 + $0x180] sm:$0xff] %vm1902, %v1849
  %1952 = vst.msk [vmem:[%s3 + $0x188] sm:$0xff] %vm1902, %v1851
  %1953 = vst.msk [vmem:[%s3 + $0x190] sm:$0xff] %vm1902, %v1854
  %1954 = vst.msk [vmem:[%s3 + $0x198] sm:$0xff] %vm1902, %v1856
  %1955 = vst.msk [vmem:[%s3 + $0x1a0] sm:$0xff] %vm1902, %v1859
  %1956 = vst.msk [vmem:[%s3 + $0x1a8] sm:$0xff] %vm1902, %v1861
  %1957 = vst.msk [vmem:[%s3 + $0x1b0] sm:$0xff] %vm1902, %v1864
  %1958 = vst.msk [vmem:[%s3 + $0x1b8] sm:$0xff] %vm1902, %v1866
  %1959 = vst.msk [vmem:[%s3 + $0x1c0] sm:$0xff] %vm1902, %v1869
  %1960 = vst.msk [vmem:[%s3 + $0x1c8] sm:$0xff] %vm1902, %v1871
  %1961 = vst.msk [vmem:[%s3 + $0x1d0] sm:$0xff] %vm1902, %v1874
  %1962 = vst.msk [vmem:[%s3 + $0x1d8] sm:$0xff] %vm1902, %v1876
  %1963 = vst.msk [vmem:[%s3 + $0x1e0] sm:$0xff] %vm1902, %v1879
  %1964 = vst.msk [vmem:[%s3 + $0x1e8] sm:$0xff] %vm1902, %v1881
  %1965 = vst.msk [vmem:[%s3 + $0x1f0] sm:$0xff] %vm1902, %v1884
  %1966 = vst.msk [vmem:[%s3 + $0x1f8] sm:$0xff] %vm1902, %v1886
  %1967 = vst.msk [vmem:[%s3 + $0x200] sm:$0xff] %vm1902, %v1889
  %1968 = vst.msk [vmem:[%s3 + $0x208] sm:$0xff] %vm1902, %v1891
  %1969 = vst.msk [vmem:[%s3 + $0x210] sm:$0xff] %vm1902, %v1894
  %1970 = vst.msk [vmem:[%s3 + $0x218] sm:$0xff] %vm1902, %v1896
  %vm1971 = vcmask 58368
  %1972 = vst.msk [vmem:[%s3 + $0x220] sm:$0x3] %vm1971, %v1899
  // Predicated region
  $region14: #{coughnet_nano_forward.7} parent=0 // pred_check
    _
  $region15: #{coughnet_nano_forward.7} parent=0 // pred_check_branch
    %1974 = sbr.rel (0) target = $region17
  $region16: #{coughnet_nano_forward.7} parent=0 // pred_region
    _
  $region17: #{coughnet_nano_forward.7} parent=0 // pred_fallthru
    _
  // Predicated region
  $region18: #{coughnet_nano_forward.7} parent=0 // pred_check
    _
  $region19: #{coughnet_nano_forward.7} parent=0 // pred_check_branch
    %1976 = sbr.rel (0) target = $region21
  $region20: #{coughnet_nano_forward.7} parent=0 // pred_region
    _
  $region21: #{coughnet_nano_forward.7} parent=0 // pred_fallthru
    _

// kernel: coughnet_nano_forward.8
$region0: #{coughnet_nano_forward.8}
  #allocation0 [shape = 'u32[]', space=smem, size = 0x4, offset = 0x4, fixed_abs, tag = 'smem constant byte address 0x4 - core index']
  #allocation1 [shape = 'u32[72,128]{1,0:T(1,128)}', space=vmem, size = 0x9000, scoped, tag = 'internal scratch']
  %s0 = inlined_call_operand.vmem [shape: f32[2,7,11,8], index: 0, kind: input, shape index: {}]
  %s1 = inlined_call_operand.vmem [shape: f32[2,7,10,8], index: 1, kind: input, shape index: {}]
  %s2 = inlined_call_operand.vmem [shape: f32[2,6,11,8], index: 2, kind: input, shape index: {}]
  %s3 = inlined_call_operand.vmem [shape: f32[2,6,10,8], index: 3, kind: input, shape index: {}]
  %s4 = inlined_call_operand.vmem [shape: f32[2,6,10,8], index: 4, kind: output, shape index: {}]
  %s5 = sld [smem:[#allocation0]]
  $region26: #{coughnet_nano_forward.8} parent=0
    _
  %s7 = ssub.s32 1, %s5
  %s8 = scalar_select 0, %s7, %s5
  // Predicated region
  $region2: #{coughnet_nano_forward.8} parent=0 // pred_check
    _
  $region3: #{coughnet_nano_forward.8} parent=0 // pred_check_branch
    %10 = sbr.rel (0) target = $region5
  $region4: #{coughnet_nano_forward.8} parent=0 // pred_region
    _
  $region5: #{coughnet_nano_forward.8} parent=0 // pred_fallthru
    _
  // Predicated region
  $region6: #{coughnet_nano_forward.8} parent=0 // pred_check
    _
  $region7: #{coughnet_nano_forward.8} parent=0 // pred_check_branch
    %12 = sbr.rel (0) target = $region9
  $region8: #{coughnet_nano_forward.8} parent=0 // pred_region
    _
  $region9: #{coughnet_nano_forward.8} parent=0 // pred_fallthru
    _
  // Predicated region
  $region10: #{coughnet_nano_forward.8} parent=0 // pred_check
    _
  $region11: #{coughnet_nano_forward.8} parent=0 // pred_check_branch
    %14 = sbr.rel (0) target = $region13
  $region12: #{coughnet_nano_forward.8} parent=0 // pred_region
    _
  $region13: #{coughnet_nano_forward.8} parent=0 // pred_fallthru
    _
  // Predicated region
  $region14: #{coughnet_nano_forward.8} parent=0 // pred_check
    _
  $region15: #{coughnet_nano_forward.8} parent=0 // pred_check_branch
    %16 = sbr.rel (0) target = $region17
  $region16: #{coughnet_nano_forward.8} parent=0 // pred_region
    _
  $region17: #{coughnet_nano_forward.8} parent=0 // pred_fallthru
    _
  %v17 = vld [vmem:[%s0] sm:$0xff]
  %v18 = vld [vmem:[%s0 + $0x8] sm:$0x7]
  %v19 = vld [vmem:[%s0 + $0x10] sm:$0xff]
  %v20 = vld [vmem:[%s0 + $0x18] sm:$0x7]
  %v21 = vld [vmem:[%s0 + $0x20] sm:$0xff]
  %v22 = vld [vmem:[%s0 + $0x28] sm:$0x7]
  %v23 = vld [vmem:[%s0 + $0x30] sm:$0xff]
  %v24 = vld [vmem:[%s0 + $0x38] sm:$0x7]
  %v25 = vld [vmem:[%s0 + $0x40] sm:$0xff]
  %v26 = vld [vmem:[%s0 + $0x48] sm:$0x7]
  %v27 = vld [vmem:[%s0 + $0x50] sm:$0xff]
  %v28 = vld [vmem:[%s0 + $0x58] sm:$0x7]
  %v29 = vld [vmem:[%s0 + $0x60] sm:$0xff]
  %v30 = vld [vmem:[%s0 + $0x68] sm:$0x7]
  %v31 = vld [vmem:[%s0 + $0x70] sm:$0xff]
  %v32 = vld [vmem:[%s0 + $0x78] sm:$0x7]
  %v33 = vld [vmem:[%s0 + $0x80] sm:$0xff]
  %v34 = vld [vmem:[%s0 + $0x88] sm:$0x7]
  %v35 = vld [vmem:[%s0 + $0x90] sm:$0xff]
  %v36 = vld [vmem:[%s0 + $0x98] sm:$0x7]
  %v37 = vld [vmem:[%s0 + $0xa0] sm:$0xff]
  %v38 = vld [vmem:[%s0 + $0xa8] sm:$0x7]
  %v39 = vld [vmem:[%s0 + $0xb0] sm:$0xff]
  %v40 = vld [vmem:[%s0 + $0xb8] sm:$0x7]
  %v41 = vld [vmem:[%s0 + $0xc0] sm:$0xff]
  %v42 = vld [vmem:[%s0 + $0xc8] sm:$0x7]
  %v43 = vld [vmem:[%s0 + $0xd0] sm:$0xff]
  %v44 = vld [vmem:[%s0 + $0xd8] sm:$0x7]
  %v45 = vld [vmem:[%s1] sm:$0xff]
  %v46 = vld [vmem:[%s1 + $0x8] sm:$0x3]
  %v47 = vld [vmem:[%s1 + $0x10] sm:$0xff]
  %v48 = vld [vmem:[%s1 + $0x18] sm:$0x3]
  %v49 = vld [vmem:[%s1 + $0x20] sm:$0xff]
  %v50 = vld [vmem:[%s1 + $0x28] sm:$0x3]
  %v51 = vld [vmem:[%s1 + $0x30] sm:$0xff]
  %v52 = vld [vmem:[%s1 + $0x38] sm:$0x3]
  %v53 = vld [vmem:[%s1 + $0x40] sm:$0xff]
  %v54 = vld [vmem:[%s1 + $0x48] sm:$0x3]
  %v55 = vld [vmem:[%s1 + $0x50] sm:$0xff]
  %v56 = vld [vmem:[%s1 + $0x58] sm:$0x3]
  %v57 = vld [vmem:[%s1 + $0x60] sm:$0xff]
  %v58 = vld [vmem:[%s1 + $0x68] sm:$0x3]
  %v59 = vld [vmem:[%s1 + $0x70] sm:$0xff]
  %v60 = vld [vmem:[%s1 + $0x78] sm:$0x3]
  %v61 = vld [vmem:[%s1 + $0x80] sm:$0xff]
  %v62 = vld [vmem:[%s1 + $0x88] sm:$0x3]
  %v63 = vld [vmem:[%s1 + $0x90] sm:$0xff]
  %v64 = vld [vmem:[%s1 + $0x98] sm:$0x3]
  %v65 = vld [vmem:[%s1 + $0xa0] sm:$0xff]
  %v66 = vld [vmem:[%s1 + $0xa8] sm:$0x3]
  %v67 = vld [vmem:[%s1 + $0xb0] sm:$0xff]
  %v68 = vld [vmem:[%s1 + $0xb8] sm:$0x3]
  %v69 = vld [vmem:[%s1 + $0xc0] sm:$0xff]
  %v70 = vld [vmem:[%s1 + $0xc8] sm:$0x3]
  %v71 = vld [vmem:[%s1 + $0xd0] sm:$0xff]
  %v72 = vld [vmem:[%s1 + $0xd8] sm:$0x3]
  %v73 = vld [vmem:[%s2] sm:$0xff]
  %v74 = vld [vmem:[%s2 + $0x8] sm:$0x7]
  %v75 = vld [vmem:[%s2 + $0x10] sm:$0xff]
  %v76 = vld [vmem:[%s2 + $0x18] sm:$0x7]
  %v77 = vld [vmem:[%s2 + $0x20] sm:$0xff]
  %v78 = vld [vmem:[%s2 + $0x28] sm:$0x7]
  %v79 = vld [vmem:[%s2 + $0x30] sm:$0xff]
  %v80 = vld [vmem:[%s2 + $0x38] sm:$0x7]
  %v81 = vld [vmem:[%s2 + $0x40] sm:$0xff]
  %v82 = vld [vmem:[%s2 + $0x48] sm:$0x7]
  %v83 = vld [vmem:[%s2 + $0x50] sm:$0xff]
  %v84 = vld [vmem:[%s2 + $0x58] sm:$0x7]
  %v85 = vld [vmem:[%s2 + $0x60] sm:$0xff]
  %v86 = vld [vmem:[%s2 + $0x68] sm:$0x7]
  %v87 = vld [vmem:[%s2 + $0x70] sm:$0xff]
  %v88 = vld [vmem:[%s2 + $0x78] sm:$0x7]
  %v89 = vld [vmem:[%s2 + $0x80] sm:$0xff]
  %v90 = vld [vmem:[%s2 + $0x88] sm:$0x7]
  %v91 = vld [vmem:[%s2 + $0x90] sm:$0xff]
  %v92 = vld [vmem:[%s2 + $0x98] sm:$0x7]
  %v93 = vld [vmem:[%s2 + $0xa0] sm:$0xff]
  %v94 = vld [vmem:[%s2 + $0xa8] sm:$0x7]
  %v95 = vld [vmem:[%s2 + $0xb0] sm:$0xff]
  %v96 = vld [vmem:[%s2 + $0xb8] sm:$0x7]
  %v97 = vld [vmem:[%s3] sm:$0xff]
  %v98 = vld [vmem:[%s3 + $0x8] sm:$0x3]
  %v99 = vld [vmem:[%s3 + $0x10] sm:$0xff]
  %v100 = vld [vmem:[%s3 + $0x18] sm:$0x3]
  %v101 = vld [vmem:[%s3 + $0x20] sm:$0xff]
  %v102 = vld [vmem:[%s3 + $0x28] sm:$0x3]
  %v103 = vld [vmem:[%s3 + $0x30] sm:$0xff]
  %v104 = vld [vmem:[%s3 + $0x38] sm:$0x3]
  %v105 = vld [vmem:[%s3 + $0x40] sm:$0xff]
  %v106 = vld [vmem:[%s3 + $0x48] sm:$0x3]
  %v107 = vld [vmem:[%s3 + $0x50] sm:$0xff]
  %v108 = vld [vmem:[%s3 + $0x58] sm:$0x3]
  %v109 = vld [vmem:[%s3 + $0x60] sm:$0xff]
  %v110 = vld [vmem:[%s3 + $0x68] sm:$0x3]
  %v111 = vld [vmem:[%s3 + $0x70] sm:$0xff]
  %v112 = vld [vmem:[%s3 + $0x78] sm:$0x3]
  %v113 = vld [vmem:[%s3 + $0x80] sm:$0xff]
  %v114 = vld [vmem:[%s3 + $0x88] sm:$0x3]
  %v115 = vld [vmem:[%s3 + $0x90] sm:$0xff]
  %v116 = vld [vmem:[%s3 + $0x98] sm:$0x3]
  %v117 = vld [vmem:[%s3 + $0xa0] sm:$0xff]
  %v118 = vld [vmem:[%s3 + $0xa8] sm:$0x3]
  %v119 = vld [vmem:[%s3 + $0xb0] sm:$0xff]
  %v120 = vld [vmem:[%s3 + $0xb8] sm:$0x3]
  %vm145 = vcmask 1046528
  %v146 = vrot.slane %v17, 1
  %v147 = vrot.slane %v18, 1
  %v148 = vsel %vm145, %v146, %v147
  %v149 = vrot.slane %v19, 1
  %v150 = vrot.slane %v20, 1
  %v151 = vsel %vm145, %v149, %v150
  %v152 = vrot.slane %v21, 1
  %v153 = vrot.slane %v22, 1
  %v154 = vsel %vm145, %v152, %v153
  %v155 = vrot.slane %v23, 1
  %v156 = vrot.slane %v24, 1
  %v157 = vsel %vm145, %v155, %v156
  %v158 = vrot.slane %v25, 1
  %v159 = vrot.slane %v26, 1
  %v160 = vsel %vm145, %v158, %v159
  %v161 = vrot.slane %v27, 1
  %v162 = vrot.slane %v28, 1
  %v163 = vsel %vm145, %v161, %v162
  %v164 = vrot.slane %v31, 1
  %v165 = vrot.slane %v32, 1
  %v166 = vsel %vm145, %v164, %v165
  %v167 = vrot.slane %v33, 1
  %v168 = vrot.slane %v34, 1
  %v169 = vsel %vm145, %v167, %v168
  %v170 = vrot.slane %v35, 1
  %v171 = vrot.slane %v36, 1
  %v172 = vsel %vm145, %v170, %v171
  %v173 = vrot.slane %v37, 1
  %v174 = vrot.slane %v38, 1
  %v175 = vsel %vm145, %v173, %v174
  %v176 = vrot.slane %v39, 1
  %v177 = vrot.slane %v40, 1
  %v178 = vsel %vm145, %v176, %v177
  %v179 = vrot.slane %v41, 1
  %v180 = vrot.slane %v42, 1
  %v181 = vsel %vm145, %v179, %v180
  %v206 = vmax.f32 %v17, %v148
  %v207 = vmax.f32 %v18, %v147
  %v208 = vmax.f32 %v19, %v151
  %v209 = vmax.f32 %v20, %v150
  %v210 = vmax.f32 %v21, %v154
  %v211 = vmax.f32 %v22, %v153
  %v212 = vmax.f32 %v23, %v157
  %v213 = vmax.f32 %v24, %v156
  %v214 = vmax.f32 %v25, %v160
  %v215 = vmax.f32 %v26, %v159
  %v216 = vmax.f32 %v27, %v163
  %v217 = vmax.f32 %v28, %v162
  %v218 = vmax.f32 %v31, %v166
  %v219 = vmax.f32 %v32, %v165
  %v220 = vmax.f32 %v33, %v169
  %v221 = vmax.f32 %v34, %v168
  %v222 = vmax.f32 %v35, %v172
  %v223 = vmax.f32 %v36, %v171
  %v224 = vmax.f32 %v37, %v175
  %v225 = vmax.f32 %v38, %v174
  %v226 = vmax.f32 %v39, %v178
  %v227 = vmax.f32 %v40, %v177
  %v228 = vmax.f32 %v41, %v181
  %v229 = vmax.f32 %v42, %v180
  %v230 = vmax.f32 %v206, %v19
  %v231 = vmax.f32 %v207, %v20
  %v232 = vmax.f32 %v208, %v21
  %v233 = vmax.f32 %v209, %v22
  %v234 = vmax.f32 %v210, %v23
  %v235 = vmax.f32 %v211, %v24
  %v236 = vmax.f32 %v212, %v25
  %v237 = vmax.f32 %v213, %v26
  %v238 = vmax.f32 %v214, %v27
  %v239 = vmax.f32 %v215, %v28
  %v240 = vmax.f32 %v216, %v29
  %v241 = vmax.f32 %v217, %v30
  %v242 = vmax.f32 %v218, %v33
  %v243 = vmax.f32 %v219, %v34
  %v244 = vmax.f32 %v220, %v35
  %v245 = vmax.f32 %v221, %v36
  %v246 = vmax.f32 %v222, %v37
  %v247 = vmax.f32 %v223, %v38
  %v248 = vmax.f32 %v224, %v39
  %v249 = vmax.f32 %v225, %v40
  %v250 = vmax.f32 %v226, %v41
  %v251 = vmax.f32 %v227, %v42
  %v252 = vmax.f32 %v228, %v43
  %v253 = vmax.f32 %v229, %v44
  %v258 = vrot.slane %v29, 1
  %v259 = vrot.slane %v30, 1
  %v260 = vsel %vm145, %v258, %v259
  %v261 = vrot.slane %v43, 1
  %v262 = vrot.slane %v44, 1
  %v263 = vsel %vm145, %v261, %v262
  %v268 = vmax.f32 %v230, %v151
  %v269 = vmax.f32 %v231, %v150
  %v270 = vmax.f32 %v232, %v154
  %v271 = vmax.f32 %v233, %v153
  %v272 = vmax.f32 %v234, %v157
  %v273 = vmax.f32 %v235, %v156
  %v274 = vmax.f32 %v236, %v160
  %v275 = vmax.f32 %v237, %v159
  %v276 = vmax.f32 %v238, %v163
  %v277 = vmax.f32 %v239, %v162
  %v278 = vmax.f32 %v240, %v260
  %v279 = vmax.f32 %v241, %v259
  %v280 = vmax.f32 %v242, %v169
  %v281 = vmax.f32 %v243, %v168
  %v282 = vmax.f32 %v244, %v172
  %v283 = vmax.f32 %v245, %v171
  %v284 = vmax.f32 %v246, %v175
  %v285 = vmax.f32 %v247, %v174
  %v286 = vmax.f32 %v248, %v178
  %v287 = vmax.f32 %v249, %v177
  %v288 = vmax.f32 %v250, %v181
  %v289 = vmax.f32 %v251, %v180
  %v290 = vmax.f32 %v252, %v263
  %v291 = vmax.f32 %v253, %v262
  %v292 = vmax.f32 %v268, %v45
  %v293 = vmax.f32 %v269, %v46
  %v294 = vmax.f32 %v270, %v47
  %v295 = vmax.f32 %v271, %v48
  %v296 = vmax.f32 %v272, %v49
  %v297 = vmax.f32 %v273, %v50
  %v298 = vmax.f32 %v274, %v51
  %v299 = vmax.f32 %v275, %v52
  %v300 = vmax.f32 %v276, %v53
  %v301 = vmax.f32 %v277, %v54
  %v302 = vmax.f32 %v278, %v55
  %v303 = vmax.f32 %v279, %v56
  %v304 = vmax.f32 %v280, %v59
  %v305 = vmax.f32 %v281, %v60
  %v306 = vmax.f32 %v282, %v61
  %v307 = vmax.f32 %v283, %v62
  %v308 = vmax.f32 %v284, %v63
  %v309 = vmax.f32 %v285, %v64
  %v310 = vmax.f32 %v286, %v65
  %v311 = vmax.f32 %v287, %v66
  %v312 = vmax.f32 %v288, %v67
  %v313 = vmax.f32 %v289, %v68
  %v314 = vmax.f32 %v290, %v69
  %v315 = vmax.f32 %v291, %v70
  %v316 = vmax.f32 %v292, %v47
  %v317 = vmax.f32 %v293, %v48
  %v318 = vmax.f32 %v294, %v49
  %v319 = vmax.f32 %v295, %v50
  %v320 = vmax.f32 %v296, %v51
  %v321 = vmax.f32 %v297, %v52
  %v322 = vmax.f32 %v298, %v53
  %v323 = vmax.f32 %v299, %v54
  %v324 = vmax.f32 %v300, %v55
  %v325 = vmax.f32 %v301, %v56
  %v326 = vmax.f32 %v302, %v57
  %v327 = vmax.f32 %v303, %v58
  %v328 = vmax.f32 %v304, %v61
  %v329 = vmax.f32 %v305, %v62
  %v330 = vmax.f32 %v306, %v63
  %v331 = vmax.f32 %v307, %v64
  %v332 = vmax.f32 %v308, %v65
  %v333 = vmax.f32 %v309, %v66
  %v334 = vmax.f32 %v310, %v67
  %v335 = vmax.f32 %v311, %v68
  %v336 = vmax.f32 %v312, %v69
  %v337 = vmax.f32 %v313, %v70
  %v338 = vmax.f32 %v314, %v71
  %v339 = vmax.f32 %v315, %v72
  %v340 = vmax.f32 %v316, %v73
  %v341 = vmax.f32 %v317, %v74
  %v342 = vmax.f32 %v318, %v75
  %v343 = vmax.f32 %v319, %v76
  %v344 = vmax.f32 %v320, %v77
  %v345 = vmax.f32 %v321, %v78
  %v346 = vmax.f32 %v322, %v79
  %v347 = vmax.f32 %v323, %v80
  %v348 = vmax.f32 %v324, %v81
  %v349 = vmax.f32 %v325, %v82
  %v350 = vmax.f32 %v326, %v83
  %v351 = vmax.f32 %v327, %v84
  %v352 = vmax.f32 %v328, %v85
  %v353 = vmax.f32 %v329, %v86
  %v354 = vmax.f32 %v330, %v87
  %v355 = vmax.f32 %v331, %v88
  %v356 = vmax.f32 %v332, %v89
  %v357 = vmax.f32 %v333, %v90
  %v358 = vmax.f32 %v334, %v91
  %v359 = vmax.f32 %v335, %v92
  %v360 = vmax.f32 %v336, %v93
  %v361 = vmax.f32 %v337, %v94
  %v362 = vmax.f32 %v338, %v95
  %v363 = vmax.f32 %v339, %v96
  %v388 = vrot.slane %v73, 1
  %v389 = vrot.slane %v74, 1
  %v390 = vsel %vm145, %v388, %v389
  %v391 = vrot.slane %v75, 1
  %v392 = vrot.slane %v76, 1
  %v393 = vsel %vm145, %v391, %v392
  %v394 = vrot.slane %v77, 1
  %v395 = vrot.slane %v78, 1
  %v396 = vsel %vm145, %v394, %v395
  %v397 = vrot.slane %v79, 1
  %v398 = vrot.slane %v80, 1
  %v399 = vsel %vm145, %v397, %v398
  %v400 = vrot.slane %v81, 1
  %v401 = vrot.slane %v82, 1
  %v402 = vsel %vm145, %v400, %v401
  %v403 = vrot.slane %v83, 1
  %v404 = vrot.slane %v84, 1
  %v405 = vsel %vm145, %v403, %v404
  %v406 = vrot.slane %v85, 1
  %v407 = vrot.slane %v86, 1
  %v408 = vsel %vm145, %v406, %v407
  %v409 = vrot.slane %v87, 1
  %v410 = vrot.slane %v88, 1
  %v411 = vsel %vm145, %v409, %v410
  %v412 = vrot.slane %v89, 1
  %v413 = vrot.slane %v90, 1
  %v414 = vsel %vm145, %v412, %v413
  %v415 = vrot.slane %v91, 1
  %v416 = vrot.slane %v92, 1
  %v417 = vsel %vm145, %v415, %v416
  %v418 = vrot.slane %v93, 1
  %v419 = vrot.slane %v94, 1
  %v420 = vsel %vm145, %v418, %v419
  %v421 = vrot.slane %v95, 1
  %v422 = vrot.slane %v96, 1
  %v423 = vsel %vm145, %v421, %v422
  %v448 = vmax.f32 %v340, %v390
  %v449 = vmax.f32 %v341, %v389
  %v450 = vmax.f32 %v342, %v393
  %v451 = vmax.f32 %v343, %v392
  %v452 = vmax.f32 %v344, %v396
  %v453 = vmax.f32 %v345, %v395
  %v454 = vmax.f32 %v346, %v399
  %v455 = vmax.f32 %v347, %v398
  %v456 = vmax.f32 %v348, %v402
  %v457 = vmax.f32 %v349, %v401
  %v458 = vmax.f32 %v350, %v405
  %v459 = vmax.f32 %v351, %v404
  %v460 = vmax.f32 %v352, %v408
  %v461 = vmax.f32 %v353, %v407
  %v462 = vmax.f32 %v354, %v411
  %v463 = vmax.f32 %v355, %v410
  %v464 = vmax.f32 %v356, %v414
  %v465 = vmax.f32 %v357, %v413
  %v466 = vmax.f32 %v358, %v417
  %v467 = vmax.f32 %v359, %v416
  %v468 = vmax.f32 %v360, %v420
  %v469 = vmax.f32 %v361, %v419
  %v470 = vmax.f32 %v362, %v423
  %v471 = vmax.f32 %v363, %v422
  %v472 = vmax.f32 %v448, %v97
  %v473 = vmax.f32 %v449, %v98
  %v474 = vmax.f32 %v450, %v99
  %v475 = vmax.f32 %v451, %v100
  %v476 = vmax.f32 %v452, %v101
  %v477 = vmax.f32 %v453, %v102
  %v478 = vmax.f32 %v454, %v103
  %v479 = vmax.f32 %v455, %v104
  %v480 = vmax.f32 %v456, %v105
  %v481 = vmax.f32 %v457, %v106
  %v482 = vmax.f32 %v458, %v107
  %v483 = vmax.f32 %v459, %v108
  %v484 = vmax.f32 %v460, %v109
  %v485 = vmax.f32 %v461, %v110
  %v486 = vmax.f32 %v462, %v111
  %v487 = vmax.f32 %v463, %v112
  %v488 = vmax.f32 %v464, %v113
  %v489 = vmax.f32 %v465, %v114
  %v490 = vmax.f32 %v466, %v115
  %v491 = vmax.f32 %v467, %v116
  %v492 = vmax.f32 %v468, %v117
  %v493 = vmax.f32 %v469, %v118
  %v494 = vmax.f32 %v470, %v119
  %v495 = vmax.f32 %v471, %v120
  %vm496 = vcmask 64512
  %497 = vst.msk [vmem:[%s4] sm:$0xff] %vm496, %v472
  %vm498 = vcmask 58368
  %499 = vst.msk [vmem:[%s4 + $0x8] sm:$0x3] %vm498, %v473
  %500 = vst.msk [vmem:[%s4 + $0x10] sm:$0xff] %vm496, %v474
  %501 = vst.msk [vmem:[%s4 + $0x18] sm:$0x3] %vm498, %v475
  %502 = vst.msk [vmem:[%s4 + $0x20] sm:$0xff] %vm496, %v476
  %503 = vst.msk [vmem:[%s4 + $0x28] sm:$0x3] %vm498, %v477
  %504 = vst.msk [vmem:[%s4 + $0x30] sm:$0xff] %vm496, %v478
  %505 = vst.msk [vmem:[%s4 + $0x38] sm:$0x3] %vm498, %v479
  %506 = vst.msk [vmem:[%s4 + $0x40] sm:$0xff] %vm496, %v480
  %507 = vst.msk [vmem:[%s4 + $0x48] sm:$0x3] %vm498, %v481
  %508 = vst.msk [vmem:[%s4 + $0x50] sm:$0xff] %vm496, %v482
  %509 = vst.msk [vmem:[%s4 + $0x58] sm:$0x3] %vm498, %v483
  %510 = vst.msk [vmem:[%s4 + $0x60] sm:$0xff] %vm496, %v484
  %511 = vst.msk [vmem:[%s4 + $0x68] sm:$0x3] %vm498, %v485
  %512 = vst.msk [vmem:[%s4 + $0x70] sm:$0xff] %vm496, %v486
  %513 = vst.msk [vmem:[%s4 + $0x78] sm:$0x3] %vm498, %v487
  %514 = vst.msk [vmem:[%s4 + $0x80] sm:$0xff] %vm496, %v488
  %515 = vst.msk [vmem:[%s4 + $0x88] sm:$0x3] %vm498, %v489
  %516 = vst.msk [vmem:[%s4 + $0x90] sm:$0xff] %vm496, %v490
  %517 = vst.msk [vmem:[%s4 + $0x98] sm:$0x3] %vm498, %v491
  %518 = vst.msk [vmem:[%s4 + $0xa0] sm:$0xff] %vm496, %v492
  %519 = vst.msk [vmem:[%s4 + $0xa8] sm:$0x3] %vm498, %v493
  %520 = vst.msk [vmem:[%s4 + $0xb0] sm:$0xff] %vm496, %v494
  %521 = vst.msk [vmem:[%s4 + $0xb8] sm:$0x3] %vm498, %v495
  // Predicated region
  $region18: #{coughnet_nano_forward.8} parent=0 // pred_check
    _
  $region19: #{coughnet_nano_forward.8} parent=0 // pred_check_branch
    %523 = sbr.rel (0) target = $region21
  $region20: #{coughnet_nano_forward.8} parent=0 // pred_region
    _
  $region21: #{coughnet_nano_forward.8} parent=0 // pred_fallthru
    _
  // Predicated region
  $region22: #{coughnet_nano_forward.8} parent=0 // pred_check
    _
  $region23: #{coughnet_nano_forward.8} parent=0 // pred_check_branch
    %525 = sbr.rel (0) target = $region25
  $region24: #{coughnet_nano_forward.8} parent=0 // pred_region
    _
  $region25: #{coughnet_nano_forward.8} parent=0 // pred_fallthru
    _

// kernel: coughnet_nano_forward.9
$region0: #{coughnet_nano_forward.9}
  #allocation0 [shape = 'u32[]', space=smem, size = 0x4, offset = 0x4, fixed_abs, tag = 'smem constant byte address 0x4 - core index']
  #allocation1 [shape = 'u32[72,128]{1,0:T(1,128)}', space=vmem, size = 0x9000, scoped, tag = 'internal scratch']
  #allocation2 [shape = 'f32[1,1]{1,0:T(1,128)S(1)}', space=vmem, size = 0x200, scoped, tag = 'scoped memory for coughnet_nano_forward.9']
  %s0 = inlined_call_operand.vmem [shape: bf16[2,480], index: 0, kind: input, shape index: {}]
  %s1 = inlined_call_operand.vmem [shape: bf16[480,512], index: 1, kind: input, shape index: {}]
  %s2 = inlined_call_operand.vmem [shape: f32[1,512], index: 2, kind: input, shape index: {}]
  %s3 = inlined_call_operand.vmem [shape: bf16[512,256], index: 3, kind: input, shape index: {}]
  %s4 = inlined_call_operand.vmem [shape: f32[1,256], index: 4, kind: input, shape index: {}]
  %s5 = inlined_call_operand.vmem [shape: bf16[1,256], index: 5, kind: input, shape index: {}]
  %s6 = inlined_call_operand.<no memory space> [shape: f32[1,1], index: 6, kind: input, shape index: {}]
  %s7 = inlined_call_operand.vmem [shape: f32[2,1], index: 7, kind: output, shape index: {}]
  %s8 = sld [smem:[#allocation0]]
  $region38: #{coughnet_nano_forward.9} parent=0
    _
  %s10 = ssub.s32 1, %s8
  %s11 = scalar_select 0, %s10, %s8
  %v12 = vstv %s6
  %13 = vst [vmem:[#allocation2] sm:$0x1] %v12
  // Predicated region
  $region2: #{coughnet_nano_forward.9} parent=0 // pred_check
    _
  $region3: #{coughnet_nano_forward.9} parent=0 // pred_check_branch
    %15 = sbr.rel (0) target = $region5
  $region4: #{coughnet_nano_forward.9} parent=0 // pred_region
    _
  $region5: #{coughnet_nano_forward.9} parent=0 // pred_fallthru
    _
  // Predicated region
  $region6: #{coughnet_nano_forward.9} parent=0 // pred_check
    _
  $region7: #{coughnet_nano_forward.9} parent=0 // pred_check_branch
    %17 = sbr.rel (0) target = $region9
  $region8: #{coughnet_nano_forward.9} parent=0 // pred_region
    _
  $region9: #{coughnet_nano_forward.9} parent=0 // pred_fallthru
    _
  // Predicated region
  $region10: #{coughnet_nano_forward.9} parent=0 // pred_check
    _
  $region11: #{coughnet_nano_forward.9} parent=0 // pred_check_branch
    %19 = sbr.rel (0) target = $region13
  $region12: #{coughnet_nano_forward.9} parent=0 // pred_region
    _
  $region13: #{coughnet_nano_forward.9} parent=0 // pred_fallthru
    _
  // Predicated region
  $region14: #{coughnet_nano_forward.9} parent=0 // pred_check
    _
  $region15: #{coughnet_nano_forward.9} parent=0 // pred_check_branch
    %21 = sbr.rel (0) target = $region17
  $region16: #{coughnet_nano_forward.9} parent=0 // pred_region
    _
  $region17: #{coughnet_nano_forward.9} parent=0 // pred_fallthru
    _
  // Predicated region
  $region18: #{coughnet_nano_forward.9} parent=0 // pred_check
    _
  $region19: #{coughnet_nano_forward.9} parent=0 // pred_check_branch
    %23 = sbr.rel (0) target = $region21
  $region20: #{coughnet_nano_forward.9} parent=0 // pred_region
    _
  $region21: #{coughnet_nano_forward.9} parent=0 // pred_fallthru
    _
  // Predicated region
  $region22: #{coughnet_nano_forward.9} parent=0 // pred_check
    _
  $region23: #{coughnet_nano_forward.9} parent=0 // pred_check_branch
    %25 = sbr.rel (0) target = $region25
  $region24: #{coughnet_nano_forward.9} parent=0 // pred_region
    _
  $region25: #{coughnet_nano_forward.9} parent=0 // pred_fallthru
    _
  // Predicated region
  $region26: #{coughnet_nano_forward.9} parent=0 // pred_check
    _
  $region27: #{coughnet_nano_forward.9} parent=0 // pred_check_branch
    %27 = sbr.rel (0) target = $region29
  $region28: #{coughnet_nano_forward.9} parent=0 // pred_region
    _
  $region29: #{coughnet_nano_forward.9} parent=0 // pred_fallthru
    _
  %v29 = vld [vmem:[%s0] sm:$0xf]
  %v30 = vld [vmem:[%s1] sm:$0xff]
  %v31 = vld [vmem:[%s1 + $0x8] sm:$0xff]
  %v32 = vld [vmem:[%s1 + $0x10] sm:$0xff]
  %v33 = vld [vmem:[%s1 + $0x18] sm:$0xff]
  %v34 = vld [vmem:[%s1 + $0x20] sm:$0xff]
  %v35 = vld [vmem:[%s1 + $0x28] sm:$0xff]
  %v36 = vld [vmem:[%s1 + $0x30] sm:$0xff]
  %v37 = vld [vmem:[%s1 + $0x38] sm:$0xff]
  %v38 = vld [vmem:[%s1 + $0x40] sm:$0xff]
  %v39 = vld [vmem:[%s1 + $0x48] sm:$0xff]
  %v40 = vld [vmem:[%s1 + $0x50] sm:$0xff]
  %v41 = vld [vmem:[%s1 + $0x58] sm:$0xff]
  %v42 = vld [vmem:[%s1 + $0x60] sm:$0xff]
  %v43 = vld [vmem:[%s1 + $0x68] sm:$0xff]
  %v44 = vld [vmem:[%s1 + $0x70] sm:$0xff]
  %v45 = vld [vmem:[%s1 + $0x78] sm:$0xff]
  %v46 = vld [vmem:[%s1 + $0x80] sm:$0xff]
  %v47 = vld [vmem:[%s1 + $0x88] sm:$0xff]
  %v48 = vld [vmem:[%s1 + $0x90] sm:$0xff]
  %v49 = vld [vmem:[%s1 + $0x98] sm:$0xff]
  %v50 = vld [vmem:[%s1 + $0xa0] sm:$0xff]
  %v51 = vld [vmem:[%s1 + $0xa8] sm:$0xff]
  %v52 = vld [vmem:[%s1 + $0xb0] sm:$0xff]
  %v53 = vld [vmem:[%s1 + $0xb8] sm:$0xff]
  %v54 = vld [vmem:[%s1 + $0xc0] sm:$0xff]
  %v55 = vld [vmem:[%s1 + $0xc8] sm:$0xff]
  %v56 = vld [vmem:[%s1 + $0xd0] sm:$0xff]
  %v57 = vld [vmem:[%s1 + $0xd8] sm:$0xff]
  %v58 = vld [vmem:[%s1 + $0xe0] sm:$0xff]
  %v59 = vld [vmem:[%s1 + $0xe8] sm:$0xff]
  %v60 = vld [vmem:[%s1 + $0xf0] sm:$0xff]
  %v61 = vld [vmem:[%s1 + $0xf8] sm:$0xff]
  %v62 = vld [vmem:[%s1 + $0x100] sm:$0xff]
  %v63 = vld [vmem:[%s1 + $0x108] sm:$0xff]
  %v64 = vld [vmem:[%s1 + $0x110] sm:$0xff]
  %v65 = vld [vmem:[%s1 + $0x118] sm:$0xff]
  %v66 = vld [vmem:[%s1 + $0x120] sm:$0xff]
  %v67 = vld [vmem:[%s1 + $0x128] sm:$0xff]
  %v68 = vld [vmem:[%s1 + $0x130] sm:$0xff]
  %v69 = vld [vmem:[%s1 + $0x138] sm:$0xff]
  %v70 = vld [vmem:[%s1 + $0x140] sm:$0xff]
  %v71 = vld [vmem:[%s1 + $0x148] sm:$0xff]
  %v72 = vld [vmem:[%s1 + $0x150] sm:$0xff]
  %v73 = vld [vmem:[%s1 + $0x158] sm:$0xff]
  %v74 = vld [vmem:[%s1 + $0x160] sm:$0xff]
  %v75 = vld [vmem:[%s1 + $0x168] sm:$0xff]
  %v76 = vld [vmem:[%s1 + $0x170] sm:$0xff]
  %v77 = vld [vmem:[%s1 + $0x178] sm:$0xff]
  %v78 = vld [vmem:[%s1 + $0x180] sm:$0xff]
  %v79 = vld [vmem:[%s1 + $0x188] sm:$0xff]
  %v80 = vld [vmem:[%s1 + $0x190] sm:$0xff]
  %v81 = vld [vmem:[%s1 + $0x198] sm:$0xff]
  %v82 = vld [vmem:[%s1 + $0x1a0] sm:$0xff]
  %v83 = vld [vmem:[%s1 + $0x1a8] sm:$0xff]
  %v84 = vld [vmem:[%s1 + $0x1b0] sm:$0xff]
  %v85 = vld [vmem:[%s1 + $0x1b8] sm:$0xff]
  %v86 = vld [vmem:[%s1 + $0x1c0] sm:$0xff]
  %v87 = vld [vmem:[%s1 + $0x1c8] sm:$0xff]
  %v88 = vld [vmem:[%s1 + $0x1d0] sm:$0xff]
  %v89 = vld [vmem:[%s1 + $0x1d8] sm:$0xff]
  %v90 = vld [vmem:[%s1 + $0x1e0] sm:$0xff]
  %v91 = vld [vmem:[%s1 + $0x1e8] sm:$0xff]
  %v92 = vld [vmem:[%s1 + $0x1f0] sm:$0xff]
  %v93 = vld [vmem:[%s1 + $0x1f8] sm:$0xff]
  %v94 = vld [vmem:[%s1 + $0x200] sm:$0xff]
  %v95 = vld [vmem:[%s1 + $0x208] sm:$0xff]
  %v96 = vld [vmem:[%s1 + $0x210] sm:$0xff]
  %v97 = vld [vmem:[%s1 + $0x218] sm:$0xff]
  %v98 = vld [vmem:[%s1 + $0x220] sm:$0xff]
  %v99 = vld [vmem:[%s1 + $0x228] sm:$0xff]
  %v100 = vld [vmem:[%s1 + $0x230] sm:$0xff]
  %v101 = vld [vmem:[%s1 + $0x238] sm:$0xff]
  %v102 = vld [vmem:[%s1 + $0x240] sm:$0xff]
  %v103 = vld [vmem:[%s1 + $0x248] sm:$0xff]
  %v104 = vld [vmem:[%s1 + $0x250] sm:$0xff]
  %v105 = vld [vmem:[%s1 + $0x258] sm:$0xff]
  %v106 = vld [vmem:[%s1 + $0x260] sm:$0xff]
  %v107 = vld [vmem:[%s1 + $0x268] sm:$0xff]
  %v108 = vld [vmem:[%s1 + $0x270] sm:$0xff]
  %v109 = vld [vmem:[%s1 + $0x278] sm:$0xff]
  %v110 = vld [vmem:[%s1 + $0x280] sm:$0xff]
  %v111 = vld [vmem:[%s1 + $0x288] sm:$0xff]
  %v112 = vld [vmem:[%s1 + $0x290] sm:$0xff]
  %v113 = vld [vmem:[%s1 + $0x298] sm:$0xff]
  %v114 = vld [vmem:[%s1 + $0x2a0] sm:$0xff]
  %v115 = vld [vmem:[%s1 + $0x2a8] sm:$0xff]
  %v116 = vld [vmem:[%s1 + $0x2b0] sm:$0xff]
  %v117 = vld [vmem:[%s1 + $0x2b8] sm:$0xff]
  %v118 = vld [vmem:[%s1 + $0x2c0] sm:$0xff]
  %v119 = vld [vmem:[%s1 + $0x2c8] sm:$0xff]
  %v120 = vld [vmem:[%s1 + $0x2d0] sm:$0xff]
  %v121 = vld [vmem:[%s1 + $0x2d8] sm:$0xff]
  %v122 = vld [vmem:[%s1 + $0x2e0] sm:$0xff]
  %v123 = vld [vmem:[%s1 + $0x2e8] sm:$0xff]
  %v124 = vld [vmem:[%s1 + $0x2f0] sm:$0xff]
  %v125 = vld [vmem:[%s1 + $0x2f8] sm:$0xff]
  %v126 = vld [vmem:[%s1 + $0x300] sm:$0xff]
  %v127 = vld [vmem:[%s1 + $0x308] sm:$0xff]
  %v128 = vld [vmem:[%s1 + $0x310] sm:$0xff]
  %v129 = vld [vmem:[%s1 + $0x318] sm:$0xff]
  %v130 = vld [vmem:[%s1 + $0x320] sm:$0xff]
  %v131 = vld [vmem:[%s1 + $0x328] sm:$0xff]
  %v132 = vld [vmem:[%s1 + $0x330] sm:$0xff]
  %v133 = vld [vmem:[%s1 + $0x338] sm:$0xff]
  %v134 = vld [vmem:[%s1 + $0x340] sm:$0xff]
  %v135 = vld [vmem:[%s1 + $0x348] sm:$0xff]
  %v136 = vld [vmem:[%s1 + $0x350] sm:$0xff]
  %v137 = vld [vmem:[%s1 + $0x358] sm:$0xff]
  %v138 = vld [vmem:[%s1 + $0x360] sm:$0xff]
  %v139 = vld [vmem:[%s1 + $0x368] sm:$0xff]
  %v140 = vld [vmem:[%s1 + $0x370] sm:$0xff]
  %v141 = vld [vmem:[%s1 + $0x378] sm:$0xff]
  %v142 = vld [vmem:[%s1 + $0x380] sm:$0xff]
  %v143 = vld [vmem:[%s1 + $0x388] sm:$0xff]
  %v144 = vld [vmem:[%s1 + $0x390] sm:$0xff]
  %v145 = vld [vmem:[%s1 + $0x398] sm:$0xff]
  %v146 = vld [vmem:[%s1 + $0x3a0] sm:$0xff]
  %v147 = vld [vmem:[%s1 + $0x3a8] sm:$0xff]
  %v148 = vld [vmem:[%s1 + $0x3b0] sm:$0xff]
  %v149 = vld [vmem:[%s1 + $0x3b8] sm:$0xff]
  %v150 = vld [vmem:[%s2] sm:$0xf]
  %v152 = vperm.slane %v150, 0
  %v153 = vperm.slane %v150, 1
  %v154 = vperm.slane %v150, 2
  %v155 = vperm.slane %v150, 3
  %161 = vst [vmem:[#allocation1] ss:$9 sm:$0xff] %v29
  %v162 = vld [vmem:[#allocation1] sm:$0xff]
  %v163 = vld [vmem:[#allocation1 + $0x9] sm:$0xff]
  %v164 = vld [vmem:[#allocation1 + $0x12] sm:$0xff]
  %v165 = vld [vmem:[#allocation1 + $0x1b] sm:$0xff]
  %v289 = vunpack.c.l.b16 %v30
  %v290 = vunpack.c.h.b16 %v30
  %v291 = vunpack.c.l.b16 %v31
  %v292 = vunpack.c.h.b16 %v31
  %v293 = vunpack.c.l.b16 %v32
  %v294 = vunpack.c.h.b16 %v32
  %v295 = vunpack.c.l.b16 %v33
  %v296 = vunpack.c.h.b16 %v33
  %v297 = vunpack.c.l.b16 %v34
  %v298 = vunpack.c.h.b16 %v34
  %v299 = vunpack.c.l.b16 %v35
  %v300 = vunpack.c.h.b16 %v35
  %v301 = vunpack.c.l.b16 %v36
  %v302 = vunpack.c.h.b16 %v36
  %v303 = vunpack.c.l.b16 %v37
  %v304 = vunpack.c.h.b16 %v37
  %v305 = vunpack.c.l.b16 %v38
  %v306 = vunpack.c.h.b16 %v38
  %v307 = vunpack.c.l.b16 %v39
  %v308 = vunpack.c.h.b16 %v39
  %v309 = vunpack.c.l.b16 %v40
  %v310 = vunpack.c.h.b16 %v40
  %v311 = vunpack.c.l.b16 %v41
  %v312 = vunpack.c.h.b16 %v41
  %v313 = vunpack.c.l.b16 %v42
  %v314 = vunpack.c.h.b16 %v42
  %v315 = vunpack.c.l.b16 %v43
  %v316 = vunpack.c.h.b16 %v43
  %v317 = vunpack.c.l.b16 %v44
  %v318 = vunpack.c.h.b16 %v44
  %v319 = vunpack.c.l.b16 %v45
  %v320 = vunpack.c.h.b16 %v45
  %v321 = vunpack.c.l.b16 %v46
  %v322 = vunpack.c.h.b16 %v46
  %v323 = vunpack.c.l.b16 %v47
  %v324 = vunpack.c.h.b16 %v47
  %v325 = vunpack.c.l.b16 %v48
  %v326 = vunpack.c.h.b16 %v48
  %v327 = vunpack.c.l.b16 %v49
  %v328 = vunpack.c.h.b16 %v49
  %v329 = vunpack.c.l.b16 %v50
  %v330 = vunpack.c.h.b16 %v50
  %v331 = vunpack.c.l.b16 %v51
  %v332 = vunpack.c.h.b16 %v51
  %v333 = vunpack.c.l.b16 %v52
  %v334 = vunpack.c.h.b16 %v52
  %v335 = vunpack.c.l.b16 %v53
  %v336 = vunpack.c.h.b16 %v53
  %v337 = vunpack.c.l.b16 %v54
  %v338 = vunpack.c.h.b16 %v54
  %v339 = vunpack.c.l.b16 %v55
  %v340 = vunpack.c.h.b16 %v55
  %v341 = vunpack.c.l.b16 %v56
  %v342 = vunpack.c.h.b16 %v56
  %v343 = vunpack.c.l.b16 %v57
  %v344 = vunpack.c.h.b16 %v57
  %v345 = vunpack.c.l.b16 %v58
  %v346 = vunpack.c.h.b16 %v58
  %v347 = vunpack.c.l.b16 %v59
  %v348 = vunpack.c.h.b16 %v59
  %v349 = vunpack.c.l.b16 %v60
  %v350 = vunpack.c.h.b16 %v60
  %v351 = vunpack.c.l.b16 %v61
  %v352 = vunpack.c.h.b16 %v61
  %v353 = vunpack.c.l.b16 %v62
  %v354 = vunpack.c.h.b16 %v62
  %v355 = vunpack.c.l.b16 %v63
  %v356 = vunpack.c.h.b16 %v63
  %v357 = vunpack.c.l.b16 %v64
  %v358 = vunpack.c.h.b16 %v64
  %v359 = vunpack.c.l.b16 %v65
  %v360 = vunpack.c.h.b16 %v65
  %v361 = vunpack.c.l.b16 %v66
  %v362 = vunpack.c.h.b16 %v66
  %v363 = vunpack.c.l.b16 %v67
  %v364 = vunpack.c.h.b16 %v67
  %v365 = vunpack.c.l.b16 %v68
  %v366 = vunpack.c.h.b16 %v68
  %v367 = vunpack.c.l.b16 %v69
  %v368 = vunpack.c.h.b16 %v69
  %v369 = vunpack.c.l.b16 %v70
  %v370 = vunpack.c.h.b16 %v70
  %v371 = vunpack.c.l.b16 %v71
  %v372 = vunpack.c.h.b16 %v71
  %v373 = vunpack.c.l.b16 %v72
  %v374 = vunpack.c.h.b16 %v72
  %v375 = vunpack.c.l.b16 %v73
  %v376 = vunpack.c.h.b16 %v73
  %v377 = vunpack.c.l.b16 %v74
  %v378 = vunpack.c.h.b16 %v74
  %v379 = vunpack.c.l.b16 %v75
  %v380 = vunpack.c.h.b16 %v75
  %v381 = vunpack.c.l.b16 %v76
  %v382 = vunpack.c.h.b16 %v76
  %v383 = vunpack.c.l.b16 %v77
  %v384 = vunpack.c.h.b16 %v77
  %v385 = vunpack.c.l.b16 %v78
  %v386 = vunpack.c.h.b16 %v78
  %v387 = vunpack.c.l.b16 %v79
  %v388 = vunpack.c.h.b16 %v79
  %v389 = vunpack.c.l.b16 %v80
  %v390 = vunpack.c.h.b16 %v80
  %v391 = vunpack.c.l.b16 %v81
  %v392 = vunpack.c.h.b16 %v81
  %v393 = vunpack.c.l.b16 %v82
  %v394 = vunpack.c.h.b16 %v82
  %v395 = vunpack.c.l.b16 %v83
  %v396 = vunpack.c.h.b16 %v83
  %v397 = vunpack.c.l.b16 %v84
  %v398 = vunpack.c.h.b16 %v84
  %v399 = vunpack.c.l.b16 %v85
  %v400 = vunpack.c.h.b16 %v85
  %v401 = vunpack.c.l.b16 %v86
  %v402 = vunpack.c.h.b16 %v86
  %v403 = vunpack.c.l.b16 %v87
  %v404 = vunpack.c.h.b16 %v87
  %v405 = vunpack.c.l.b16 %v88
  %v406 = vunpack.c.h.b16 %v88
  %v407 = vunpack.c.l.b16 %v89
  %v408 = vunpack.c.h.b16 %v89
  %v409 = vunpack.c.l.b16 %v90
  %v410 = vunpack.c.h.b16 %v90
  %v411 = vunpack.c.l.b16 %v91
  %v412 = vunpack.c.h.b16 %v91
  %v413 = vunpack.c.l.b16 %v92
  %v414 = vunpack.c.h.b16 %v92
  %v415 = vunpack.c.l.b16 %v93
  %v416 = vunpack.c.h.b16 %v93
  %v417 = vunpack.c.l.b16 %v94
  %v418 = vunpack.c.h.b16 %v94
  %v419 = vunpack.c.l.b16 %v95
  %v420 = vunpack.c.h.b16 %v95
  %v421 = vunpack.c.l.b16 %v96
  %v422 = vunpack.c.h.b16 %v96
  %v423 = vunpack.c.l.b16 %v97
  %v424 = vunpack.c.h.b16 %v97
  %v425 = vunpack.c.l.b16 %v98
  %v426 = vunpack.c.h.b16 %v98
  %v427 = vunpack.c.l.b16 %v99
  %v428 = vunpack.c.h.b16 %v99
  %v429 = vunpack.c.l.b16 %v100
  %v430 = vunpack.c.h.b16 %v100
  %v431 = vunpack.c.l.b16 %v101
  %v432 = vunpack.c.h.b16 %v101
  %v433 = vunpack.c.l.b16 %v102
  %v434 = vunpack.c.h.b16 %v102
  %v435 = vunpack.c.l.b16 %v103
  %v436 = vunpack.c.h.b16 %v103
  %v437 = vunpack.c.l.b16 %v104
  %v438 = vunpack.c.h.b16 %v104
  %v439 = vunpack.c.l.b16 %v105
  %v440 = vunpack.c.h.b16 %v105
  %v441 = vunpack.c.l.b16 %v106
  %v442 = vunpack.c.h.b16 %v106
  %v443 = vunpack.c.l.b16 %v107
  %v444 = vunpack.c.h.b16 %v107
  %v445 = vunpack.c.l.b16 %v108
  %v446 = vunpack.c.h.b16 %v108
  %v447 = vunpack.c.l.b16 %v109
  %v448 = vunpack.c.h.b16 %v109
  %v449 = vunpack.c.l.b16 %v110
  %v450 = vunpack.c.h.b16 %v110
  %v451 = vunpack.c.l.b16 %v111
  %v452 = vunpack.c.h.b16 %v111
  %v453 = vunpack.c.l.b16 %v112
  %v454 = vunpack.c.h.b16 %v112
  %v455 = vunpack.c.l.b16 %v113
  %v456 = vunpack.c.h.b16 %v113
  %v457 = vunpack.c.l.b16 %v114
  %v458 = vunpack.c.h.b16 %v114
  %v459 = vunpack.c.l.b16 %v115
  %v460 = vunpack.c.h.b16 %v115
  %v461 = vunpack.c.l.b16 %v116
  %v462 = vunpack.c.h.b16 %v116
  %v463 = vunpack.c.l.b16 %v117
  %v464 = vunpack.c.h.b16 %v117
  %v465 = vunpack.c.l.b16 %v118
  %v466 = vunpack.c.h.b16 %v118
  %v467 = vunpack.c.l.b16 %v119
  %v468 = vunpack.c.h.b16 %v119
  %v469 = vunpack.c.l.b16 %v120
  %v470 = vunpack.c.h.b16 %v120
  %v471 = vunpack.c.l.b16 %v121
  %v472 = vunpack.c.h.b16 %v121
  %v473 = vunpack.c.l.b16 %v122
  %v474 = vunpack.c.h.b16 %v122
  %v475 = vunpack.c.l.b16 %v123
  %v476 = vunpack.c.h.b16 %v123
  %v477 = vunpack.c.l.b16 %v124
  %v478 = vunpack.c.h.b16 %v124
  %v479 = vunpack.c.l.b16 %v125
  %v480 = vunpack.c.h.b16 %v125
  %v481 = vunpack.c.l.b16 %v126
  %v482 = vunpack.c.h.b16 %v126
  %v483 = vunpack.c.l.b16 %v127
  %v484 = vunpack.c.h.b16 %v127
  %v485 = vunpack.c.l.b16 %v128
  %v486 = vunpack.c.h.b16 %v128
  %v487 = vunpack.c.l.b16 %v129
  %v488 = vunpack.c.h.b16 %v129
  %v489 = vunpack.c.l.b16 %v130
  %v490 = vunpack.c.h.b16 %v130
  %v491 = vunpack.c.l.b16 %v131
  %v492 = vunpack.c.h.b16 %v131
  %v493 = vunpack.c.l.b16 %v132
  %v494 = vunpack.c.h.b16 %v132
  %v495 = vunpack.c.l.b16 %v133
  %v496 = vunpack.c.h.b16 %v133
  %v497 = vunpack.c.l.b16 %v134
  %v498 = vunpack.c.h.b16 %v134
  %v499 = vunpack.c.l.b16 %v135
  %v500 = vunpack.c.h.b16 %v135
  %v501 = vunpack.c.l.b16 %v136
  %v502 = vunpack.c.h.b16 %v136
  %v503 = vunpack.c.l.b16 %v137
  %v504 = vunpack.c.h.b16 %v137
  %v505 = vunpack.c.l.b16 %v138
  %v506 = vunpack.c.h.b16 %v138
  %v507 = vunpack.c.l.b16 %v139
  %v508 = vunpack.c.h.b16 %v139
  %v509 = vunpack.c.l.b16 %v140
  %v510 = vunpack.c.h.b16 %v140
  %v511 = vunpack.c.l.b16 %v141
  %v512 = vunpack.c.h.b16 %v141
  %v513 = vunpack.c.l.b16 %v142
  %v514 = vunpack.c.h.b16 %v142
  %v515 = vunpack.c.l.b16 %v143
  %v516 = vunpack.c.h.b16 %v143
  %v517 = vunpack.c.l.b16 %v144
  %v518 = vunpack.c.h.b16 %v144
  %v519 = vunpack.c.l.b16 %v145
  %v520 = vunpack.c.h.b16 %v145
  %v521 = vunpack.c.l.b16 %v146
  %v522 = vunpack.c.h.b16 %v146
  %v523 = vunpack.c.l.b16 %v147
  %v524 = vunpack.c.h.b16 %v147
  %v525 = vunpack.c.l.b16 %v148
  %v526 = vunpack.c.h.b16 %v148
  %v527 = vunpack.c.l.b16 %v149
  %v528 = vunpack.c.h.b16 %v149
  %v529 = vpack.c.b16 %v293, %v289
  %v530 = vpack.c.b16 %v294, %v290
  %v531 = vpack.c.b16 %v295, %v291
  %v532 = vpack.c.b16 %v296, %v292
  %v533 = vpack.c.b16 %v301, %v297
  %v534 = vpack.c.b16 %v302, %v298
  %v535 = vpack.c.b16 %v303, %v299
  %v536 = vpack.c.b16 %v304, %v300
  %v537 = vpack.c.b16 %v309, %v305
  %v538 = vpack.c.b16 %v310, %v306
  %v539 = vpack.c.b16 %v311, %v307
  %v540 = vpack.c.b16 %v312, %v308
  %v541 = vpack.c.b16 %v317, %v313
  %v542 = vpack.c.b16 %v318, %v314
  %v543 = vpack.c.b16 %v319, %v315
  %v544 = vpack.c.b16 %v320, %v316
  %v545 = vpack.c.b16 %v325, %v321
  %v546 = vpack.c.b16 %v326, %v322
  %v547 = vpack.c.b16 %v327, %v323
  %v548 = vpack.c.b16 %v328, %v324
  %v549 = vpack.c.b16 %v333, %v329
  %v550 = vpack.c.b16 %v334, %v330
  %v551 = vpack.c.b16 %v335, %v331
  %v552 = vpack.c.b16 %v336, %v332
  %v553 = vpack.c.b16 %v341, %v337
  %v554 = vpack.c.b16 %v342, %v338
  %v555 = vpack.c.b16 %v343, %v339
  %v556 = vpack.c.b16 %v344, %v340
  %v557 = vpack.c.b16 %v349, %v345
  %v558 = vpack.c.b16 %v350, %v346
  %v559 = vpack.c.b16 %v351, %v347
  %v560 = vpack.c.b16 %v352, %v348
  %v561 = vpack.c.b16 %v357, %v353
  %v562 = vpack.c.b16 %v358, %v354
  %v563 = vpack.c.b16 %v359, %v355
  %v564 = vpack.c.b16 %v360, %v356
  %v565 = vpack.c.b16 %v365, %v361
  %v566 = vpack.c.b16 %v366, %v362
  %v567 = vpack.c.b16 %v367, %v363
  %v568 = vpack.c.b16 %v368, %v364
  %v569 = vpack.c.b16 %v373, %v369
  %v570 = vpack.c.b16 %v374, %v370
  %v571 = vpack.c.b16 %v375, %v371
  %v572 = vpack.c.b16 %v376, %v372
  %v573 = vpack.c.b16 %v381, %v377
  %v574 = vpack.c.b16 %v382, %v378
  %v575 = vpack.c.b16 %v383, %v379
  %v576 = vpack.c.b16 %v384, %v380
  %v577 = vpack.c.b16 %v389, %v385
  %v578 = vpack.c.b16 %v390, %v386
  %v579 = vpack.c.b16 %v391, %v387
  %v580 = vpack.c.b16 %v392, %v388
  %v581 = vpack.c.b16 %v397, %v393
  %v582 = vpack.c.b16 %v398, %v394
  %v583 = vpack.c.b16 %v399, %v395
  %v584 = vpack.c.b16 %v400, %v396
  %v585 = vpack.c.b16 %v405, %v401
  %v586 = vpack.c.b16 %v406, %v402
  %v587 = vpack.c.b16 %v407, %v403
  %v588 = vpack.c.b16 %v408, %v404
  %v589 = vpack.c.b16 %v413, %v409
  %v590 = vpack.c.b16 %v414, %v410
  %v591 = vpack.c.b16 %v415, %v411
  %v592 = vpack.c.b16 %v416, %v412
  %v593 = vpack.c.b16 %v421, %v417
  %v594 = vpack.c.b16 %v422, %v418
  %v595 = vpack.c.b16 %v423, %v419
  %v596 = vpack.c.b16 %v424, %v420
  %v597 = vpack.c.b16 %v429, %v425
  %v598 = vpack.c.b16 %v430, %v426
  %v599 = vpack.c.b16 %v431, %v427
  %v600 = vpack.c.b16 %v432, %v428
  %v601 = vpack.c.b16 %v437, %v433
  %v602 = vpack.c.b16 %v438, %v434
  %v603 = vpack.c.b16 %v439, %v435
  %v604 = vpack.c.b16 %v440, %v436
  %v605 = vpack.c.b16 %v445, %v441
  %v606 = vpack.c.b16 %v446, %v442
  %v607 = vpack.c.b16 %v447, %v443
  %v608 = vpack.c.b16 %v448, %v444
  %v609 = vpack.c.b16 %v453, %v449
  %v610 = vpack.c.b16 %v454, %v450
  %v611 = vpack.c.b16 %v455, %v451
  %v612 = vpack.c.b16 %v456, %v452
  %v613 = vpack.c.b16 %v461, %v457
  %v614 = vpack.c.b16 %v462, %v458
  %v615 = vpack.c.b16 %v463, %v459
  %v616 = vpack.c.b16 %v464, %v460
  %v617 = vpack.c.b16 %v469, %v465
  %v618 = vpack.c.b16 %v470, %v466
  %v619 = vpack.c.b16 %v471, %v467
  %v620 = vpack.c.b16 %v472, %v468
  %v621 = vpack.c.b16 %v477, %v473
  %v622 = vpack.c.b16 %v478, %v474
  %v623 = vpack.c.b16 %v479, %v475
  %v624 = vpack.c.b16 %v480, %v476
  %v625 = vpack.c.b16 %v485, %v481
  %v626 = vpack.c.b16 %v486, %v482
  %v627 = vpack.c.b16 %v487, %v483
  %v628 = vpack.c.b16 %v488, %v484
  %v629 = vpack.c.b16 %v493, %v489
  %v630 = vpack.c.b16 %v494, %v490
  %v631 = vpack.c.b16 %v495, %v491
  %v632 = vpack.c.b16 %v496, %v492
  %v633 = vpack.c.b16 %v501, %v497
  %v634 = vpack.c.b16 %v502, %v498
  %v635 = vpack.c.b16 %v503, %v499
  %v636 = vpack.c.b16 %v504, %v500
  %v637 = vpack.c.b16 %v509, %v505
  %v638 = vpack.c.b16 %v510, %v506
  %v639 = vpack.c.b16 %v511, %v507
  %v640 = vpack.c.b16 %v512, %v508
  %v641 = vpack.c.b16 %v517, %v513
  %v642 = vpack.c.b16 %v518, %v514
  %v643 = vpack.c.b16 %v519, %v515
  %v644 = vpack.c.b16 %v520, %v516
  %v645 = vpack.c.b16 %v525, %v521
  %v646 = vpack.c.b16 %v526, %v522
  %v647 = vpack.c.b16 %v527, %v523
  %v648 = vpack.c.b16 %v528, %v524
  %vm769 = vcmask 785408
  %v770 = vsel %vm769, %v165, 0
  %772 = vmatpush.bf16.msra.mxu0 %v557
  %773 = vmatpush.bf16.msra.mxu0 %v553
  %774 = vmatpush.bf16.msra.mxu0 %v549
  %775 = vmatpush.bf16.msra.mxu0 %v545
  %776 = vmatpush.bf16.msra.mxu0 %v541
  %777 = vmatpush.bf16.msra.mxu0 %v537
  %778 = vmatpush.bf16.msra.mxu0 %v533
  %779 = vmatpush.bf16.msra.mxu0 %v529
  %780 = vmatmul.bf16.gmra.mxu0 %v162
  %v781 = vpop.f32.mrf.mxu0
  %v782 = vadd.f32 %v152, %v781
  %v783 = vpop.f32.mrf.mxu0
  %784 = vdwg.mxu0
  %785 = vmatpush.bf16.msra.mxu0 %v589
  %786 = vmatpush.bf16.msra.mxu0 %v585
  %787 = vmatpush.bf16.msra.mxu0 %v581
  %788 = vmatpush.bf16.msra.mxu0 %v577
  %789 = vmatpush.bf16.msra.mxu0 %v573
  %790 = vmatpush.bf16.msra.mxu0 %v569
  %791 = vmatpush.bf16.msra.mxu0 %v565
  %792 = vmatpush.bf16.msra.mxu0 %v561
  %793 = vmatmul.bf16.gmra.mxu0 %v163
  %v794 = vpop.f32.mrf.mxu0
  %v795 = vadd.f32 %v782, %v794
  %v796 = vpop.f32.mrf.mxu0
  %797 = vdwg.mxu0
  %798 = vmatpush.bf16.msra.mxu0 %v621
  %799 = vmatpush.bf16.msra.mxu0 %v617
  %800 = vmatpush.bf16.msra.mxu0 %v613
  %801 = vmatpush.bf16.msra.mxu0 %v609
  %802 = vmatpush.bf16.msra.mxu0 %v605
  %803 = vmatpush.bf16.msra.mxu0 %v601
  %804 = vmatpush.bf16.msra.mxu0 %v597
  %805 = vmatpush.bf16.msra.mxu0 %v593
  %806 = vmatmul.bf16.gmra.mxu0 %v164
  %v807 = vpop.f32.mrf.mxu0
  %v808 = vadd.f32 %v795, %v807
  %v809 = vpop.f32.mrf.mxu0
  %810 = vdwg.mxu0
  %811 = vmatpush.bf16.msra.mxu0 0
  %812 = vmatpush.bf16.msra.mxu0 0
  %813 = vmatpush.bf16.msra.mxu0 %v645
  %814 = vmatpush.bf16.msra.mxu0 %v641
  %815 = vmatpush.bf16.msra.mxu0 %v637
  %816 = vmatpush.bf16.msra.mxu0 %v633
  %817 = vmatpush.bf16.msra.mxu0 %v629
  %818 = vmatpush.bf16.msra.mxu0 %v625
  %819 = vmatmul.bf16.gmra.mxu0 %v770
  %v820 = vpop.f32.mrf.mxu0
  %v821 = vadd.f32 %v808, %v820
  %v822 = vpop.f32.mrf.mxu0
  %823 = vdwg.mxu0
  %824 = vmatpush.bf16.msra.mxu0 %v558
  %825 = vmatpush.bf16.msra.mxu0 %v554
  %826 = vmatpush.bf16.msra.mxu0 %v550
  %827 = vmatpush.bf16.msra.mxu0 %v546
  %828 = vmatpush.bf16.msra.mxu0 %v542
  %829 = vmatpush.bf16.msra.mxu0 %v538
  %830 = vmatpush.bf16.msra.mxu0 %v534
  %831 = vmatpush.bf16.msra.mxu0 %v530
  %832 = vmatmul.bf16.gmra.mxu0 %v162
  %v833 = vpop.f32.mrf.mxu0
  %v834 = vadd.f32 %v153, %v833
  %v835 = vpop.f32.mrf.mxu0
  %836 = vdwg.mxu0
  %837 = vmatpush.bf16.msra.mxu0 %v590
  %838 = vmatpush.bf16.msra.mxu0 %v586
  %839 = vmatpush.bf16.msra.mxu0 %v582
  %840 = vmatpush.bf16.msra.mxu0 %v578
  %841 = vmatpush.bf16.msra.mxu0 %v574
  %842 = vmatpush.bf16.msra.mxu0 %v570
  %843 = vmatpush.bf16.msra.mxu0 %v566
  %844 = vmatpush.bf16.msra.mxu0 %v562
  %845 = vmatmul.bf16.gmra.mxu0 %v163
  %v846 = vpop.f32.mrf.mxu0
  %v847 = vadd.f32 %v834, %v846
  %v848 = vpop.f32.mrf.mxu0
  %849 = vdwg.mxu0
  %850 = vmatpush.bf16.msra.mxu0 %v622
  %851 = vmatpush.bf16.msra.mxu0 %v618
  %852 = vmatpush.bf16.msra.mxu0 %v614
  %853 = vmatpush.bf16.msra.mxu0 %v610
  %854 = vmatpush.bf16.msra.mxu0 %v606
  %855 = vmatpush.bf16.msra.mxu0 %v602
  %856 = vmatpush.bf16.msra.mxu0 %v598
  %857 = vmatpush.bf16.msra.mxu0 %v594
  %858 = vmatmul.bf16.gmra.mxu0 %v164
  %v859 = vpop.f32.mrf.mxu0
  %v860 = vadd.f32 %v847, %v859
  %v861 = vpop.f32.mrf.mxu0
  %862 = vdwg.mxu0
  %863 = vmatpush.bf16.msra.mxu0 0
  %864 = vmatpush.bf16.msra.mxu0 0
  %865 = vmatpush.bf16.msra.mxu0 %v646
  %866 = vmatpush.bf16.msra.mxu0 %v642
  %867 = vmatpush.bf16.msra.mxu0 %v638
  %868 = vmatpush.bf16.msra.mxu0 %v634
  %869 = vmatpush.bf16.msra.mxu0 %v630
  %870 = vmatpush.bf16.msra.mxu0 %v626
  %871 = vmatmul.bf16.gmra.mxu0 %v770
  %v872 = vpop.f32.mrf.mxu0
  %v873 = vadd.f32 %v860, %v872
  %v874 = vpop.f32.mrf.mxu0
  %875 = vdwg.mxu0
  %876 = vmatpush.bf16.msra.mxu0 %v559
  %877 = vmatpush.bf16.msra.mxu0 %v555
  %878 = vmatpush.bf16.msra.mxu0 %v551
  %879 = vmatpush.bf16.msra.mxu0 %v547
  %880 = vmatpush.bf16.msra.mxu0 %v543
  %881 = vmatpush.bf16.msra.mxu0 %v539
  %882 = vmatpush.bf16.msra.mxu0 %v535
  %883 = vmatpush.bf16.msra.mxu0 %v531
  %884 = vmatmul.bf16.gmra.mxu0 %v162
  %v885 = vpop.f32.mrf.mxu0
  %v886 = vadd.f32 %v154, %v885
  %v887 = vpop.f32.mrf.mxu0
  %888 = vdwg.mxu0
  %889 = vmatpush.bf16.msra.mxu0 %v591
  %890 = vmatpush.bf16.msra.mxu0 %v587
  %891 = vmatpush.bf16.msra.mxu0 %v583
  %892 = vmatpush.bf16.msra.mxu0 %v579
  %893 = vmatpush.bf16.msra.mxu0 %v575
  %894 = vmatpush.bf16.msra.mxu0 %v571
  %895 = vmatpush.bf16.msra.mxu0 %v567
  %896 = vmatpush.bf16.msra.mxu0 %v563
  %897 = vmatmul.bf16.gmra.mxu0 %v163
  %v898 = vpop.f32.mrf.mxu0
  %v899 = vadd.f32 %v886, %v898
  %v900 = vpop.f32.mrf.mxu0
  %901 = vdwg.mxu0
  %902 = vmatpush.bf16.msra.mxu0 %v623
  %903 = vmatpush.bf16.msra.mxu0 %v619
  %904 = vmatpush.bf16.msra.mxu0 %v615
  %905 = vmatpush.bf16.msra.mxu0 %v611
  %906 = vmatpush.bf16.msra.mxu0 %v607
  %907 = vmatpush.bf16.msra.mxu0 %v603
  %908 = vmatpush.bf16.msra.mxu0 %v599
  %909 = vmatpush.bf16.msra.mxu0 %v595
  %910 = vmatmul.bf16.gmra.mxu0 %v164
  %v911 = vpop.f32.mrf.mxu0
  %v912 = vadd.f32 %v899, %v911
  %v913 = vpop.f32.mrf.mxu0
  %914 = vdwg.mxu0
  %915 = vmatpush.bf16.msra.mxu0 0
  %916 = vmatpush.bf16.msra.mxu0 0
  %917 = vmatpush.bf16.msra.mxu0 %v647
  %918 = vmatpush.bf16.msra.mxu0 %v643
  %919 = vmatpush.bf16.msra.mxu0 %v639
  %920 = vmatpush.bf16.msra.mxu0 %v635
  %921 = vmatpush.bf16.msra.mxu0 %v631
  %922 = vmatpush.bf16.msra.mxu0 %v627
  %923 = vmatmul.bf16.gmra.mxu0 %v770
  %v924 = vpop.f32.mrf.mxu0
  %v925 = vadd.f32 %v912, %v924
  %v926 = vpop.f32.mrf.mxu0
  %927 = vdwg.mxu0
  %928 = vmatpush.bf16.msra.mxu0 %v560
  %929 = vmatpush.bf16.msra.mxu0 %v556
  %930 = vmatpush.bf16.msra.mxu0 %v552
  %931 = vmatpush.bf16.msra.mxu0 %v548
  %932 = vmatpush.bf16.msra.mxu0 %v544
  %933 = vmatpush.bf16.msra.mxu0 %v540
  %934 = vmatpush.bf16.msra.mxu0 %v536
  %935 = vmatpush.bf16.msra.mxu0 %v532
  %936 = vmatmul.bf16.gmra.mxu0 %v162
  %v937 = vpop.f32.mrf.mxu0
  %v938 = vadd.f32 %v155, %v937
  %v939 = vpop.f32.mrf.mxu0
  %940 = vdwg.mxu0
  %941 = vmatpush.bf16.msra.mxu0 %v592
  %942 = vmatpush.bf16.msra.mxu0 %v588
  %943 = vmatpush.bf16.msra.mxu0 %v584
  %944 = vmatpush.bf16.msra.mxu0 %v580
  %945 = vmatpush.bf16.msra.mxu0 %v576
  %946 = vmatpush.bf16.msra.mxu0 %v572
  %947 = vmatpush.bf16.msra.mxu0 %v568
  %948 = vmatpush.bf16.msra.mxu0 %v564
  %949 = vmatmul.bf16.gmra.mxu0 %v163
  %v950 = vpop.f32.mrf.mxu0
  %v951 = vadd.f32 %v938, %v950
  %v952 = vpop.f32.mrf.mxu0
  %953 = vdwg.mxu0
  %954 = vmatpush.bf16.msra.mxu0 %v624
  %955 = vmatpush.bf16.msra.mxu0 %v620
  %956 = vmatpush.bf16.msra.mxu0 %v616
  %957 = vmatpush.bf16.msra.mxu0 %v612
  %958 = vmatpush.bf16.msra.mxu0 %v608
  %959 = vmatpush.bf16.msra.mxu0 %v604
  %960 = vmatpush.bf16.msra.mxu0 %v600
  %961 = vmatpush.bf16.msra.mxu0 %v596
  %962 = vmatmul.bf16.gmra.mxu0 %v164
  %v963 = vpop.f32.mrf.mxu0
  %v964 = vadd.f32 %v951, %v963
  %v965 = vpop.f32.mrf.mxu0
  %966 = vdwg.mxu0
  %967 = vmatpush.bf16.msra.mxu0 0
  %968 = vmatpush.bf16.msra.mxu0 0
  %969 = vmatpush.bf16.msra.mxu0 %v648
  %970 = vmatpush.bf16.msra.mxu0 %v644
  %971 = vmatpush.bf16.msra.mxu0 %v640
  %972 = vmatpush.bf16.msra.mxu0 %v636
  %973 = vmatpush.bf16.msra.mxu0 %v632
  %974 = vmatpush.bf16.msra.mxu0 %v628
  %975 = vmatmul.bf16.gmra.mxu0 %v770
  %v976 = vpop.f32.mrf.mxu0
  %v977 = vadd.f32 %v964, %v976
  %v978 = vpop.f32.mrf.mxu0
  %979 = vdwg.mxu0
  %v980 = vmax.f32 %v821, 0.0
  %v981 = vmax.f32 %v873, 0.0
  %v982 = vmax.f32 %v925, 0.0
  %v983 = vmax.f32 %v977, 0.0
  %v984 = vpack.c.bf16 %v980, %v980
  %v985 = vpack.c.bf16 %v981, %v981
  %v986 = vpack.c.bf16 %v982, %v982
  %v987 = vpack.c.bf16 %v983, %v983
  %v988 = vld [vmem:[%s3] sm:$0xff]
  %v989 = vld [vmem:[%s3 + $0x8] sm:$0xff]
  %v990 = vld [vmem:[%s3 + $0x10] sm:$0xff]
  %v991 = vld [vmem:[%s3 + $0x18] sm:$0xff]
  %v992 = vld [vmem:[%s3 + $0x20] sm:$0xff]
  %v993 = vld [vmem:[%s3 + $0x28] sm:$0xff]
  %v994 = vld [vmem:[%s3 + $0x30] sm:$0xff]
  %v995 = vld [vmem:[%s3 + $0x38] sm:$0xff]
  %v996 = vld [vmem:[%s3 + $0x40] sm:$0xff]
  %v997 = vld [vmem:[%s3 + $0x48] sm:$0xff]
  %v998 = vld [vmem:[%s3 + $0x50] sm:$0xff]
  %v999 = vld [vmem:[%s3 + $0x58] sm:$0xff]
  %v1000 = vld [vmem:[%s3 + $0x60] sm:$0xff]
  %v1001 = vld [vmem:[%s3 + $0x68] sm:$0xff]
  %v1002 = vld [vmem:[%s3 + $0x70] sm:$0xff]
  %v1003 = vld [vmem:[%s3 + $0x78] sm:$0xff]
  %v1004 = vld [vmem:[%s3 + $0x80] sm:$0xff]
  %v1005 = vld [vmem:[%s3 + $0x88] sm:$0xff]
  %v1006 = vld [vmem:[%s3 + $0x90] sm:$0xff]
  %v1007 = vld [vmem:[%s3 + $0x98] sm:$0xff]
  %v1008 = vld [vmem:[%s3 + $0xa0] sm:$0xff]
  %v1009 = vld [vmem:[%s3 + $0xa8] sm:$0xff]
  %v1010 = vld [vmem:[%s3 + $0xb0] sm:$0xff]
  %v1011 = vld [vmem:[%s3 + $0xb8] sm:$0xff]
  %v1012 = vld [vmem:[%s3 + $0xc0] sm:$0xff]
  %v1013 = vld [vmem:[%s3 + $0xc8] sm:$0xff]
  %v1014 = vld [vmem:[%s3 + $0xd0] sm:$0xff]
  %v1015 = vld [vmem:[%s3 + $0xd8] sm:$0xff]
  %v1016 = vld [vmem:[%s3 + $0xe0] sm:$0xff]
  %v1017 = vld [vmem:[%s3 + $0xe8] sm:$0xff]
  %v1018 = vld [vmem:[%s3 + $0xf0] sm:$0xff]
  %v1019 = vld [vmem:[%s3 + $0xf8] sm:$0xff]
  %v1020 = vld [vmem:[%s3 + $0x100] sm:$0xff]
  %v1021 = vld [vmem:[%s3 + $0x108] sm:$0xff]
  %v1022 = vld [vmem:[%s3 + $0x110] sm:$0xff]
  %v1023 = vld [vmem:[%s3 + $0x118] sm:$0xff]
  %v1024 = vld [vmem:[%s3 + $0x120] sm:$0xff]
  %v1025 = vld [vmem:[%s3 + $0x128] sm:$0xff]
  %v1026 = vld [vmem:[%s3 + $0x130] sm:$0xff]
  %v1027 = vld [vmem:[%s3 + $0x138] sm:$0xff]
  %v1028 = vld [vmem:[%s3 + $0x140] sm:$0xff]
  %v1029 = vld [vmem:[%s3 + $0x148] sm:$0xff]
  %v1030 = vld [vmem:[%s3 + $0x150] sm:$0xff]
  %v1031 = vld [vmem:[%s3 + $0x158] sm:$0xff]
  %v1032 = vld [vmem:[%s3 + $0x160] sm:$0xff]
  %v1033 = vld [vmem:[%s3 + $0x168] sm:$0xff]
  %v1034 = vld [vmem:[%s3 + $0x170] sm:$0xff]
  %v1035 = vld [vmem:[%s3 + $0x178] sm:$0xff]
  %v1036 = vld [vmem:[%s3 + $0x180] sm:$0xff]
  %v1037 = vld [vmem:[%s3 + $0x188] sm:$0xff]
  %v1038 = vld [vmem:[%s3 + $0x190] sm:$0xff]
  %v1039 = vld [vmem:[%s3 + $0x198] sm:$0xff]
  %v1040 = vld [vmem:[%s3 + $0x1a0] sm:$0xff]
  %v1041 = vld [vmem:[%s3 + $0x1a8] sm:$0xff]
  %v1042 = vld [vmem:[%s3 + $0x1b0] sm:$0xff]
  %v1043 = vld [vmem:[%s3 + $0x1b8] sm:$0xff]
  %v1044 = vld [vmem:[%s3 + $0x1c0] sm:$0xff]
  %v1045 = vld [vmem:[%s3 + $0x1c8] sm:$0xff]
  %v1046 = vld [vmem:[%s3 + $0x1d0] sm:$0xff]
  %v1047 = vld [vmem:[%s3 + $0x1d8] sm:$0xff]
  %v1048 = vld [vmem:[%s3 + $0x1e0] sm:$0xff]
  %v1049 = vld [vmem:[%s3 + $0x1e8] sm:$0xff]
  %v1050 = vld [vmem:[%s3 + $0x1f0] sm:$0xff]
  %v1051 = vld [vmem:[%s3 + $0x1f8] sm:$0xff]
  %v1052 = vld [vmem:[%s4] sm:$0x3]
  %v1054 = vperm.slane %v1052, 0
  %v1055 = vperm.slane %v1052, 1
  %v1122 = vunpack.c.l.b16 %v988
  %v1123 = vunpack.c.h.b16 %v988
  %v1124 = vunpack.c.l.b16 %v989
  %v1125 = vunpack.c.h.b16 %v989
  %v1126 = vunpack.c.l.b16 %v990
  %v1127 = vunpack.c.h.b16 %v990
  %v1128 = vunpack.c.l.b16 %v991
  %v1129 = vunpack.c.h.b16 %v991
  %v1130 = vunpack.c.l.b16 %v992
  %v1131 = vunpack.c.h.b16 %v992
  %v1132 = vunpack.c.l.b16 %v993
  %v1133 = vunpack.c.h.b16 %v993
  %v1134 = vunpack.c.l.b16 %v994
  %v1135 = vunpack.c.h.b16 %v994
  %v1136 = vunpack.c.l.b16 %v995
  %v1137 = vunpack.c.h.b16 %v995
  %v1138 = vunpack.c.l.b16 %v996
  %v1139 = vunpack.c.h.b16 %v996
  %v1140 = vunpack.c.l.b16 %v997
  %v1141 = vunpack.c.h.b16 %v997
  %v1142 = vunpack.c.l.b16 %v998
  %v1143 = vunpack.c.h.b16 %v998
  %v1144 = vunpack.c.l.b16 %v999
  %v1145 = vunpack.c.h.b16 %v999
  %v1146 = vunpack.c.l.b16 %v1000
  %v1147 = vunpack.c.h.b16 %v1000
  %v1148 = vunpack.c.l.b16 %v1001
  %v1149 = vunpack.c.h.b16 %v1001
  %v1150 = vunpack.c.l.b16 %v1002
  %v1151 = vunpack.c.h.b16 %v1002
  %v1152 = vunpack.c.l.b16 %v1003
  %v1153 = vunpack.c.h.b16 %v1003
  %v1154 = vunpack.c.l.b16 %v1004
  %v1155 = vunpack.c.h.b16 %v1004
  %v1156 = vunpack.c.l.b16 %v1005
  %v1157 = vunpack.c.h.b16 %v1005
  %v1158 = vunpack.c.l.b16 %v1006
  %v1159 = vunpack.c.h.b16 %v1006
  %v1160 = vunpack.c.l.b16 %v1007
  %v1161 = vunpack.c.h.b16 %v1007
  %v1162 = vunpack.c.l.b16 %v1008
  %v1163 = vunpack.c.h.b16 %v1008
  %v1164 = vunpack.c.l.b16 %v1009
  %v1165 = vunpack.c.h.b16 %v1009
  %v1166 = vunpack.c.l.b16 %v1010
  %v1167 = vunpack.c.h.b16 %v1010
  %v1168 = vunpack.c.l.b16 %v1011
  %v1169 = vunpack.c.h.b16 %v1011
  %v1170 = vunpack.c.l.b16 %v1012
  %v1171 = vunpack.c.h.b16 %v1012
  %v1172 = vunpack.c.l.b16 %v1013
  %v1173 = vunpack.c.h.b16 %v1013
  %v1174 = vunpack.c.l.b16 %v1014
  %v1175 = vunpack.c.h.b16 %v1014
  %v1176 = vunpack.c.l.b16 %v1015
  %v1177 = vunpack.c.h.b16 %v1015
  %v1178 = vunpack.c.l.b16 %v1016
  %v1179 = vunpack.c.h.b16 %v1016
  %v1180 = vunpack.c.l.b16 %v1017
  %v1181 = vunpack.c.h.b16 %v1017
  %v1182 = vunpack.c.l.b16 %v1018
  %v1183 = vunpack.c.h.b16 %v1018
  %v1184 = vunpack.c.l.b16 %v1019
  %v1185 = vunpack.c.h.b16 %v1019
  %v1186 = vunpack.c.l.b16 %v1020
  %v1187 = vunpack.c.h.b16 %v1020
  %v1188 = vunpack.c.l.b16 %v1021
  %v1189 = vunpack.c.h.b16 %v1021
  %v1190 = vunpack.c.l.b16 %v1022
  %v1191 = vunpack.c.h.b16 %v1022
  %v1192 = vunpack.c.l.b16 %v1023
  %v1193 = vunpack.c.h.b16 %v1023
  %v1194 = vunpack.c.l.b16 %v1024
  %v1195 = vunpack.c.h.b16 %v1024
  %v1196 = vunpack.c.l.b16 %v1025
  %v1197 = vunpack.c.h.b16 %v1025
  %v1198 = vunpack.c.l.b16 %v1026
  %v1199 = vunpack.c.h.b16 %v1026
  %v1200 = vunpack.c.l.b16 %v1027
  %v1201 = vunpack.c.h.b16 %v1027
  %v1202 = vunpack.c.l.b16 %v1028
  %v1203 = vunpack.c.h.b16 %v1028
  %v1204 = vunpack.c.l.b16 %v1029
  %v1205 = vunpack.c.h.b16 %v1029
  %v1206 = vunpack.c.l.b16 %v1030
  %v1207 = vunpack.c.h.b16 %v1030
  %v1208 = vunpack.c.l.b16 %v1031
  %v1209 = vunpack.c.h.b16 %v1031
  %v1210 = vunpack.c.l.b16 %v1032
  %v1211 = vunpack.c.h.b16 %v1032
  %v1212 = vunpack.c.l.b16 %v1033
  %v1213 = vunpack.c.h.b16 %v1033
  %v1214 = vunpack.c.l.b16 %v1034
  %v1215 = vunpack.c.h.b16 %v1034
  %v1216 = vunpack.c.l.b16 %v1035
  %v1217 = vunpack.c.h.b16 %v1035
  %v1218 = vunpack.c.l.b16 %v1036
  %v1219 = vunpack.c.h.b16 %v1036
  %v1220 = vunpack.c.l.b16 %v1037
  %v1221 = vunpack.c.h.b16 %v1037
  %v1222 = vunpack.c.l.b16 %v1038
  %v1223 = vunpack.c.h.b16 %v1038
  %v1224 = vunpack.c.l.b16 %v1039
  %v1225 = vunpack.c.h.b16 %v1039
  %v1226 = vunpack.c.l.b16 %v1040
  %v1227 = vunpack.c.h.b16 %v1040
  %v1228 = vunpack.c.l.b16 %v1041
  %v1229 = vunpack.c.h.b16 %v1041
  %v1230 = vunpack.c.l.b16 %v1042
  %v1231 = vunpack.c.h.b16 %v1042
  %v1232 = vunpack.c.l.b16 %v1043
  %v1233 = vunpack.c.h.b16 %v1043
  %v1234 = vunpack.c.l.b16 %v1044
  %v1235 = vunpack.c.h.b16 %v1044
  %v1236 = vunpack.c.l.b16 %v1045
  %v1237 = vunpack.c.h.b16 %v1045
  %v1238 = vunpack.c.l.b16 %v1046
  %v1239 = vunpack.c.h.b16 %v1046
  %v1240 = vunpack.c.l.b16 %v1047
  %v1241 = vunpack.c.h.b16 %v1047
  %v1242 = vunpack.c.l.b16 %v1048
  %v1243 = vunpack.c.h.b16 %v1048
  %v1244 = vunpack.c.l.b16 %v1049
  %v1245 = vunpack.c.h.b16 %v1049
  %v1246 = vunpack.c.l.b16 %v1050
  %v1247 = vunpack.c.h.b16 %v1050
  %v1248 = vunpack.c.l.b16 %v1051
  %v1249 = vunpack.c.h.b16 %v1051
  %v1250 = vpack.c.b16 %v1124, %v1122
  %v1251 = vpack.c.b16 %v1125, %v1123
  %v1252 = vpack.c.b16 %v1128, %v1126
  %v1253 = vpack.c.b16 %v1129, %v1127
  %v1254 = vpack.c.b16 %v1132, %v1130
  %v1255 = vpack.c.b16 %v1133, %v1131
  %v1256 = vpack.c.b16 %v1136, %v1134
  %v1257 = vpack.c.b16 %v1137, %v1135
  %v1258 = vpack.c.b16 %v1140, %v1138
  %v1259 = vpack.c.b16 %v1141, %v1139
  %v1260 = vpack.c.b16 %v1144, %v1142
  %v1261 = vpack.c.b16 %v1145, %v1143
  %v1262 = vpack.c.b16 %v1148, %v1146
  %v1263 = vpack.c.b16 %v1149, %v1147
  %v1264 = vpack.c.b16 %v1152, %v1150
  %v1265 = vpack.c.b16 %v1153, %v1151
  %v1266 = vpack.c.b16 %v1156, %v1154
  %v1267 = vpack.c.b16 %v1157, %v1155
  %v1268 = vpack.c.b16 %v1160, %v1158
  %v1269 = vpack.c.b16 %v1161, %v1159
  %v1270 = vpack.c.b16 %v1164, %v1162
  %v1271 = vpack.c.b16 %v1165, %v1163
  %v1272 = vpack.c.b16 %v1168, %v1166
  %v1273 = vpack.c.b16 %v1169, %v1167
  %v1274 = vpack.c.b16 %v1172, %v1170
  %v1275 = vpack.c.b16 %v1173, %v1171
  %v1276 = vpack.c.b16 %v1176, %v1174
  %v1277 = vpack.c.b16 %v1177, %v1175
  %v1278 = vpack.c.b16 %v1180, %v1178
  %v1279 = vpack.c.b16 %v1181, %v1179
  %v1280 = vpack.c.b16 %v1184, %v1182
  %v1281 = vpack.c.b16 %v1185, %v1183
  %v1282 = vpack.c.b16 %v1188, %v1186
  %v1283 = vpack.c.b16 %v1189, %v1187
  %v1284 = vpack.c.b16 %v1192, %v1190
  %v1285 = vpack.c.b16 %v1193, %v1191
  %v1286 = vpack.c.b16 %v1196, %v1194
  %v1287 = vpack.c.b16 %v1197, %v1195
  %v1288 = vpack.c.b16 %v1200, %v1198
  %v1289 = vpack.c.b16 %v1201, %v1199
  %v1290 = vpack.c.b16 %v1204, %v1202
  %v1291 = vpack.c.b16 %v1205, %v1203
  %v1292 = vpack.c.b16 %v1208, %v1206
  %v1293 = vpack.c.b16 %v1209, %v1207
  %v1294 = vpack.c.b16 %v1212, %v1210
  %v1295 = vpack.c.b16 %v1213, %v1211
  %v1296 = vpack.c.b16 %v1216, %v1214
  %v1297 = vpack.c.b16 %v1217, %v1215
  %v1298 = vpack.c.b16 %v1220, %v1218
  %v1299 = vpack.c.b16 %v1221, %v1219
  %v1300 = vpack.c.b16 %v1224, %v1222
  %v1301 = vpack.c.b16 %v1225, %v1223
  %v1302 = vpack.c.b16 %v1228, %v1226
  %v1303 = vpack.c.b16 %v1229, %v1227
  %v1304 = vpack.c.b16 %v1232, %v1230
  %v1305 = vpack.c.b16 %v1233, %v1231
  %v1306 = vpack.c.b16 %v1236, %v1234
  %v1307 = vpack.c.b16 %v1237, %v1235
  %v1308 = vpack.c.b16 %v1240, %v1238
  %v1309 = vpack.c.b16 %v1241, %v1239
  %v1310 = vpack.c.b16 %v1244, %v1242
  %v1311 = vpack.c.b16 %v1245, %v1243
  %v1312 = vpack.c.b16 %v1248, %v1246
  %v1313 = vpack.c.b16 %v1249, %v1247
  %1378 = vmatpush.bf16.msra.mxu0 %v1264
  %1379 = vmatpush.bf16.msra.mxu0 %v1262
  %1380 = vmatpush.bf16.msra.mxu0 %v1260
  %1381 = vmatpush.bf16.msra.mxu0 %v1258
  %1382 = vmatpush.bf16.msra.mxu0 %v1256
  %1383 = vmatpush.bf16.msra.mxu0 %v1254
  %1384 = vmatpush.bf16.msra.mxu0 %v1252
  %1385 = vmatpush.bf16.msra.mxu0 %v1250
  %1386 = vmatmul.bf16.gmra.mxu0 %v984
  %v1387 = vpop.f32.mrf.mxu0
  %v1388 = vadd.f32 %v1054, %v1387
  %v1389 = vpop.f32.mrf.mxu0
  %1390 = vdwg.mxu0
  %1391 = vmatpush.bf16.msra.mxu0 %v1280
  %1392 = vmatpush.bf16.msra.mxu0 %v1278
  %1393 = vmatpush.bf16.msra.mxu0 %v1276
  %1394 = vmatpush.bf16.msra.mxu0 %v1274
  %1395 = vmatpush.bf16.msra.mxu0 %v1272
  %1396 = vmatpush.bf16.msra.mxu0 %v1270
  %1397 = vmatpush.bf16.msra.mxu0 %v1268
  %1398 = vmatpush.bf16.msra.mxu0 %v1266
  %1399 = vmatmul.bf16.gmra.mxu0 %v985
  %v1400 = vpop.f32.mrf.mxu0
  %v1401 = vadd.f32 %v1388, %v1400
  %v1402 = vpop.f32.mrf.mxu0
  %1403 = vdwg.mxu0
  %1404 = vmatpush.bf16.msra.mxu0 %v1296
  %1405 = vmatpush.bf16.msra.mxu0 %v1294
  %1406 = vmatpush.bf16.msra.mxu0 %v1292
  %1407 = vmatpush.bf16.msra.mxu0 %v1290
  %1408 = vmatpush.bf16.msra.mxu0 %v1288
  %1409 = vmatpush.bf16.msra.mxu0 %v1286
  %1410 = vmatpush.bf16.msra.mxu0 %v1284
  %1411 = vmatpush.bf16.msra.mxu0 %v1282
  %1412 = vmatmul.bf16.gmra.mxu0 %v986
  %v1413 = vpop.f32.mrf.mxu0
  %v1414 = vadd.f32 %v1401, %v1413
  %v1415 = vpop.f32.mrf.mxu0
  %1416 = vdwg.mxu0
  %1417 = vmatpush.bf16.msra.mxu0 %v1312
  %1418 = vmatpush.bf16.msra.mxu0 %v1310
  %1419 = vmatpush.bf16.msra.mxu0 %v1308
  %1420 = vmatpush.bf16.msra.mxu0 %v1306
  %1421 = vmatpush.bf16.msra.mxu0 %v1304
  %1422 = vmatpush.bf16.msra.mxu0 %v1302
  %1423 = vmatpush.bf16.msra.mxu0 %v1300
  %1424 = vmatpush.bf16.msra.mxu0 %v1298
  %1425 = vmatmul.bf16.gmra.mxu0 %v987
  %v1426 = vpop.f32.mrf.mxu0
  %v1427 = vadd.f32 %v1414, %v1426
  %v1428 = vpop.f32.mrf.mxu0
  %1429 = vdwg.mxu0
  %1430 = vmatpush.bf16.msra.mxu0 %v1265
  %1431 = vmatpush.bf16.msra.mxu0 %v1263
  %1432 = vmatpush.bf16.msra.mxu0 %v1261
  %1433 = vmatpush.bf16.msra.mxu0 %v1259
  %1434 = vmatpush.bf16.msra.mxu0 %v1257
  %1435 = vmatpush.bf16.msra.mxu0 %v1255
  %1436 = vmatpush.bf16.msra.mxu0 %v1253
  %1437 = vmatpush.bf16.msra.mxu0 %v1251
  %1438 = vmatmul.bf16.gmra.mxu0 %v984
  %v1439 = vpop.f32.mrf.mxu0
  %v1440 = vadd.f32 %v1055, %v1439
  %v1441 = vpop.f32.mrf.mxu0
  %1442 = vdwg.mxu0
  %1443 = vmatpush.bf16.msra.mxu0 %v1281
  %1444 = vmatpush.bf16.msra.mxu0 %v1279
  %1445 = vmatpush.bf16.msra.mxu0 %v1277
  %1446 = vmatpush.bf16.msra.mxu0 %v1275
  %1447 = vmatpush.bf16.msra.mxu0 %v1273
  %1448 = vmatpush.bf16.msra.mxu0 %v1271
  %1449 = vmatpush.bf16.msra.mxu0 %v1269
  %1450 = vmatpush.bf16.msra.mxu0 %v1267
  %1451 = vmatmul.bf16.gmra.mxu0 %v985
  %v1452 = vpop.f32.mrf.mxu0
  %v1453 = vadd.f32 %v1440, %v1452
  %v1454 = vpop.f32.mrf.mxu0
  %1455 = vdwg.mxu0
  %1456 = vmatpush.bf16.msra.mxu0 %v1297
  %1457 = vmatpush.bf16.msra.mxu0 %v1295
  %1458 = vmatpush.bf16.msra.mxu0 %v1293
  %1459 = vmatpush.bf16.msra.mxu0 %v1291
  %1460 = vmatpush.bf16.msra.mxu0 %v1289
  %1461 = vmatpush.bf16.msra.mxu0 %v1287
  %1462 = vmatpush.bf16.msra.mxu0 %v1285
  %1463 = vmatpush.bf16.msra.mxu0 %v1283
  %1464 = vmatmul.bf16.gmra.mxu0 %v986
  %v1465 = vpop.f32.mrf.mxu0
  %v1466 = vadd.f32 %v1453, %v1465
  %v1467 = vpop.f32.mrf.mxu0
  %1468 = vdwg.mxu0
  %1469 = vmatpush.bf16.msra.mxu0 %v1313
  %1470 = vmatpush.bf16.msra.mxu0 %v1311
  %1471 = vmatpush.bf16.msra.mxu0 %v1309
  %1472 = vmatpush.bf16.msra.mxu0 %v1307
  %1473 = vmatpush.bf16.msra.mxu0 %v1305
  %1474 = vmatpush.bf16.msra.mxu0 %v1303
  %1475 = vmatpush.bf16.msra.mxu0 %v1301
  %1476 = vmatpush.bf16.msra.mxu0 %v1299
  %1477 = vmatmul.bf16.gmra.mxu0 %v987
  %v1478 = vpop.f32.mrf.mxu0
  %v1479 = vadd.f32 %v1466, %v1478
  %v1480 = vpop.f32.mrf.mxu0
  %1481 = vdwg.mxu0
  %v1482 = vmax.f32 %v1427, 0.0
  %v1483 = vmax.f32 %v1479, 0.0
  %v1484 = vld [vmem:[%s5] sm:$0x3]
  %v1485 = vunpack.c.l.bf16 %v1484
  %v1487 = vperm.slane %v1485, 0
  %v1488 = vperm.slane %v1485, 2
  %v1491 = vperm.slane %v1487, 0
  %v1492 = vperm.slane %v1488, 0
  %v1493 = vmul.f32 %v1482, %v1491
  %v1494 = vmul.f32 %v1483, %v1492
  %vm1495 = vcmask 1041408
  %v1496 = vsel %vm1495, %v1493, 0.0
  %v1497 = vsel %vm1495, %v1494, 0.0
  %v1498 = vadd.f32 %v1496, %v1497
  %1499 = vadd.xlane.f32.xlu0 %v1498
  %v1500 = vpop.xlane.xlu0 %1499
  %v1501 = vld [vmem:[#allocation2] sm:$0x1]
  %v1503 = vperm.slane %v1501, 0
  %v1505 = vadd.f32 %v1500, %v1503
  %vm1506 = vcmask 1024
  %v1507 = vsel %vm1506, %v1505, -inf
  %v1508 = vrot.slane %v1507, 4
  %v1509 = vmax.f32 %v1507, %v1508
  %v1510 = vrot.slane %v1509, 2
  %v1511 = vmax.f32 %v1509, %v1510
  %v1512 = vrot.slane %v1511, 1
  %v1513 = vmax.f32 %v1511, %v1512
  %v1514 = vsub.f32 %v1505, %v1513
  %v1515 = vmul.f32 %v1514, 1.442695
  %v1516 = vpow.pop %v1515
  %v1517 = vsel %vm1506, %v1516, 0.0
  %v1518 = vrot.slane %v1517, 4
  %v1519 = vadd.f32 %v1517, %v1518
  %v1520 = vrot.slane %v1519, 2
  %v1521 = vadd.f32 %v1519, %v1520
  %v1522 = vrot.slane %v1521, 1
  %v1523 = vadd.f32 %v1521, %v1522
  %v1524 = vrcp.pop %v1523
  %v1525 = vmul.f32 %v1523, %v1524
  %v1526 = vsub.f32 1.0, %v1525
  %v1527 = vmul.f32 %v1524, %v1526
  %v1528 = vadd.f32 %v1524, %v1527
  %vm1529 = vweird.f32 %v1523
  %vm1530 = vweird.f32 %v1524
  %vm1531 = vmor %vm1529, %vm1530
  %v1532 = vsel %vm1531, %v1524, %v1528
  %v1533 = vand.u32 2147483647, %v1523
  %vm1534 = vcmp.eq.f32.partialorder %v1533, 8.507059e+37
  %v1535 = vand.u32 %v1523, 2147483648
  %v1536 = vor.u32 1.1754944e-38, %v1535
  %v1537 = vsel %vm1534, %v1536, %v1532
  %v1538 = vmul.f32 %v1516, %v1537
  %1539 = vst.msk [vmem:[%s7] sm:$0x3] %vm1506, %v1538
  // Predicated region
  $region30: #{coughnet_nano_forward.9} parent=0 // pred_check
    _
  $region31: #{coughnet_nano_forward.9} parent=0 // pred_check_branch
    %1541 = sbr.rel (0) target = $region33
  $region32: #{coughnet_nano_forward.9} parent=0 // pred_region
    _
  $region33: #{coughnet_nano_forward.9} parent=0 // pred_fallthru
    _
  // Predicated region
  $region34: #{coughnet_nano_forward.9} parent=0 // pred_check
    _
  $region35: #{coughnet_nano_forward.9} parent=0 // pred_check_branch
    %1543 = sbr.rel (0) target = $region37
  $region36: #{coughnet_nano_forward.9} parent=0 // pred_region
    _
  $region37: #{coughnet_nano_forward.9} parent=0 // pred_fallthru
    _

</llo_original>
